<compile_context>
chip_gen: v7x
topology: tpu7x:2x2x1
jax: 0.10.0
libtpu: 0.0.40
codegen_flags: <defaults>
</compile_context>

<pallas_src>
import functools

import jax
import jax.numpy as jnp
from jax.experimental import pallas as pl
from jax.experimental.pallas import tpu as pltpu

C_IN, STEM_C, EXP_C, SE_RED, HEAD_C = 3, 16, 64, 4, 64
HIDDEN, NUM_CLASSES = 32, 3
LANE = 128


# ----------------------------- weight slab layout ------------------------------


def _round8(n):
    return -(-n // 8) * 8


_SLAB_LAYOUT = [
    ("stem_w", 9 * C_IN, STEM_C), ("stem_b", 1, STEM_C),
    ("exp_w", STEM_C, EXP_C),     ("exp_b", 1, EXP_C),
    ("dw_w", 9, EXP_C),           ("dw_b", 1, EXP_C),
    ("se_rwT", SE_RED, EXP_C),    ("se_rb", 1, SE_RED),
    ("se_ew", SE_RED, EXP_C),     ("se_eb", 1, EXP_C),
    ("proj_w", EXP_C, STEM_C),    ("proj_b", 1, STEM_C),
    ("hc_w", STEM_C, HEAD_C),     ("hc_b", 1, HEAD_C),
    ("fc1_w", HEAD_C, HIDDEN),    ("fc1_b", 1, HIDDEN),
    ("fc2_w", HIDDEN, LANE),      ("fc2_b", 1, LANE),
]
_SLAB = {}
_off = 0
for _name, _r, _c in _SLAB_LAYOUT:
    _SLAB[_name] = (_off, _r, _c)   # (row offset [8-aligned], rows, cols)
    _off += _round8(_r)
SLAB_ROWS = _round8(_off)


# ------------------------------ JAX glue -------------------------------------


def _tf_same_pad(size, k, s):
    out = -(-size // s)
    pad = max((out - 1) * s + k - size, 0)
    return pad // 2, pad - pad // 2


def im2col(x, kh, kw, stride):
    """x: (N, H, W, C) NHWC, TF-'same' padding -> patches (N, Ho, Wo, kh*kw, C)."""
    N, H, W, C = x.shape
    pt, pb = _tf_same_pad(H, kh, stride)
    pleft, pright = _tf_same_pad(W, kw, stride)
    xp = jnp.pad(x, ((0, 0), (pt, pb), (pleft, pright), (0, 0)))
    Hp, Wp = xp.shape[1], xp.shape[2]
    Ho = (Hp - kh) // stride + 1
    Wo = (Wp - kw) // stride + 1
    cols = []
    for i in range(kh):
        for j in range(kw):
            cols.append(
                xp[:, i : i + (Ho - 1) * stride + 1 : stride,
                       j : j + (Wo - 1) * stride + 1 : stride, :]
            )
    return jnp.stack(cols, axis=3), Ho, Wo


def fold_bn(w, bn, eps=1e-3):
    """Fold BatchNorm (gamma, beta, mean, var) into matmul weight (K, Cout)."""
    gamma, beta, mean, var = bn
    scale = gamma / jnp.sqrt(var + eps)
    return w * scale[None, :], beta - mean * scale


def prepare_weights(params):
    """Fold BN and pack all weights/biases into one (SLAB_ROWS, 128) f32 slab.

    Called ONCE (weights are static across forward passes) -> the kernel sees a
    single resident weight input instead of 18 tiny DMA streams.
    """
    stem_w = jnp.transpose(params["stem_w"], (2, 3, 1, 0)).reshape(9 * C_IN, STEM_C)
    stem_w, stem_b = fold_bn(stem_w, params["stem_bn"])
    exp_w, exp_b = fold_bn(params["exp_w"], params["exp_bn"])
    dw_w, dw_b = fold_bn(params["dw_w"], params["dw_bn"])
    proj_w, proj_b = fold_bn(params["proj_w"], params["proj_bn"])
    hc_w, hc_b = fold_bn(params["headc_w"], params["headc_bn"])

    # fc2 pre-padded to 128 output lanes: zero weights, -1e30 bias in the pad lanes
    # so the in-kernel 128-wide log-softmax ignores them (lane-dense output store).
    fc2_w = jnp.zeros((HIDDEN, LANE), jnp.float32).at[:, :NUM_CLASSES].set(
        params["fc2_w"])
    fc2_b = jnp.full((1, LANE), -1e30, jnp.float32).at[:, :NUM_CLASSES].set(
        params["fc2_b"].reshape(1, NUM_CLASSES))

    entries = {
        "stem_w": stem_w, "stem_b": stem_b.reshape(1, STEM_C),
        "exp_w": exp_w,   "exp_b": exp_b.reshape(1, EXP_C),
        "dw_w": dw_w,     "dw_b": dw_b.reshape(1, EXP_C),
        "se_rwT": params["se_r_w"].T,                      # stored (SE_RED, EXP_C)
        "se_rb": params["se_r_b"].reshape(1, SE_RED),
        "se_ew": params["se_e_w"],                         # (SE_RED, EXP_C)
        "se_eb": params["se_e_b"].reshape(1, EXP_C),
        "proj_w": proj_w, "proj_b": proj_b.reshape(1, STEM_C),
        "hc_w": hc_w,     "hc_b": hc_b.reshape(1, HEAD_C),
        "fc1_w": params["fc1_w"], "fc1_b": params["fc1_b"].reshape(1, HIDDEN),
        "fc2_w": fc2_w,   "fc2_b": fc2_b,
    }
    slab = jnp.zeros((SLAB_ROWS, LANE), jnp.float32)
    for name, (off, r, c) in _SLAB.items():
        slab = slab.at[off:off + r, :c].set(entries[name].astype(jnp.float32))
    return slab


# ----------------------------- fused Pallas kernel ----------------------------


def _fused_kernel(Hf, Wf, Wp, nb, p_ref, w_ref, o_ref, ep_ref):
    """Whole forward pass; nb samples are folded into the matmul rows."""
    f32, bf16 = jnp.float32, jnp.bfloat16
    sig = jax.nn.sigmoid
    HW = Hf * Wf
    rows = nb * HW

    def wslice(name):
        off, r, c = _SLAB[name]
        return w_ref[off:off + r, :c]

    def mxu(a, name):
        # bf16 MXU operands, f32 accumulation, f32 bias add.
        return jnp.dot(a.astype(bf16), wslice(name + "_w").astype(bf16),
                       preferred_element_type=f32) + wslice(name + "_b")

    # --- stem 3x3/s2 conv (im2col matmul) + folded BN + swish ---
    h = mxu(p_ref[0], "stem")
    h = h * sig(h)                                        # (rows, STEM_C)

    # --- MBConv expand 1x1 + BN + swish ---
    e = mxu(h, "exp")
    e = e * sig(e)                                        # (rows, EXP_C)

    # --- depthwise 3x3/s1 'same': halo scratch, ring-only zero, aligned taps ---
    zrow = jnp.zeros((nb, 1, Wp, EXP_C), f32)
    ep_ref[:, 0:1, :, :] = zrow                           # top halo row
    ep_ref[:, Hf + 1:Hf + 2, :, :] = zrow                 # bottom halo row
    zband = jnp.zeros((nb, Hf, 8, EXP_C), f32)
    ep_ref[:, 1:Hf + 1, 0:8, :] = zband                   # left 8-wide aligned band
    ep_ref[:, 1:Hf + 1, 8 + Wf:Wp, :] = zband             # right 8-wide aligned band
    ep_ref[:, 1:Hf + 1, 8:8 + Wf, :] = e.reshape(nb, Hf, Wf, EXP_C)   # interior

    wdw = wslice("dw_w")                                  # (9, EXP_C) f32
    acc = jnp.zeros((nb, Hf, Wf, EXP_C), f32)
    for di in range(3):
        base = ep_ref[:, di:di + Hf, :, :]                # aligned full-width read
        for dj in range(3):
            if dj == 1:
                tap = base[:, :, 8:8 + Wf, :]             # aligned centre window
            else:
                # +-1 column shift via static sublane roll (XLU), then aligned slice
                shifted = pltpu.roll(base, shift=Wp - (7 + dj), axis=2)
                tap = shifted[:, :, 0:Wf, :]
            acc = acc + tap * wdw[3 * di + dj].reshape(1, 1, 1, EXP_C)
    d = acc.reshape(rows, EXP_C) + wslice("dw_b")
    d = d * sig(d)                                        # (rows, EXP_C)

    # --- squeeze-excite: GAP -> reduce (swish) -> expand (sigmoid) -> scale ---
    # M=1-per-sample matmuls done on the VPU (broadcast-mul + reduce), not the MXU.
    d3 = d.reshape(nb, HW, EXP_C)
    s = jnp.mean(d3, axis=1)                              # (nb, EXP_C)
    s = jnp.sum(s[:, None, :] * wslice("se_rwT")[None, :, :], axis=2) \
        + wslice("se_rb")                                 # (nb, SE_RED)
    s = s * sig(s)
    s = jnp.sum(s[:, :, None] * wslice("se_ew")[None, :, :], axis=1) \
        + wslice("se_eb")                                 # (nb, EXP_C)
    d = (d3 * sig(s)[:, None, :]).reshape(rows, EXP_C)

    # --- project 1x1 + BN (no act) + residual (drop_connect eval = identity) ---
    o = mxu(d, "proj") + h                                # (rows, STEM_C)

    # --- 1x1 head conv + BN + swish ---
    hh = mxu(o, "hc")
    hh = hh * sig(hh)                                     # (rows, HEAD_C)

    # --- global average pool ---
    feat = jnp.mean(hh.reshape(nb, HW, HEAD_C), axis=1)   # (nb, HEAD_C)

    # --- replaced _fc: Linear -> ReLU -> Dropout(p=0.5, eval=identity) -> Linear
    #     -> LogSoftmax(dim=1); computed 128 lanes wide (pad logits ~ -1e30) ---
    z = jnp.maximum(mxu(feat, "fc1"), 0.0)                # (nb, HIDDEN)
    logits = mxu(z, "fc2")                                # (nb, 128)
    m = jnp.max(logits, axis=1, keepdims=True)
    lse = m + jnp.log(jnp.sum(jnp.exp(logits - m), axis=1, keepdims=True))
    o_ref[0] = logits - lse                               # lane-dense unmasked store


# ------------------------------ model wrapper ---------------------------------


def init_params(key):
    ks = jax.random.split(key, 24)

    def nrm(k, shape, s=0.1):
        return s * jax.random.normal(k, shape, jnp.float32)

    def bn(k, c):
        k1, k2, k3, k4 = jax.random.split(k, 4)
        return (
            1.0 + 0.1 * jax.random.normal(k1, (c,), jnp.float32),
            0.05 * jax.random.normal(k2, (c,), jnp.float32),
            0.05 * jax.random.normal(k3, (c,), jnp.float32),
            1.0 + 0.1 * jax.random.uniform(k4, (c,), jnp.float32),
        )

    return {
        "stem_w": nrm(ks[0], (STEM_C, C_IN, 3, 3)),          # torch conv layout
        "stem_bn": bn(ks[1], STEM_C),
        "exp_w": nrm(ks[2], (STEM_C, EXP_C)),                # 1x1 conv as (Cin, Cout)
        "exp_bn": bn(ks[3], EXP_C),
        "dw_w": nrm(ks[4], (9, EXP_C)),                      # depthwise 3x3 as (9, C)
        "dw_bn": bn(ks[5], EXP_C),
        "se_r_w": nrm(ks[6], (EXP_C, SE_RED)),
        "se_r_b": nrm(ks[7], (SE_RED,)),
        "se_e_w": nrm(ks[8], (SE_RED, EXP_C)),
        "se_e_b": nrm(ks[9], (EXP_C,)),
        "proj_w": nrm(ks[10], (EXP_C, STEM_C)),
        "proj_bn": bn(ks[11], STEM_C),
        "headc_w": nrm(ks[12], (STEM_C, HEAD_C)),
        "headc_bn": bn(ks[13], HEAD_C),
        "fc1_w": nrm(ks[14], (HEAD_C, HIDDEN)),
        "fc1_b": nrm(ks[15], (HIDDEN,)),
        "fc2_w": nrm(ks[16], (HIDDEN, NUM_CLASSES)),
        "fc2_b": nrm(ks[17], (NUM_CLASSES,)),
    }


def efficientnet_forward(x_nchw, w_slab, *, grid_steps=1):
    """x_nchw: (N, 3, H, W); w_slab: packed weights from prepare_weights().

    grid_steps=1 folds the whole batch into one kernel step (best on 1-TC v5e/v6e);
    grid_steps=2 splits the batch across both v7x TensorCores.
    """
    x = jnp.transpose(x_nchw, (0, 2, 3, 1)).astype(jnp.float32)   # NCHW -> NHWC
    N = x.shape[0]

    # Stem im2col (Cin=3, tiny) is layout glue; all compute runs in the kernel.
    # TODO(synk): fold the stem im2col / NCHW->NHWC transpose into the kernel too.
    p, Hf, Wf = im2col(x, 3, 3, 2)                        # (N, Hf, Wf, 9, C_IN)
    HW = Hf * Wf
    assert Wf % 8 == 0, Wf
    if N % grid_steps != 0:
        grid_steps = 1
    G = grid_steps
    NB = N // G
    patches = p.reshape(G, NB * HW, 9 * C_IN).astype(jnp.float32)

    Wp = 8 + Wf + 8                                       # halo row: 8 | Wf | 8
    kernel = functools.partial(_fused_kernel, Hf, Wf, Wp, NB)

    out = pl.pallas_call(
        kernel,
        out_shape=jax.ShapeDtypeStruct((G, NB, LANE), jnp.float32),
        grid=(G,),
        in_specs=[
            pl.BlockSpec((1, NB * HW, 9 * C_IN), lambda g: (g, 0, 0)),
            pl.BlockSpec((SLAB_ROWS, LANE), lambda g: (0, 0)),   # resident weights
        ],
        out_specs=pl.BlockSpec((1, NB, LANE), lambda g: (g, 0, 0)),
        scratch_shapes=[pltpu.VMEM((NB, Hf + 2, Wp, EXP_C), jnp.float32)],
        compiler_params=pltpu.CompilerParams(
            dimension_semantics=("parallel",),            # grid_steps=2 -> both v7x TCs
        ),
    )(patches, w_slab)

    return out.reshape(N, LANE)[:, :NUM_CLASSES]


if __name__ == "__main__":
    key = jax.random.PRNGKey(0)
    kx, kp = jax.random.split(key)
    x = jax.random.normal(kx, (2, 3, 32, 32), jnp.float32)   # NCHW, like PyTorch
    params = init_params(kp)
    w_slab = prepare_weights(params)                         # packed once (static weights)

    out = jax.jit(efficientnet_forward)(x, w_slab)
    out = jax.block_until_ready(out)

    assert out.shape == (2, NUM_CLASSES), out.shape
    # log-softmax rows must exponentiate to ~1
    row_sums = jnp.exp(out).sum(axis=1)
    assert bool(jnp.all(jnp.abs(row_sums - 1.0) < 1e-4)), row_sums
    print("KERNEL_OK")
</pallas_src>

<mosaic_0001>
module attributes {stable_mosaic.version = 11 : i64} {
  func.func @_fused_kernel(%arg0: i32, %arg1: memref<1x512x27xf32, #tpu.memory_space<vmem>>, %arg2: memref<328x128xf32, #tpu.memory_space<vmem>>, %arg3: memref<1x2x128xf32, #tpu.memory_space<vmem>>, %arg4: memref<2x18x32x64xf32, #tpu.memory_space<vmem>>) attributes {dimension_semantics = [#tpu.dimension_semantics<parallel>], iteration_bounds = array<i64: 1>, scalar_prefetch = 0 : i64, scratch_operands = 1 : i64, tpu.core_type = #tpu.core_type<tc>, window_params = [{transform_indices = @transform_0, window_bounds = array<i64: 1, 512, 27>}, {pipeline_mode = #tpu.pipeline_mode<synchronous>, transform_indices = @transform_1, window_bounds = array<i64: 328, 128>}, {transform_indices = @transform_2, window_bounds = array<i64: 1, 2, 128>}]} {
    %c0 = arith.constant 0 : index
    %c0_0 = arith.constant 0 : index
    %c0_1 = arith.constant 0 : index
    %0 = vector.load %arg1[%c0, %c0_0, %c0_1] : memref<1x512x27xf32, #tpu.memory_space<vmem>>, vector<1x512x27xf32>
    %1 = vector.shape_cast %0 : vector<1x512x27xf32> to vector<512x27xf32>
    %2 = arith.truncf %1 : vector<512x27xf32> to vector<512x27xbf16>
    %c0_2 = arith.constant 0 : index
    %c0_3 = arith.constant 0 : index
    %3 = vector.load %arg2[%c0_2, %c0_3] : memref<328x128xf32, #tpu.memory_space<vmem>>, vector<27x16xf32>
    %4 = arith.truncf %3 : vector<27x16xf32> to vector<27x16xbf16>
    %cst = arith.constant dense<0.000000e+00> : vector<512x16xf32>
    %5 = tpu.matmul %2, %4, %cst {dimension_numbers = #tpu.dot_dimension_numbers<[1], [0], [0], [1], [0, 0, 1, 1], [], []>} : vector<512x27xbf16>, vector<27x16xbf16>, vector<512x16xf32> -> vector<512x16xf32>
    %c32 = arith.constant 32 : index
    %c0_4 = arith.constant 0 : index
    %6 = vector.load %arg2[%c32, %c0_4] : memref<328x128xf32, #tpu.memory_space<vmem>>, vector<1x16xf32>
    %7 = vector.broadcast %6 : vector<1x16xf32> to vector<512x16xf32>
    %8 = arith.addf %5, %7 : vector<512x16xf32>
    %9 = arith.negf %8 : vector<512x16xf32>
    %10 = math.exp %9 : vector<512x16xf32>
    %cst_5 = arith.constant 1.000000e+00 : f32
    %11 = vector.broadcast %cst_5 : f32 to vector<512x16xf32>
    %12 = arith.addf %11, %10 : vector<512x16xf32>
    %13 = arith.divf %11, %12 : vector<512x16xf32>
    %14 = arith.mulf %8, %13 : vector<512x16xf32>
    %15 = arith.truncf %14 : vector<512x16xf32> to vector<512x16xbf16>
    %c40 = arith.constant 40 : index
    %c0_6 = arith.constant 0 : index
    %16 = vector.load %arg2[%c40, %c0_6] : memref<328x128xf32, #tpu.memory_space<vmem>>, vector<16x64xf32>
    %17 = arith.truncf %16 : vector<16x64xf32> to vector<16x64xbf16>
    %cst_7 = arith.constant dense<0.000000e+00> : vector<512x64xf32>
    %18 = tpu.matmul %15, %17, %cst_7 {dimension_numbers = #tpu.dot_dimension_numbers<[1], [0], [0], [1], [0, 0, 1, 1], [], []>} : vector<512x16xbf16>, vector<16x64xbf16>, vector<512x64xf32> -> vector<512x64xf32>
    %c56 = arith.constant 56 : index
    %c0_8 = arith.constant 0 : index
    %19 = vector.load %arg2[%c56, %c0_8] : memref<328x128xf32, #tpu.memory_space<vmem>>, vector<1x64xf32>
    %20 = vector.broadcast %19 : vector<1x64xf32> to vector<512x64xf32>
    %21 = arith.addf %18, %20 : vector<512x64xf32>
    %22 = arith.negf %21 : vector<512x64xf32>
    %23 = math.exp %22 : vector<512x64xf32>
    %cst_9 = arith.constant 1.000000e+00 : f32
    %24 = vector.broadcast %cst_9 : f32 to vector<512x64xf32>
    %25 = arith.addf %24, %23 : vector<512x64xf32>
    %26 = arith.divf %24, %25 : vector<512x64xf32>
    %27 = arith.mulf %21, %26 : vector<512x64xf32>
    %cst_10 = arith.constant 0.000000e+00 : f32
    %28 = vector.broadcast %cst_10 : f32 to vector<2x1x32x64xf32>
    %c0_11 = arith.constant 0 : index
    %c0_12 = arith.constant 0 : index
    %c0_13 = arith.constant 0 : index
    %c0_14 = arith.constant 0 : index
    %29 = vector.load %arg4[%c0_11, %c0_12, %c0_13, %c0_14] : memref<2x18x32x64xf32, #tpu.memory_space<vmem>>, vector<2x1x32x64xf32>
    tpu.vector_store %arg4[%c0_11, %c0_12, %c0_13, %c0_14], %28 {strides = array<i32>} : memref<2x18x32x64xf32, #tpu.memory_space<vmem>>, vector<2x1x32x64xf32>,
    %c0_15 = arith.constant 0 : index
    %c17 = arith.constant 17 : index
    %c0_16 = arith.constant 0 : index
    %c0_17 = arith.constant 0 : index
    %30 = vector.load %arg4[%c0_15, %c17, %c0_16, %c0_17] : memref<2x18x32x64xf32, #tpu.memory_space<vmem>>, vector<2x1x32x64xf32>
    tpu.vector_store %arg4[%c0_15, %c17, %c0_16, %c0_17], %28 {strides = array<i32>} : memref<2x18x32x64xf32, #tpu.memory_space<vmem>>, vector<2x1x32x64xf32>,
    %cst_18 = arith.constant 0.000000e+00 : f32
    %31 = vector.broadcast %cst_18 : f32 to vector<2x16x8x64xf32>
    %c0_19 = arith.constant 0 : index
    %c1 = arith.constant 1 : index
    %c0_20 = arith.constant 0 : index
    %c0_21 = arith.constant 0 : index
    %32 = vector.load %arg4[%c0_19, %c1, %c0_20, %c0_21] : memref<2x18x32x64xf32, #tpu.memory_space<vmem>>, vector<2x16x8x64xf32>
    tpu.vector_store %arg4[%c0_19, %c1, %c0_20, %c0_21], %31 {strides = array<i32>} : memref<2x18x32x64xf32, #tpu.memory_space<vmem>>, vector<2x16x8x64xf32>,
    %c0_22 = arith.constant 0 : index
    %c1_23 = arith.constant 1 : index
    %c24 = arith.constant 24 : index
    %c0_24 = arith.constant 0 : index
    %33 = vector.load %arg4[%c0_22, %c1_23, %c24, %c0_24] : memref<2x18x32x64xf32, #tpu.memory_space<vmem>>, vector<2x16x8x64xf32>
    tpu.vector_store %arg4[%c0_22, %c1_23, %c24, %c0_24], %31 {strides = array<i32>} : memref<2x18x32x64xf32, #tpu.memory_space<vmem>>, vector<2x16x8x64xf32>,
    %34 = vector.shape_cast %27 : vector<512x64xf32> to vector<2x16x16x64xf32>
    %c0_25 = arith.constant 0 : index
    %c1_26 = arith.constant 1 : index
    %c8 = arith.constant 8 : index
    %c0_27 = arith.constant 0 : index
    %35 = vector.load %arg4[%c0_25, %c1_26, %c8, %c0_27] : memref<2x18x32x64xf32, #tpu.memory_space<vmem>>, vector<2x16x16x64xf32>
    tpu.vector_store %arg4[%c0_25, %c1_26, %c8, %c0_27], %34 {strides = array<i32>} : memref<2x18x32x64xf32, #tpu.memory_space<vmem>>, vector<2x16x16x64xf32>,
    %c64 = arith.constant 64 : index
    %c0_28 = arith.constant 0 : index
    %36 = vector.load %arg2[%c64, %c0_28] : memref<328x128xf32, #tpu.memory_space<vmem>>, vector<9x64xf32>
    %cst_29 = arith.constant 0.000000e+00 : f32
    %37 = vector.broadcast %cst_29 : f32 to vector<2x16x16x64xf32>
    %c0_30 = arith.constant 0 : index
    %c0_31 = arith.constant 0 : index
    %c0_32 = arith.constant 0 : index
    %c0_33 = arith.constant 0 : index
    %38 = vector.load %arg4[%c0_30, %c0_31, %c0_32, %c0_33] : memref<2x18x32x64xf32, #tpu.memory_space<vmem>>, vector<2x16x32x64xf32>
    %c25_i32 = arith.constant 25 : i32
    %39 = tpu.dynamic_rotate %38 by %c25_i32 dim 2 : vector<2x16x32x64xf32>, i32 -> vector<2x16x32x64xf32>
    %40 = vector.extract_strided_slice %39 {offsets = [0, 0, 0, 0], sizes = [2, 16, 16, 64], strides = [1, 1, 1, 1]} : vector<2x16x32x64xf32> to vector<2x16x16x64xf32>
    %41 = vector.extract_strided_slice %36 {offsets = [0, 0], sizes = [1, 64], strides = [1, 1]} : vector<9x64xf32> to vector<1x64xf32>
    %42 = vector.shape_cast %41 : vector<1x64xf32> to vector<64xf32>
    %43 = vector.shape_cast %42 : vector<64xf32> to vector<1x1x1x64xf32>
    %44 = vector.broadcast %43 : vector<1x1x1x64xf32> to vector<2x16x16x64xf32>
    %45 = arith.mulf %40, %44 : vector<2x16x16x64xf32>
    %46 = arith.addf %37, %45 : vector<2x16x16x64xf32>
    %47 = vector.extract_strided_slice %38 {offsets = [0, 0, 8, 0], sizes = [2, 16, 16, 64], strides = [1, 1, 1, 1]} : vector<2x16x32x64xf32> to vector<2x16x16x64xf32>
    %48 = vector.extract_strided_slice %36 {offsets = [1, 0], sizes = [1, 64], strides = [1, 1]} : vector<9x64xf32> to vector<1x64xf32>
    %49 = vector.shape_cast %48 : vector<1x64xf32> to vector<64xf32>
    %50 = vector.shape_cast %49 : vector<64xf32> to vector<1x1x1x64xf32>
    %51 = vector.broadcast %50 : vector<1x1x1x64xf32> to vector<2x16x16x64xf32>
    %52 = arith.mulf %47, %51 : vector<2x16x16x64xf32>
    %53 = arith.addf %46, %52 : vector<2x16x16x64xf32>
    %c23_i32 = arith.constant 23 : i32
    %54 = tpu.dynamic_rotate %38 by %c23_i32 dim 2 : vector<2x16x32x64xf32>, i32 -> vector<2x16x32x64xf32>
    %55 = vector.extract_strided_slice %54 {offsets = [0, 0, 0, 0], sizes = [2, 16, 16, 64], strides = [1, 1, 1, 1]} : vector<2x16x32x64xf32> to vector<2x16x16x64xf32>
    %56 = vector.extract_strided_slice %36 {offsets = [2, 0], sizes = [1, 64], strides = [1, 1]} : vector<9x64xf32> to vector<1x64xf32>
    %57 = vector.shape_cast %56 : vector<1x64xf32> to vector<64xf32>
    %58 = vector.shape_cast %57 : vector<64xf32> to vector<1x1x1x64xf32>
    %59 = vector.broadcast %58 : vector<1x1x1x64xf32> to vector<2x16x16x64xf32>
    %60 = arith.mulf %55, %59 : vector<2x16x16x64xf32>
    %61 = arith.addf %53, %60 : vector<2x16x16x64xf32>
    %c0_34 = arith.constant 0 : index
    %c1_35 = arith.constant 1 : index
    %c0_36 = arith.constant 0 : index
    %c0_37 = arith.constant 0 : index
    %62 = vector.load %arg4[%c0_34, %c1_35, %c0_36, %c0_37] : memref<2x18x32x64xf32, #tpu.memory_space<vmem>>, vector<2x16x32x64xf32>
    %c25_i32_38 = arith.constant 25 : i32
    %63 = tpu.dynamic_rotate %62 by %c25_i32_38 dim 2 : vector<2x16x32x64xf32>, i32 -> vector<2x16x32x64xf32>
    %64 = vector.extract_strided_slice %63 {offsets = [0, 0, 0, 0], sizes = [2, 16, 16, 64], strides = [1, 1, 1, 1]} : vector<2x16x32x64xf32> to vector<2x16x16x64xf32>
    %65 = vector.extract_strided_slice %36 {offsets = [3, 0], sizes = [1, 64], strides = [1, 1]} : vector<9x64xf32> to vector<1x64xf32>
    %66 = vector.shape_cast %65 : vector<1x64xf32> to vector<64xf32>
    %67 = vector.shape_cast %66 : vector<64xf32> to vector<1x1x1x64xf32>
    %68 = vector.broadcast %67 : vector<1x1x1x64xf32> to vector<2x16x16x64xf32>
    %69 = arith.mulf %64, %68 : vector<2x16x16x64xf32>
    %70 = arith.addf %61, %69 : vector<2x16x16x64xf32>
    %71 = vector.extract_strided_slice %62 {offsets = [0, 0, 8, 0], sizes = [2, 16, 16, 64], strides = [1, 1, 1, 1]} : vector<2x16x32x64xf32> to vector<2x16x16x64xf32>
    %72 = vector.extract_strided_slice %36 {offsets = [4, 0], sizes = [1, 64], strides = [1, 1]} : vector<9x64xf32> to vector<1x64xf32>
    %73 = vector.shape_cast %72 : vector<1x64xf32> to vector<64xf32>
    %74 = vector.shape_cast %73 : vector<64xf32> to vector<1x1x1x64xf32>
    %75 = vector.broadcast %74 : vector<1x1x1x64xf32> to vector<2x16x16x64xf32>
    %76 = arith.mulf %71, %75 : vector<2x16x16x64xf32>
    %77 = arith.addf %70, %76 : vector<2x16x16x64xf32>
    %c23_i32_39 = arith.constant 23 : i32
    %78 = tpu.dynamic_rotate %62 by %c23_i32_39 dim 2 : vector<2x16x32x64xf32>, i32 -> vector<2x16x32x64xf32>
    %79 = vector.extract_strided_slice %78 {offsets = [0, 0, 0, 0], sizes = [2, 16, 16, 64], strides = [1, 1, 1, 1]} : vector<2x16x32x64xf32> to vector<2x16x16x64xf32>
    %80 = vector.extract_strided_slice %36 {offsets = [5, 0], sizes = [1, 64], strides = [1, 1]} : vector<9x64xf32> to vector<1x64xf32>
    %81 = vector.shape_cast %80 : vector<1x64xf32> to vector<64xf32>
    %82 = vector.shape_cast %81 : vector<64xf32> to vector<1x1x1x64xf32>
    %83 = vector.broadcast %82 : vector<1x1x1x64xf32> to vector<2x16x16x64xf32>
    %84 = arith.mulf %79, %83 : vector<2x16x16x64xf32>
    %85 = arith.addf %77, %84 : vector<2x16x16x64xf32>
    %c0_40 = arith.constant 0 : index
    %c2 = arith.constant 2 : index
    %c0_41 = arith.constant 0 : index
    %c0_42 = arith.constant 0 : index
    %86 = vector.load %arg4[%c0_40, %c2, %c0_41, %c0_42] : memref<2x18x32x64xf32, #tpu.memory_space<vmem>>, vector<2x16x32x64xf32>
    %c25_i32_43 = arith.constant 25 : i32
    %87 = tpu.dynamic_rotate %86 by %c25_i32_43 dim 2 : vector<2x16x32x64xf32>, i32 -> vector<2x16x32x64xf32>
    %88 = vector.extract_strided_slice %87 {offsets = [0, 0, 0, 0], sizes = [2, 16, 16, 64], strides = [1, 1, 1, 1]} : vector<2x16x32x64xf32> to vector<2x16x16x64xf32>
    %89 = vector.extract_strided_slice %36 {offsets = [6, 0], sizes = [1, 64], strides = [1, 1]} : vector<9x64xf32> to vector<1x64xf32>
    %90 = vector.shape_cast %89 : vector<1x64xf32> to vector<64xf32>
    %91 = vector.shape_cast %90 : vector<64xf32> to vector<1x1x1x64xf32>
    %92 = vector.broadcast %91 : vector<1x1x1x64xf32> to vector<2x16x16x64xf32>
    %93 = arith.mulf %88, %92 : vector<2x16x16x64xf32>
    %94 = arith.addf %85, %93 : vector<2x16x16x64xf32>
    %95 = vector.extract_strided_slice %86 {offsets = [0, 0, 8, 0], sizes = [2, 16, 16, 64], strides = [1, 1, 1, 1]} : vector<2x16x32x64xf32> to vector<2x16x16x64xf32>
    %96 = vector.extract_strided_slice %36 {offsets = [7, 0], sizes = [1, 64], strides = [1, 1]} : vector<9x64xf32> to vector<1x64xf32>
    %97 = vector.shape_cast %96 : vector<1x64xf32> to vector<64xf32>
    %98 = vector.shape_cast %97 : vector<64xf32> to vector<1x1x1x64xf32>
    %99 = vector.broadcast %98 : vector<1x1x1x64xf32> to vector<2x16x16x64xf32>
    %100 = arith.mulf %95, %99 : vector<2x16x16x64xf32>
    %101 = arith.addf %94, %100 : vector<2x16x16x64xf32>
    %c23_i32_44 = arith.constant 23 : i32
    %102 = tpu.dynamic_rotate %86 by %c23_i32_44 dim 2 : vector<2x16x32x64xf32>, i32 -> vector<2x16x32x64xf32>
    %103 = vector.extract_strided_slice %102 {offsets = [0, 0, 0, 0], sizes = [2, 16, 16, 64], strides = [1, 1, 1, 1]} : vector<2x16x32x64xf32> to vector<2x16x16x64xf32>
    %104 = vector.extract_strided_slice %36 {offsets = [8, 0], sizes = [1, 64], strides = [1, 1]} : vector<9x64xf32> to vector<1x64xf32>
    %105 = vector.shape_cast %104 : vector<1x64xf32> to vector<64xf32>
    %106 = vector.shape_cast %105 : vector<64xf32> to vector<1x1x1x64xf32>
    %107 = vector.broadcast %106 : vector<1x1x1x64xf32> to vector<2x16x16x64xf32>
    %108 = arith.mulf %103, %107 : vector<2x16x16x64xf32>
    %109 = arith.addf %101, %108 : vector<2x16x16x64xf32>
    %110 = vector.shape_cast %109 : vector<2x16x16x64xf32> to vector<512x64xf32>
    %c80 = arith.constant 80 : index
    %c0_45 = arith.constant 0 : index
    %111 = vector.load %arg2[%c80, %c0_45] : memref<328x128xf32, #tpu.memory_space<vmem>>, vector<1x64xf32>
    %112 = vector.broadcast %111 : vector<1x64xf32> to vector<512x64xf32>
    %113 = arith.addf %110, %112 : vector<512x64xf32>
    %114 = arith.negf %113 : vector<512x64xf32>
    %115 = math.exp %114 : vector<512x64xf32>
    %cst_46 = arith.constant 1.000000e+00 : f32
    %116 = vector.broadcast %cst_46 : f32 to vector<512x64xf32>
    %117 = arith.addf %116, %115 : vector<512x64xf32>
    %118 = arith.divf %116, %117 : vector<512x64xf32>
    %119 = arith.mulf %113, %118 : vector<512x64xf32>
    %120 = vector.shape_cast %119 : vector<512x64xf32> to vector<2x256x64xf32>
    %cst_47 = arith.constant dense<0.000000e+00> : vector<2x64xf32>
    %121 = vector.multi_reduction <add>, %120, %cst_47 [1] : vector<2x256x64xf32> to vector<2x64xf32>
    %cst_48 = arith.constant 2.560000e+02 : f32
    %122 = vector.broadcast %cst_48 : f32 to vector<2x64xf32>
    %123 = arith.divf %121, %122 : vector<2x64xf32>
    %124 = vector.shape_cast %123 : vector<2x64xf32> to vector<2x1x64xf32>
    %c88 = arith.constant 88 : index
    %c0_49 = arith.constant 0 : index
    %125 = vector.load %arg2[%c88, %c0_49] : memref<328x128xf32, #tpu.memory_space<vmem>>, vector<4x64xf32>
    %126 = vector.shape_cast %125 : vector<4x64xf32> to vector<1x4x64xf32>
    %127 = vector.broadcast %124 : vector<2x1x64xf32> to vector<2x4x64xf32>
    %128 = vector.broadcast %126 : vector<1x4x64xf32> to vector<2x4x64xf32>
    %129 = arith.mulf %127, %128 : vector<2x4x64xf32>
    %cst_50 = arith.constant dense<0.000000e+00> : vector<2x4xf32>
    %130 = vector.multi_reduction <add>, %129, %cst_50 [2] : vector<2x4x64xf32> to vector<2x4xf32>
    %c96 = arith.constant 96 : index
    %c0_51 = arith.constant 0 : index
    %131 = vector.load %arg2[%c96, %c0_51] : memref<328x128xf32, #tpu.memory_space<vmem>>, vector<1x4xf32>
    %132 = vector.broadcast %131 : vector<1x4xf32> to vector<2x4xf32>
    %133 = arith.addf %130, %132 : vector<2x4xf32>
    %134 = arith.negf %133 : vector<2x4xf32>
    %135 = math.exp %134 : vector<2x4xf32>
    %cst_52 = arith.constant 1.000000e+00 : f32
    %136 = vector.broadcast %cst_52 : f32 to vector<2x4xf32>
    %137 = arith.addf %136, %135 : vector<2x4xf32>
    %138 = arith.divf %136, %137 : vector<2x4xf32>
    %139 = arith.mulf %133, %138 : vector<2x4xf32>
    %140 = vector.shape_cast %139 : vector<2x4xf32> to vector<2x4x1xf32>
    %c104 = arith.constant 104 : index
    %c0_53 = arith.constant 0 : index
    %141 = vector.load %arg2[%c104, %c0_53] : memref<328x128xf32, #tpu.memory_space<vmem>>, vector<4x64xf32>
    %142 = vector.shape_cast %141 : vector<4x64xf32> to vector<1x4x64xf32>
    %143 = vector.broadcast %140 : vector<2x4x1xf32> to vector<2x4x64xf32>
    %144 = vector.broadcast %142 : vector<1x4x64xf32> to vector<2x4x64xf32>
    %145 = arith.mulf %143, %144 : vector<2x4x64xf32>
    %cst_54 = arith.constant dense<0.000000e+00> : vector<2x64xf32>
    %146 = vector.multi_reduction <add>, %145, %cst_54 [1] : vector<2x4x64xf32> to vector<2x64xf32>
    %c112 = arith.constant 112 : index
    %c0_55 = arith.constant 0 : index
    %147 = vector.load %arg2[%c112, %c0_55] : memref<328x128xf32, #tpu.memory_space<vmem>>, vector<1x64xf32>
    %148 = vector.broadcast %147 : vector<1x64xf32> to vector<2x64xf32>
    %149 = arith.addf %146, %148 : vector<2x64xf32>
    %150 = arith.negf %149 : vector<2x64xf32>
    %151 = math.exp %150 : vector<2x64xf32>
    %cst_56 = arith.constant 1.000000e+00 : f32
    %152 = vector.broadcast %cst_56 : f32 to vector<2x64xf32>
    %153 = arith.addf %152, %151 : vector<2x64xf32>
    %154 = arith.divf %152, %153 : vector<2x64xf32>
    %155 = vector.shape_cast %154 : vector<2x64xf32> to vector<2x1x64xf32>
    %156 = vector.broadcast %155 : vector<2x1x64xf32> to vector<2x256x64xf32>
    %157 = arith.mulf %120, %156 : vector<2x256x64xf32>
    %158 = vector.shape_cast %157 : vector<2x256x64xf32> to vector<512x64xf32>
    %159 = arith.truncf %158 : vector<512x64xf32> to vector<512x64xbf16>
    %c120 = arith.constant 120 : index
    %c0_57 = arith.constant 0 : index
    %160 = vector.load %arg2[%c120, %c0_57] : memref<328x128xf32, #tpu.memory_space<vmem>>, vector<64x16xf32>
    %161 = arith.truncf %160 : vector<64x16xf32> to vector<64x16xbf16>
    %cst_58 = arith.constant dense<0.000000e+00> : vector<512x16xf32>
    %162 = tpu.matmul %159, %161, %cst_58 {dimension_numbers = #tpu.dot_dimension_numbers<[1], [0], [0], [1], [0, 0, 1, 1], [], []>} : vector<512x64xbf16>, vector<64x16xbf16>, vector<512x16xf32> -> vector<512x16xf32>
    %c184 = arith.constant 184 : index
    %c0_59 = arith.constant 0 : index
    %163 = vector.load %arg2[%c184, %c0_59] : memref<328x128xf32, #tpu.memory_space<vmem>>, vector<1x16xf32>
    %164 = vector.broadcast %163 : vector<1x16xf32> to vector<512x16xf32>
    %165 = arith.addf %162, %164 : vector<512x16xf32>
    %166 = arith.addf %165, %14 : vector<512x16xf32>
    %167 = arith.truncf %166 : vector<512x16xf32> to vector<512x16xbf16>
    %c192 = arith.constant 192 : index
    %c0_60 = arith.constant 0 : index
    %168 = vector.load %arg2[%c192, %c0_60] : memref<328x128xf32, #tpu.memory_space<vmem>>, vector<16x64xf32>
    %169 = arith.truncf %168 : vector<16x64xf32> to vector<16x64xbf16>
    %cst_61 = arith.constant dense<0.000000e+00> : vector<512x64xf32>
    %170 = tpu.matmul %167, %169, %cst_61 {dimension_numbers = #tpu.dot_dimension_numbers<[1], [0], [0], [1], [0, 0, 1, 1], [], []>} : vector<512x16xbf16>, vector<16x64xbf16>, vector<512x64xf32> -> vector<512x64xf32>
    %c208 = arith.constant 208 : index
    %c0_62 = arith.constant 0 : index
    %171 = vector.load %arg2[%c208, %c0_62] : memref<328x128xf32, #tpu.memory_space<vmem>>, vector<1x64xf32>
    %172 = vector.broadcast %171 : vector<1x64xf32> to vector<512x64xf32>
    %173 = arith.addf %170, %172 : vector<512x64xf32>
    %174 = arith.negf %173 : vector<512x64xf32>
    %175 = math.exp %174 : vector<512x64xf32>
    %cst_63 = arith.constant 1.000000e+00 : f32
    %176 = vector.broadcast %cst_63 : f32 to vector<512x64xf32>
    %177 = arith.addf %176, %175 : vector<512x64xf32>
    %178 = arith.divf %176, %177 : vector<512x64xf32>
    %179 = arith.mulf %173, %178 : vector<512x64xf32>
    %180 = vector.shape_cast %179 : vector<512x64xf32> to vector<2x256x64xf32>
    %cst_64 = arith.constant dense<0.000000e+00> : vector<2x64xf32>
    %181 = vector.multi_reduction <add>, %180, %cst_64 [1] : vector<2x256x64xf32> to vector<2x64xf32>
    %cst_65 = arith.constant 2.560000e+02 : f32
    %182 = vector.broadcast %cst_65 : f32 to vector<2x64xf32>
    %183 = arith.divf %181, %182 : vector<2x64xf32>
    %184 = arith.truncf %183 : vector<2x64xf32> to vector<2x64xbf16>
    %c216 = arith.constant 216 : index
    %c0_66 = arith.constant 0 : index
    %185 = vector.load %arg2[%c216, %c0_66] : memref<328x128xf32, #tpu.memory_space<vmem>>, vector<64x32xf32>
    %186 = arith.truncf %185 : vector<64x32xf32> to vector<64x32xbf16>
    %cst_67 = arith.constant dense<0.000000e+00> : vector<2x32xf32>
    %187 = tpu.matmul %184, %186, %cst_67 {dimension_numbers = #tpu.dot_dimension_numbers<[1], [0], [0], [1], [0, 0, 1, 1], [], []>} : vector<2x64xbf16>, vector<64x32xbf16>, vector<2x32xf32> -> vector<2x32xf32>
    %c280 = arith.constant 280 : index
    %c0_68 = arith.constant 0 : index
    %188 = vector.load %arg2[%c280, %c0_68] : memref<328x128xf32, #tpu.memory_space<vmem>>, vector<1x32xf32>
    %189 = vector.broadcast %188 : vector<1x32xf32> to vector<2x32xf32>
    %190 = arith.addf %187, %189 : vector<2x32xf32>
    %cst_69 = arith.constant 0.000000e+00 : f32
    %191 = vector.broadcast %cst_69 : f32 to vector<2x32xf32>
    %192 = arith.maximumf %190, %191 : vector<2x32xf32>
    %193 = arith.truncf %192 : vector<2x32xf32> to vector<2x32xbf16>
    %c288 = arith.constant 288 : index
    %c0_70 = arith.constant 0 : index
    %194 = vector.load %arg2[%c288, %c0_70] : memref<328x128xf32, #tpu.memory_space<vmem>>, vector<32x128xf32>
    %195 = arith.truncf %194 : vector<32x128xf32> to vector<32x128xbf16>
    %cst_71 = arith.constant dense<0.000000e+00> : vector<2x128xf32>
    %196 = tpu.matmul %193, %195, %cst_71 {dimension_numbers = #tpu.dot_dimension_numbers<[1], [0], [0], [1], [0, 0, 1, 1], [], []>} : vector<2x32xbf16>, vector<32x128xbf16>, vector<2x128xf32> -> vector<2x128xf32>
    %c320 = arith.constant 320 : index
    %c0_72 = arith.constant 0 : index
    %197 = vector.load %arg2[%c320, %c0_72] : memref<328x128xf32, #tpu.memory_space<vmem>>, vector<1x128xf32>
    %198 = vector.broadcast %197 : vector<1x128xf32> to vector<2x128xf32>
    %199 = arith.addf %196, %198 : vector<2x128xf32>
    %cst_73 = arith.constant dense<0xFF800000> : vector<2xf32>
    %200 = vector.multi_reduction <maximumf>, %199, %cst_73 [1] : vector<2x128xf32> to vector<2xf32>
    %201 = vector.shape_cast %200 : vector<2xf32> to vector<2x1xf32>
    %202 = vector.broadcast %201 : vector<2x1xf32> to vector<2x128xf32>
    %203 = arith.subf %199, %202 : vector<2x128xf32>
    %204 = math.exp %203 : vector<2x128xf32>
    %cst_74 = arith.constant dense<0.000000e+00> : vector<2xf32>
    %205 = vector.multi_reduction <add>, %204, %cst_74 [1] : vector<2x128xf32> to vector<2xf32>
    %206 = vector.shape_cast %205 : vector<2xf32> to vector<2x1xf32>
    %207 = math.log %206 : vector<2x1xf32>
    %208 = arith.addf %201, %207 : vector<2x1xf32>
    %209 = vector.broadcast %208 : vector<2x1xf32> to vector<2x128xf32>
    %210 = arith.subf %199, %209 : vector<2x128xf32>
    %c0_75 = arith.constant 0 : index
    %c0_76 = arith.constant 0 : index
    %c0_77 = arith.constant 0 : index
    %211 = vector.load %arg3[%c0_75, %c0_76, %c0_77] : memref<1x2x128xf32, #tpu.memory_space<vmem>>, vector<1x2x128xf32>
    %212 = vector.shape_cast %211 : vector<1x2x128xf32> to vector<2x128xf32>
    %213 = vector.shape_cast %210 : vector<2x128xf32> to vector<1x2x128xf32>
    tpu.vector_store %arg3[%c0_75, %c0_76, %c0_77], %213 {strides = array<i32>} : memref<1x2x128xf32, #tpu.memory_space<vmem>>, vector<1x2x128xf32>,
    return
  }
  func.func @transform_0(%arg0: i32) -> (i32, i32, i32) {
    %c0_i32 = arith.constant 0 : i32
    %c0_i32_0 = arith.constant 0 : i32
    %c0_i32_1 = arith.constant 0 : i32
    return %arg0, %c0_i32, %c0_i32_0 : i32, i32, i32
  }
  func.func @transform_1(%arg0: i32) -> (i32, i32) {
    %c0_i32 = arith.constant 0 : i32
    %c0_i32_0 = arith.constant 0 : i32
    %c0_i32_1 = arith.constant 0 : i32
    return %c0_i32, %c0_i32_0 : i32, i32
  }
  func.func @transform_2(%arg0: i32) -> (i32, i32, i32) {
    %c0_i32 = arith.constant 0 : i32
    %c0_i32_0 = arith.constant 0 : i32
    %c0_i32_1 = arith.constant 0 : i32
    return %arg0, %c0_i32, %c0_i32_0 : i32, i32, i32
  }
}

</mosaic_0001>

<llo_original>
// kernel: efficientnet_forward.1
$region0: #{efficientnet_forward.1}
  #allocation0 [shape = 'u32[]', space=smem, size = 0x4, offset = 0x4, fixed_abs, tag = 'smem constant byte address 0x4 - core index']
  #allocation1 [shape = 'u32[144,128]{1,0:T(1,128)}', space=vmem, size = 0x12000, scoped, tag = 'internal scratch']
  #allocation2 [shape = 'f32[2,18,32,64]{3,2,1,0:T(8,128)}', space=vmem, size = 0x90000, scoped, tag = 'scratch operand']
  %s0 = inlined_call_operand.vmem [shape: f32[1,512,27], index: 0, kind: input, shape index: {}]
  %s1 = inlined_call_operand.vmem [shape: f32[328,128], index: 1, kind: input, shape index: {}]
  %s2 = inlined_call_operand.hbm [shape: f32[1,2,128], index: 2, kind: output, shape index: {}]
  %s3 = sld [smem:[#allocation0]]
  $region18: #{efficientnet_forward.1} parent=0
    _
  %s5 = ssub.s32 1, %s3
  %s6 = scalar_select 0, %s5, %s3
  $region1: #{efficientnet_forward.1} parent=0
    #allocation3 [shape = 'u8[1024]{0}', space=vmem, size = 0x400, scoped, tag = 'output window, operand 0, single buffered']
    #allocation4 [shape = 's32[1]{0}', space=sflag, size = 0x4, scoped, tag = 'scoped memory for efficientnet_forward.1']
    %7 = vsyncpa [#allocation4], 0
    // Predicated region
    $region2: #{efficientnet_forward.1} parent=1 // pred_check
      _
    $region3: #{efficientnet_forward.1} parent=1 // pred_check_branch
      %9 = sbr.rel (0) target = $region5
    $region4: #{efficientnet_forward.1} parent=1 // pred_region
      _
    $region5: #{efficientnet_forward.1} parent=1 // pred_fallthru
      _
    // Predicated region
    $region6: #{efficientnet_forward.1} parent=1 // pred_check
      _
    $region7: #{efficientnet_forward.1} parent=1 // pred_check_branch
      %11 = sbr.rel (0) target = $region9
    $region8: #{efficientnet_forward.1} parent=1 // pred_region
      _
    $region9: #{efficientnet_forward.1} parent=1 // pred_fallthru
      _
    %v13 = vld [vmem:[%s0] sm:$0xff]
    %v14 = vld [vmem:[%s0 + $0x8] sm:$0xff]
    %v15 = vld [vmem:[%s0 + $0x10] sm:$0xff]
    %v16 = vld [vmem:[%s0 + $0x18] sm:$0xff]
    %v17 = vld [vmem:[%s0 + $0x20] sm:$0xff]
    %v18 = vld [vmem:[%s0 + $0x28] sm:$0xff]
    %v19 = vld [vmem:[%s0 + $0x30] sm:$0xff]
    %v20 = vld [vmem:[%s0 + $0x38] sm:$0xff]
    %v21 = vld [vmem:[%s0 + $0x40] sm:$0xff]
    %v22 = vld [vmem:[%s0 + $0x48] sm:$0xff]
    %v23 = vld [vmem:[%s0 + $0x50] sm:$0xff]
    %v24 = vld [vmem:[%s0 + $0x58] sm:$0xff]
    %v25 = vld [vmem:[%s0 + $0x60] sm:$0xff]
    %v26 = vld [vmem:[%s0 + $0x68] sm:$0xff]
    %v27 = vld [vmem:[%s0 + $0x70] sm:$0xff]
    %v28 = vld [vmem:[%s0 + $0x78] sm:$0xff]
    %v29 = vld [vmem:[%s0 + $0x80] sm:$0xff]
    %v30 = vld [vmem:[%s0 + $0x88] sm:$0xff]
    %v31 = vld [vmem:[%s0 + $0x90] sm:$0xff]
    %v32 = vld [vmem:[%s0 + $0x98] sm:$0xff]
    %v33 = vld [vmem:[%s0 + $0xa0] sm:$0xff]
    %v34 = vld [vmem:[%s0 + $0xa8] sm:$0xff]
    %v35 = vld [vmem:[%s0 + $0xb0] sm:$0xff]
    %v36 = vld [vmem:[%s0 + $0xb8] sm:$0xff]
    %v37 = vld [vmem:[%s0 + $0xc0] sm:$0xff]
    %v38 = vld [vmem:[%s0 + $0xc8] sm:$0xff]
    %v39 = vld [vmem:[%s0 + $0xd0] sm:$0xff]
    %v40 = vld [vmem:[%s0 + $0xd8] sm:$0xff]
    %v41 = vld [vmem:[%s0 + $0xe0] sm:$0xff]
    %v42 = vld [vmem:[%s0 + $0xe8] sm:$0xff]
    %v43 = vld [vmem:[%s0 + $0xf0] sm:$0xff]
    %v44 = vld [vmem:[%s0 + $0xf8] sm:$0xff]
    %v45 = vld [vmem:[%s0 + $0x100] sm:$0xff]
    %v46 = vld [vmem:[%s0 + $0x108] sm:$0xff]
    %v47 = vld [vmem:[%s0 + $0x110] sm:$0xff]
    %v48 = vld [vmem:[%s0 + $0x118] sm:$0xff]
    %v49 = vld [vmem:[%s0 + $0x120] sm:$0xff]
    %v50 = vld [vmem:[%s0 + $0x128] sm:$0xff]
    %v51 = vld [vmem:[%s0 + $0x130] sm:$0xff]
    %v52 = vld [vmem:[%s0 + $0x138] sm:$0xff]
    %v53 = vld [vmem:[%s0 + $0x140] sm:$0xff]
    %v54 = vld [vmem:[%s0 + $0x148] sm:$0xff]
    %v55 = vld [vmem:[%s0 + $0x150] sm:$0xff]
    %v56 = vld [vmem:[%s0 + $0x158] sm:$0xff]
    %v57 = vld [vmem:[%s0 + $0x160] sm:$0xff]
    %v58 = vld [vmem:[%s0 + $0x168] sm:$0xff]
    %v59 = vld [vmem:[%s0 + $0x170] sm:$0xff]
    %v60 = vld [vmem:[%s0 + $0x178] sm:$0xff]
    %v61 = vld [vmem:[%s0 + $0x180] sm:$0xff]
    %v62 = vld [vmem:[%s0 + $0x188] sm:$0xff]
    %v63 = vld [vmem:[%s0 + $0x190] sm:$0xff]
    %v64 = vld [vmem:[%s0 + $0x198] sm:$0xff]
    %v65 = vld [vmem:[%s0 + $0x1a0] sm:$0xff]
    %v66 = vld [vmem:[%s0 + $0x1a8] sm:$0xff]
    %v67 = vld [vmem:[%s0 + $0x1b0] sm:$0xff]
    %v68 = vld [vmem:[%s0 + $0x1b8] sm:$0xff]
    %v69 = vld [vmem:[%s0 + $0x1c0] sm:$0xff]
    %v70 = vld [vmem:[%s0 + $0x1c8] sm:$0xff]
    %v71 = vld [vmem:[%s0 + $0x1d0] sm:$0xff]
    %v72 = vld [vmem:[%s0 + $0x1d8] sm:$0xff]
    %v73 = vld [vmem:[%s0 + $0x1e0] sm:$0xff]
    %v74 = vld [vmem:[%s0 + $0x1e8] sm:$0xff]
    %v75 = vld [vmem:[%s0 + $0x1f0] sm:$0xff]
    %v76 = vld [vmem:[%s0 + $0x1f8] sm:$0xff]
    %v77 = vpack.c.bf16 %v14, %v13
    %v78 = vpack.c.bf16 %v16, %v15
    %v79 = vpack.c.bf16 %v18, %v17
    %v80 = vpack.c.bf16 %v20, %v19
    %v81 = vpack.c.bf16 %v22, %v21
    %v82 = vpack.c.bf16 %v24, %v23
    %v83 = vpack.c.bf16 %v26, %v25
    %v84 = vpack.c.bf16 %v28, %v27
    %v85 = vpack.c.bf16 %v30, %v29
    %v86 = vpack.c.bf16 %v32, %v31
    %v87 = vpack.c.bf16 %v34, %v33
    %v88 = vpack.c.bf16 %v36, %v35
    %v89 = vpack.c.bf16 %v38, %v37
    %v90 = vpack.c.bf16 %v40, %v39
    %v91 = vpack.c.bf16 %v42, %v41
    %v92 = vpack.c.bf16 %v44, %v43
    %v93 = vpack.c.bf16 %v46, %v45
    %v94 = vpack.c.bf16 %v48, %v47
    %v95 = vpack.c.bf16 %v50, %v49
    %v96 = vpack.c.bf16 %v52, %v51
    %v97 = vpack.c.bf16 %v54, %v53
    %v98 = vpack.c.bf16 %v56, %v55
    %v99 = vpack.c.bf16 %v58, %v57
    %v100 = vpack.c.bf16 %v60, %v59
    %v101 = vpack.c.bf16 %v62, %v61
    %v102 = vpack.c.bf16 %v64, %v63
    %v103 = vpack.c.bf16 %v66, %v65
    %v104 = vpack.c.bf16 %v68, %v67
    %v105 = vpack.c.bf16 %v70, %v69
    %v106 = vpack.c.bf16 %v72, %v71
    %v107 = vpack.c.bf16 %v74, %v73
    %v108 = vpack.c.bf16 %v76, %v75
    %v109 = vld [vmem:[%s1] sm:$0xff]
    %v110 = vld [vmem:[%s1 + $0x8] sm:$0xff]
    %v111 = vld [vmem:[%s1 + $0x10] sm:$0xff]
    %v112 = vld [vmem:[%s1 + $0x18] sm:$0x7]
    %v113 = vpack.c.bf16 %v110, %v109
    %v114 = vpack.c.bf16 %v112, %v111
    %v115 = vld [vmem:[%s1 + $0x20] sm:$0x1]
    %v116 = vlaneseq
    %v117 = vshrl.u32 %v116, 7
    %v118 = vsub.s32 0, %v117
    %v119 = vrot.slane %v115, %v118
    %vm120 = vcmask 220160
    %v122 = vsel %vm120, %v77, 0
    %v125 = vsel %vm120, %v78, 0
    %v128 = vsel %vm120, %v79, 0
    %v131 = vsel %vm120, %v80, 0
    %v134 = vsel %vm120, %v81, 0
    %v137 = vsel %vm120, %v82, 0
    %v140 = vsel %vm120, %v83, 0
    %v143 = vsel %vm120, %v84, 0
    %v146 = vsel %vm120, %v85, 0
    %v149 = vsel %vm120, %v86, 0
    %v152 = vsel %vm120, %v87, 0
    %v155 = vsel %vm120, %v88, 0
    %v158 = vsel %vm120, %v89, 0
    %v161 = vsel %vm120, %v90, 0
    %v164 = vsel %vm120, %v91, 0
    %v167 = vsel %vm120, %v92, 0
    %v170 = vsel %vm120, %v93, 0
    %v173 = vsel %vm120, %v94, 0
    %v176 = vsel %vm120, %v95, 0
    %v179 = vsel %vm120, %v96, 0
    %v182 = vsel %vm120, %v97, 0
    %v185 = vsel %vm120, %v98, 0
    %v188 = vsel %vm120, %v99, 0
    %v191 = vsel %vm120, %v100, 0
    %v194 = vsel %vm120, %v101, 0
    %v197 = vsel %vm120, %v102, 0
    %v200 = vsel %vm120, %v103, 0
    %v203 = vsel %vm120, %v104, 0
    %v206 = vsel %vm120, %v105, 0
    %v209 = vsel %vm120, %v106, 0
    %v212 = vsel %vm120, %v107, 0
    %v215 = vsel %vm120, %v108, 0
    %vm217 = vcmask 1044480
    %vm218 = vcmask 1045504
    %v219 = vsel %vm217, 4294967295, 65535
    %v220 = vsel %vm218, %v219, 0
    %v222 = vand.u32 %v114, %v220
    %224 = vmatprep.subr.bf16.mxu0 0
    %225 = vmatpush1.bf16.msra.mxu0 %v113
    %226 = vmatprep.subr.bf16.mxu0 0
    %227 = vmatpush1.bf16.msra.mxu0 %v222
    %228 = vmatprep.subr.bf16.mxu0 0
    %229 = vmatpush1.bf16.msra.mxu0 0
    %230 = vmatprep.subr.bf16.mxu0 0
    %231 = vmatpush1.bf16.msra.mxu0 0
    %232 = vmatprep.subr.bf16.mxu0 0
    %233 = vmatpush1.bf16.msra.mxu0 0
    %234 = vmatprep.subr.bf16.mxu0 0
    %235 = vmatpush1.bf16.msra.mxu0 0
    %236 = vmatprep.subr.bf16.mxu0 0
    %237 = vmatpush1.bf16.msra.mxu0 0
    %238 = vmatprep.subr.bf16.mxu0 0
    %239 = vmatpush1.bf16.msra.mxu0 0
    %240 = vmatprep.subr.bf16.mxu0 0
    %241 = vmatpush1.bf16.msra.mxu0 0
    %242 = vmatprep.subr.bf16.mxu0 0
    %243 = vmatpush1.bf16.msra.mxu0 0
    %244 = vmatprep.subr.bf16.mxu0 0
    %245 = vmatpush1.bf16.msra.mxu0 0
    %246 = vmatprep.subr.bf16.mxu0 0
    %247 = vmatpush1.bf16.msra.mxu0 0
    %248 = vmatprep.subr.bf16.mxu0 0
    %249 = vmatpush1.bf16.msra.mxu0 0
    %250 = vmatprep.subr.bf16.mxu0 0
    %251 = vmatpush1.bf16.msra.mxu0 0
    %252 = vmatprep.subr.bf16.mxu0 0
    %253 = vmatpush1.bf16.msra.mxu0 0
    %254 = vmatprep.subr.bf16.mxu0 0
    %255 = vmatpush1.bf16.msra.mxu0 0
    %256 = vmatprep.mubr.bf16.mxu0 0
    %257 = vmatmul.mubr.bf16.gmra.mrb[0].mxu0 %v122
    %v258 = vpop.f32.mrb[0].mxu0
    %v259 = vadd.f32 %v119, %v258
    %v260 = vpop.f32.mrb[0].mxu0
    %v261 = vpop.f32.mrb[0].mxu0
    %v262 = vadd.f32 %v119, %v261
    %v263 = vpop.f32.mrb[0].mxu0
    %264 = vmatprep.mubr.bf16.mxu0 0
    %265 = vmatmul.mubr.bf16.gmra.mrb[0].mxu0 %v125
    %v266 = vpop.f32.mrb[0].mxu0
    %v267 = vadd.f32 %v119, %v266
    %v268 = vpop.f32.mrb[0].mxu0
    %v269 = vpop.f32.mrb[0].mxu0
    %v270 = vadd.f32 %v119, %v269
    %v271 = vpop.f32.mrb[0].mxu0
    %272 = vmatprep.mubr.bf16.mxu0 0
    %273 = vmatmul.mubr.bf16.gmra.mrb[0].mxu0 %v128
    %v274 = vpop.f32.mrb[0].mxu0
    %v275 = vadd.f32 %v119, %v274
    %v276 = vpop.f32.mrb[0].mxu0
    %v277 = vpop.f32.mrb[0].mxu0
    %v278 = vadd.f32 %v119, %v277
    %v279 = vpop.f32.mrb[0].mxu0
    %280 = vmatprep.mubr.bf16.mxu0 0
    %281 = vmatmul.mubr.bf16.gmra.mrb[0].mxu0 %v131
    %v282 = vpop.f32.mrb[0].mxu0
    %v283 = vadd.f32 %v119, %v282
    %v284 = vpop.f32.mrb[0].mxu0
    %v285 = vpop.f32.mrb[0].mxu0
    %v286 = vadd.f32 %v119, %v285
    %v287 = vpop.f32.mrb[0].mxu0
    %288 = vmatprep.mubr.bf16.mxu0 0
    %289 = vmatmul.mubr.bf16.gmra.mrb[0].mxu0 %v134
    %v290 = vpop.f32.mrb[0].mxu0
    %v291 = vadd.f32 %v119, %v290
    %v292 = vpop.f32.mrb[0].mxu0
    %v293 = vpop.f32.mrb[0].mxu0
    %v294 = vadd.f32 %v119, %v293
    %v295 = vpop.f32.mrb[0].mxu0
    %296 = vmatprep.mubr.bf16.mxu0 0
    %297 = vmatmul.mubr.bf16.gmra.mrb[0].mxu0 %v137
    %v298 = vpop.f32.mrb[0].mxu0
    %v299 = vadd.f32 %v119, %v298
    %v300 = vpop.f32.mrb[0].mxu0
    %v301 = vpop.f32.mrb[0].mxu0
    %v302 = vadd.f32 %v119, %v301
    %v303 = vpop.f32.mrb[0].mxu0
    %304 = vmatprep.mubr.bf16.mxu0 0
    %305 = vmatmul.mubr.bf16.gmra.mrb[0].mxu0 %v140
    %v306 = vpop.f32.mrb[0].mxu0
    %v307 = vadd.f32 %v119, %v306
    %v308 = vpop.f32.mrb[0].mxu0
    %v309 = vpop.f32.mrb[0].mxu0
    %v310 = vadd.f32 %v119, %v309
    %v311 = vpop.f32.mrb[0].mxu0
    %312 = vmatprep.mubr.bf16.mxu0 0
    %313 = vmatmul.mubr.bf16.gmra.mrb[0].mxu0 %v143
    %v314 = vpop.f32.mrb[0].mxu0
    %v315 = vadd.f32 %v119, %v314
    %v316 = vpop.f32.mrb[0].mxu0
    %v317 = vpop.f32.mrb[0].mxu0
    %v318 = vadd.f32 %v119, %v317
    %v319 = vpop.f32.mrb[0].mxu0
    %320 = vmatprep.mubr.bf16.mxu0 0
    %321 = vmatmul.mubr.bf16.gmra.mrb[0].mxu0 %v146
    %v322 = vpop.f32.mrb[0].mxu0
    %v323 = vadd.f32 %v119, %v322
    %v324 = vpop.f32.mrb[0].mxu0
    %v325 = vpop.f32.mrb[0].mxu0
    %v326 = vadd.f32 %v119, %v325
    %v327 = vpop.f32.mrb[0].mxu0
    %328 = vmatprep.mubr.bf16.mxu0 0
    %329 = vmatmul.mubr.bf16.gmra.mrb[0].mxu0 %v149
    %v330 = vpop.f32.mrb[0].mxu0
    %v331 = vadd.f32 %v119, %v330
    %v332 = vpop.f32.mrb[0].mxu0
    %v333 = vpop.f32.mrb[0].mxu0
    %v334 = vadd.f32 %v119, %v333
    %v335 = vpop.f32.mrb[0].mxu0
    %336 = vmatprep.mubr.bf16.mxu0 0
    %337 = vmatmul.mubr.bf16.gmra.mrb[0].mxu0 %v152
    %v338 = vpop.f32.mrb[0].mxu0
    %v339 = vadd.f32 %v119, %v338
    %v340 = vpop.f32.mrb[0].mxu0
    %v341 = vpop.f32.mrb[0].mxu0
    %v342 = vadd.f32 %v119, %v341
    %v343 = vpop.f32.mrb[0].mxu0
    %344 = vmatprep.mubr.bf16.mxu0 0
    %345 = vmatmul.mubr.bf16.gmra.mrb[0].mxu0 %v155
    %v346 = vpop.f32.mrb[0].mxu0
    %v347 = vadd.f32 %v119, %v346
    %v348 = vpop.f32.mrb[0].mxu0
    %v349 = vpop.f32.mrb[0].mxu0
    %v350 = vadd.f32 %v119, %v349
    %v351 = vpop.f32.mrb[0].mxu0
    %352 = vmatprep.mubr.bf16.mxu0 0
    %353 = vmatmul.mubr.bf16.gmra.mrb[0].mxu0 %v158
    %v354 = vpop.f32.mrb[0].mxu0
    %v355 = vadd.f32 %v119, %v354
    %v356 = vpop.f32.mrb[0].mxu0
    %v357 = vpop.f32.mrb[0].mxu0
    %v358 = vadd.f32 %v119, %v357
    %v359 = vpop.f32.mrb[0].mxu0
    %360 = vmatprep.mubr.bf16.mxu0 0
    %361 = vmatmul.mubr.bf16.gmra.mrb[0].mxu0 %v161
    %v362 = vpop.f32.mrb[0].mxu0
    %v363 = vadd.f32 %v119, %v362
    %v364 = vpop.f32.mrb[0].mxu0
    %v365 = vpop.f32.mrb[0].mxu0
    %v366 = vadd.f32 %v119, %v365
    %v367 = vpop.f32.mrb[0].mxu0
    %368 = vmatprep.mubr.bf16.mxu0 0
    %369 = vmatmul.mubr.bf16.gmra.mrb[0].mxu0 %v164
    %v370 = vpop.f32.mrb[0].mxu0
    %v371 = vadd.f32 %v119, %v370
    %v372 = vpop.f32.mrb[0].mxu0
    %v373 = vpop.f32.mrb[0].mxu0
    %v374 = vadd.f32 %v119, %v373
    %v375 = vpop.f32.mrb[0].mxu0
    %376 = vmatprep.mubr.bf16.mxu0 0
    %377 = vmatmul.mubr.bf16.gmra.mrb[0].mxu0 %v167
    %v378 = vpop.f32.mrb[0].mxu0
    %v379 = vadd.f32 %v119, %v378
    %v380 = vpop.f32.mrb[0].mxu0
    %v381 = vpop.f32.mrb[0].mxu0
    %v382 = vadd.f32 %v119, %v381
    %v383 = vpop.f32.mrb[0].mxu0
    %384 = vmatprep.mubr.bf16.mxu0 0
    %385 = vmatmul.mubr.bf16.gmra.mrb[0].mxu0 %v170
    %v386 = vpop.f32.mrb[0].mxu0
    %v387 = vadd.f32 %v119, %v386
    %v388 = vpop.f32.mrb[0].mxu0
    %v389 = vpop.f32.mrb[0].mxu0
    %v390 = vadd.f32 %v119, %v389
    %v391 = vpop.f32.mrb[0].mxu0
    %392 = vmatprep.mubr.bf16.mxu0 0
    %393 = vmatmul.mubr.bf16.gmra.mrb[0].mxu0 %v173
    %v394 = vpop.f32.mrb[0].mxu0
    %v395 = vadd.f32 %v119, %v394
    %v396 = vpop.f32.mrb[0].mxu0
    %v397 = vpop.f32.mrb[0].mxu0
    %v398 = vadd.f32 %v119, %v397
    %v399 = vpop.f32.mrb[0].mxu0
    %400 = vmatprep.mubr.bf16.mxu0 0
    %401 = vmatmul.mubr.bf16.gmra.mrb[0].mxu0 %v176
    %v402 = vpop.f32.mrb[0].mxu0
    %v403 = vadd.f32 %v119, %v402
    %v404 = vpop.f32.mrb[0].mxu0
    %v405 = vpop.f32.mrb[0].mxu0
    %v406 = vadd.f32 %v119, %v405
    %v407 = vpop.f32.mrb[0].mxu0
    %408 = vmatprep.mubr.bf16.mxu0 0
    %409 = vmatmul.mubr.bf16.gmra.mrb[0].mxu0 %v179
    %v410 = vpop.f32.mrb[0].mxu0
    %v411 = vadd.f32 %v119, %v410
    %v412 = vpop.f32.mrb[0].mxu0
    %v413 = vpop.f32.mrb[0].mxu0
    %v414 = vadd.f32 %v119, %v413
    %v415 = vpop.f32.mrb[0].mxu0
    %416 = vmatprep.mubr.bf16.mxu0 0
    %417 = vmatmul.mubr.bf16.gmra.mrb[0].mxu0 %v182
    %v418 = vpop.f32.mrb[0].mxu0
    %v419 = vadd.f32 %v119, %v418
    %v420 = vpop.f32.mrb[0].mxu0
    %v421 = vpop.f32.mrb[0].mxu0
    %v422 = vadd.f32 %v119, %v421
    %v423 = vpop.f32.mrb[0].mxu0
    %424 = vmatprep.mubr.bf16.mxu0 0
    %425 = vmatmul.mubr.bf16.gmra.mrb[0].mxu0 %v185
    %v426 = vpop.f32.mrb[0].mxu0
    %v427 = vadd.f32 %v119, %v426
    %v428 = vpop.f32.mrb[0].mxu0
    %v429 = vpop.f32.mrb[0].mxu0
    %v430 = vadd.f32 %v119, %v429
    %v431 = vpop.f32.mrb[0].mxu0
    %432 = vmatprep.mubr.bf16.mxu0 0
    %433 = vmatmul.mubr.bf16.gmra.mrb[0].mxu0 %v188
    %v434 = vpop.f32.mrb[0].mxu0
    %v435 = vadd.f32 %v119, %v434
    %v436 = vpop.f32.mrb[0].mxu0
    %v437 = vpop.f32.mrb[0].mxu0
    %v438 = vadd.f32 %v119, %v437
    %v439 = vpop.f32.mrb[0].mxu0
    %440 = vmatprep.mubr.bf16.mxu0 0
    %441 = vmatmul.mubr.bf16.gmra.mrb[0].mxu0 %v191
    %v442 = vpop.f32.mrb[0].mxu0
    %v443 = vadd.f32 %v119, %v442
    %v444 = vpop.f32.mrb[0].mxu0
    %v445 = vpop.f32.mrb[0].mxu0
    %v446 = vadd.f32 %v119, %v445
    %v447 = vpop.f32.mrb[0].mxu0
    %448 = vmatprep.mubr.bf16.mxu0 0
    %449 = vmatmul.mubr.bf16.gmra.mrb[0].mxu0 %v194
    %v450 = vpop.f32.mrb[0].mxu0
    %v451 = vadd.f32 %v119, %v450
    %v452 = vpop.f32.mrb[0].mxu0
    %v453 = vpop.f32.mrb[0].mxu0
    %v454 = vadd.f32 %v119, %v453
    %v455 = vpop.f32.mrb[0].mxu0
    %456 = vmatprep.mubr.bf16.mxu0 0
    %457 = vmatmul.mubr.bf16.gmra.mrb[0].mxu0 %v197
    %v458 = vpop.f32.mrb[0].mxu0
    %v459 = vadd.f32 %v119, %v458
    %v460 = vpop.f32.mrb[0].mxu0
    %v461 = vpop.f32.mrb[0].mxu0
    %v462 = vadd.f32 %v119, %v461
    %v463 = vpop.f32.mrb[0].mxu0
    %464 = vmatprep.mubr.bf16.mxu0 0
    %465 = vmatmul.mubr.bf16.gmra.mrb[0].mxu0 %v200
    %v466 = vpop.f32.mrb[0].mxu0
    %v467 = vadd.f32 %v119, %v466
    %v468 = vpop.f32.mrb[0].mxu0
    %v469 = vpop.f32.mrb[0].mxu0
    %v470 = vadd.f32 %v119, %v469
    %v471 = vpop.f32.mrb[0].mxu0
    %472 = vmatprep.mubr.bf16.mxu0 0
    %473 = vmatmul.mubr.bf16.gmra.mrb[0].mxu0 %v203
    %v474 = vpop.f32.mrb[0].mxu0
    %v475 = vadd.f32 %v119, %v474
    %v476 = vpop.f32.mrb[0].mxu0
    %v477 = vpop.f32.mrb[0].mxu0
    %v478 = vadd.f32 %v119, %v477
    %v479 = vpop.f32.mrb[0].mxu0
    %480 = vmatprep.mubr.bf16.mxu0 0
    %481 = vmatmul.mubr.bf16.gmra.mrb[0].mxu0 %v206
    %v482 = vpop.f32.mrb[0].mxu0
    %v483 = vadd.f32 %v119, %v482
    %v484 = vpop.f32.mrb[0].mxu0
    %v485 = vpop.f32.mrb[0].mxu0
    %v486 = vadd.f32 %v119, %v485
    %v487 = vpop.f32.mrb[0].mxu0
    %488 = vmatprep.mubr.bf16.mxu0 0
    %489 = vmatmul.mubr.bf16.gmra.mrb[0].mxu0 %v209
    %v490 = vpop.f32.mrb[0].mxu0
    %v491 = vadd.f32 %v119, %v490
    %v492 = vpop.f32.mrb[0].mxu0
    %v493 = vpop.f32.mrb[0].mxu0
    %v494 = vadd.f32 %v119, %v493
    %v495 = vpop.f32.mrb[0].mxu0
    %496 = vmatprep.mubr.bf16.mxu0 0
    %497 = vmatmul.mubr.bf16.gmra.mrb[0].mxu0 %v212
    %v498 = vpop.f32.mrb[0].mxu0
    %v499 = vadd.f32 %v119, %v498
    %v500 = vpop.f32.mrb[0].mxu0
    %v501 = vpop.f32.mrb[0].mxu0
    %v502 = vadd.f32 %v119, %v501
    %v503 = vpop.f32.mrb[0].mxu0
    %504 = vmatprep.mubr.bf16.mxu0 0
    %505 = vmatmul.mubr.bf16.gmra.mrb[0].mxu0 %v215
    %v506 = vpop.f32.mrb[0].mxu0
    %v507 = vadd.f32 %v119, %v506
    %v508 = vpop.f32.mrb[0].mxu0
    %v509 = vpop.f32.mrb[0].mxu0
    %v510 = vadd.f32 %v119, %v509
    %v511 = vpop.f32.mrb[0].mxu0
    %512 = vdwg.mxu0
    %v513 = vxor.u32 %v259, 2147483648
    %v514 = vxor.u32 %v262, 2147483648
    %v515 = vxor.u32 %v267, 2147483648
    %v516 = vxor.u32 %v270, 2147483648
    %v517 = vxor.u32 %v275, 2147483648
    %v518 = vxor.u32 %v278, 2147483648
    %v519 = vxor.u32 %v283, 2147483648
    %v520 = vxor.u32 %v286, 2147483648
    %v521 = vxor.u32 %v291, 2147483648
    %v522 = vxor.u32 %v294, 2147483648
    %v523 = vxor.u32 %v299, 2147483648
    %v524 = vxor.u32 %v302, 2147483648
    %v525 = vxor.u32 %v307, 2147483648
    %v526 = vxor.u32 %v310, 2147483648
    %v527 = vxor.u32 %v315, 2147483648
    %v528 = vxor.u32 %v318, 2147483648
    %v529 = vxor.u32 %v323, 2147483648
    %v530 = vxor.u32 %v326, 2147483648
    %v531 = vxor.u32 %v331, 2147483648
    %v532 = vxor.u32 %v334, 2147483648
    %v533 = vxor.u32 %v339, 2147483648
    %v534 = vxor.u32 %v342, 2147483648
    %v535 = vxor.u32 %v347, 2147483648
    %v536 = vxor.u32 %v350, 2147483648
    %v537 = vxor.u32 %v355, 2147483648
    %v538 = vxor.u32 %v358, 2147483648
    %v539 = vxor.u32 %v363, 2147483648
    %v540 = vxor.u32 %v366, 2147483648
    %v541 = vxor.u32 %v371, 2147483648
    %v542 = vxor.u32 %v374, 2147483648
    %v543 = vxor.u32 %v379, 2147483648
    %v544 = vxor.u32 %v382, 2147483648
    %v545 = vxor.u32 %v387, 2147483648
    %v546 = vxor.u32 %v390, 2147483648
    %v547 = vxor.u32 %v395, 2147483648
    %v548 = vxor.u32 %v398, 2147483648
    %v549 = vxor.u32 %v403, 2147483648
    %v550 = vxor.u32 %v406, 2147483648
    %v551 = vxor.u32 %v411, 2147483648
    %v552 = vxor.u32 %v414, 2147483648
    %v553 = vxor.u32 %v419, 2147483648
    %v554 = vxor.u32 %v422, 2147483648
    %v555 = vxor.u32 %v427, 2147483648
    %v556 = vxor.u32 %v430, 2147483648
    %v557 = vxor.u32 %v435, 2147483648
    %v558 = vxor.u32 %v438, 2147483648
    %v559 = vxor.u32 %v443, 2147483648
    %v560 = vxor.u32 %v446, 2147483648
    %v561 = vxor.u32 %v451, 2147483648
    %v562 = vxor.u32 %v454, 2147483648
    %v563 = vxor.u32 %v459, 2147483648
    %v564 = vxor.u32 %v462, 2147483648
    %v565 = vxor.u32 %v467, 2147483648
    %v566 = vxor.u32 %v470, 2147483648
    %v567 = vxor.u32 %v475, 2147483648
    %v568 = vxor.u32 %v478, 2147483648
    %v569 = vxor.u32 %v483, 2147483648
    %v570 = vxor.u32 %v486, 2147483648
    %v571 = vxor.u32 %v491, 2147483648
    %v572 = vxor.u32 %v494, 2147483648
    %v573 = vxor.u32 %v499, 2147483648
    %v574 = vxor.u32 %v502, 2147483648
    %v575 = vxor.u32 %v507, 2147483648
    %v576 = vxor.u32 %v510, 2147483648
    %v577 = vmul.f32 %v513, 1.442695
    %v578 = vpow.pop %v577
    %v579 = vmul.f32 %v514, 1.442695
    %v580 = vpow.pop %v579
    %v581 = vmul.f32 %v515, 1.442695
    %v582 = vpow.pop %v581
    %v583 = vmul.f32 %v516, 1.442695
    %v584 = vpow.pop %v583
    %v585 = vmul.f32 %v517, 1.442695
    %v586 = vpow.pop %v585
    %v587 = vmul.f32 %v518, 1.442695
    %v588 = vpow.pop %v587
    %v589 = vmul.f32 %v519, 1.442695
    %v590 = vpow.pop %v589
    %v591 = vmul.f32 %v520, 1.442695
    %v592 = vpow.pop %v591
    %v593 = vmul.f32 %v521, 1.442695
    %v594 = vpow.pop %v593
    %v595 = vmul.f32 %v522, 1.442695
    %v596 = vpow.pop %v595
    %v597 = vmul.f32 %v523, 1.442695
    %v598 = vpow.pop %v597
    %v599 = vmul.f32 %v524, 1.442695
    %v600 = vpow.pop %v599
    %v601 = vmul.f32 %v525, 1.442695
    %v602 = vpow.pop %v601
    %v603 = vmul.f32 %v526, 1.442695
    %v604 = vpow.pop %v603
    %v605 = vmul.f32 %v527, 1.442695
    %v606 = vpow.pop %v605
    %v607 = vmul.f32 %v528, 1.442695
    %v608 = vpow.pop %v607
    %v609 = vmul.f32 %v529, 1.442695
    %v610 = vpow.pop %v609
    %v611 = vmul.f32 %v530, 1.442695
    %v612 = vpow.pop %v611
    %v613 = vmul.f32 %v531, 1.442695
    %v614 = vpow.pop %v613
    %v615 = vmul.f32 %v532, 1.442695
    %v616 = vpow.pop %v615
    %v617 = vmul.f32 %v533, 1.442695
    %v618 = vpow.pop %v617
    %v619 = vmul.f32 %v534, 1.442695
    %v620 = vpow.pop %v619
    %v621 = vmul.f32 %v535, 1.442695
    %v622 = vpow.pop %v621
    %v623 = vmul.f32 %v536, 1.442695
    %v624 = vpow.pop %v623
    %v625 = vmul.f32 %v537, 1.442695
    %v626 = vpow.pop %v625
    %v627 = vmul.f32 %v538, 1.442695
    %v628 = vpow.pop %v627
    %v629 = vmul.f32 %v539, 1.442695
    %v630 = vpow.pop %v629
    %v631 = vmul.f32 %v540, 1.442695
    %v632 = vpow.pop %v631
    %v633 = vmul.f32 %v541, 1.442695
    %v634 = vpow.pop %v633
    %v635 = vmul.f32 %v542, 1.442695
    %v636 = vpow.pop %v635
    %v637 = vmul.f32 %v543, 1.442695
    %v638 = vpow.pop %v637
    %v639 = vmul.f32 %v544, 1.442695
    %v640 = vpow.pop %v639
    %v641 = vmul.f32 %v545, 1.442695
    %v642 = vpow.pop %v641
    %v643 = vmul.f32 %v546, 1.442695
    %v644 = vpow.pop %v643
    %v645 = vmul.f32 %v547, 1.442695
    %v646 = vpow.pop %v645
    %v647 = vmul.f32 %v548, 1.442695
    %v648 = vpow.pop %v647
    %v649 = vmul.f32 %v549, 1.442695
    %v650 = vpow.pop %v649
    %v651 = vmul.f32 %v550, 1.442695
    %v652 = vpow.pop %v651
    %v653 = vmul.f32 %v551, 1.442695
    %v654 = vpow.pop %v653
    %v655 = vmul.f32 %v552, 1.442695
    %v656 = vpow.pop %v655
    %v657 = vmul.f32 %v553, 1.442695
    %v658 = vpow.pop %v657
    %v659 = vmul.f32 %v554, 1.442695
    %v660 = vpow.pop %v659
    %v661 = vmul.f32 %v555, 1.442695
    %v662 = vpow.pop %v661
    %v663 = vmul.f32 %v556, 1.442695
    %v664 = vpow.pop %v663
    %v665 = vmul.f32 %v557, 1.442695
    %v666 = vpow.pop %v665
    %v667 = vmul.f32 %v558, 1.442695
    %v668 = vpow.pop %v667
    %v669 = vmul.f32 %v559, 1.442695
    %v670 = vpow.pop %v669
    %v671 = vmul.f32 %v560, 1.442695
    %v672 = vpow.pop %v671
    %v673 = vmul.f32 %v561, 1.442695
    %v674 = vpow.pop %v673
    %v675 = vmul.f32 %v562, 1.442695
    %v676 = vpow.pop %v675
    %v677 = vmul.f32 %v563, 1.442695
    %v678 = vpow.pop %v677
    %v679 = vmul.f32 %v564, 1.442695
    %v680 = vpow.pop %v679
    %v681 = vmul.f32 %v565, 1.442695
    %v682 = vpow.pop %v681
    %v683 = vmul.f32 %v566, 1.442695
    %v684 = vpow.pop %v683
    %v685 = vmul.f32 %v567, 1.442695
    %v686 = vpow.pop %v685
    %v687 = vmul.f32 %v568, 1.442695
    %v688 = vpow.pop %v687
    %v689 = vmul.f32 %v569, 1.442695
    %v690 = vpow.pop %v689
    %v691 = vmul.f32 %v570, 1.442695
    %v692 = vpow.pop %v691
    %v693 = vmul.f32 %v571, 1.442695
    %v694 = vpow.pop %v693
    %v695 = vmul.f32 %v572, 1.442695
    %v696 = vpow.pop %v695
    %v697 = vmul.f32 %v573, 1.442695
    %v698 = vpow.pop %v697
    %v699 = vmul.f32 %v574, 1.442695
    %v700 = vpow.pop %v699
    %v701 = vmul.f32 %v575, 1.442695
    %v702 = vpow.pop %v701
    %v703 = vmul.f32 %v576, 1.442695
    %v704 = vpow.pop %v703
    %v705 = vadd.f32 %v578, 1.0
    %v706 = vadd.f32 %v580, 1.0
    %v707 = vadd.f32 %v582, 1.0
    %v708 = vadd.f32 %v584, 1.0
    %v709 = vadd.f32 %v586, 1.0
    %v710 = vadd.f32 %v588, 1.0
    %v711 = vadd.f32 %v590, 1.0
    %v712 = vadd.f32 %v592, 1.0
    %v713 = vadd.f32 %v594, 1.0
    %v714 = vadd.f32 %v596, 1.0
    %v715 = vadd.f32 %v598, 1.0
    %v716 = vadd.f32 %v600, 1.0
    %v717 = vadd.f32 %v602, 1.0
    %v718 = vadd.f32 %v604, 1.0
    %v719 = vadd.f32 %v606, 1.0
    %v720 = vadd.f32 %v608, 1.0
    %v721 = vadd.f32 %v610, 1.0
    %v722 = vadd.f32 %v612, 1.0
    %v723 = vadd.f32 %v614, 1.0
    %v724 = vadd.f32 %v616, 1.0
    %v725 = vadd.f32 %v618, 1.0
    %v726 = vadd.f32 %v620, 1.0
    %v727 = vadd.f32 %v622, 1.0
    %v728 = vadd.f32 %v624, 1.0
    %v729 = vadd.f32 %v626, 1.0
    %v730 = vadd.f32 %v628, 1.0
    %v731 = vadd.f32 %v630, 1.0
    %v732 = vadd.f32 %v632, 1.0
    %v733 = vadd.f32 %v634, 1.0
    %v734 = vadd.f32 %v636, 1.0
    %v735 = vadd.f32 %v638, 1.0
    %v736 = vadd.f32 %v640, 1.0
    %v737 = vadd.f32 %v642, 1.0
    %v738 = vadd.f32 %v644, 1.0
    %v739 = vadd.f32 %v646, 1.0
    %v740 = vadd.f32 %v648, 1.0
    %v741 = vadd.f32 %v650, 1.0
    %v742 = vadd.f32 %v652, 1.0
    %v743 = vadd.f32 %v654, 1.0
    %v744 = vadd.f32 %v656, 1.0
    %v745 = vadd.f32 %v658, 1.0
    %v746 = vadd.f32 %v660, 1.0
    %v747 = vadd.f32 %v662, 1.0
    %v748 = vadd.f32 %v664, 1.0
    %v749 = vadd.f32 %v666, 1.0
    %v750 = vadd.f32 %v668, 1.0
    %v751 = vadd.f32 %v670, 1.0
    %v752 = vadd.f32 %v672, 1.0
    %v753 = vadd.f32 %v674, 1.0
    %v754 = vadd.f32 %v676, 1.0
    %v755 = vadd.f32 %v678, 1.0
    %v756 = vadd.f32 %v680, 1.0
    %v757 = vadd.f32 %v682, 1.0
    %v758 = vadd.f32 %v684, 1.0
    %v759 = vadd.f32 %v686, 1.0
    %v760 = vadd.f32 %v688, 1.0
    %v761 = vadd.f32 %v690, 1.0
    %v762 = vadd.f32 %v692, 1.0
    %v763 = vadd.f32 %v694, 1.0
    %v764 = vadd.f32 %v696, 1.0
    %v765 = vadd.f32 %v698, 1.0
    %v766 = vadd.f32 %v700, 1.0
    %v767 = vadd.f32 %v702, 1.0
    %v768 = vadd.f32 %v704, 1.0
    %v769 = vrcp.pop %v705
    %v770 = vmul.f32 1.0, %v769
    %v771 = vrcp.pop %v706
    %v772 = vmul.f32 1.0, %v771
    %v773 = vrcp.pop %v707
    %v774 = vmul.f32 1.0, %v773
    %v775 = vrcp.pop %v708
    %v776 = vmul.f32 1.0, %v775
    %v777 = vrcp.pop %v709
    %v778 = vmul.f32 1.0, %v777
    %v779 = vrcp.pop %v710
    %v780 = vmul.f32 1.0, %v779
    %v781 = vrcp.pop %v711
    %v782 = vmul.f32 1.0, %v781
    %v783 = vrcp.pop %v712
    %v784 = vmul.f32 1.0, %v783
    %v785 = vrcp.pop %v713
    %v786 = vmul.f32 1.0, %v785
    %v787 = vrcp.pop %v714
    %v788 = vmul.f32 1.0, %v787
    %v789 = vrcp.pop %v715
    %v790 = vmul.f32 1.0, %v789
    %v791 = vrcp.pop %v716
    %v792 = vmul.f32 1.0, %v791
    %v793 = vrcp.pop %v717
    %v794 = vmul.f32 1.0, %v793
    %v795 = vrcp.pop %v718
    %v796 = vmul.f32 1.0, %v795
    %v797 = vrcp.pop %v719
    %v798 = vmul.f32 1.0, %v797
    %v799 = vrcp.pop %v720
    %v800 = vmul.f32 1.0, %v799
    %v801 = vrcp.pop %v721
    %v802 = vmul.f32 1.0, %v801
    %v803 = vrcp.pop %v722
    %v804 = vmul.f32 1.0, %v803
    %v805 = vrcp.pop %v723
    %v806 = vmul.f32 1.0, %v805
    %v807 = vrcp.pop %v724
    %v808 = vmul.f32 1.0, %v807
    %v809 = vrcp.pop %v725
    %v810 = vmul.f32 1.0, %v809
    %v811 = vrcp.pop %v726
    %v812 = vmul.f32 1.0, %v811
    %v813 = vrcp.pop %v727
    %v814 = vmul.f32 1.0, %v813
    %v815 = vrcp.pop %v728
    %v816 = vmul.f32 1.0, %v815
    %v817 = vrcp.pop %v729
    %v818 = vmul.f32 1.0, %v817
    %v819 = vrcp.pop %v730
    %v820 = vmul.f32 1.0, %v819
    %v821 = vrcp.pop %v731
    %v822 = vmul.f32 1.0, %v821
    %v823 = vrcp.pop %v732
    %v824 = vmul.f32 1.0, %v823
    %v825 = vrcp.pop %v733
    %v826 = vmul.f32 1.0, %v825
    %v827 = vrcp.pop %v734
    %v828 = vmul.f32 1.0, %v827
    %v829 = vrcp.pop %v735
    %v830 = vmul.f32 1.0, %v829
    %v831 = vrcp.pop %v736
    %v832 = vmul.f32 1.0, %v831
    %v833 = vrcp.pop %v737
    %v834 = vmul.f32 1.0, %v833
    %v835 = vrcp.pop %v738
    %v836 = vmul.f32 1.0, %v835
    %v837 = vrcp.pop %v739
    %v838 = vmul.f32 1.0, %v837
    %v839 = vrcp.pop %v740
    %v840 = vmul.f32 1.0, %v839
    %v841 = vrcp.pop %v741
    %v842 = vmul.f32 1.0, %v841
    %v843 = vrcp.pop %v742
    %v844 = vmul.f32 1.0, %v843
    %v845 = vrcp.pop %v743
    %v846 = vmul.f32 1.0, %v845
    %v847 = vrcp.pop %v744
    %v848 = vmul.f32 1.0, %v847
    %v849 = vrcp.pop %v745
    %v850 = vmul.f32 1.0, %v849
    %v851 = vrcp.pop %v746
    %v852 = vmul.f32 1.0, %v851
    %v853 = vrcp.pop %v747
    %v854 = vmul.f32 1.0, %v853
    %v855 = vrcp.pop %v748
    %v856 = vmul.f32 1.0, %v855
    %v857 = vrcp.pop %v749
    %v858 = vmul.f32 1.0, %v857
    %v859 = vrcp.pop %v750
    %v860 = vmul.f32 1.0, %v859
    %v861 = vrcp.pop %v751
    %v862 = vmul.f32 1.0, %v861
    %v863 = vrcp.pop %v752
    %v864 = vmul.f32 1.0, %v863
    %v865 = vrcp.pop %v753
    %v866 = vmul.f32 1.0, %v865
    %v867 = vrcp.pop %v754
    %v868 = vmul.f32 1.0, %v867
    %v869 = vrcp.pop %v755
    %v870 = vmul.f32 1.0, %v869
    %v871 = vrcp.pop %v756
    %v872 = vmul.f32 1.0, %v871
    %v873 = vrcp.pop %v757
    %v874 = vmul.f32 1.0, %v873
    %v875 = vrcp.pop %v758
    %v876 = vmul.f32 1.0, %v875
    %v877 = vrcp.pop %v759
    %v878 = vmul.f32 1.0, %v877
    %v879 = vrcp.pop %v760
    %v880 = vmul.f32 1.0, %v879
    %v881 = vrcp.pop %v761
    %v882 = vmul.f32 1.0, %v881
    %v883 = vrcp.pop %v762
    %v884 = vmul.f32 1.0, %v883
    %v885 = vrcp.pop %v763
    %v886 = vmul.f32 1.0, %v885
    %v887 = vrcp.pop %v764
    %v888 = vmul.f32 1.0, %v887
    %v889 = vrcp.pop %v765
    %v890 = vmul.f32 1.0, %v889
    %v891 = vrcp.pop %v766
    %v892 = vmul.f32 1.0, %v891
    %v893 = vrcp.pop %v767
    %v894 = vmul.f32 1.0, %v893
    %v895 = vrcp.pop %v768
    %v896 = vmul.f32 1.0, %v895
    %v897 = vmul.f32 %v259, %v770
    %v898 = vmul.f32 %v262, %v772
    %v899 = vmul.f32 %v267, %v774
    %v900 = vmul.f32 %v270, %v776
    %v901 = vmul.f32 %v275, %v778
    %v902 = vmul.f32 %v278, %v780
    %v903 = vmul.f32 %v283, %v782
    %v904 = vmul.f32 %v286, %v784
    %v905 = vmul.f32 %v291, %v786
    %v906 = vmul.f32 %v294, %v788
    %v907 = vmul.f32 %v299, %v790
    %v908 = vmul.f32 %v302, %v792
    %v909 = vmul.f32 %v307, %v794
    %v910 = vmul.f32 %v310, %v796
    %v911 = vmul.f32 %v315, %v798
    %v912 = vmul.f32 %v318, %v800
    %v913 = vmul.f32 %v323, %v802
    %v914 = vmul.f32 %v326, %v804
    %v915 = vmul.f32 %v331, %v806
    %v916 = vmul.f32 %v334, %v808
    %v917 = vmul.f32 %v339, %v810
    %v918 = vmul.f32 %v342, %v812
    %v919 = vmul.f32 %v347, %v814
    %v920 = vmul.f32 %v350, %v816
    %v921 = vmul.f32 %v355, %v818
    %v922 = vmul.f32 %v358, %v820
    %v923 = vmul.f32 %v363, %v822
    %v924 = vmul.f32 %v366, %v824
    %v925 = vmul.f32 %v371, %v826
    %v926 = vmul.f32 %v374, %v828
    %v927 = vmul.f32 %v379, %v830
    %v928 = vmul.f32 %v382, %v832
    %v929 = vmul.f32 %v387, %v834
    %v930 = vmul.f32 %v390, %v836
    %v931 = vmul.f32 %v395, %v838
    %v932 = vmul.f32 %v398, %v840
    %v933 = vmul.f32 %v403, %v842
    %v934 = vmul.f32 %v406, %v844
    %v935 = vmul.f32 %v411, %v846
    %v936 = vmul.f32 %v414, %v848
    %v937 = vmul.f32 %v419, %v850
    %v938 = vmul.f32 %v422, %v852
    %v939 = vmul.f32 %v427, %v854
    %v940 = vmul.f32 %v430, %v856
    %v941 = vmul.f32 %v435, %v858
    %v942 = vmul.f32 %v438, %v860
    %v943 = vmul.f32 %v443, %v862
    %v944 = vmul.f32 %v446, %v864
    %v945 = vmul.f32 %v451, %v866
    %v946 = vmul.f32 %v454, %v868
    %v947 = vmul.f32 %v459, %v870
    %v948 = vmul.f32 %v462, %v872
    %v949 = vmul.f32 %v467, %v874
    %v950 = vmul.f32 %v470, %v876
    %v951 = vmul.f32 %v475, %v878
    %v952 = vmul.f32 %v478, %v880
    %v953 = vmul.f32 %v483, %v882
    %v954 = vmul.f32 %v486, %v884
    %v955 = vmul.f32 %v491, %v886
    %v956 = vmul.f32 %v494, %v888
    %v957 = vmul.f32 %v499, %v890
    %v958 = vmul.f32 %v502, %v892
    %v959 = vmul.f32 %v507, %v894
    %v960 = vmul.f32 %v510, %v896
    %v961 = vpack.c.bf16 %v898, %v897
    %v962 = vpack.c.bf16 %v900, %v899
    %v963 = vpack.c.bf16 %v902, %v901
    %v964 = vpack.c.bf16 %v904, %v903
    %v965 = vpack.c.bf16 %v906, %v905
    %v966 = vpack.c.bf16 %v908, %v907
    %v967 = vpack.c.bf16 %v910, %v909
    %v968 = vpack.c.bf16 %v912, %v911
    %v969 = vpack.c.bf16 %v914, %v913
    %v970 = vpack.c.bf16 %v916, %v915
    %v971 = vpack.c.bf16 %v918, %v917
    %v972 = vpack.c.bf16 %v920, %v919
    %v973 = vpack.c.bf16 %v922, %v921
    %v974 = vpack.c.bf16 %v924, %v923
    %v975 = vpack.c.bf16 %v926, %v925
    %v976 = vpack.c.bf16 %v928, %v927
    %v977 = vpack.c.bf16 %v930, %v929
    %v978 = vpack.c.bf16 %v932, %v931
    %v979 = vpack.c.bf16 %v934, %v933
    %v980 = vpack.c.bf16 %v936, %v935
    %v981 = vpack.c.bf16 %v938, %v937
    %v982 = vpack.c.bf16 %v940, %v939
    %v983 = vpack.c.bf16 %v942, %v941
    %v984 = vpack.c.bf16 %v944, %v943
    %v985 = vpack.c.bf16 %v946, %v945
    %v986 = vpack.c.bf16 %v948, %v947
    %v987 = vpack.c.bf16 %v950, %v949
    %v988 = vpack.c.bf16 %v952, %v951
    %v989 = vpack.c.bf16 %v954, %v953
    %v990 = vpack.c.bf16 %v956, %v955
    %v991 = vpack.c.bf16 %v958, %v957
    %v992 = vpack.c.bf16 %v960, %v959
    %v993 = vld [vmem:[%s1 + $0x28] sm:$0xff]
    %v994 = vld [vmem:[%s1 + $0x30] sm:$0xff]
    %v995 = vpack.c.bf16 %v994, %v993
    %v996 = vld [vmem:[%s1 + $0x38] sm:$0x1]
    %v997 = vlaneseq
    %v998 = vshrl.u32 %v997, 7
    %v999 = vsub.s32 0, %v998
    %v1000 = vrot.slane %v996, %v999
    %vm1001 = vcmask 130048
    %v1003 = vsel %vm1001, %v961, 0
    %v1006 = vsel %vm1001, %v962, 0
    %v1009 = vsel %vm1001, %v963, 0
    %v1012 = vsel %vm1001, %v964, 0
    %v1015 = vsel %vm1001, %v965, 0
    %v1018 = vsel %vm1001, %v966, 0
    %v1021 = vsel %vm1001, %v967, 0
    %v1024 = vsel %vm1001, %v968, 0
    %v1027 = vsel %vm1001, %v969, 0
    %v1030 = vsel %vm1001, %v970, 0
    %v1033 = vsel %vm1001, %v971, 0
    %v1036 = vsel %vm1001, %v972, 0
    %v1039 = vsel %vm1001, %v973, 0
    %v1042 = vsel %vm1001, %v974, 0
    %v1045 = vsel %vm1001, %v975, 0
    %v1048 = vsel %vm1001, %v976, 0
    %v1051 = vsel %vm1001, %v977, 0
    %v1054 = vsel %vm1001, %v978, 0
    %v1057 = vsel %vm1001, %v979, 0
    %v1060 = vsel %vm1001, %v980, 0
    %v1063 = vsel %vm1001, %v981, 0
    %v1066 = vsel %vm1001, %v982, 0
    %v1069 = vsel %vm1001, %v983, 0
    %v1072 = vsel %vm1001, %v984, 0
    %v1075 = vsel %vm1001, %v985, 0
    %v1078 = vsel %vm1001, %v986, 0
    %v1081 = vsel %vm1001, %v987, 0
    %v1084 = vsel %vm1001, %v988, 0
    %v1087 = vsel %vm1001, %v989, 0
    %v1090 = vsel %vm1001, %v990, 0
    %v1093 = vsel %vm1001, %v991, 0
    %v1096 = vsel %vm1001, %v992, 0
    %1098 = vmatprep.subr.bf16.mxu0 0
    %1099 = vmatpush1.bf16.msra.mxu0 %v995
    %1100 = vmatprep.subr.bf16.mxu0 0
    %1101 = vmatpush1.bf16.msra.mxu0 0
    %1102 = vmatprep.subr.bf16.mxu0 0
    %1103 = vmatpush1.bf16.msra.mxu0 0
    %1104 = vmatprep.subr.bf16.mxu0 0
    %1105 = vmatpush1.bf16.msra.mxu0 0
    %1106 = vmatprep.subr.bf16.mxu0 0
    %1107 = vmatpush1.bf16.msra.mxu0 0
    %1108 = vmatprep.subr.bf16.mxu0 0
    %1109 = vmatpush1.bf16.msra.mxu0 0
    %1110 = vmatprep.subr.bf16.mxu0 0
    %1111 = vmatpush1.bf16.msra.mxu0 0
    %1112 = vmatprep.subr.bf16.mxu0 0
    %1113 = vmatpush1.bf16.msra.mxu0 0
    %1114 = vmatprep.subr.bf16.mxu0 0
    %1115 = vmatpush1.bf16.msra.mxu0 0
    %1116 = vmatprep.subr.bf16.mxu0 0
    %1117 = vmatpush1.bf16.msra.mxu0 0
    %1118 = vmatprep.subr.bf16.mxu0 0
    %1119 = vmatpush1.bf16.msra.mxu0 0
    %1120 = vmatprep.subr.bf16.mxu0 0
    %1121 = vmatpush1.bf16.msra.mxu0 0
    %1122 = vmatprep.subr.bf16.mxu0 0
    %1123 = vmatpush1.bf16.msra.mxu0 0
    %1124 = vmatprep.subr.bf16.mxu0 0
    %1125 = vmatpush1.bf16.msra.mxu0 0
    %1126 = vmatprep.subr.bf16.mxu0 0
    %1127 = vmatpush1.bf16.msra.mxu0 0
    %1128 = vmatprep.subr.bf16.mxu0 0
    %1129 = vmatpush1.bf16.msra.mxu0 0
    %1130 = vmatprep.mubr.bf16.mxu0 0
    %1131 = vmatmul.mubr.bf16.gmra.mrb[0].mxu0 %v1003
    %v1132 = vpop.f32.mrb[0].mxu0
    %v1133 = vadd.f32 %v1000, %v1132
    %v1134 = vpop.f32.mrb[0].mxu0
    %v1135 = vpop.f32.mrb[0].mxu0
    %v1136 = vadd.f32 %v1000, %v1135
    %v1137 = vpop.f32.mrb[0].mxu0
    %1138 = vmatprep.mubr.bf16.mxu0 0
    %1139 = vmatmul.mubr.bf16.gmra.mrb[0].mxu0 %v1006
    %v1140 = vpop.f32.mrb[0].mxu0
    %v1141 = vadd.f32 %v1000, %v1140
    %v1142 = vpop.f32.mrb[0].mxu0
    %v1143 = vpop.f32.mrb[0].mxu0
    %v1144 = vadd.f32 %v1000, %v1143
    %v1145 = vpop.f32.mrb[0].mxu0
    %1146 = vmatprep.mubr.bf16.mxu0 0
    %1147 = vmatmul.mubr.bf16.gmra.mrb[0].mxu0 %v1009
    %v1148 = vpop.f32.mrb[0].mxu0
    %v1149 = vadd.f32 %v1000, %v1148
    %v1150 = vpop.f32.mrb[0].mxu0
    %v1151 = vpop.f32.mrb[0].mxu0
    %v1152 = vadd.f32 %v1000, %v1151
    %v1153 = vpop.f32.mrb[0].mxu0
    %1154 = vmatprep.mubr.bf16.mxu0 0
    %1155 = vmatmul.mubr.bf16.gmra.mrb[0].mxu0 %v1012
    %v1156 = vpop.f32.mrb[0].mxu0
    %v1157 = vadd.f32 %v1000, %v1156
    %v1158 = vpop.f32.mrb[0].mxu0
    %v1159 = vpop.f32.mrb[0].mxu0
    %v1160 = vadd.f32 %v1000, %v1159
    %v1161 = vpop.f32.mrb[0].mxu0
    %1162 = vmatprep.mubr.bf16.mxu0 0
    %1163 = vmatmul.mubr.bf16.gmra.mrb[0].mxu0 %v1015
    %v1164 = vpop.f32.mrb[0].mxu0
    %v1165 = vadd.f32 %v1000, %v1164
    %v1166 = vpop.f32.mrb[0].mxu0
    %v1167 = vpop.f32.mrb[0].mxu0
    %v1168 = vadd.f32 %v1000, %v1167
    %v1169 = vpop.f32.mrb[0].mxu0
    %1170 = vmatprep.mubr.bf16.mxu0 0
    %1171 = vmatmul.mubr.bf16.gmra.mrb[0].mxu0 %v1018
    %v1172 = vpop.f32.mrb[0].mxu0
    %v1173 = vadd.f32 %v1000, %v1172
    %v1174 = vpop.f32.mrb[0].mxu0
    %v1175 = vpop.f32.mrb[0].mxu0
    %v1176 = vadd.f32 %v1000, %v1175
    %v1177 = vpop.f32.mrb[0].mxu0
    %1178 = vmatprep.mubr.bf16.mxu0 0
    %1179 = vmatmul.mubr.bf16.gmra.mrb[0].mxu0 %v1021
    %v1180 = vpop.f32.mrb[0].mxu0
    %v1181 = vadd.f32 %v1000, %v1180
    %v1182 = vpop.f32.mrb[0].mxu0
    %v1183 = vpop.f32.mrb[0].mxu0
    %v1184 = vadd.f32 %v1000, %v1183
    %v1185 = vpop.f32.mrb[0].mxu0
    %1186 = vmatprep.mubr.bf16.mxu0 0
    %1187 = vmatmul.mubr.bf16.gmra.mrb[0].mxu0 %v1024
    %v1188 = vpop.f32.mrb[0].mxu0
    %v1189 = vadd.f32 %v1000, %v1188
    %v1190 = vpop.f32.mrb[0].mxu0
    %v1191 = vpop.f32.mrb[0].mxu0
    %v1192 = vadd.f32 %v1000, %v1191
    %v1193 = vpop.f32.mrb[0].mxu0
    %1194 = vmatprep.mubr.bf16.mxu0 0
    %1195 = vmatmul.mubr.bf16.gmra.mrb[0].mxu0 %v1027
    %v1196 = vpop.f32.mrb[0].mxu0
    %v1197 = vadd.f32 %v1000, %v1196
    %v1198 = vpop.f32.mrb[0].mxu0
    %v1199 = vpop.f32.mrb[0].mxu0
    %v1200 = vadd.f32 %v1000, %v1199
    %v1201 = vpop.f32.mrb[0].mxu0
    %1202 = vmatprep.mubr.bf16.mxu0 0
    %1203 = vmatmul.mubr.bf16.gmra.mrb[0].mxu0 %v1030
    %v1204 = vpop.f32.mrb[0].mxu0
    %v1205 = vadd.f32 %v1000, %v1204
    %v1206 = vpop.f32.mrb[0].mxu0
    %v1207 = vpop.f32.mrb[0].mxu0
    %v1208 = vadd.f32 %v1000, %v1207
    %v1209 = vpop.f32.mrb[0].mxu0
    %1210 = vmatprep.mubr.bf16.mxu0 0
    %1211 = vmatmul.mubr.bf16.gmra.mrb[0].mxu0 %v1033
    %v1212 = vpop.f32.mrb[0].mxu0
    %v1213 = vadd.f32 %v1000, %v1212
    %v1214 = vpop.f32.mrb[0].mxu0
    %v1215 = vpop.f32.mrb[0].mxu0
    %v1216 = vadd.f32 %v1000, %v1215
    %v1217 = vpop.f32.mrb[0].mxu0
    %1218 = vmatprep.mubr.bf16.mxu0 0
    %1219 = vmatmul.mubr.bf16.gmra.mrb[0].mxu0 %v1036
    %v1220 = vpop.f32.mrb[0].mxu0
    %v1221 = vadd.f32 %v1000, %v1220
    %v1222 = vpop.f32.mrb[0].mxu0
    %v1223 = vpop.f32.mrb[0].mxu0
    %v1224 = vadd.f32 %v1000, %v1223
    %v1225 = vpop.f32.mrb[0].mxu0
    %1226 = vmatprep.mubr.bf16.mxu0 0
    %1227 = vmatmul.mubr.bf16.gmra.mrb[0].mxu0 %v1039
    %v1228 = vpop.f32.mrb[0].mxu0
    %v1229 = vadd.f32 %v1000, %v1228
    %v1230 = vpop.f32.mrb[0].mxu0
    %v1231 = vpop.f32.mrb[0].mxu0
    %v1232 = vadd.f32 %v1000, %v1231
    %v1233 = vpop.f32.mrb[0].mxu0
    %1234 = vmatprep.mubr.bf16.mxu0 0
    %1235 = vmatmul.mubr.bf16.gmra.mrb[0].mxu0 %v1042
    %v1236 = vpop.f32.mrb[0].mxu0
    %v1237 = vadd.f32 %v1000, %v1236
    %v1238 = vpop.f32.mrb[0].mxu0
    %v1239 = vpop.f32.mrb[0].mxu0
    %v1240 = vadd.f32 %v1000, %v1239
    %v1241 = vpop.f32.mrb[0].mxu0
    %1242 = vmatprep.mubr.bf16.mxu0 0
    %1243 = vmatmul.mubr.bf16.gmra.mrb[0].mxu0 %v1045
    %v1244 = vpop.f32.mrb[0].mxu0
    %v1245 = vadd.f32 %v1000, %v1244
    %v1246 = vpop.f32.mrb[0].mxu0
    %v1247 = vpop.f32.mrb[0].mxu0
    %v1248 = vadd.f32 %v1000, %v1247
    %v1249 = vpop.f32.mrb[0].mxu0
    %1250 = vmatprep.mubr.bf16.mxu0 0
    %1251 = vmatmul.mubr.bf16.gmra.mrb[0].mxu0 %v1048
    %v1252 = vpop.f32.mrb[0].mxu0
    %v1253 = vadd.f32 %v1000, %v1252
    %v1254 = vpop.f32.mrb[0].mxu0
    %v1255 = vpop.f32.mrb[0].mxu0
    %v1256 = vadd.f32 %v1000, %v1255
    %v1257 = vpop.f32.mrb[0].mxu0
    %1258 = vmatprep.mubr.bf16.mxu0 0
    %1259 = vmatmul.mubr.bf16.gmra.mrb[0].mxu0 %v1051
    %v1260 = vpop.f32.mrb[0].mxu0
    %v1261 = vadd.f32 %v1000, %v1260
    %v1262 = vpop.f32.mrb[0].mxu0
    %v1263 = vpop.f32.mrb[0].mxu0
    %v1264 = vadd.f32 %v1000, %v1263
    %v1265 = vpop.f32.mrb[0].mxu0
    %1266 = vmatprep.mubr.bf16.mxu0 0
    %1267 = vmatmul.mubr.bf16.gmra.mrb[0].mxu0 %v1054
    %v1268 = vpop.f32.mrb[0].mxu0
    %v1269 = vadd.f32 %v1000, %v1268
    %v1270 = vpop.f32.mrb[0].mxu0
    %v1271 = vpop.f32.mrb[0].mxu0
    %v1272 = vadd.f32 %v1000, %v1271
    %v1273 = vpop.f32.mrb[0].mxu0
    %1274 = vmatprep.mubr.bf16.mxu0 0
    %1275 = vmatmul.mubr.bf16.gmra.mrb[0].mxu0 %v1057
    %v1276 = vpop.f32.mrb[0].mxu0
    %v1277 = vadd.f32 %v1000, %v1276
    %v1278 = vpop.f32.mrb[0].mxu0
    %v1279 = vpop.f32.mrb[0].mxu0
    %v1280 = vadd.f32 %v1000, %v1279
    %v1281 = vpop.f32.mrb[0].mxu0
    %1282 = vmatprep.mubr.bf16.mxu0 0
    %1283 = vmatmul.mubr.bf16.gmra.mrb[0].mxu0 %v1060
    %v1284 = vpop.f32.mrb[0].mxu0
    %v1285 = vadd.f32 %v1000, %v1284
    %v1286 = vpop.f32.mrb[0].mxu0
    %v1287 = vpop.f32.mrb[0].mxu0
    %v1288 = vadd.f32 %v1000, %v1287
    %v1289 = vpop.f32.mrb[0].mxu0
    %1290 = vmatprep.mubr.bf16.mxu0 0
    %1291 = vmatmul.mubr.bf16.gmra.mrb[0].mxu0 %v1063
    %v1292 = vpop.f32.mrb[0].mxu0
    %v1293 = vadd.f32 %v1000, %v1292
    %v1294 = vpop.f32.mrb[0].mxu0
    %v1295 = vpop.f32.mrb[0].mxu0
    %v1296 = vadd.f32 %v1000, %v1295
    %v1297 = vpop.f32.mrb[0].mxu0
    %1298 = vmatprep.mubr.bf16.mxu0 0
    %1299 = vmatmul.mubr.bf16.gmra.mrb[0].mxu0 %v1066
    %v1300 = vpop.f32.mrb[0].mxu0
    %v1301 = vadd.f32 %v1000, %v1300
    %v1302 = vpop.f32.mrb[0].mxu0
    %v1303 = vpop.f32.mrb[0].mxu0
    %v1304 = vadd.f32 %v1000, %v1303
    %v1305 = vpop.f32.mrb[0].mxu0
    %1306 = vmatprep.mubr.bf16.mxu0 0
    %1307 = vmatmul.mubr.bf16.gmra.mrb[0].mxu0 %v1069
    %v1308 = vpop.f32.mrb[0].mxu0
    %v1309 = vadd.f32 %v1000, %v1308
    %v1310 = vpop.f32.mrb[0].mxu0
    %v1311 = vpop.f32.mrb[0].mxu0
    %v1312 = vadd.f32 %v1000, %v1311
    %v1313 = vpop.f32.mrb[0].mxu0
    %1314 = vmatprep.mubr.bf16.mxu0 0
    %1315 = vmatmul.mubr.bf16.gmra.mrb[0].mxu0 %v1072
    %v1316 = vpop.f32.mrb[0].mxu0
    %v1317 = vadd.f32 %v1000, %v1316
    %v1318 = vpop.f32.mrb[0].mxu0
    %v1319 = vpop.f32.mrb[0].mxu0
    %v1320 = vadd.f32 %v1000, %v1319
    %v1321 = vpop.f32.mrb[0].mxu0
    %1322 = vmatprep.mubr.bf16.mxu0 0
    %1323 = vmatmul.mubr.bf16.gmra.mrb[0].mxu0 %v1075
    %v1324 = vpop.f32.mrb[0].mxu0
    %v1325 = vadd.f32 %v1000, %v1324
    %v1326 = vpop.f32.mrb[0].mxu0
    %v1327 = vpop.f32.mrb[0].mxu0
    %v1328 = vadd.f32 %v1000, %v1327
    %v1329 = vpop.f32.mrb[0].mxu0
    %1330 = vmatprep.mubr.bf16.mxu0 0
    %1331 = vmatmul.mubr.bf16.gmra.mrb[0].mxu0 %v1078
    %v1332 = vpop.f32.mrb[0].mxu0
    %v1333 = vadd.f32 %v1000, %v1332
    %v1334 = vpop.f32.mrb[0].mxu0
    %v1335 = vpop.f32.mrb[0].mxu0
    %v1336 = vadd.f32 %v1000, %v1335
    %v1337 = vpop.f32.mrb[0].mxu0
    %1338 = vmatprep.mubr.bf16.mxu0 0
    %1339 = vmatmul.mubr.bf16.gmra.mrb[0].mxu0 %v1081
    %v1340 = vpop.f32.mrb[0].mxu0
    %v1341 = vadd.f32 %v1000, %v1340
    %v1342 = vpop.f32.mrb[0].mxu0
    %v1343 = vpop.f32.mrb[0].mxu0
    %v1344 = vadd.f32 %v1000, %v1343
    %v1345 = vpop.f32.mrb[0].mxu0
    %1346 = vmatprep.mubr.bf16.mxu0 0
    %1347 = vmatmul.mubr.bf16.gmra.mrb[0].mxu0 %v1084
    %v1348 = vpop.f32.mrb[0].mxu0
    %v1349 = vadd.f32 %v1000, %v1348
    %v1350 = vpop.f32.mrb[0].mxu0
    %v1351 = vpop.f32.mrb[0].mxu0
    %v1352 = vadd.f32 %v1000, %v1351
    %v1353 = vpop.f32.mrb[0].mxu0
    %1354 = vmatprep.mubr.bf16.mxu0 0
    %1355 = vmatmul.mubr.bf16.gmra.mrb[0].mxu0 %v1087
    %v1356 = vpop.f32.mrb[0].mxu0
    %v1357 = vadd.f32 %v1000, %v1356
    %v1358 = vpop.f32.mrb[0].mxu0
    %v1359 = vpop.f32.mrb[0].mxu0
    %v1360 = vadd.f32 %v1000, %v1359
    %v1361 = vpop.f32.mrb[0].mxu0
    %1362 = vmatprep.mubr.bf16.mxu0 0
    %1363 = vmatmul.mubr.bf16.gmra.mrb[0].mxu0 %v1090
    %v1364 = vpop.f32.mrb[0].mxu0
    %v1365 = vadd.f32 %v1000, %v1364
    %v1366 = vpop.f32.mrb[0].mxu0
    %v1367 = vpop.f32.mrb[0].mxu0
    %v1368 = vadd.f32 %v1000, %v1367
    %v1369 = vpop.f32.mrb[0].mxu0
    %1370 = vmatprep.mubr.bf16.mxu0 0
    %1371 = vmatmul.mubr.bf16.gmra.mrb[0].mxu0 %v1093
    %v1372 = vpop.f32.mrb[0].mxu0
    %v1373 = vadd.f32 %v1000, %v1372
    %v1374 = vpop.f32.mrb[0].mxu0
    %v1375 = vpop.f32.mrb[0].mxu0
    %v1376 = vadd.f32 %v1000, %v1375
    %v1377 = vpop.f32.mrb[0].mxu0
    %1378 = vmatprep.mubr.bf16.mxu0 0
    %1379 = vmatmul.mubr.bf16.gmra.mrb[0].mxu0 %v1096
    %v1380 = vpop.f32.mrb[0].mxu0
    %v1381 = vadd.f32 %v1000, %v1380
    %v1382 = vpop.f32.mrb[0].mxu0
    %v1383 = vpop.f32.mrb[0].mxu0
    %v1384 = vadd.f32 %v1000, %v1383
    %v1385 = vpop.f32.mrb[0].mxu0
    %1386 = vdwg.mxu0
    %v1387 = vxor.u32 %v1133, 2147483648
    %v1388 = vxor.u32 %v1136, 2147483648
    %v1389 = vxor.u32 %v1141, 2147483648
    %v1390 = vxor.u32 %v1144, 2147483648
    %v1391 = vxor.u32 %v1149, 2147483648
    %v1392 = vxor.u32 %v1152, 2147483648
    %v1393 = vxor.u32 %v1157, 2147483648
    %v1394 = vxor.u32 %v1160, 2147483648
    %v1395 = vxor.u32 %v1165, 2147483648
    %v1396 = vxor.u32 %v1168, 2147483648
    %v1397 = vxor.u32 %v1173, 2147483648
    %v1398 = vxor.u32 %v1176, 2147483648
    %v1399 = vxor.u32 %v1181, 2147483648
    %v1400 = vxor.u32 %v1184, 2147483648
    %v1401 = vxor.u32 %v1189, 2147483648
    %v1402 = vxor.u32 %v1192, 2147483648
    %v1403 = vxor.u32 %v1197, 2147483648
    %v1404 = vxor.u32 %v1200, 2147483648
    %v1405 = vxor.u32 %v1205, 2147483648
    %v1406 = vxor.u32 %v1208, 2147483648
    %v1407 = vxor.u32 %v1213, 2147483648
    %v1408 = vxor.u32 %v1216, 2147483648
    %v1409 = vxor.u32 %v1221, 2147483648
    %v1410 = vxor.u32 %v1224, 2147483648
    %v1411 = vxor.u32 %v1229, 2147483648
    %v1412 = vxor.u32 %v1232, 2147483648
    %v1413 = vxor.u32 %v1237, 2147483648
    %v1414 = vxor.u32 %v1240, 2147483648
    %v1415 = vxor.u32 %v1245, 2147483648
    %v1416 = vxor.u32 %v1248, 2147483648
    %v1417 = vxor.u32 %v1253, 2147483648
    %v1418 = vxor.u32 %v1256, 2147483648
    %v1419 = vxor.u32 %v1261, 2147483648
    %v1420 = vxor.u32 %v1264, 2147483648
    %v1421 = vxor.u32 %v1269, 2147483648
    %v1422 = vxor.u32 %v1272, 2147483648
    %v1423 = vxor.u32 %v1277, 2147483648
    %v1424 = vxor.u32 %v1280, 2147483648
    %v1425 = vxor.u32 %v1285, 2147483648
    %v1426 = vxor.u32 %v1288, 2147483648
    %v1427 = vxor.u32 %v1293, 2147483648
    %v1428 = vxor.u32 %v1296, 2147483648
    %v1429 = vxor.u32 %v1301, 2147483648
    %v1430 = vxor.u32 %v1304, 2147483648
    %v1431 = vxor.u32 %v1309, 2147483648
    %v1432 = vxor.u32 %v1312, 2147483648
    %v1433 = vxor.u32 %v1317, 2147483648
    %v1434 = vxor.u32 %v1320, 2147483648
    %v1435 = vxor.u32 %v1325, 2147483648
    %v1436 = vxor.u32 %v1328, 2147483648
    %v1437 = vxor.u32 %v1333, 2147483648
    %v1438 = vxor.u32 %v1336, 2147483648
    %v1439 = vxor.u32 %v1341, 2147483648
    %v1440 = vxor.u32 %v1344, 2147483648
    %v1441 = vxor.u32 %v1349, 2147483648
    %v1442 = vxor.u32 %v1352, 2147483648
    %v1443 = vxor.u32 %v1357, 2147483648
    %v1444 = vxor.u32 %v1360, 2147483648
    %v1445 = vxor.u32 %v1365, 2147483648
    %v1446 = vxor.u32 %v1368, 2147483648
    %v1447 = vxor.u32 %v1373, 2147483648
    %v1448 = vxor.u32 %v1376, 2147483648
    %v1449 = vxor.u32 %v1381, 2147483648
    %v1450 = vxor.u32 %v1384, 2147483648
    %v1451 = vmul.f32 %v1387, 1.442695
    %v1452 = vpow.pop %v1451
    %v1453 = vmul.f32 %v1388, 1.442695
    %v1454 = vpow.pop %v1453
    %v1455 = vmul.f32 %v1389, 1.442695
    %v1456 = vpow.pop %v1455
    %v1457 = vmul.f32 %v1390, 1.442695
    %v1458 = vpow.pop %v1457
    %v1459 = vmul.f32 %v1391, 1.442695
    %v1460 = vpow.pop %v1459
    %v1461 = vmul.f32 %v1392, 1.442695
    %v1462 = vpow.pop %v1461
    %v1463 = vmul.f32 %v1393, 1.442695
    %v1464 = vpow.pop %v1463
    %v1465 = vmul.f32 %v1394, 1.442695
    %v1466 = vpow.pop %v1465
    %v1467 = vmul.f32 %v1395, 1.442695
    %v1468 = vpow.pop %v1467
    %v1469 = vmul.f32 %v1396, 1.442695
    %v1470 = vpow.pop %v1469
    %v1471 = vmul.f32 %v1397, 1.442695
    %v1472 = vpow.pop %v1471
    %v1473 = vmul.f32 %v1398, 1.442695
    %v1474 = vpow.pop %v1473
    %v1475 = vmul.f32 %v1399, 1.442695
    %v1476 = vpow.pop %v1475
    %v1477 = vmul.f32 %v1400, 1.442695
    %v1478 = vpow.pop %v1477
    %v1479 = vmul.f32 %v1401, 1.442695
    %v1480 = vpow.pop %v1479
    %v1481 = vmul.f32 %v1402, 1.442695
    %v1482 = vpow.pop %v1481
    %v1483 = vmul.f32 %v1403, 1.442695
    %v1484 = vpow.pop %v1483
    %v1485 = vmul.f32 %v1404, 1.442695
    %v1486 = vpow.pop %v1485
    %v1487 = vmul.f32 %v1405, 1.442695
    %v1488 = vpow.pop %v1487
    %v1489 = vmul.f32 %v1406, 1.442695
    %v1490 = vpow.pop %v1489
    %v1491 = vmul.f32 %v1407, 1.442695
    %v1492 = vpow.pop %v1491
    %v1493 = vmul.f32 %v1408, 1.442695
    %v1494 = vpow.pop %v1493
    %v1495 = vmul.f32 %v1409, 1.442695
    %v1496 = vpow.pop %v1495
    %v1497 = vmul.f32 %v1410, 1.442695
    %v1498 = vpow.pop %v1497
    %v1499 = vmul.f32 %v1411, 1.442695
    %v1500 = vpow.pop %v1499
    %v1501 = vmul.f32 %v1412, 1.442695
    %v1502 = vpow.pop %v1501
    %v1503 = vmul.f32 %v1413, 1.442695
    %v1504 = vpow.pop %v1503
    %v1505 = vmul.f32 %v1414, 1.442695
    %v1506 = vpow.pop %v1505
    %v1507 = vmul.f32 %v1415, 1.442695
    %v1508 = vpow.pop %v1507
    %v1509 = vmul.f32 %v1416, 1.442695
    %v1510 = vpow.pop %v1509
    %v1511 = vmul.f32 %v1417, 1.442695
    %v1512 = vpow.pop %v1511
    %v1513 = vmul.f32 %v1418, 1.442695
    %v1514 = vpow.pop %v1513
    %v1515 = vmul.f32 %v1419, 1.442695
    %v1516 = vpow.pop %v1515
    %v1517 = vmul.f32 %v1420, 1.442695
    %v1518 = vpow.pop %v1517
    %v1519 = vmul.f32 %v1421, 1.442695
    %v1520 = vpow.pop %v1519
    %v1521 = vmul.f32 %v1422, 1.442695
    %v1522 = vpow.pop %v1521
    %v1523 = vmul.f32 %v1423, 1.442695
    %v1524 = vpow.pop %v1523
    %v1525 = vmul.f32 %v1424, 1.442695
    %v1526 = vpow.pop %v1525
    %v1527 = vmul.f32 %v1425, 1.442695
    %v1528 = vpow.pop %v1527
    %v1529 = vmul.f32 %v1426, 1.442695
    %v1530 = vpow.pop %v1529
    %v1531 = vmul.f32 %v1427, 1.442695
    %v1532 = vpow.pop %v1531
    %v1533 = vmul.f32 %v1428, 1.442695
    %v1534 = vpow.pop %v1533
    %v1535 = vmul.f32 %v1429, 1.442695
    %v1536 = vpow.pop %v1535
    %v1537 = vmul.f32 %v1430, 1.442695
    %v1538 = vpow.pop %v1537
    %v1539 = vmul.f32 %v1431, 1.442695
    %v1540 = vpow.pop %v1539
    %v1541 = vmul.f32 %v1432, 1.442695
    %v1542 = vpow.pop %v1541
    %v1543 = vmul.f32 %v1433, 1.442695
    %v1544 = vpow.pop %v1543
    %v1545 = vmul.f32 %v1434, 1.442695
    %v1546 = vpow.pop %v1545
    %v1547 = vmul.f32 %v1435, 1.442695
    %v1548 = vpow.pop %v1547
    %v1549 = vmul.f32 %v1436, 1.442695
    %v1550 = vpow.pop %v1549
    %v1551 = vmul.f32 %v1437, 1.442695
    %v1552 = vpow.pop %v1551
    %v1553 = vmul.f32 %v1438, 1.442695
    %v1554 = vpow.pop %v1553
    %v1555 = vmul.f32 %v1439, 1.442695
    %v1556 = vpow.pop %v1555
    %v1557 = vmul.f32 %v1440, 1.442695
    %v1558 = vpow.pop %v1557
    %v1559 = vmul.f32 %v1441, 1.442695
    %v1560 = vpow.pop %v1559
    %v1561 = vmul.f32 %v1442, 1.442695
    %v1562 = vpow.pop %v1561
    %v1563 = vmul.f32 %v1443, 1.442695
    %v1564 = vpow.pop %v1563
    %v1565 = vmul.f32 %v1444, 1.442695
    %v1566 = vpow.pop %v1565
    %v1567 = vmul.f32 %v1445, 1.442695
    %v1568 = vpow.pop %v1567
    %v1569 = vmul.f32 %v1446, 1.442695
    %v1570 = vpow.pop %v1569
    %v1571 = vmul.f32 %v1447, 1.442695
    %v1572 = vpow.pop %v1571
    %v1573 = vmul.f32 %v1448, 1.442695
    %v1574 = vpow.pop %v1573
    %v1575 = vmul.f32 %v1449, 1.442695
    %v1576 = vpow.pop %v1575
    %v1577 = vmul.f32 %v1450, 1.442695
    %v1578 = vpow.pop %v1577
    %v1579 = vadd.f32 %v1452, 1.0
    %v1580 = vadd.f32 %v1454, 1.0
    %v1581 = vadd.f32 %v1456, 1.0
    %v1582 = vadd.f32 %v1458, 1.0
    %v1583 = vadd.f32 %v1460, 1.0
    %v1584 = vadd.f32 %v1462, 1.0
    %v1585 = vadd.f32 %v1464, 1.0
    %v1586 = vadd.f32 %v1466, 1.0
    %v1587 = vadd.f32 %v1468, 1.0
    %v1588 = vadd.f32 %v1470, 1.0
    %v1589 = vadd.f32 %v1472, 1.0
    %v1590 = vadd.f32 %v1474, 1.0
    %v1591 = vadd.f32 %v1476, 1.0
    %v1592 = vadd.f32 %v1478, 1.0
    %v1593 = vadd.f32 %v1480, 1.0
    %v1594 = vadd.f32 %v1482, 1.0
    %v1595 = vadd.f32 %v1484, 1.0
    %v1596 = vadd.f32 %v1486, 1.0
    %v1597 = vadd.f32 %v1488, 1.0
    %v1598 = vadd.f32 %v1490, 1.0
    %v1599 = vadd.f32 %v1492, 1.0
    %v1600 = vadd.f32 %v1494, 1.0
    %v1601 = vadd.f32 %v1496, 1.0
    %v1602 = vadd.f32 %v1498, 1.0
    %v1603 = vadd.f32 %v1500, 1.0
    %v1604 = vadd.f32 %v1502, 1.0
    %v1605 = vadd.f32 %v1504, 1.0
    %v1606 = vadd.f32 %v1506, 1.0
    %v1607 = vadd.f32 %v1508, 1.0
    %v1608 = vadd.f32 %v1510, 1.0
    %v1609 = vadd.f32 %v1512, 1.0
    %v1610 = vadd.f32 %v1514, 1.0
    %v1611 = vadd.f32 %v1516, 1.0
    %v1612 = vadd.f32 %v1518, 1.0
    %v1613 = vadd.f32 %v1520, 1.0
    %v1614 = vadd.f32 %v1522, 1.0
    %v1615 = vadd.f32 %v1524, 1.0
    %v1616 = vadd.f32 %v1526, 1.0
    %v1617 = vadd.f32 %v1528, 1.0
    %v1618 = vadd.f32 %v1530, 1.0
    %v1619 = vadd.f32 %v1532, 1.0
    %v1620 = vadd.f32 %v1534, 1.0
    %v1621 = vadd.f32 %v1536, 1.0
    %v1622 = vadd.f32 %v1538, 1.0
    %v1623 = vadd.f32 %v1540, 1.0
    %v1624 = vadd.f32 %v1542, 1.0
    %v1625 = vadd.f32 %v1544, 1.0
    %v1626 = vadd.f32 %v1546, 1.0
    %v1627 = vadd.f32 %v1548, 1.0
    %v1628 = vadd.f32 %v1550, 1.0
    %v1629 = vadd.f32 %v1552, 1.0
    %v1630 = vadd.f32 %v1554, 1.0
    %v1631 = vadd.f32 %v1556, 1.0
    %v1632 = vadd.f32 %v1558, 1.0
    %v1633 = vadd.f32 %v1560, 1.0
    %v1634 = vadd.f32 %v1562, 1.0
    %v1635 = vadd.f32 %v1564, 1.0
    %v1636 = vadd.f32 %v1566, 1.0
    %v1637 = vadd.f32 %v1568, 1.0
    %v1638 = vadd.f32 %v1570, 1.0
    %v1639 = vadd.f32 %v1572, 1.0
    %v1640 = vadd.f32 %v1574, 1.0
    %v1641 = vadd.f32 %v1576, 1.0
    %v1642 = vadd.f32 %v1578, 1.0
    %v1643 = vrcp.pop %v1579
    %v1644 = vmul.f32 1.0, %v1643
    %v1645 = vrcp.pop %v1580
    %v1646 = vmul.f32 1.0, %v1645
    %v1647 = vrcp.pop %v1581
    %v1648 = vmul.f32 1.0, %v1647
    %v1649 = vrcp.pop %v1582
    %v1650 = vmul.f32 1.0, %v1649
    %v1651 = vrcp.pop %v1583
    %v1652 = vmul.f32 1.0, %v1651
    %v1653 = vrcp.pop %v1584
    %v1654 = vmul.f32 1.0, %v1653
    %v1655 = vrcp.pop %v1585
    %v1656 = vmul.f32 1.0, %v1655
    %v1657 = vrcp.pop %v1586
    %v1658 = vmul.f32 1.0, %v1657
    %v1659 = vrcp.pop %v1587
    %v1660 = vmul.f32 1.0, %v1659
    %v1661 = vrcp.pop %v1588
    %v1662 = vmul.f32 1.0, %v1661
    %v1663 = vrcp.pop %v1589
    %v1664 = vmul.f32 1.0, %v1663
    %v1665 = vrcp.pop %v1590
    %v1666 = vmul.f32 1.0, %v1665
    %v1667 = vrcp.pop %v1591
    %v1668 = vmul.f32 1.0, %v1667
    %v1669 = vrcp.pop %v1592
    %v1670 = vmul.f32 1.0, %v1669
    %v1671 = vrcp.pop %v1593
    %v1672 = vmul.f32 1.0, %v1671
    %v1673 = vrcp.pop %v1594
    %v1674 = vmul.f32 1.0, %v1673
    %v1675 = vrcp.pop %v1595
    %v1676 = vmul.f32 1.0, %v1675
    %v1677 = vrcp.pop %v1596
    %v1678 = vmul.f32 1.0, %v1677
    %v1679 = vrcp.pop %v1597
    %v1680 = vmul.f32 1.0, %v1679
    %v1681 = vrcp.pop %v1598
    %v1682 = vmul.f32 1.0, %v1681
    %v1683 = vrcp.pop %v1599
    %v1684 = vmul.f32 1.0, %v1683
    %v1685 = vrcp.pop %v1600
    %v1686 = vmul.f32 1.0, %v1685
    %v1687 = vrcp.pop %v1601
    %v1688 = vmul.f32 1.0, %v1687
    %v1689 = vrcp.pop %v1602
    %v1690 = vmul.f32 1.0, %v1689
    %v1691 = vrcp.pop %v1603
    %v1692 = vmul.f32 1.0, %v1691
    %v1693 = vrcp.pop %v1604
    %v1694 = vmul.f32 1.0, %v1693
    %v1695 = vrcp.pop %v1605
    %v1696 = vmul.f32 1.0, %v1695
    %v1697 = vrcp.pop %v1606
    %v1698 = vmul.f32 1.0, %v1697
    %v1699 = vrcp.pop %v1607
    %v1700 = vmul.f32 1.0, %v1699
    %v1701 = vrcp.pop %v1608
    %v1702 = vmul.f32 1.0, %v1701
    %v1703 = vrcp.pop %v1609
    %v1704 = vmul.f32 1.0, %v1703
    %v1705 = vrcp.pop %v1610
    %v1706 = vmul.f32 1.0, %v1705
    %v1707 = vrcp.pop %v1611
    %v1708 = vmul.f32 1.0, %v1707
    %v1709 = vrcp.pop %v1612
    %v1710 = vmul.f32 1.0, %v1709
    %v1711 = vrcp.pop %v1613
    %v1712 = vmul.f32 1.0, %v1711
    %v1713 = vrcp.pop %v1614
    %v1714 = vmul.f32 1.0, %v1713
    %v1715 = vrcp.pop %v1615
    %v1716 = vmul.f32 1.0, %v1715
    %v1717 = vrcp.pop %v1616
    %v1718 = vmul.f32 1.0, %v1717
    %v1719 = vrcp.pop %v1617
    %v1720 = vmul.f32 1.0, %v1719
    %v1721 = vrcp.pop %v1618
    %v1722 = vmul.f32 1.0, %v1721
    %v1723 = vrcp.pop %v1619
    %v1724 = vmul.f32 1.0, %v1723
    %v1725 = vrcp.pop %v1620
    %v1726 = vmul.f32 1.0, %v1725
    %v1727 = vrcp.pop %v1621
    %v1728 = vmul.f32 1.0, %v1727
    %v1729 = vrcp.pop %v1622
    %v1730 = vmul.f32 1.0, %v1729
    %v1731 = vrcp.pop %v1623
    %v1732 = vmul.f32 1.0, %v1731
    %v1733 = vrcp.pop %v1624
    %v1734 = vmul.f32 1.0, %v1733
    %v1735 = vrcp.pop %v1625
    %v1736 = vmul.f32 1.0, %v1735
    %v1737 = vrcp.pop %v1626
    %v1738 = vmul.f32 1.0, %v1737
    %v1739 = vrcp.pop %v1627
    %v1740 = vmul.f32 1.0, %v1739
    %v1741 = vrcp.pop %v1628
    %v1742 = vmul.f32 1.0, %v1741
    %v1743 = vrcp.pop %v1629
    %v1744 = vmul.f32 1.0, %v1743
    %v1745 = vrcp.pop %v1630
    %v1746 = vmul.f32 1.0, %v1745
    %v1747 = vrcp.pop %v1631
    %v1748 = vmul.f32 1.0, %v1747
    %v1749 = vrcp.pop %v1632
    %v1750 = vmul.f32 1.0, %v1749
    %v1751 = vrcp.pop %v1633
    %v1752 = vmul.f32 1.0, %v1751
    %v1753 = vrcp.pop %v1634
    %v1754 = vmul.f32 1.0, %v1753
    %v1755 = vrcp.pop %v1635
    %v1756 = vmul.f32 1.0, %v1755
    %v1757 = vrcp.pop %v1636
    %v1758 = vmul.f32 1.0, %v1757
    %v1759 = vrcp.pop %v1637
    %v1760 = vmul.f32 1.0, %v1759
    %v1761 = vrcp.pop %v1638
    %v1762 = vmul.f32 1.0, %v1761
    %v1763 = vrcp.pop %v1639
    %v1764 = vmul.f32 1.0, %v1763
    %v1765 = vrcp.pop %v1640
    %v1766 = vmul.f32 1.0, %v1765
    %v1767 = vrcp.pop %v1641
    %v1768 = vmul.f32 1.0, %v1767
    %v1769 = vrcp.pop %v1642
    %v1770 = vmul.f32 1.0, %v1769
    %v1771 = vmul.f32 %v1133, %v1644
    %v1772 = vmul.f32 %v1136, %v1646
    %v1773 = vmul.f32 %v1141, %v1648
    %v1774 = vmul.f32 %v1144, %v1650
    %v1775 = vmul.f32 %v1149, %v1652
    %v1776 = vmul.f32 %v1152, %v1654
    %v1777 = vmul.f32 %v1157, %v1656
    %v1778 = vmul.f32 %v1160, %v1658
    %v1779 = vmul.f32 %v1165, %v1660
    %v1780 = vmul.f32 %v1168, %v1662
    %v1781 = vmul.f32 %v1173, %v1664
    %v1782 = vmul.f32 %v1176, %v1666
    %v1783 = vmul.f32 %v1181, %v1668
    %v1784 = vmul.f32 %v1184, %v1670
    %v1785 = vmul.f32 %v1189, %v1672
    %v1786 = vmul.f32 %v1192, %v1674
    %v1787 = vmul.f32 %v1197, %v1676
    %v1788 = vmul.f32 %v1200, %v1678
    %v1789 = vmul.f32 %v1205, %v1680
    %v1790 = vmul.f32 %v1208, %v1682
    %v1791 = vmul.f32 %v1213, %v1684
    %v1792 = vmul.f32 %v1216, %v1686
    %v1793 = vmul.f32 %v1221, %v1688
    %v1794 = vmul.f32 %v1224, %v1690
    %v1795 = vmul.f32 %v1229, %v1692
    %v1796 = vmul.f32 %v1232, %v1694
    %v1797 = vmul.f32 %v1237, %v1696
    %v1798 = vmul.f32 %v1240, %v1698
    %v1799 = vmul.f32 %v1245, %v1700
    %v1800 = vmul.f32 %v1248, %v1702
    %v1801 = vmul.f32 %v1253, %v1704
    %v1802 = vmul.f32 %v1256, %v1706
    %v1803 = vmul.f32 %v1261, %v1708
    %v1804 = vmul.f32 %v1264, %v1710
    %v1805 = vmul.f32 %v1269, %v1712
    %v1806 = vmul.f32 %v1272, %v1714
    %v1807 = vmul.f32 %v1277, %v1716
    %v1808 = vmul.f32 %v1280, %v1718
    %v1809 = vmul.f32 %v1285, %v1720
    %v1810 = vmul.f32 %v1288, %v1722
    %v1811 = vmul.f32 %v1293, %v1724
    %v1812 = vmul.f32 %v1296, %v1726
    %v1813 = vmul.f32 %v1301, %v1728
    %v1814 = vmul.f32 %v1304, %v1730
    %v1815 = vmul.f32 %v1309, %v1732
    %v1816 = vmul.f32 %v1312, %v1734
    %v1817 = vmul.f32 %v1317, %v1736
    %v1818 = vmul.f32 %v1320, %v1738
    %v1819 = vmul.f32 %v1325, %v1740
    %v1820 = vmul.f32 %v1328, %v1742
    %v1821 = vmul.f32 %v1333, %v1744
    %v1822 = vmul.f32 %v1336, %v1746
    %v1823 = vmul.f32 %v1341, %v1748
    %v1824 = vmul.f32 %v1344, %v1750
    %v1825 = vmul.f32 %v1349, %v1752
    %v1826 = vmul.f32 %v1352, %v1754
    %v1827 = vmul.f32 %v1357, %v1756
    %v1828 = vmul.f32 %v1360, %v1758
    %v1829 = vmul.f32 %v1365, %v1760
    %v1830 = vmul.f32 %v1368, %v1762
    %v1831 = vmul.f32 %v1373, %v1764
    %v1832 = vmul.f32 %v1376, %v1766
    %v1833 = vmul.f32 %v1381, %v1768
    %v1834 = vmul.f32 %v1384, %v1770
    %vm1835 = vcmask 523264
    %1836 = vst.msk [vmem:[#allocation2] sm:$0xff] %vm1835, 0.0
    %1837 = vst.msk [vmem:[#allocation2 + $0x8] sm:$0xff] %vm1835, 0.0
    %1838 = vst.msk [vmem:[#allocation2 + $0x10] sm:$0xff] %vm1835, 0.0
    %1839 = vst.msk [vmem:[#allocation2 + $0x18] sm:$0xff] %vm1835, 0.0
    %1840 = vst.msk [vmem:[#allocation2 + $0x240] sm:$0xff] %vm1835, 0.0
    %1841 = vst.msk [vmem:[#allocation2 + $0x248] sm:$0xff] %vm1835, 0.0
    %1842 = vst.msk [vmem:[#allocation2 + $0x250] sm:$0xff] %vm1835, 0.0
    %1843 = vst.msk [vmem:[#allocation2 + $0x258] sm:$0xff] %vm1835, 0.0
    %s1844 = scalar_lea.vmem [#allocation2], 544
    %1845 = vst.msk [vmem:[%s1844] sm:$0xff] %vm1835, 0.0
    %1846 = vst.msk [vmem:[%s1844 + $0x8] sm:$0xff] %vm1835, 0.0
    %1847 = vst.msk [vmem:[%s1844 + $0x10] sm:$0xff] %vm1835, 0.0
    %1848 = vst.msk [vmem:[%s1844 + $0x18] sm:$0xff] %vm1835, 0.0
    %1849 = vst.msk [vmem:[%s1844 + $0x240] sm:$0xff] %vm1835, 0.0
    %1850 = vst.msk [vmem:[%s1844 + $0x248] sm:$0xff] %vm1835, 0.0
    %1851 = vst.msk [vmem:[%s1844 + $0x250] sm:$0xff] %vm1835, 0.0
    %1852 = vst.msk [vmem:[%s1844 + $0x258] sm:$0xff] %vm1835, 0.0
    %s1853 = scalar_lea.vmem [#allocation2], 32
    %1854 = vst.msk [vmem:[%s1853] sm:$0xff] %vm1835, 0.0
    %1855 = vst.msk [vmem:[%s1853 + $0x20] sm:$0xff] %vm1835, 0.0
    %1856 = vst.msk [vmem:[%s1853 + $0x40] sm:$0xff] %vm1835, 0.0
    %1857 = vst.msk [vmem:[%s1853 + $0x60] sm:$0xff] %vm1835, 0.0
    %1858 = vst.msk [vmem:[%s1853 + $0x80] sm:$0xff] %vm1835, 0.0
    %1859 = vst.msk [vmem:[%s1853 + $0xa0] sm:$0xff] %vm1835, 0.0
    %1860 = vst.msk [vmem:[%s1853 + $0xc0] sm:$0xff] %vm1835, 0.0
    %1861 = vst.msk [vmem:[%s1853 + $0xe0] sm:$0xff] %vm1835, 0.0
    %1862 = vst.msk [vmem:[%s1853 + $0x100] sm:$0xff] %vm1835, 0.0
    %1863 = vst.msk [vmem:[%s1853 + $0x120] sm:$0xff] %vm1835, 0.0
    %1864 = vst.msk [vmem:[%s1853 + $0x140] sm:$0xff] %vm1835, 0.0
    %1865 = vst.msk [vmem:[%s1853 + $0x160] sm:$0xff] %vm1835, 0.0
    %1866 = vst.msk [vmem:[%s1853 + $0x180] sm:$0xff] %vm1835, 0.0
    %1867 = vst.msk [vmem:[%s1853 + $0x1a0] sm:$0xff] %vm1835, 0.0
    %1868 = vst.msk [vmem:[%s1853 + $0x1c0] sm:$0xff] %vm1835, 0.0
    %1869 = vst.msk [vmem:[%s1853 + $0x1e0] sm:$0xff] %vm1835, 0.0
    %1870 = vst.msk [vmem:[%s1853 + $0x240] sm:$0xff] %vm1835, 0.0
    %1871 = vst.msk [vmem:[%s1853 + $0x260] sm:$0xff] %vm1835, 0.0
    %1872 = vst.msk [vmem:[%s1853 + $0x280] sm:$0xff] %vm1835, 0.0
    %1873 = vst.msk [vmem:[%s1853 + $0x2a0] sm:$0xff] %vm1835, 0.0
    %1874 = vst.msk [vmem:[%s1853 + $0x2c0] sm:$0xff] %vm1835, 0.0
    %1875 = vst.msk [vmem:[%s1853 + $0x2e0] sm:$0xff] %vm1835, 0.0
    %1876 = vst.msk [vmem:[%s1853 + $0x300] sm:$0xff] %vm1835, 0.0
    %1877 = vst.msk [vmem:[%s1853 + $0x320] sm:$0xff] %vm1835, 0.0
    %1878 = vst.msk [vmem:[%s1853 + $0x340] sm:$0xff] %vm1835, 0.0
    %1879 = vst.msk [vmem:[%s1853 + $0x360] sm:$0xff] %vm1835, 0.0
    %1880 = vst.msk [vmem:[%s1853 + $0x380] sm:$0xff] %vm1835, 0.0
    %1881 = vst.msk [vmem:[%s1853 + $0x3a0] sm:$0xff] %vm1835, 0.0
    %1882 = vst.msk [vmem:[%s1853 + $0x3c0] sm:$0xff] %vm1835, 0.0
    %1883 = vst.msk [vmem:[%s1853 + $0x3e0] sm:$0xff] %vm1835, 0.0
    %1884 = vst.msk [vmem:[%s1853 + $0x400] sm:$0xff] %vm1835, 0.0
    %1885 = vst.msk [vmem:[%s1853 + $0x420] sm:$0xff] %vm1835, 0.0
    %1886 = vst.msk [vmem:[%s1853 + $0x18] sm:$0xff] %vm1835, 0.0
    %1887 = vst.msk [vmem:[%s1853 + $0x38] sm:$0xff] %vm1835, 0.0
    %1888 = vst.msk [vmem:[%s1853 + $0x58] sm:$0xff] %vm1835, 0.0
    %1889 = vst.msk [vmem:[%s1853 + $0x78] sm:$0xff] %vm1835, 0.0
    %1890 = vst.msk [vmem:[%s1853 + $0x98] sm:$0xff] %vm1835, 0.0
    %1891 = vst.msk [vmem:[%s1853 + $0xb8] sm:$0xff] %vm1835, 0.0
    %1892 = vst.msk [vmem:[%s1853 + $0xd8] sm:$0xff] %vm1835, 0.0
    %1893 = vst.msk [vmem:[%s1853 + $0xf8] sm:$0xff] %vm1835, 0.0
    %1894 = vst.msk [vmem:[%s1853 + $0x118] sm:$0xff] %vm1835, 0.0
    %1895 = vst.msk [vmem:[%s1853 + $0x138] sm:$0xff] %vm1835, 0.0
    %1896 = vst.msk [vmem:[%s1853 + $0x158] sm:$0xff] %vm1835, 0.0
    %1897 = vst.msk [vmem:[%s1853 + $0x178] sm:$0xff] %vm1835, 0.0
    %1898 = vst.msk [vmem:[%s1853 + $0x198] sm:$0xff] %vm1835, 0.0
    %1899 = vst.msk [vmem:[%s1853 + $0x1b8] sm:$0xff] %vm1835, 0.0
    %1900 = vst.msk [vmem:[%s1853 + $0x1d8] sm:$0xff] %vm1835, 0.0
    %1901 = vst.msk [vmem:[%s1853 + $0x1f8] sm:$0xff] %vm1835, 0.0
    %1902 = vst.msk [vmem:[%s1853 + $0x258] sm:$0xff] %vm1835, 0.0
    %1903 = vst.msk [vmem:[%s1853 + $0x278] sm:$0xff] %vm1835, 0.0
    %1904 = vst.msk [vmem:[%s1853 + $0x298] sm:$0xff] %vm1835, 0.0
    %1905 = vst.msk [vmem:[%s1853 + $0x2b8] sm:$0xff] %vm1835, 0.0
    %1906 = vst.msk [vmem:[%s1853 + $0x2d8] sm:$0xff] %vm1835, 0.0
    %1907 = vst.msk [vmem:[%s1853 + $0x2f8] sm:$0xff] %vm1835, 0.0
    %1908 = vst.msk [vmem:[%s1853 + $0x318] sm:$0xff] %vm1835, 0.0
    %1909 = vst.msk [vmem:[%s1853 + $0x338] sm:$0xff] %vm1835, 0.0
    %1910 = vst.msk [vmem:[%s1853 + $0x358] sm:$0xff] %vm1835, 0.0
    %1911 = vst.msk [vmem:[%s1853 + $0x378] sm:$0xff] %vm1835, 0.0
    %1912 = vst.msk [vmem:[%s1853 + $0x398] sm:$0xff] %vm1835, 0.0
    %1913 = vst.msk [vmem:[%s1853 + $0x3b8] sm:$0xff] %vm1835, 0.0
    %1914 = vst.msk [vmem:[%s1853 + $0x3d8] sm:$0xff] %vm1835, 0.0
    %1915 = vst.msk [vmem:[%s1853 + $0x3f8] sm:$0xff] %vm1835, 0.0
    %1916 = vst.msk [vmem:[%s1853 + $0x418] sm:$0xff] %vm1835, 0.0
    %1917 = vst.msk [vmem:[%s1853 + $0x438] sm:$0xff] %vm1835, 0.0
    %1918 = vst.msk [vmem:[%s1853 + $0x8] sm:$0xff] %vm1835, %v1771
    %1919 = vst.msk [vmem:[%s1853 + $0x10] sm:$0xff] %vm1835, %v1772
    %1920 = vst.msk [vmem:[%s1853 + $0x28] sm:$0xff] %vm1835, %v1773
    %1921 = vst.msk [vmem:[%s1853 + $0x30] sm:$0xff] %vm1835, %v1774
    %1922 = vst.msk [vmem:[%s1853 + $0x48] sm:$0xff] %vm1835, %v1775
    %1923 = vst.msk [vmem:[%s1853 + $0x50] sm:$0xff] %vm1835, %v1776
    %1924 = vst.msk [vmem:[%s1853 + $0x68] sm:$0xff] %vm1835, %v1777
    %1925 = vst.msk [vmem:[%s1853 + $0x70] sm:$0xff] %vm1835, %v1778
    %1926 = vst.msk [vmem:[%s1853 + $0x88] sm:$0xff] %vm1835, %v1779
    %1927 = vst.msk [vmem:[%s1853 + $0x90] sm:$0xff] %vm1835, %v1780
    %1928 = vst.msk [vmem:[%s1853 + $0xa8] sm:$0xff] %vm1835, %v1781
    %1929 = vst.msk [vmem:[%s1853 + $0xb0] sm:$0xff] %vm1835, %v1782
    %1930 = vst.msk [vmem:[%s1853 + $0xc8] sm:$0xff] %vm1835, %v1783
    %1931 = vst.msk [vmem:[%s1853 + $0xd0] sm:$0xff] %vm1835, %v1784
    %1932 = vst.msk [vmem:[%s1853 + $0xe8] sm:$0xff] %vm1835, %v1785
    %1933 = vst.msk [vmem:[%s1853 + $0xf0] sm:$0xff] %vm1835, %v1786
    %1934 = vst.msk [vmem:[%s1853 + $0x108] sm:$0xff] %vm1835, %v1787
    %1935 = vst.msk [vmem:[%s1853 + $0x110] sm:$0xff] %vm1835, %v1788
    %1936 = vst.msk [vmem:[%s1853 + $0x128] sm:$0xff] %vm1835, %v1789
    %1937 = vst.msk [vmem:[%s1853 + $0x130] sm:$0xff] %vm1835, %v1790
    %1938 = vst.msk [vmem:[%s1853 + $0x148] sm:$0xff] %vm1835, %v1791
    %1939 = vst.msk [vmem:[%s1853 + $0x150] sm:$0xff] %vm1835, %v1792
    %1940 = vst.msk [vmem:[%s1853 + $0x168] sm:$0xff] %vm1835, %v1793
    %1941 = vst.msk [vmem:[%s1853 + $0x170] sm:$0xff] %vm1835, %v1794
    %1942 = vst.msk [vmem:[%s1853 + $0x188] sm:$0xff] %vm1835, %v1795
    %1943 = vst.msk [vmem:[%s1853 + $0x190] sm:$0xff] %vm1835, %v1796
    %1944 = vst.msk [vmem:[%s1853 + $0x1a8] sm:$0xff] %vm1835, %v1797
    %1945 = vst.msk [vmem:[%s1853 + $0x1b0] sm:$0xff] %vm1835, %v1798
    %1946 = vst.msk [vmem:[%s1853 + $0x1c8] sm:$0xff] %vm1835, %v1799
    %1947 = vst.msk [vmem:[%s1853 + $0x1d0] sm:$0xff] %vm1835, %v1800
    %1948 = vst.msk [vmem:[%s1853 + $0x1e8] sm:$0xff] %vm1835, %v1801
    %1949 = vst.msk [vmem:[%s1853 + $0x1f0] sm:$0xff] %vm1835, %v1802
    %1950 = vst.msk [vmem:[%s1853 + $0x248] sm:$0xff] %vm1835, %v1803
    %1951 = vst.msk [vmem:[%s1853 + $0x250] sm:$0xff] %vm1835, %v1804
    %1952 = vst.msk [vmem:[%s1853 + $0x268] sm:$0xff] %vm1835, %v1805
    %1953 = vst.msk [vmem:[%s1853 + $0x270] sm:$0xff] %vm1835, %v1806
    %1954 = vst.msk [vmem:[%s1853 + $0x288] sm:$0xff] %vm1835, %v1807
    %1955 = vst.msk [vmem:[%s1853 + $0x290] sm:$0xff] %vm1835, %v1808
    %1956 = vst.msk [vmem:[%s1853 + $0x2a8] sm:$0xff] %vm1835, %v1809
    %1957 = vst.msk [vmem:[%s1853 + $0x2b0] sm:$0xff] %vm1835, %v1810
    %1958 = vst.msk [vmem:[%s1853 + $0x2c8] sm:$0xff] %vm1835, %v1811
    %1959 = vst.msk [vmem:[%s1853 + $0x2d0] sm:$0xff] %vm1835, %v1812
    %1960 = vst.msk [vmem:[%s1853 + $0x2e8] sm:$0xff] %vm1835, %v1813
    %1961 = vst.msk [vmem:[%s1853 + $0x2f0] sm:$0xff] %vm1835, %v1814
    %1962 = vst.msk [vmem:[%s1853 + $0x308] sm:$0xff] %vm1835, %v1815
    %1963 = vst.msk [vmem:[%s1853 + $0x310] sm:$0xff] %vm1835, %v1816
    %1964 = vst.msk [vmem:[%s1853 + $0x328] sm:$0xff] %vm1835, %v1817
    %1965 = vst.msk [vmem:[%s1853 + $0x330] sm:$0xff] %vm1835, %v1818
    %1966 = vst.msk [vmem:[%s1853 + $0x348] sm:$0xff] %vm1835, %v1819
    %1967 = vst.msk [vmem:[%s1853 + $0x350] sm:$0xff] %vm1835, %v1820
    %1968 = vst.msk [vmem:[%s1853 + $0x368] sm:$0xff] %vm1835, %v1821
    %1969 = vst.msk [vmem:[%s1853 + $0x370] sm:$0xff] %vm1835, %v1822
    %1970 = vst.msk [vmem:[%s1853 + $0x388] sm:$0xff] %vm1835, %v1823
    %1971 = vst.msk [vmem:[%s1853 + $0x390] sm:$0xff] %vm1835, %v1824
    %1972 = vst.msk [vmem:[%s1853 + $0x3a8] sm:$0xff] %vm1835, %v1825
    %1973 = vst.msk [vmem:[%s1853 + $0x3b0] sm:$0xff] %vm1835, %v1826
    %1974 = vst.msk [vmem:[%s1853 + $0x3c8] sm:$0xff] %vm1835, %v1827
    %1975 = vst.msk [vmem:[%s1853 + $0x3d0] sm:$0xff] %vm1835, %v1828
    %1976 = vst.msk [vmem:[%s1853 + $0x3e8] sm:$0xff] %vm1835, %v1829
    %1977 = vst.msk [vmem:[%s1853 + $0x3f0] sm:$0xff] %vm1835, %v1830
    %1978 = vst.msk [vmem:[%s1853 + $0x408] sm:$0xff] %vm1835, %v1831
    %1979 = vst.msk [vmem:[%s1853 + $0x410] sm:$0xff] %vm1835, %v1832
    %1980 = vst.msk [vmem:[%s1853 + $0x428] sm:$0xff] %vm1835, %v1833
    %1981 = vst.msk [vmem:[%s1853 + $0x430] sm:$0xff] %vm1835, %v1834
    %v1982 = vld [vmem:[%s1 + $0x40] sm:$0xff]
    %v1983 = vld [vmem:[%s1 + $0x48] sm:$0x1]
    %v1984 = vld [vmem:[#allocation2] sm:$0xff]
    %v1985 = vld [vmem:[#allocation2 + $0x8] sm:$0xff]
    %v1986 = vld [vmem:[#allocation2 + $0x10] sm:$0xff]
    %v1987 = vld [vmem:[#allocation2 + $0x18] sm:$0xff]
    %v1988 = vld [vmem:[#allocation2 + $0x20] sm:$0xff]
    %v1989 = vld [vmem:[#allocation2 + $0x28] sm:$0xff]
    %v1990 = vld [vmem:[#allocation2 + $0x30] sm:$0xff]
    %v1991 = vld [vmem:[#allocation2 + $0x38] sm:$0xff]
    %v1992 = vld [vmem:[#allocation2 + $0x40] sm:$0xff]
    %v1993 = vld [vmem:[#allocation2 + $0x48] sm:$0xff]
    %v1994 = vld [vmem:[#allocation2 + $0x50] sm:$0xff]
    %v1995 = vld [vmem:[#allocation2 + $0x58] sm:$0xff]
    %v1996 = vld [vmem:[#allocation2 + $0x60] sm:$0xff]
    %v1997 = vld [vmem:[#allocation2 + $0x68] sm:$0xff]
    %v1998 = vld [vmem:[#allocation2 + $0x70] sm:$0xff]
    %v1999 = vld [vmem:[#allocation2 + $0x78] sm:$0xff]
    %v2000 = vld [vmem:[#allocation2 + $0x80] sm:$0xff]
    %v2001 = vld [vmem:[#allocation2 + $0x88] sm:$0xff]
    %v2002 = vld [vmem:[#allocation2 + $0x90] sm:$0xff]
    %v2003 = vld [vmem:[#allocation2 + $0x98] sm:$0xff]
    %v2004 = vld [vmem:[#allocation2 + $0xa0] sm:$0xff]
    %v2005 = vld [vmem:[#allocation2 + $0xa8] sm:$0xff]
    %v2006 = vld [vmem:[#allocation2 + $0xb0] sm:$0xff]
    %v2007 = vld [vmem:[#allocation2 + $0xb8] sm:$0xff]
    %v2008 = vld [vmem:[#allocation2 + $0xc0] sm:$0xff]
    %v2009 = vld [vmem:[#allocation2 + $0xc8] sm:$0xff]
    %v2010 = vld [vmem:[#allocation2 + $0xd0] sm:$0xff]
    %v2011 = vld [vmem:[#allocation2 + $0xd8] sm:$0xff]
    %v2012 = vld [vmem:[#allocation2 + $0xe0] sm:$0xff]
    %v2013 = vld [vmem:[#allocation2 + $0xe8] sm:$0xff]
    %v2014 = vld [vmem:[#allocation2 + $0xf0] sm:$0xff]
    %v2015 = vld [vmem:[#allocation2 + $0xf8] sm:$0xff]
    %v2016 = vld [vmem:[#allocation2 + $0x100] sm:$0xff]
    %v2017 = vld [vmem:[#allocation2 + $0x108] sm:$0xff]
    %v2018 = vld [vmem:[#allocation2 + $0x110] sm:$0xff]
    %v2019 = vld [vmem:[#allocation2 + $0x118] sm:$0xff]
    %v2020 = vld [vmem:[#allocation2 + $0x120] sm:$0xff]
    %v2021 = vld [vmem:[#allocation2 + $0x128] sm:$0xff]
    %v2022 = vld [vmem:[#allocation2 + $0x130] sm:$0xff]
    %v2023 = vld [vmem:[#allocation2 + $0x138] sm:$0xff]
    %v2024 = vld [vmem:[#allocation2 + $0x140] sm:$0xff]
    %v2025 = vld [vmem:[#allocation2 + $0x148] sm:$0xff]
    %v2026 = vld [vmem:[#allocation2 + $0x150] sm:$0xff]
    %v2027 = vld [vmem:[#allocation2 + $0x158] sm:$0xff]
    %v2028 = vld [vmem:[#allocation2 + $0x160] sm:$0xff]
    %v2029 = vld [vmem:[#allocation2 + $0x168] sm:$0xff]
    %v2030 = vld [vmem:[#allocation2 + $0x170] sm:$0xff]
    %v2031 = vld [vmem:[#allocation2 + $0x178] sm:$0xff]
    %v2032 = vld [vmem:[#allocation2 + $0x180] sm:$0xff]
    %v2033 = vld [vmem:[#allocation2 + $0x188] sm:$0xff]
    %v2034 = vld [vmem:[#allocation2 + $0x190] sm:$0xff]
    %v2035 = vld [vmem:[#allocation2 + $0x198] sm:$0xff]
    %v2036 = vld [vmem:[#allocation2 + $0x1a0] sm:$0xff]
    %v2037 = vld [vmem:[#allocation2 + $0x1a8] sm:$0xff]
    %v2038 = vld [vmem:[#allocation2 + $0x1b0] sm:$0xff]
    %v2039 = vld [vmem:[#allocation2 + $0x1b8] sm:$0xff]
    %v2040 = vld [vmem:[#allocation2 + $0x1c0] sm:$0xff]
    %v2041 = vld [vmem:[#allocation2 + $0x1c8] sm:$0xff]
    %v2042 = vld [vmem:[#allocation2 + $0x1d0] sm:$0xff]
    %v2043 = vld [vmem:[#allocation2 + $0x1d8] sm:$0xff]
    %v2044 = vld [vmem:[#allocation2 + $0x1e0] sm:$0xff]
    %v2045 = vld [vmem:[#allocation2 + $0x1e8] sm:$0xff]
    %v2046 = vld [vmem:[#allocation2 + $0x1f0] sm:$0xff]
    %v2047 = vld [vmem:[#allocation2 + $0x1f8] sm:$0xff]
    %v2048 = vld [vmem:[#allocation2 + $0x240] sm:$0xff]
    %v2049 = vld [vmem:[#allocation2 + $0x248] sm:$0xff]
    %v2050 = vld [vmem:[#allocation2 + $0x250] sm:$0xff]
    %v2051 = vld [vmem:[#allocation2 + $0x258] sm:$0xff]
    %v2052 = vld [vmem:[#allocation2 + $0x260] sm:$0xff]
    %v2053 = vld [vmem:[#allocation2 + $0x268] sm:$0xff]
    %v2054 = vld [vmem:[#allocation2 + $0x270] sm:$0xff]
    %v2055 = vld [vmem:[#allocation2 + $0x278] sm:$0xff]
    %v2056 = vld [vmem:[#allocation2 + $0x280] sm:$0xff]
    %v2057 = vld [vmem:[#allocation2 + $0x288] sm:$0xff]
    %v2058 = vld [vmem:[#allocation2 + $0x290] sm:$0xff]
    %v2059 = vld [vmem:[#allocation2 + $0x298] sm:$0xff]
    %v2060 = vld [vmem:[#allocation2 + $0x2a0] sm:$0xff]
    %v2061 = vld [vmem:[#allocation2 + $0x2a8] sm:$0xff]
    %v2062 = vld [vmem:[#allocation2 + $0x2b0] sm:$0xff]
    %v2063 = vld [vmem:[#allocation2 + $0x2b8] sm:$0xff]
    %v2064 = vld [vmem:[#allocation2 + $0x2c0] sm:$0xff]
    %v2065 = vld [vmem:[#allocation2 + $0x2c8] sm:$0xff]
    %v2066 = vld [vmem:[#allocation2 + $0x2d0] sm:$0xff]
    %v2067 = vld [vmem:[#allocation2 + $0x2d8] sm:$0xff]
    %v2068 = vld [vmem:[#allocation2 + $0x2e0] sm:$0xff]
    %v2069 = vld [vmem:[#allocation2 + $0x2e8] sm:$0xff]
    %v2070 = vld [vmem:[#allocation2 + $0x2f0] sm:$0xff]
    %v2071 = vld [vmem:[#allocation2 + $0x2f8] sm:$0xff]
    %v2072 = vld [vmem:[#allocation2 + $0x300] sm:$0xff]
    %v2073 = vld [vmem:[#allocation2 + $0x308] sm:$0xff]
    %v2074 = vld [vmem:[#allocation2 + $0x310] sm:$0xff]
    %v2075 = vld [vmem:[#allocation2 + $0x318] sm:$0xff]
    %v2076 = vld [vmem:[#allocation2 + $0x320] sm:$0xff]
    %v2077 = vld [vmem:[#allocation2 + $0x328] sm:$0xff]
    %v2078 = vld [vmem:[#allocation2 + $0x330] sm:$0xff]
    %v2079 = vld [vmem:[#allocation2 + $0x338] sm:$0xff]
    %v2080 = vld [vmem:[#allocation2 + $0x340] sm:$0xff]
    %v2081 = vld [vmem:[#allocation2 + $0x348] sm:$0xff]
    %v2082 = vld [vmem:[#allocation2 + $0x350] sm:$0xff]
    %v2083 = vld [vmem:[#allocation2 + $0x358] sm:$0xff]
    %v2084 = vld [vmem:[#allocation2 + $0x360] sm:$0xff]
    %v2085 = vld [vmem:[#allocation2 + $0x368] sm:$0xff]
    %v2086 = vld [vmem:[#allocation2 + $0x370] sm:$0xff]
    %v2087 = vld [vmem:[#allocation2 + $0x378] sm:$0xff]
    %v2088 = vld [vmem:[#allocation2 + $0x380] sm:$0xff]
    %v2089 = vld [vmem:[#allocation2 + $0x388] sm:$0xff]
    %v2090 = vld [vmem:[#allocation2 + $0x390] sm:$0xff]
    %v2091 = vld [vmem:[#allocation2 + $0x398] sm:$0xff]
    %v2092 = vld [vmem:[#allocation2 + $0x3a0] sm:$0xff]
    %v2093 = vld [vmem:[#allocation2 + $0x3a8] sm:$0xff]
    %v2094 = vld [vmem:[#allocation2 + $0x3b0] sm:$0xff]
    %v2095 = vld [vmem:[#allocation2 + $0x3b8] sm:$0xff]
    %v2096 = vld [vmem:[#allocation2 + $0x3c0] sm:$0xff]
    %v2097 = vld [vmem:[#allocation2 + $0x3c8] sm:$0xff]
    %v2098 = vld [vmem:[#allocation2 + $0x3d0] sm:$0xff]
    %v2099 = vld [vmem:[#allocation2 + $0x3d8] sm:$0xff]
    %v2100 = vld [vmem:[#allocation2 + $0x3e0] sm:$0xff]
    %v2101 = vld [vmem:[#allocation2 + $0x3e8] sm:$0xff]
    %v2102 = vld [vmem:[#allocation2 + $0x3f0] sm:$0xff]
    %v2103 = vld [vmem:[#allocation2 + $0x3f8] sm:$0xff]
    %v2104 = vld [vmem:[#allocation2 + $0x400] sm:$0xff]
    %v2105 = vld [vmem:[#allocation2 + $0x408] sm:$0xff]
    %v2106 = vld [vmem:[#allocation2 + $0x410] sm:$0xff]
    %v2107 = vld [vmem:[#allocation2 + $0x418] sm:$0xff]
    %v2108 = vld [vmem:[#allocation2 + $0x420] sm:$0xff]
    %v2109 = vld [vmem:[#allocation2 + $0x428] sm:$0xff]
    %v2110 = vld [vmem:[#allocation2 + $0x430] sm:$0xff]
    %v2111 = vld [vmem:[#allocation2 + $0x438] sm:$0xff]
    %v2112 = vrot.slane %v1984, 7
    %v2113 = vrot.slane %v1988, 7
    %v2114 = vrot.slane %v1992, 7
    %v2115 = vrot.slane %v1996, 7
    %v2116 = vrot.slane %v2000, 7
    %v2117 = vrot.slane %v2004, 7
    %v2118 = vrot.slane %v2008, 7
    %v2119 = vrot.slane %v2012, 7
    %v2120 = vrot.slane %v2016, 7
    %v2121 = vrot.slane %v2020, 7
    %v2122 = vrot.slane %v2024, 7
    %v2123 = vrot.slane %v2028, 7
    %v2124 = vrot.slane %v2032, 7
    %v2125 = vrot.slane %v2036, 7
    %v2126 = vrot.slane %v2040, 7
    %v2127 = vrot.slane %v2044, 7
    %v2128 = vrot.slane %v2048, 7
    %v2129 = vrot.slane %v2052, 7
    %v2130 = vrot.slane %v2056, 7
    %v2131 = vrot.slane %v2060, 7
    %v2132 = vrot.slane %v2064, 7
    %v2133 = vrot.slane %v2068, 7
    %v2134 = vrot.slane %v2072, 7
    %v2135 = vrot.slane %v2076, 7
    %v2136 = vrot.slane %v2080, 7
    %v2137 = vrot.slane %v2084, 7
    %v2138 = vrot.slane %v2088, 7
    %v2139 = vrot.slane %v2092, 7
    %v2140 = vrot.slane %v2096, 7
    %v2141 = vrot.slane %v2100, 7
    %v2142 = vrot.slane %v2104, 7
    %v2143 = vrot.slane %v2108, 7
    %v2144 = vrot.slane %v1985, 7
    %v2145 = vrot.slane %v1989, 7
    %v2146 = vrot.slane %v1993, 7
    %v2147 = vrot.slane %v1997, 7
    %v2148 = vrot.slane %v2001, 7
    %v2149 = vrot.slane %v2005, 7
    %v2150 = vrot.slane %v2009, 7
    %v2151 = vrot.slane %v2013, 7
    %v2152 = vrot.slane %v2017, 7
    %v2153 = vrot.slane %v2021, 7
    %v2154 = vrot.slane %v2025, 7
    %v2155 = vrot.slane %v2029, 7
    %v2156 = vrot.slane %v2033, 7
    %v2157 = vrot.slane %v2037, 7
    %v2158 = vrot.slane %v2041, 7
    %v2159 = vrot.slane %v2045, 7
    %v2160 = vrot.slane %v2049, 7
    %v2161 = vrot.slane %v2053, 7
    %v2162 = vrot.slane %v2057, 7
    %v2163 = vrot.slane %v2061, 7
    %v2164 = vrot.slane %v2065, 7
    %v2165 = vrot.slane %v2069, 7
    %v2166 = vrot.slane %v2073, 7
    %v2167 = vrot.slane %v2077, 7
    %v2168 = vrot.slane %v2081, 7
    %v2169 = vrot.slane %v2085, 7
    %v2170 = vrot.slane %v2089, 7
    %v2171 = vrot.slane %v2093, 7
    %v2172 = vrot.slane %v2097, 7
    %v2173 = vrot.slane %v2101, 7
    %v2174 = vrot.slane %v2105, 7
    %v2175 = vrot.slane %v2109, 7
    %v2176 = vrot.slane %v1986, 7
    %v2177 = vrot.slane %v1990, 7
    %v2178 = vrot.slane %v1994, 7
    %v2179 = vrot.slane %v1998, 7
    %v2180 = vrot.slane %v2002, 7
    %v2181 = vrot.slane %v2006, 7
    %v2182 = vrot.slane %v2010, 7
    %v2183 = vrot.slane %v2014, 7
    %v2184 = vrot.slane %v2018, 7
    %v2185 = vrot.slane %v2022, 7
    %v2186 = vrot.slane %v2026, 7
    %v2187 = vrot.slane %v2030, 7
    %v2188 = vrot.slane %v2034, 7
    %v2189 = vrot.slane %v2038, 7
    %v2190 = vrot.slane %v2042, 7
    %v2191 = vrot.slane %v2046, 7
    %v2192 = vrot.slane %v2050, 7
    %v2193 = vrot.slane %v2054, 7
    %v2194 = vrot.slane %v2058, 7
    %v2195 = vrot.slane %v2062, 7
    %v2196 = vrot.slane %v2066, 7
    %v2197 = vrot.slane %v2070, 7
    %v2198 = vrot.slane %v2074, 7
    %v2199 = vrot.slane %v2078, 7
    %v2200 = vrot.slane %v2082, 7
    %v2201 = vrot.slane %v2086, 7
    %v2202 = vrot.slane %v2090, 7
    %v2203 = vrot.slane %v2094, 7
    %v2204 = vrot.slane %v2098, 7
    %v2205 = vrot.slane %v2102, 7
    %v2206 = vrot.slane %v2106, 7
    %v2207 = vrot.slane %v2110, 7
    %v2208 = vlaneseq
    %v2209 = vshrl.u32 %v2208, 7
    %vm2210 = vcmp.lt.s32.totalorder %v2209, 1
    %v2211 = vsel %vm2210, %v2144, %v2176
    %v2212 = vsel %vm2210, %v2145, %v2177
    %v2213 = vsel %vm2210, %v2146, %v2178
    %v2214 = vsel %vm2210, %v2147, %v2179
    %v2215 = vsel %vm2210, %v2148, %v2180
    %v2216 = vsel %vm2210, %v2149, %v2181
    %v2217 = vsel %vm2210, %v2150, %v2182
    %v2218 = vsel %vm2210, %v2151, %v2183
    %v2219 = vsel %vm2210, %v2152, %v2184
    %v2220 = vsel %vm2210, %v2153, %v2185
    %v2221 = vsel %vm2210, %v2154, %v2186
    %v2222 = vsel %vm2210, %v2155, %v2187
    %v2223 = vsel %vm2210, %v2156, %v2188
    %v2224 = vsel %vm2210, %v2157, %v2189
    %v2225 = vsel %vm2210, %v2158, %v2190
    %v2226 = vsel %vm2210, %v2159, %v2191
    %v2227 = vsel %vm2210, %v2160, %v2192
    %v2228 = vsel %vm2210, %v2161, %v2193
    %v2229 = vsel %vm2210, %v2162, %v2194
    %v2230 = vsel %vm2210, %v2163, %v2195
    %v2231 = vsel %vm2210, %v2164, %v2196
    %v2232 = vsel %vm2210, %v2165, %v2197
    %v2233 = vsel %vm2210, %v2166, %v2198
    %v2234 = vsel %vm2210, %v2167, %v2199
    %v2235 = vsel %vm2210, %v2168, %v2200
    %v2236 = vsel %vm2210, %v2169, %v2201
    %v2237 = vsel %vm2210, %v2170, %v2202
    %v2238 = vsel %vm2210, %v2171, %v2203
    %v2239 = vsel %vm2210, %v2172, %v2204
    %v2240 = vsel %vm2210, %v2173, %v2205
    %v2241 = vsel %vm2210, %v2174, %v2206
    %v2242 = vsel %vm2210, %v2175, %v2207
    %v2243 = vsel %vm2210, %v2112, %v2144
    %v2244 = vsel %vm2210, %v2113, %v2145
    %v2245 = vsel %vm2210, %v2114, %v2146
    %v2246 = vsel %vm2210, %v2115, %v2147
    %v2247 = vsel %vm2210, %v2116, %v2148
    %v2248 = vsel %vm2210, %v2117, %v2149
    %v2249 = vsel %vm2210, %v2118, %v2150
    %v2250 = vsel %vm2210, %v2119, %v2151
    %v2251 = vsel %vm2210, %v2120, %v2152
    %v2252 = vsel %vm2210, %v2121, %v2153
    %v2253 = vsel %vm2210, %v2122, %v2154
    %v2254 = vsel %vm2210, %v2123, %v2155
    %v2255 = vsel %vm2210, %v2124, %v2156
    %v2256 = vsel %vm2210, %v2125, %v2157
    %v2257 = vsel %vm2210, %v2126, %v2158
    %v2258 = vsel %vm2210, %v2127, %v2159
    %v2259 = vsel %vm2210, %v2128, %v2160
    %v2260 = vsel %vm2210, %v2129, %v2161
    %v2261 = vsel %vm2210, %v2130, %v2162
    %v2262 = vsel %vm2210, %v2131, %v2163
    %v2263 = vsel %vm2210, %v2132, %v2164
    %v2264 = vsel %vm2210, %v2133, %v2165
    %v2265 = vsel %vm2210, %v2134, %v2166
    %v2266 = vsel %vm2210, %v2135, %v2167
    %v2267 = vsel %vm2210, %v2136, %v2168
    %v2268 = vsel %vm2210, %v2137, %v2169
    %v2269 = vsel %vm2210, %v2138, %v2170
    %v2270 = vsel %vm2210, %v2139, %v2171
    %v2271 = vsel %vm2210, %v2140, %v2172
    %v2272 = vsel %vm2210, %v2141, %v2173
    %v2273 = vsel %vm2210, %v2142, %v2174
    %v2274 = vsel %vm2210, %v2143, %v2175
    %v2275 = vlaneseq
    %v2276 = vshrl.u32 %v2275, 7
    %v2277 = vsub.s32 0, %v2276
    %v2278 = vrot.slane %v1982, %v2277
    %v2279 = vmul.f32 %v2243, %v2278
    %v2280 = vmul.f32 %v2211, %v2278
    %v2281 = vmul.f32 %v2244, %v2278
    %v2282 = vmul.f32 %v2212, %v2278
    %v2283 = vmul.f32 %v2245, %v2278
    %v2284 = vmul.f32 %v2213, %v2278
    %v2285 = vmul.f32 %v2246, %v2278
    %v2286 = vmul.f32 %v2214, %v2278
    %v2287 = vmul.f32 %v2247, %v2278
    %v2288 = vmul.f32 %v2215, %v2278
    %v2289 = vmul.f32 %v2248, %v2278
    %v2290 = vmul.f32 %v2216, %v2278
    %v2291 = vmul.f32 %v2249, %v2278
    %v2292 = vmul.f32 %v2217, %v2278
    %v2293 = vmul.f32 %v2250, %v2278
    %v2294 = vmul.f32 %v2218, %v2278
    %v2295 = vmul.f32 %v2251, %v2278
    %v2296 = vmul.f32 %v2219, %v2278
    %v2297 = vmul.f32 %v2252, %v2278
    %v2298 = vmul.f32 %v2220, %v2278
    %v2299 = vmul.f32 %v2253, %v2278
    %v2300 = vmul.f32 %v2221, %v2278
    %v2301 = vmul.f32 %v2254, %v2278
    %v2302 = vmul.f32 %v2222, %v2278
    %v2303 = vmul.f32 %v2255, %v2278
    %v2304 = vmul.f32 %v2223, %v2278
    %v2305 = vmul.f32 %v2256, %v2278
    %v2306 = vmul.f32 %v2224, %v2278
    %v2307 = vmul.f32 %v2257, %v2278
    %v2308 = vmul.f32 %v2225, %v2278
    %v2309 = vmul.f32 %v2258, %v2278
    %v2310 = vmul.f32 %v2226, %v2278
    %v2311 = vmul.f32 %v2259, %v2278
    %v2312 = vmul.f32 %v2227, %v2278
    %v2313 = vmul.f32 %v2260, %v2278
    %v2314 = vmul.f32 %v2228, %v2278
    %v2315 = vmul.f32 %v2261, %v2278
    %v2316 = vmul.f32 %v2229, %v2278
    %v2317 = vmul.f32 %v2262, %v2278
    %v2318 = vmul.f32 %v2230, %v2278
    %v2319 = vmul.f32 %v2263, %v2278
    %v2320 = vmul.f32 %v2231, %v2278
    %v2321 = vmul.f32 %v2264, %v2278
    %v2322 = vmul.f32 %v2232, %v2278
    %v2323 = vmul.f32 %v2265, %v2278
    %v2324 = vmul.f32 %v2233, %v2278
    %v2325 = vmul.f32 %v2266, %v2278
    %v2326 = vmul.f32 %v2234, %v2278
    %v2327 = vmul.f32 %v2267, %v2278
    %v2328 = vmul.f32 %v2235, %v2278
    %v2329 = vmul.f32 %v2268, %v2278
    %v2330 = vmul.f32 %v2236, %v2278
    %v2331 = vmul.f32 %v2269, %v2278
    %v2332 = vmul.f32 %v2237, %v2278
    %v2333 = vmul.f32 %v2270, %v2278
    %v2334 = vmul.f32 %v2238, %v2278
    %v2335 = vmul.f32 %v2271, %v2278
    %v2336 = vmul.f32 %v2239, %v2278
    %v2337 = vmul.f32 %v2272, %v2278
    %v2338 = vmul.f32 %v2240, %v2278
    %v2339 = vmul.f32 %v2273, %v2278
    %v2340 = vmul.f32 %v2241, %v2278
    %v2341 = vmul.f32 %v2274, %v2278
    %v2342 = vmul.f32 %v2242, %v2278
    %v2343 = vadd.f32 %v2279, 0.0
    %v2344 = vadd.f32 %v2280, 0.0
    %v2345 = vadd.f32 %v2281, 0.0
    %v2346 = vadd.f32 %v2282, 0.0
    %v2347 = vadd.f32 %v2283, 0.0
    %v2348 = vadd.f32 %v2284, 0.0
    %v2349 = vadd.f32 %v2285, 0.0
    %v2350 = vadd.f32 %v2286, 0.0
    %v2351 = vadd.f32 %v2287, 0.0
    %v2352 = vadd.f32 %v2288, 0.0
    %v2353 = vadd.f32 %v2289, 0.0
    %v2354 = vadd.f32 %v2290, 0.0
    %v2355 = vadd.f32 %v2291, 0.0
    %v2356 = vadd.f32 %v2292, 0.0
    %v2357 = vadd.f32 %v2293, 0.0
    %v2358 = vadd.f32 %v2294, 0.0
    %v2359 = vadd.f32 %v2295, 0.0
    %v2360 = vadd.f32 %v2296, 0.0
    %v2361 = vadd.f32 %v2297, 0.0
    %v2362 = vadd.f32 %v2298, 0.0
    %v2363 = vadd.f32 %v2299, 0.0
    %v2364 = vadd.f32 %v2300, 0.0
    %v2365 = vadd.f32 %v2301, 0.0
    %v2366 = vadd.f32 %v2302, 0.0
    %v2367 = vadd.f32 %v2303, 0.0
    %v2368 = vadd.f32 %v2304, 0.0
    %v2369 = vadd.f32 %v2305, 0.0
    %v2370 = vadd.f32 %v2306, 0.0
    %v2371 = vadd.f32 %v2307, 0.0
    %v2372 = vadd.f32 %v2308, 0.0
    %v2373 = vadd.f32 %v2309, 0.0
    %v2374 = vadd.f32 %v2310, 0.0
    %v2375 = vadd.f32 %v2311, 0.0
    %v2376 = vadd.f32 %v2312, 0.0
    %v2377 = vadd.f32 %v2313, 0.0
    %v2378 = vadd.f32 %v2314, 0.0
    %v2379 = vadd.f32 %v2315, 0.0
    %v2380 = vadd.f32 %v2316, 0.0
    %v2381 = vadd.f32 %v2317, 0.0
    %v2382 = vadd.f32 %v2318, 0.0
    %v2383 = vadd.f32 %v2319, 0.0
    %v2384 = vadd.f32 %v2320, 0.0
    %v2385 = vadd.f32 %v2321, 0.0
    %v2386 = vadd.f32 %v2322, 0.0
    %v2387 = vadd.f32 %v2323, 0.0
    %v2388 = vadd.f32 %v2324, 0.0
    %v2389 = vadd.f32 %v2325, 0.0
    %v2390 = vadd.f32 %v2326, 0.0
    %v2391 = vadd.f32 %v2327, 0.0
    %v2392 = vadd.f32 %v2328, 0.0
    %v2393 = vadd.f32 %v2329, 0.0
    %v2394 = vadd.f32 %v2330, 0.0
    %v2395 = vadd.f32 %v2331, 0.0
    %v2396 = vadd.f32 %v2332, 0.0
    %v2397 = vadd.f32 %v2333, 0.0
    %v2398 = vadd.f32 %v2334, 0.0
    %v2399 = vadd.f32 %v2335, 0.0
    %v2400 = vadd.f32 %v2336, 0.0
    %v2401 = vadd.f32 %v2337, 0.0
    %v2402 = vadd.f32 %v2338, 0.0
    %v2403 = vadd.f32 %v2339, 0.0
    %v2404 = vadd.f32 %v2340, 0.0
    %v2405 = vadd.f32 %v2341, 0.0
    %v2406 = vadd.f32 %v2342, 0.0
    %v2407 = vlaneseq
    %v2408 = vshrl.u32 %v2407, 7
    %v2409 = vsub.s32 1, %v2408
    %v2410 = vrot.slane %v1982, %v2409
    %v2411 = vmul.f32 %v1985, %v2410
    %v2412 = vmul.f32 %v1986, %v2410
    %v2413 = vmul.f32 %v1989, %v2410
    %v2414 = vmul.f32 %v1990, %v2410
    %v2415 = vmul.f32 %v1993, %v2410
    %v2416 = vmul.f32 %v1994, %v2410
    %v2417 = vmul.f32 %v1997, %v2410
    %v2418 = vmul.f32 %v1998, %v2410
    %v2419 = vmul.f32 %v2001, %v2410
    %v2420 = vmul.f32 %v2002, %v2410
    %v2421 = vmul.f32 %v2005, %v2410
    %v2422 = vmul.f32 %v2006, %v2410
    %v2423 = vmul.f32 %v2009, %v2410
    %v2424 = vmul.f32 %v2010, %v2410
    %v2425 = vmul.f32 %v2013, %v2410
    %v2426 = vmul.f32 %v2014, %v2410
    %v2427 = vmul.f32 %v2017, %v2410
    %v2428 = vmul.f32 %v2018, %v2410
    %v2429 = vmul.f32 %v2021, %v2410
    %v2430 = vmul.f32 %v2022, %v2410
    %v2431 = vmul.f32 %v2025, %v2410
    %v2432 = vmul.f32 %v2026, %v2410
    %v2433 = vmul.f32 %v2029, %v2410
    %v2434 = vmul.f32 %v2030, %v2410
    %v2435 = vmul.f32 %v2033, %v2410
    %v2436 = vmul.f32 %v2034, %v2410
    %v2437 = vmul.f32 %v2037, %v2410
    %v2438 = vmul.f32 %v2038, %v2410
    %v2439 = vmul.f32 %v2041, %v2410
    %v2440 = vmul.f32 %v2042, %v2410
    %v2441 = vmul.f32 %v2045, %v2410
    %v2442 = vmul.f32 %v2046, %v2410
    %v2443 = vmul.f32 %v2049, %v2410
    %v2444 = vmul.f32 %v2050, %v2410
    %v2445 = vmul.f32 %v2053, %v2410
    %v2446 = vmul.f32 %v2054, %v2410
    %v2447 = vmul.f32 %v2057, %v2410
    %v2448 = vmul.f32 %v2058, %v2410
    %v2449 = vmul.f32 %v2061, %v2410
    %v2450 = vmul.f32 %v2062, %v2410
    %v2451 = vmul.f32 %v2065, %v2410
    %v2452 = vmul.f32 %v2066, %v2410
    %v2453 = vmul.f32 %v2069, %v2410
    %v2454 = vmul.f32 %v2070, %v2410
    %v2455 = vmul.f32 %v2073, %v2410
    %v2456 = vmul.f32 %v2074, %v2410
    %v2457 = vmul.f32 %v2077, %v2410
    %v2458 = vmul.f32 %v2078, %v2410
    %v2459 = vmul.f32 %v2081, %v2410
    %v2460 = vmul.f32 %v2082, %v2410
    %v2461 = vmul.f32 %v2085, %v2410
    %v2462 = vmul.f32 %v2086, %v2410
    %v2463 = vmul.f32 %v2089, %v2410
    %v2464 = vmul.f32 %v2090, %v2410
    %v2465 = vmul.f32 %v2093, %v2410
    %v2466 = vmul.f32 %v2094, %v2410
    %v2467 = vmul.f32 %v2097, %v2410
    %v2468 = vmul.f32 %v2098, %v2410
    %v2469 = vmul.f32 %v2101, %v2410
    %v2470 = vmul.f32 %v2102, %v2410
    %v2471 = vmul.f32 %v2105, %v2410
    %v2472 = vmul.f32 %v2106, %v2410
    %v2473 = vmul.f32 %v2109, %v2410
    %v2474 = vmul.f32 %v2110, %v2410
    %v2475 = vadd.f32 %v2343, %v2411
    %v2476 = vadd.f32 %v2344, %v2412
    %v2477 = vadd.f32 %v2345, %v2413
    %v2478 = vadd.f32 %v2346, %v2414
    %v2479 = vadd.f32 %v2347, %v2415
    %v2480 = vadd.f32 %v2348, %v2416
    %v2481 = vadd.f32 %v2349, %v2417
    %v2482 = vadd.f32 %v2350, %v2418
    %v2483 = vadd.f32 %v2351, %v2419
    %v2484 = vadd.f32 %v2352, %v2420
    %v2485 = vadd.f32 %v2353, %v2421
    %v2486 = vadd.f32 %v2354, %v2422
    %v2487 = vadd.f32 %v2355, %v2423
    %v2488 = vadd.f32 %v2356, %v2424
    %v2489 = vadd.f32 %v2357, %v2425
    %v2490 = vadd.f32 %v2358, %v2426
    %v2491 = vadd.f32 %v2359, %v2427
    %v2492 = vadd.f32 %v2360, %v2428
    %v2493 = vadd.f32 %v2361, %v2429
    %v2494 = vadd.f32 %v2362, %v2430
    %v2495 = vadd.f32 %v2363, %v2431
    %v2496 = vadd.f32 %v2364, %v2432
    %v2497 = vadd.f32 %v2365, %v2433
    %v2498 = vadd.f32 %v2366, %v2434
    %v2499 = vadd.f32 %v2367, %v2435
    %v2500 = vadd.f32 %v2368, %v2436
    %v2501 = vadd.f32 %v2369, %v2437
    %v2502 = vadd.f32 %v2370, %v2438
    %v2503 = vadd.f32 %v2371, %v2439
    %v2504 = vadd.f32 %v2372, %v2440
    %v2505 = vadd.f32 %v2373, %v2441
    %v2506 = vadd.f32 %v2374, %v2442
    %v2507 = vadd.f32 %v2375, %v2443
    %v2508 = vadd.f32 %v2376, %v2444
    %v2509 = vadd.f32 %v2377, %v2445
    %v2510 = vadd.f32 %v2378, %v2446
    %v2511 = vadd.f32 %v2379, %v2447
    %v2512 = vadd.f32 %v2380, %v2448
    %v2513 = vadd.f32 %v2381, %v2449
    %v2514 = vadd.f32 %v2382, %v2450
    %v2515 = vadd.f32 %v2383, %v2451
    %v2516 = vadd.f32 %v2384, %v2452
    %v2517 = vadd.f32 %v2385, %v2453
    %v2518 = vadd.f32 %v2386, %v2454
    %v2519 = vadd.f32 %v2387, %v2455
    %v2520 = vadd.f32 %v2388, %v2456
    %v2521 = vadd.f32 %v2389, %v2457
    %v2522 = vadd.f32 %v2390, %v2458
    %v2523 = vadd.f32 %v2391, %v2459
    %v2524 = vadd.f32 %v2392, %v2460
    %v2525 = vadd.f32 %v2393, %v2461
    %v2526 = vadd.f32 %v2394, %v2462
    %v2527 = vadd.f32 %v2395, %v2463
    %v2528 = vadd.f32 %v2396, %v2464
    %v2529 = vadd.f32 %v2397, %v2465
    %v2530 = vadd.f32 %v2398, %v2466
    %v2531 = vadd.f32 %v2399, %v2467
    %v2532 = vadd.f32 %v2400, %v2468
    %v2533 = vadd.f32 %v2401, %v2469
    %v2534 = vadd.f32 %v2402, %v2470
    %v2535 = vadd.f32 %v2403, %v2471
    %v2536 = vadd.f32 %v2404, %v2472
    %v2537 = vadd.f32 %v2405, %v2473
    %v2538 = vadd.f32 %v2406, %v2474
    %v2539 = vrot.slane %v1985, 1
    %v2540 = vrot.slane %v1989, 1
    %v2541 = vrot.slane %v1993, 1
    %v2542 = vrot.slane %v1997, 1
    %v2543 = vrot.slane %v2001, 1
    %v2544 = vrot.slane %v2005, 1
    %v2545 = vrot.slane %v2009, 1
    %v2546 = vrot.slane %v2013, 1
    %v2547 = vrot.slane %v2017, 1
    %v2548 = vrot.slane %v2021, 1
    %v2549 = vrot.slane %v2025, 1
    %v2550 = vrot.slane %v2029, 1
    %v2551 = vrot.slane %v2033, 1
    %v2552 = vrot.slane %v2037, 1
    %v2553 = vrot.slane %v2041, 1
    %v2554 = vrot.slane %v2045, 1
    %v2555 = vrot.slane %v2049, 1
    %v2556 = vrot.slane %v2053, 1
    %v2557 = vrot.slane %v2057, 1
    %v2558 = vrot.slane %v2061, 1
    %v2559 = vrot.slane %v2065, 1
    %v2560 = vrot.slane %v2069, 1
    %v2561 = vrot.slane %v2073, 1
    %v2562 = vrot.slane %v2077, 1
    %v2563 = vrot.slane %v2081, 1
    %v2564 = vrot.slane %v2085, 1
    %v2565 = vrot.slane %v2089, 1
    %v2566 = vrot.slane %v2093, 1
    %v2567 = vrot.slane %v2097, 1
    %v2568 = vrot.slane %v2101, 1
    %v2569 = vrot.slane %v2105, 1
    %v2570 = vrot.slane %v2109, 1
    %v2571 = vrot.slane %v1986, 1
    %v2572 = vrot.slane %v1990, 1
    %v2573 = vrot.slane %v1994, 1
    %v2574 = vrot.slane %v1998, 1
    %v2575 = vrot.slane %v2002, 1
    %v2576 = vrot.slane %v2006, 1
    %v2577 = vrot.slane %v2010, 1
    %v2578 = vrot.slane %v2014, 1
    %v2579 = vrot.slane %v2018, 1
    %v2580 = vrot.slane %v2022, 1
    %v2581 = vrot.slane %v2026, 1
    %v2582 = vrot.slane %v2030, 1
    %v2583 = vrot.slane %v2034, 1
    %v2584 = vrot.slane %v2038, 1
    %v2585 = vrot.slane %v2042, 1
    %v2586 = vrot.slane %v2046, 1
    %v2587 = vrot.slane %v2050, 1
    %v2588 = vrot.slane %v2054, 1
    %v2589 = vrot.slane %v2058, 1
    %v2590 = vrot.slane %v2062, 1
    %v2591 = vrot.slane %v2066, 1
    %v2592 = vrot.slane %v2070, 1
    %v2593 = vrot.slane %v2074, 1
    %v2594 = vrot.slane %v2078, 1
    %v2595 = vrot.slane %v2082, 1
    %v2596 = vrot.slane %v2086, 1
    %v2597 = vrot.slane %v2090, 1
    %v2598 = vrot.slane %v2094, 1
    %v2599 = vrot.slane %v2098, 1
    %v2600 = vrot.slane %v2102, 1
    %v2601 = vrot.slane %v2106, 1
    %v2602 = vrot.slane %v2110, 1
    %v2603 = vrot.slane %v1987, 1
    %v2604 = vrot.slane %v1991, 1
    %v2605 = vrot.slane %v1995, 1
    %v2606 = vrot.slane %v1999, 1
    %v2607 = vrot.slane %v2003, 1
    %v2608 = vrot.slane %v2007, 1
    %v2609 = vrot.slane %v2011, 1
    %v2610 = vrot.slane %v2015, 1
    %v2611 = vrot.slane %v2019, 1
    %v2612 = vrot.slane %v2023, 1
    %v2613 = vrot.slane %v2027, 1
    %v2614 = vrot.slane %v2031, 1
    %v2615 = vrot.slane %v2035, 1
    %v2616 = vrot.slane %v2039, 1
    %v2617 = vrot.slane %v2043, 1
    %v2618 = vrot.slane %v2047, 1
    %v2619 = vrot.slane %v2051, 1
    %v2620 = vrot.slane %v2055, 1
    %v2621 = vrot.slane %v2059, 1
    %v2622 = vrot.slane %v2063, 1
    %v2623 = vrot.slane %v2067, 1
    %v2624 = vrot.slane %v2071, 1
    %v2625 = vrot.slane %v2075, 1
    %v2626 = vrot.slane %v2079, 1
    %v2627 = vrot.slane %v2083, 1
    %v2628 = vrot.slane %v2087, 1
    %v2629 = vrot.slane %v2091, 1
    %v2630 = vrot.slane %v2095, 1
    %v2631 = vrot.slane %v2099, 1
    %v2632 = vrot.slane %v2103, 1
    %v2633 = vrot.slane %v2107, 1
    %v2634 = vrot.slane %v2111, 1
    %vm2635 = vcmp.lt.s32.totalorder %v2209, 7
    %v2636 = vsel %vm2635, %v2571, %v2603
    %v2637 = vsel %vm2635, %v2572, %v2604
    %v2638 = vsel %vm2635, %v2573, %v2605
    %v2639 = vsel %vm2635, %v2574, %v2606
    %v2640 = vsel %vm2635, %v2575, %v2607
    %v2641 = vsel %vm2635, %v2576, %v2608
    %v2642 = vsel %vm2635, %v2577, %v2609
    %v2643 = vsel %vm2635, %v2578, %v2610
    %v2644 = vsel %vm2635, %v2579, %v2611
    %v2645 = vsel %vm2635, %v2580, %v2612
    %v2646 = vsel %vm2635, %v2581, %v2613
    %v2647 = vsel %vm2635, %v2582, %v2614
    %v2648 = vsel %vm2635, %v2583, %v2615
    %v2649 = vsel %vm2635, %v2584, %v2616
    %v2650 = vsel %vm2635, %v2585, %v2617
    %v2651 = vsel %vm2635, %v2586, %v2618
    %v2652 = vsel %vm2635, %v2587, %v2619
    %v2653 = vsel %vm2635, %v2588, %v2620
    %v2654 = vsel %vm2635, %v2589, %v2621
    %v2655 = vsel %vm2635, %v2590, %v2622
    %v2656 = vsel %vm2635, %v2591, %v2623
    %v2657 = vsel %vm2635, %v2592, %v2624
    %v2658 = vsel %vm2635, %v2593, %v2625
    %v2659 = vsel %vm2635, %v2594, %v2626
    %v2660 = vsel %vm2635, %v2595, %v2627
    %v2661 = vsel %vm2635, %v2596, %v2628
    %v2662 = vsel %vm2635, %v2597, %v2629
    %v2663 = vsel %vm2635, %v2598, %v2630
    %v2664 = vsel %vm2635, %v2599, %v2631
    %v2665 = vsel %vm2635, %v2600, %v2632
    %v2666 = vsel %vm2635, %v2601, %v2633
    %v2667 = vsel %vm2635, %v2602, %v2634
    %v2668 = vsel %vm2635, %v2539, %v2571
    %v2669 = vsel %vm2635, %v2540, %v2572
    %v2670 = vsel %vm2635, %v2541, %v2573
    %v2671 = vsel %vm2635, %v2542, %v2574
    %v2672 = vsel %vm2635, %v2543, %v2575
    %v2673 = vsel %vm2635, %v2544, %v2576
    %v2674 = vsel %vm2635, %v2545, %v2577
    %v2675 = vsel %vm2635, %v2546, %v2578
    %v2676 = vsel %vm2635, %v2547, %v2579
    %v2677 = vsel %vm2635, %v2548, %v2580
    %v2678 = vsel %vm2635, %v2549, %v2581
    %v2679 = vsel %vm2635, %v2550, %v2582
    %v2680 = vsel %vm2635, %v2551, %v2583
    %v2681 = vsel %vm2635, %v2552, %v2584
    %v2682 = vsel %vm2635, %v2553, %v2585
    %v2683 = vsel %vm2635, %v2554, %v2586
    %v2684 = vsel %vm2635, %v2555, %v2587
    %v2685 = vsel %vm2635, %v2556, %v2588
    %v2686 = vsel %vm2635, %v2557, %v2589
    %v2687 = vsel %vm2635, %v2558, %v2590
    %v2688 = vsel %vm2635, %v2559, %v2591
    %v2689 = vsel %vm2635, %v2560, %v2592
    %v2690 = vsel %vm2635, %v2561, %v2593
    %v2691 = vsel %vm2635, %v2562, %v2594
    %v2692 = vsel %vm2635, %v2563, %v2595
    %v2693 = vsel %vm2635, %v2564, %v2596
    %v2694 = vsel %vm2635, %v2565, %v2597
    %v2695 = vsel %vm2635, %v2566, %v2598
    %v2696 = vsel %vm2635, %v2567, %v2599
    %v2697 = vsel %vm2635, %v2568, %v2600
    %v2698 = vsel %vm2635, %v2569, %v2601
    %v2699 = vsel %vm2635, %v2570, %v2602
    %v2700 = vlaneseq
    %v2701 = vshrl.u32 %v2700, 7
    %v2702 = vsub.s32 2, %v2701
    %v2703 = vrot.slane %v1982, %v2702
    %v2704 = vmul.f32 %v2668, %v2703
    %v2705 = vmul.f32 %v2636, %v2703
    %v2706 = vmul.f32 %v2669, %v2703
    %v2707 = vmul.f32 %v2637, %v2703
    %v2708 = vmul.f32 %v2670, %v2703
    %v2709 = vmul.f32 %v2638, %v2703
    %v2710 = vmul.f32 %v2671, %v2703
    %v2711 = vmul.f32 %v2639, %v2703
    %v2712 = vmul.f32 %v2672, %v2703
    %v2713 = vmul.f32 %v2640, %v2703
    %v2714 = vmul.f32 %v2673, %v2703
    %v2715 = vmul.f32 %v2641, %v2703
    %v2716 = vmul.f32 %v2674, %v2703
    %v2717 = vmul.f32 %v2642, %v2703
    %v2718 = vmul.f32 %v2675, %v2703
    %v2719 = vmul.f32 %v2643, %v2703
    %v2720 = vmul.f32 %v2676, %v2703
    %v2721 = vmul.f32 %v2644, %v2703
    %v2722 = vmul.f32 %v2677, %v2703
    %v2723 = vmul.f32 %v2645, %v2703
    %v2724 = vmul.f32 %v2678, %v2703
    %v2725 = vmul.f32 %v2646, %v2703
    %v2726 = vmul.f32 %v2679, %v2703
    %v2727 = vmul.f32 %v2647, %v2703
    %v2728 = vmul.f32 %v2680, %v2703
    %v2729 = vmul.f32 %v2648, %v2703
    %v2730 = vmul.f32 %v2681, %v2703
    %v2731 = vmul.f32 %v2649, %v2703
    %v2732 = vmul.f32 %v2682, %v2703
    %v2733 = vmul.f32 %v2650, %v2703
    %v2734 = vmul.f32 %v2683, %v2703
    %v2735 = vmul.f32 %v2651, %v2703
    %v2736 = vmul.f32 %v2684, %v2703
    %v2737 = vmul.f32 %v2652, %v2703
    %v2738 = vmul.f32 %v2685, %v2703
    %v2739 = vmul.f32 %v2653, %v2703
    %v2740 = vmul.f32 %v2686, %v2703
    %v2741 = vmul.f32 %v2654, %v2703
    %v2742 = vmul.f32 %v2687, %v2703
    %v2743 = vmul.f32 %v2655, %v2703
    %v2744 = vmul.f32 %v2688, %v2703
    %v2745 = vmul.f32 %v2656, %v2703
    %v2746 = vmul.f32 %v2689, %v2703
    %v2747 = vmul.f32 %v2657, %v2703
    %v2748 = vmul.f32 %v2690, %v2703
    %v2749 = vmul.f32 %v2658, %v2703
    %v2750 = vmul.f32 %v2691, %v2703
    %v2751 = vmul.f32 %v2659, %v2703
    %v2752 = vmul.f32 %v2692, %v2703
    %v2753 = vmul.f32 %v2660, %v2703
    %v2754 = vmul.f32 %v2693, %v2703
    %v2755 = vmul.f32 %v2661, %v2703
    %v2756 = vmul.f32 %v2694, %v2703
    %v2757 = vmul.f32 %v2662, %v2703
    %v2758 = vmul.f32 %v2695, %v2703
    %v2759 = vmul.f32 %v2663, %v2703
    %v2760 = vmul.f32 %v2696, %v2703
    %v2761 = vmul.f32 %v2664, %v2703
    %v2762 = vmul.f32 %v2697, %v2703
    %v2763 = vmul.f32 %v2665, %v2703
    %v2764 = vmul.f32 %v2698, %v2703
    %v2765 = vmul.f32 %v2666, %v2703
    %v2766 = vmul.f32 %v2699, %v2703
    %v2767 = vmul.f32 %v2667, %v2703
    %v2768 = vadd.f32 %v2475, %v2704
    %v2769 = vadd.f32 %v2476, %v2705
    %v2770 = vadd.f32 %v2477, %v2706
    %v2771 = vadd.f32 %v2478, %v2707
    %v2772 = vadd.f32 %v2479, %v2708
    %v2773 = vadd.f32 %v2480, %v2709
    %v2774 = vadd.f32 %v2481, %v2710
    %v2775 = vadd.f32 %v2482, %v2711
    %v2776 = vadd.f32 %v2483, %v2712
    %v2777 = vadd.f32 %v2484, %v2713
    %v2778 = vadd.f32 %v2485, %v2714
    %v2779 = vadd.f32 %v2486, %v2715
    %v2780 = vadd.f32 %v2487, %v2716
    %v2781 = vadd.f32 %v2488, %v2717
    %v2782 = vadd.f32 %v2489, %v2718
    %v2783 = vadd.f32 %v2490, %v2719
    %v2784 = vadd.f32 %v2491, %v2720
    %v2785 = vadd.f32 %v2492, %v2721
    %v2786 = vadd.f32 %v2493, %v2722
    %v2787 = vadd.f32 %v2494, %v2723
    %v2788 = vadd.f32 %v2495, %v2724
    %v2789 = vadd.f32 %v2496, %v2725
    %v2790 = vadd.f32 %v2497, %v2726
    %v2791 = vadd.f32 %v2498, %v2727
    %v2792 = vadd.f32 %v2499, %v2728
    %v2793 = vadd.f32 %v2500, %v2729
    %v2794 = vadd.f32 %v2501, %v2730
    %v2795 = vadd.f32 %v2502, %v2731
    %v2796 = vadd.f32 %v2503, %v2732
    %v2797 = vadd.f32 %v2504, %v2733
    %v2798 = vadd.f32 %v2505, %v2734
    %v2799 = vadd.f32 %v2506, %v2735
    %v2800 = vadd.f32 %v2507, %v2736
    %v2801 = vadd.f32 %v2508, %v2737
    %v2802 = vadd.f32 %v2509, %v2738
    %v2803 = vadd.f32 %v2510, %v2739
    %v2804 = vadd.f32 %v2511, %v2740
    %v2805 = vadd.f32 %v2512, %v2741
    %v2806 = vadd.f32 %v2513, %v2742
    %v2807 = vadd.f32 %v2514, %v2743
    %v2808 = vadd.f32 %v2515, %v2744
    %v2809 = vadd.f32 %v2516, %v2745
    %v2810 = vadd.f32 %v2517, %v2746
    %v2811 = vadd.f32 %v2518, %v2747
    %v2812 = vadd.f32 %v2519, %v2748
    %v2813 = vadd.f32 %v2520, %v2749
    %v2814 = vadd.f32 %v2521, %v2750
    %v2815 = vadd.f32 %v2522, %v2751
    %v2816 = vadd.f32 %v2523, %v2752
    %v2817 = vadd.f32 %v2524, %v2753
    %v2818 = vadd.f32 %v2525, %v2754
    %v2819 = vadd.f32 %v2526, %v2755
    %v2820 = vadd.f32 %v2527, %v2756
    %v2821 = vadd.f32 %v2528, %v2757
    %v2822 = vadd.f32 %v2529, %v2758
    %v2823 = vadd.f32 %v2530, %v2759
    %v2824 = vadd.f32 %v2531, %v2760
    %v2825 = vadd.f32 %v2532, %v2761
    %v2826 = vadd.f32 %v2533, %v2762
    %v2827 = vadd.f32 %v2534, %v2763
    %v2828 = vadd.f32 %v2535, %v2764
    %v2829 = vadd.f32 %v2536, %v2765
    %v2830 = vadd.f32 %v2537, %v2766
    %v2831 = vadd.f32 %v2538, %v2767
    %v2832 = vld [vmem:[%s1853] sm:$0xff]
    %v2833 = vld [vmem:[%s1853 + $0x8] sm:$0xff]
    %v2834 = vld [vmem:[%s1853 + $0x10] sm:$0xff]
    %v2835 = vld [vmem:[%s1853 + $0x18] sm:$0xff]
    %v2836 = vld [vmem:[%s1853 + $0x20] sm:$0xff]
    %v2837 = vld [vmem:[%s1853 + $0x28] sm:$0xff]
    %v2838 = vld [vmem:[%s1853 + $0x30] sm:$0xff]
    %v2839 = vld [vmem:[%s1853 + $0x38] sm:$0xff]
    %v2840 = vld [vmem:[%s1853 + $0x40] sm:$0xff]
    %v2841 = vld [vmem:[%s1853 + $0x48] sm:$0xff]
    %v2842 = vld [vmem:[%s1853 + $0x50] sm:$0xff]
    %v2843 = vld [vmem:[%s1853 + $0x58] sm:$0xff]
    %v2844 = vld [vmem:[%s1853 + $0x60] sm:$0xff]
    %v2845 = vld [vmem:[%s1853 + $0x68] sm:$0xff]
    %v2846 = vld [vmem:[%s1853 + $0x70] sm:$0xff]
    %v2847 = vld [vmem:[%s1853 + $0x78] sm:$0xff]
    %v2848 = vld [vmem:[%s1853 + $0x80] sm:$0xff]
    %v2849 = vld [vmem:[%s1853 + $0x88] sm:$0xff]
    %v2850 = vld [vmem:[%s1853 + $0x90] sm:$0xff]
    %v2851 = vld [vmem:[%s1853 + $0x98] sm:$0xff]
    %v2852 = vld [vmem:[%s1853 + $0xa0] sm:$0xff]
    %v2853 = vld [vmem:[%s1853 + $0xa8] sm:$0xff]
    %v2854 = vld [vmem:[%s1853 + $0xb0] sm:$0xff]
    %v2855 = vld [vmem:[%s1853 + $0xb8] sm:$0xff]
    %v2856 = vld [vmem:[%s1853 + $0xc0] sm:$0xff]
    %v2857 = vld [vmem:[%s1853 + $0xc8] sm:$0xff]
    %v2858 = vld [vmem:[%s1853 + $0xd0] sm:$0xff]
    %v2859 = vld [vmem:[%s1853 + $0xd8] sm:$0xff]
    %v2860 = vld [vmem:[%s1853 + $0xe0] sm:$0xff]
    %v2861 = vld [vmem:[%s1853 + $0xe8] sm:$0xff]
    %v2862 = vld [vmem:[%s1853 + $0xf0] sm:$0xff]
    %v2863 = vld [vmem:[%s1853 + $0xf8] sm:$0xff]
    %v2864 = vld [vmem:[%s1853 + $0x100] sm:$0xff]
    %v2865 = vld [vmem:[%s1853 + $0x108] sm:$0xff]
    %v2866 = vld [vmem:[%s1853 + $0x110] sm:$0xff]
    %v2867 = vld [vmem:[%s1853 + $0x118] sm:$0xff]
    %v2868 = vld [vmem:[%s1853 + $0x120] sm:$0xff]
    %v2869 = vld [vmem:[%s1853 + $0x128] sm:$0xff]
    %v2870 = vld [vmem:[%s1853 + $0x130] sm:$0xff]
    %v2871 = vld [vmem:[%s1853 + $0x138] sm:$0xff]
    %v2872 = vld [vmem:[%s1853 + $0x140] sm:$0xff]
    %v2873 = vld [vmem:[%s1853 + $0x148] sm:$0xff]
    %v2874 = vld [vmem:[%s1853 + $0x150] sm:$0xff]
    %v2875 = vld [vmem:[%s1853 + $0x158] sm:$0xff]
    %v2876 = vld [vmem:[%s1853 + $0x160] sm:$0xff]
    %v2877 = vld [vmem:[%s1853 + $0x168] sm:$0xff]
    %v2878 = vld [vmem:[%s1853 + $0x170] sm:$0xff]
    %v2879 = vld [vmem:[%s1853 + $0x178] sm:$0xff]
    %v2880 = vld [vmem:[%s1853 + $0x180] sm:$0xff]
    %v2881 = vld [vmem:[%s1853 + $0x188] sm:$0xff]
    %v2882 = vld [vmem:[%s1853 + $0x190] sm:$0xff]
    %v2883 = vld [vmem:[%s1853 + $0x198] sm:$0xff]
    %v2884 = vld [vmem:[%s1853 + $0x1a0] sm:$0xff]
    %v2885 = vld [vmem:[%s1853 + $0x1a8] sm:$0xff]
    %v2886 = vld [vmem:[%s1853 + $0x1b0] sm:$0xff]
    %v2887 = vld [vmem:[%s1853 + $0x1b8] sm:$0xff]
    %v2888 = vld [vmem:[%s1853 + $0x1c0] sm:$0xff]
    %v2889 = vld [vmem:[%s1853 + $0x1c8] sm:$0xff]
    %v2890 = vld [vmem:[%s1853 + $0x1d0] sm:$0xff]
    %v2891 = vld [vmem:[%s1853 + $0x1d8] sm:$0xff]
    %v2892 = vld [vmem:[%s1853 + $0x1e0] sm:$0xff]
    %v2893 = vld [vmem:[%s1853 + $0x1e8] sm:$0xff]
    %v2894 = vld [vmem:[%s1853 + $0x1f0] sm:$0xff]
    %v2895 = vld [vmem:[%s1853 + $0x1f8] sm:$0xff]
    %v2896 = vld [vmem:[%s1853 + $0x240] sm:$0xff]
    %v2897 = vld [vmem:[%s1853 + $0x248] sm:$0xff]
    %v2898 = vld [vmem:[%s1853 + $0x250] sm:$0xff]
    %v2899 = vld [vmem:[%s1853 + $0x258] sm:$0xff]
    %v2900 = vld [vmem:[%s1853 + $0x260] sm:$0xff]
    %v2901 = vld [vmem:[%s1853 + $0x268] sm:$0xff]
    %v2902 = vld [vmem:[%s1853 + $0x270] sm:$0xff]
    %v2903 = vld [vmem:[%s1853 + $0x278] sm:$0xff]
    %v2904 = vld [vmem:[%s1853 + $0x280] sm:$0xff]
    %v2905 = vld [vmem:[%s1853 + $0x288] sm:$0xff]
    %v2906 = vld [vmem:[%s1853 + $0x290] sm:$0xff]
    %v2907 = vld [vmem:[%s1853 + $0x298] sm:$0xff]
    %v2908 = vld [vmem:[%s1853 + $0x2a0] sm:$0xff]
    %v2909 = vld [vmem:[%s1853 + $0x2a8] sm:$0xff]
    %v2910 = vld [vmem:[%s1853 + $0x2b0] sm:$0xff]
    %v2911 = vld [vmem:[%s1853 + $0x2b8] sm:$0xff]
    %v2912 = vld [vmem:[%s1853 + $0x2c0] sm:$0xff]
    %v2913 = vld [vmem:[%s1853 + $0x2c8] sm:$0xff]
    %v2914 = vld [vmem:[%s1853 + $0x2d0] sm:$0xff]
    %v2915 = vld [vmem:[%s1853 + $0x2d8] sm:$0xff]
    %v2916 = vld [vmem:[%s1853 + $0x2e0] sm:$0xff]
    %v2917 = vld [vmem:[%s1853 + $0x2e8] sm:$0xff]
    %v2918 = vld [vmem:[%s1853 + $0x2f0] sm:$0xff]
    %v2919 = vld [vmem:[%s1853 + $0x2f8] sm:$0xff]
    %v2920 = vld [vmem:[%s1853 + $0x300] sm:$0xff]
    %v2921 = vld [vmem:[%s1853 + $0x308] sm:$0xff]
    %v2922 = vld [vmem:[%s1853 + $0x310] sm:$0xff]
    %v2923 = vld [vmem:[%s1853 + $0x318] sm:$0xff]
    %v2924 = vld [vmem:[%s1853 + $0x320] sm:$0xff]
    %v2925 = vld [vmem:[%s1853 + $0x328] sm:$0xff]
    %v2926 = vld [vmem:[%s1853 + $0x330] sm:$0xff]
    %v2927 = vld [vmem:[%s1853 + $0x338] sm:$0xff]
    %v2928 = vld [vmem:[%s1853 + $0x340] sm:$0xff]
    %v2929 = vld [vmem:[%s1853 + $0x348] sm:$0xff]
    %v2930 = vld [vmem:[%s1853 + $0x350] sm:$0xff]
    %v2931 = vld [vmem:[%s1853 + $0x358] sm:$0xff]
    %v2932 = vld [vmem:[%s1853 + $0x360] sm:$0xff]
    %v2933 = vld [vmem:[%s1853 + $0x368] sm:$0xff]
    %v2934 = vld [vmem:[%s1853 + $0x370] sm:$0xff]
    %v2935 = vld [vmem:[%s1853 + $0x378] sm:$0xff]
    %v2936 = vld [vmem:[%s1853 + $0x380] sm:$0xff]
    %v2937 = vld [vmem:[%s1853 + $0x388] sm:$0xff]
    %v2938 = vld [vmem:[%s1853 + $0x390] sm:$0xff]
    %v2939 = vld [vmem:[%s1853 + $0x398] sm:$0xff]
    %v2940 = vld [vmem:[%s1853 + $0x3a0] sm:$0xff]
    %v2941 = vld [vmem:[%s1853 + $0x3a8] sm:$0xff]
    %v2942 = vld [vmem:[%s1853 + $0x3b0] sm:$0xff]
    %v2943 = vld [vmem:[%s1853 + $0x3b8] sm:$0xff]
    %v2944 = vld [vmem:[%s1853 + $0x3c0] sm:$0xff]
    %v2945 = vld [vmem:[%s1853 + $0x3c8] sm:$0xff]
    %v2946 = vld [vmem:[%s1853 + $0x3d0] sm:$0xff]
    %v2947 = vld [vmem:[%s1853 + $0x3d8] sm:$0xff]
    %v2948 = vld [vmem:[%s1853 + $0x3e0] sm:$0xff]
    %v2949 = vld [vmem:[%s1853 + $0x3e8] sm:$0xff]
    %v2950 = vld [vmem:[%s1853 + $0x3f0] sm:$0xff]
    %v2951 = vld [vmem:[%s1853 + $0x3f8] sm:$0xff]
    %v2952 = vld [vmem:[%s1853 + $0x400] sm:$0xff]
    %v2953 = vld [vmem:[%s1853 + $0x408] sm:$0xff]
    %v2954 = vld [vmem:[%s1853 + $0x410] sm:$0xff]
    %v2955 = vld [vmem:[%s1853 + $0x418] sm:$0xff]
    %v2956 = vld [vmem:[%s1853 + $0x420] sm:$0xff]
    %v2957 = vld [vmem:[%s1853 + $0x428] sm:$0xff]
    %v2958 = vld [vmem:[%s1853 + $0x430] sm:$0xff]
    %v2959 = vld [vmem:[%s1853 + $0x438] sm:$0xff]
    %v2960 = vrot.slane %v2832, 7
    %v2961 = vrot.slane %v2836, 7
    %v2962 = vrot.slane %v2840, 7
    %v2963 = vrot.slane %v2844, 7
    %v2964 = vrot.slane %v2848, 7
    %v2965 = vrot.slane %v2852, 7
    %v2966 = vrot.slane %v2856, 7
    %v2967 = vrot.slane %v2860, 7
    %v2968 = vrot.slane %v2864, 7
    %v2969 = vrot.slane %v2868, 7
    %v2970 = vrot.slane %v2872, 7
    %v2971 = vrot.slane %v2876, 7
    %v2972 = vrot.slane %v2880, 7
    %v2973 = vrot.slane %v2884, 7
    %v2974 = vrot.slane %v2888, 7
    %v2975 = vrot.slane %v2892, 7
    %v2976 = vrot.slane %v2896, 7
    %v2977 = vrot.slane %v2900, 7
    %v2978 = vrot.slane %v2904, 7
    %v2979 = vrot.slane %v2908, 7
    %v2980 = vrot.slane %v2912, 7
    %v2981 = vrot.slane %v2916, 7
    %v2982 = vrot.slane %v2920, 7
    %v2983 = vrot.slane %v2924, 7
    %v2984 = vrot.slane %v2928, 7
    %v2985 = vrot.slane %v2932, 7
    %v2986 = vrot.slane %v2936, 7
    %v2987 = vrot.slane %v2940, 7
    %v2988 = vrot.slane %v2944, 7
    %v2989 = vrot.slane %v2948, 7
    %v2990 = vrot.slane %v2952, 7
    %v2991 = vrot.slane %v2956, 7
    %v2992 = vrot.slane %v2833, 7
    %v2993 = vrot.slane %v2837, 7
    %v2994 = vrot.slane %v2841, 7
    %v2995 = vrot.slane %v2845, 7
    %v2996 = vrot.slane %v2849, 7
    %v2997 = vrot.slane %v2853, 7
    %v2998 = vrot.slane %v2857, 7
    %v2999 = vrot.slane %v2861, 7
    %v3000 = vrot.slane %v2865, 7
    %v3001 = vrot.slane %v2869, 7
    %v3002 = vrot.slane %v2873, 7
    %v3003 = vrot.slane %v2877, 7
    %v3004 = vrot.slane %v2881, 7
    %v3005 = vrot.slane %v2885, 7
    %v3006 = vrot.slane %v2889, 7
    %v3007 = vrot.slane %v2893, 7
    %v3008 = vrot.slane %v2897, 7
    %v3009 = vrot.slane %v2901, 7
    %v3010 = vrot.slane %v2905, 7
    %v3011 = vrot.slane %v2909, 7
    %v3012 = vrot.slane %v2913, 7
    %v3013 = vrot.slane %v2917, 7
    %v3014 = vrot.slane %v2921, 7
    %v3015 = vrot.slane %v2925, 7
    %v3016 = vrot.slane %v2929, 7
    %v3017 = vrot.slane %v2933, 7
    %v3018 = vrot.slane %v2937, 7
    %v3019 = vrot.slane %v2941, 7
    %v3020 = vrot.slane %v2945, 7
    %v3021 = vrot.slane %v2949, 7
    %v3022 = vrot.slane %v2953, 7
    %v3023 = vrot.slane %v2957, 7
    %v3024 = vrot.slane %v2834, 7
    %v3025 = vrot.slane %v2838, 7
    %v3026 = vrot.slane %v2842, 7
    %v3027 = vrot.slane %v2846, 7
    %v3028 = vrot.slane %v2850, 7
    %v3029 = vrot.slane %v2854, 7
    %v3030 = vrot.slane %v2858, 7
    %v3031 = vrot.slane %v2862, 7
    %v3032 = vrot.slane %v2866, 7
    %v3033 = vrot.slane %v2870, 7
    %v3034 = vrot.slane %v2874, 7
    %v3035 = vrot.slane %v2878, 7
    %v3036 = vrot.slane %v2882, 7
    %v3037 = vrot.slane %v2886, 7
    %v3038 = vrot.slane %v2890, 7
    %v3039 = vrot.slane %v2894, 7
    %v3040 = vrot.slane %v2898, 7
    %v3041 = vrot.slane %v2902, 7
    %v3042 = vrot.slane %v2906, 7
    %v3043 = vrot.slane %v2910, 7
    %v3044 = vrot.slane %v2914, 7
    %v3045 = vrot.slane %v2918, 7
    %v3046 = vrot.slane %v2922, 7
    %v3047 = vrot.slane %v2926, 7
    %v3048 = vrot.slane %v2930, 7
    %v3049 = vrot.slane %v2934, 7
    %v3050 = vrot.slane %v2938, 7
    %v3051 = vrot.slane %v2942, 7
    %v3052 = vrot.slane %v2946, 7
    %v3053 = vrot.slane %v2950, 7
    %v3054 = vrot.slane %v2954, 7
    %v3055 = vrot.slane %v2958, 7
    %v3056 = vsel %vm2210, %v2992, %v3024
    %v3057 = vsel %vm2210, %v2993, %v3025
    %v3058 = vsel %vm2210, %v2994, %v3026
    %v3059 = vsel %vm2210, %v2995, %v3027
    %v3060 = vsel %vm2210, %v2996, %v3028
    %v3061 = vsel %vm2210, %v2997, %v3029
    %v3062 = vsel %vm2210, %v2998, %v3030
    %v3063 = vsel %vm2210, %v2999, %v3031
    %v3064 = vsel %vm2210, %v3000, %v3032
    %v3065 = vsel %vm2210, %v3001, %v3033
    %v3066 = vsel %vm2210, %v3002, %v3034
    %v3067 = vsel %vm2210, %v3003, %v3035
    %v3068 = vsel %vm2210, %v3004, %v3036
    %v3069 = vsel %vm2210, %v3005, %v3037
    %v3070 = vsel %vm2210, %v3006, %v3038
    %v3071 = vsel %vm2210, %v3007, %v3039
    %v3072 = vsel %vm2210, %v3008, %v3040
    %v3073 = vsel %vm2210, %v3009, %v3041
    %v3074 = vsel %vm2210, %v3010, %v3042
    %v3075 = vsel %vm2210, %v3011, %v3043
    %v3076 = vsel %vm2210, %v3012, %v3044
    %v3077 = vsel %vm2210, %v3013, %v3045
    %v3078 = vsel %vm2210, %v3014, %v3046
    %v3079 = vsel %vm2210, %v3015, %v3047
    %v3080 = vsel %vm2210, %v3016, %v3048
    %v3081 = vsel %vm2210, %v3017, %v3049
    %v3082 = vsel %vm2210, %v3018, %v3050
    %v3083 = vsel %vm2210, %v3019, %v3051
    %v3084 = vsel %vm2210, %v3020, %v3052
    %v3085 = vsel %vm2210, %v3021, %v3053
    %v3086 = vsel %vm2210, %v3022, %v3054
    %v3087 = vsel %vm2210, %v3023, %v3055
    %v3088 = vsel %vm2210, %v2960, %v2992
    %v3089 = vsel %vm2210, %v2961, %v2993
    %v3090 = vsel %vm2210, %v2962, %v2994
    %v3091 = vsel %vm2210, %v2963, %v2995
    %v3092 = vsel %vm2210, %v2964, %v2996
    %v3093 = vsel %vm2210, %v2965, %v2997
    %v3094 = vsel %vm2210, %v2966, %v2998
    %v3095 = vsel %vm2210, %v2967, %v2999
    %v3096 = vsel %vm2210, %v2968, %v3000
    %v3097 = vsel %vm2210, %v2969, %v3001
    %v3098 = vsel %vm2210, %v2970, %v3002
    %v3099 = vsel %vm2210, %v2971, %v3003
    %v3100 = vsel %vm2210, %v2972, %v3004
    %v3101 = vsel %vm2210, %v2973, %v3005
    %v3102 = vsel %vm2210, %v2974, %v3006
    %v3103 = vsel %vm2210, %v2975, %v3007
    %v3104 = vsel %vm2210, %v2976, %v3008
    %v3105 = vsel %vm2210, %v2977, %v3009
    %v3106 = vsel %vm2210, %v2978, %v3010
    %v3107 = vsel %vm2210, %v2979, %v3011
    %v3108 = vsel %vm2210, %v2980, %v3012
    %v3109 = vsel %vm2210, %v2981, %v3013
    %v3110 = vsel %vm2210, %v2982, %v3014
    %v3111 = vsel %vm2210, %v2983, %v3015
    %v3112 = vsel %vm2210, %v2984, %v3016
    %v3113 = vsel %vm2210, %v2985, %v3017
    %v3114 = vsel %vm2210, %v2986, %v3018
    %v3115 = vsel %vm2210, %v2987, %v3019
    %v3116 = vsel %vm2210, %v2988, %v3020
    %v3117 = vsel %vm2210, %v2989, %v3021
    %v3118 = vsel %vm2210, %v2990, %v3022
    %v3119 = vsel %vm2210, %v2991, %v3023
    %v3120 = vlaneseq
    %v3121 = vshrl.u32 %v3120, 7
    %v3122 = vsub.s32 3, %v3121
    %v3123 = vrot.slane %v1982, %v3122
    %v3124 = vmul.f32 %v3088, %v3123
    %v3125 = vmul.f32 %v3056, %v3123
    %v3126 = vmul.f32 %v3089, %v3123
    %v3127 = vmul.f32 %v3057, %v3123
    %v3128 = vmul.f32 %v3090, %v3123
    %v3129 = vmul.f32 %v3058, %v3123
    %v3130 = vmul.f32 %v3091, %v3123
    %v3131 = vmul.f32 %v3059, %v3123
    %v3132 = vmul.f32 %v3092, %v3123
    %v3133 = vmul.f32 %v3060, %v3123
    %v3134 = vmul.f32 %v3093, %v3123
    %v3135 = vmul.f32 %v3061, %v3123
    %v3136 = vmul.f32 %v3094, %v3123
    %v3137 = vmul.f32 %v3062, %v3123
    %v3138 = vmul.f32 %v3095, %v3123
    %v3139 = vmul.f32 %v3063, %v3123
    %v3140 = vmul.f32 %v3096, %v3123
    %v3141 = vmul.f32 %v3064, %v3123
    %v3142 = vmul.f32 %v3097, %v3123
    %v3143 = vmul.f32 %v3065, %v3123
    %v3144 = vmul.f32 %v3098, %v3123
    %v3145 = vmul.f32 %v3066, %v3123
    %v3146 = vmul.f32 %v3099, %v3123
    %v3147 = vmul.f32 %v3067, %v3123
    %v3148 = vmul.f32 %v3100, %v3123
    %v3149 = vmul.f32 %v3068, %v3123
    %v3150 = vmul.f32 %v3101, %v3123
    %v3151 = vmul.f32 %v3069, %v3123
    %v3152 = vmul.f32 %v3102, %v3123
    %v3153 = vmul.f32 %v3070, %v3123
    %v3154 = vmul.f32 %v3103, %v3123
    %v3155 = vmul.f32 %v3071, %v3123
    %v3156 = vmul.f32 %v3104, %v3123
    %v3157 = vmul.f32 %v3072, %v3123
    %v3158 = vmul.f32 %v3105, %v3123
    %v3159 = vmul.f32 %v3073, %v3123
    %v3160 = vmul.f32 %v3106, %v3123
    %v3161 = vmul.f32 %v3074, %v3123
    %v3162 = vmul.f32 %v3107, %v3123
    %v3163 = vmul.f32 %v3075, %v3123
    %v3164 = vmul.f32 %v3108, %v3123
    %v3165 = vmul.f32 %v3076, %v3123
    %v3166 = vmul.f32 %v3109, %v3123
    %v3167 = vmul.f32 %v3077, %v3123
    %v3168 = vmul.f32 %v3110, %v3123
    %v3169 = vmul.f32 %v3078, %v3123
    %v3170 = vmul.f32 %v3111, %v3123
    %v3171 = vmul.f32 %v3079, %v3123
    %v3172 = vmul.f32 %v3112, %v3123
    %v3173 = vmul.f32 %v3080, %v3123
    %v3174 = vmul.f32 %v3113, %v3123
    %v3175 = vmul.f32 %v3081, %v3123
    %v3176 = vmul.f32 %v3114, %v3123
    %v3177 = vmul.f32 %v3082, %v3123
    %v3178 = vmul.f32 %v3115, %v3123
    %v3179 = vmul.f32 %v3083, %v3123
    %v3180 = vmul.f32 %v3116, %v3123
    %v3181 = vmul.f32 %v3084, %v3123
    %v3182 = vmul.f32 %v3117, %v3123
    %v3183 = vmul.f32 %v3085, %v3123
    %v3184 = vmul.f32 %v3118, %v3123
    %v3185 = vmul.f32 %v3086, %v3123
    %v3186 = vmul.f32 %v3119, %v3123
    %v3187 = vmul.f32 %v3087, %v3123
    %v3188 = vadd.f32 %v2768, %v3124
    %v3189 = vadd.f32 %v2769, %v3125
    %v3190 = vadd.f32 %v2770, %v3126
    %v3191 = vadd.f32 %v2771, %v3127
    %v3192 = vadd.f32 %v2772, %v3128
    %v3193 = vadd.f32 %v2773, %v3129
    %v3194 = vadd.f32 %v2774, %v3130
    %v3195 = vadd.f32 %v2775, %v3131
    %v3196 = vadd.f32 %v2776, %v3132
    %v3197 = vadd.f32 %v2777, %v3133
    %v3198 = vadd.f32 %v2778, %v3134
    %v3199 = vadd.f32 %v2779, %v3135
    %v3200 = vadd.f32 %v2780, %v3136
    %v3201 = vadd.f32 %v2781, %v3137
    %v3202 = vadd.f32 %v2782, %v3138
    %v3203 = vadd.f32 %v2783, %v3139
    %v3204 = vadd.f32 %v2784, %v3140
    %v3205 = vadd.f32 %v2785, %v3141
    %v3206 = vadd.f32 %v2786, %v3142
    %v3207 = vadd.f32 %v2787, %v3143
    %v3208 = vadd.f32 %v2788, %v3144
    %v3209 = vadd.f32 %v2789, %v3145
    %v3210 = vadd.f32 %v2790, %v3146
    %v3211 = vadd.f32 %v2791, %v3147
    %v3212 = vadd.f32 %v2792, %v3148
    %v3213 = vadd.f32 %v2793, %v3149
    %v3214 = vadd.f32 %v2794, %v3150
    %v3215 = vadd.f32 %v2795, %v3151
    %v3216 = vadd.f32 %v2796, %v3152
    %v3217 = vadd.f32 %v2797, %v3153
    %v3218 = vadd.f32 %v2798, %v3154
    %v3219 = vadd.f32 %v2799, %v3155
    %v3220 = vadd.f32 %v2800, %v3156
    %v3221 = vadd.f32 %v2801, %v3157
    %v3222 = vadd.f32 %v2802, %v3158
    %v3223 = vadd.f32 %v2803, %v3159
    %v3224 = vadd.f32 %v2804, %v3160
    %v3225 = vadd.f32 %v2805, %v3161
    %v3226 = vadd.f32 %v2806, %v3162
    %v3227 = vadd.f32 %v2807, %v3163
    %v3228 = vadd.f32 %v2808, %v3164
    %v3229 = vadd.f32 %v2809, %v3165
    %v3230 = vadd.f32 %v2810, %v3166
    %v3231 = vadd.f32 %v2811, %v3167
    %v3232 = vadd.f32 %v2812, %v3168
    %v3233 = vadd.f32 %v2813, %v3169
    %v3234 = vadd.f32 %v2814, %v3170
    %v3235 = vadd.f32 %v2815, %v3171
    %v3236 = vadd.f32 %v2816, %v3172
    %v3237 = vadd.f32 %v2817, %v3173
    %v3238 = vadd.f32 %v2818, %v3174
    %v3239 = vadd.f32 %v2819, %v3175
    %v3240 = vadd.f32 %v2820, %v3176
    %v3241 = vadd.f32 %v2821, %v3177
    %v3242 = vadd.f32 %v2822, %v3178
    %v3243 = vadd.f32 %v2823, %v3179
    %v3244 = vadd.f32 %v2824, %v3180
    %v3245 = vadd.f32 %v2825, %v3181
    %v3246 = vadd.f32 %v2826, %v3182
    %v3247 = vadd.f32 %v2827, %v3183
    %v3248 = vadd.f32 %v2828, %v3184
    %v3249 = vadd.f32 %v2829, %v3185
    %v3250 = vadd.f32 %v2830, %v3186
    %v3251 = vadd.f32 %v2831, %v3187
    %v3252 = vlaneseq
    %v3253 = vshrl.u32 %v3252, 7
    %v3254 = vsub.s32 4, %v3253
    %v3255 = vrot.slane %v1982, %v3254
    %v3256 = vmul.f32 %v2833, %v3255
    %v3257 = vmul.f32 %v2834, %v3255
    %v3258 = vmul.f32 %v2837, %v3255
    %v3259 = vmul.f32 %v2838, %v3255
    %v3260 = vmul.f32 %v2841, %v3255
    %v3261 = vmul.f32 %v2842, %v3255
    %v3262 = vmul.f32 %v2845, %v3255
    %v3263 = vmul.f32 %v2846, %v3255
    %v3264 = vmul.f32 %v2849, %v3255
    %v3265 = vmul.f32 %v2850, %v3255
    %v3266 = vmul.f32 %v2853, %v3255
    %v3267 = vmul.f32 %v2854, %v3255
    %v3268 = vmul.f32 %v2857, %v3255
    %v3269 = vmul.f32 %v2858, %v3255
    %v3270 = vmul.f32 %v2861, %v3255
    %v3271 = vmul.f32 %v2862, %v3255
    %v3272 = vmul.f32 %v2865, %v3255
    %v3273 = vmul.f32 %v2866, %v3255
    %v3274 = vmul.f32 %v2869, %v3255
    %v3275 = vmul.f32 %v2870, %v3255
    %v3276 = vmul.f32 %v2873, %v3255
    %v3277 = vmul.f32 %v2874, %v3255
    %v3278 = vmul.f32 %v2877, %v3255
    %v3279 = vmul.f32 %v2878, %v3255
    %v3280 = vmul.f32 %v2881, %v3255
    %v3281 = vmul.f32 %v2882, %v3255
    %v3282 = vmul.f32 %v2885, %v3255
    %v3283 = vmul.f32 %v2886, %v3255
    %v3284 = vmul.f32 %v2889, %v3255
    %v3285 = vmul.f32 %v2890, %v3255
    %v3286 = vmul.f32 %v2893, %v3255
    %v3287 = vmul.f32 %v2894, %v3255
    %v3288 = vmul.f32 %v2897, %v3255
    %v3289 = vmul.f32 %v2898, %v3255
    %v3290 = vmul.f32 %v2901, %v3255
    %v3291 = vmul.f32 %v2902, %v3255
    %v3292 = vmul.f32 %v2905, %v3255
    %v3293 = vmul.f32 %v2906, %v3255
    %v3294 = vmul.f32 %v2909, %v3255
    %v3295 = vmul.f32 %v2910, %v3255
    %v3296 = vmul.f32 %v2913, %v3255
    %v3297 = vmul.f32 %v2914, %v3255
    %v3298 = vmul.f32 %v2917, %v3255
    %v3299 = vmul.f32 %v2918, %v3255
    %v3300 = vmul.f32 %v2921, %v3255
    %v3301 = vmul.f32 %v2922, %v3255
    %v3302 = vmul.f32 %v2925, %v3255
    %v3303 = vmul.f32 %v2926, %v3255
    %v3304 = vmul.f32 %v2929, %v3255
    %v3305 = vmul.f32 %v2930, %v3255
    %v3306 = vmul.f32 %v2933, %v3255
    %v3307 = vmul.f32 %v2934, %v3255
    %v3308 = vmul.f32 %v2937, %v3255
    %v3309 = vmul.f32 %v2938, %v3255
    %v3310 = vmul.f32 %v2941, %v3255
    %v3311 = vmul.f32 %v2942, %v3255
    %v3312 = vmul.f32 %v2945, %v3255
    %v3313 = vmul.f32 %v2946, %v3255
    %v3314 = vmul.f32 %v2949, %v3255
    %v3315 = vmul.f32 %v2950, %v3255
    %v3316 = vmul.f32 %v2953, %v3255
    %v3317 = vmul.f32 %v2954, %v3255
    %v3318 = vmul.f32 %v2957, %v3255
    %v3319 = vmul.f32 %v2958, %v3255
    %v3320 = vadd.f32 %v3188, %v3256
    %v3321 = vadd.f32 %v3189, %v3257
    %v3322 = vadd.f32 %v3190, %v3258
    %v3323 = vadd.f32 %v3191, %v3259
    %v3324 = vadd.f32 %v3192, %v3260
    %v3325 = vadd.f32 %v3193, %v3261
    %v3326 = vadd.f32 %v3194, %v3262
    %v3327 = vadd.f32 %v3195, %v3263
    %v3328 = vadd.f32 %v3196, %v3264
    %v3329 = vadd.f32 %v3197, %v3265
    %v3330 = vadd.f32 %v3198, %v3266
    %v3331 = vadd.f32 %v3199, %v3267
    %v3332 = vadd.f32 %v3200, %v3268
    %v3333 = vadd.f32 %v3201, %v3269
    %v3334 = vadd.f32 %v3202, %v3270
    %v3335 = vadd.f32 %v3203, %v3271
    %v3336 = vadd.f32 %v3204, %v3272
    %v3337 = vadd.f32 %v3205, %v3273
    %v3338 = vadd.f32 %v3206, %v3274
    %v3339 = vadd.f32 %v3207, %v3275
    %v3340 = vadd.f32 %v3208, %v3276
    %v3341 = vadd.f32 %v3209, %v3277
    %v3342 = vadd.f32 %v3210, %v3278
    %v3343 = vadd.f32 %v3211, %v3279
    %v3344 = vadd.f32 %v3212, %v3280
    %v3345 = vadd.f32 %v3213, %v3281
    %v3346 = vadd.f32 %v3214, %v3282
    %v3347 = vadd.f32 %v3215, %v3283
    %v3348 = vadd.f32 %v3216, %v3284
    %v3349 = vadd.f32 %v3217, %v3285
    %v3350 = vadd.f32 %v3218, %v3286
    %v3351 = vadd.f32 %v3219, %v3287
    %v3352 = vadd.f32 %v3220, %v3288
    %v3353 = vadd.f32 %v3221, %v3289
    %v3354 = vadd.f32 %v3222, %v3290
    %v3355 = vadd.f32 %v3223, %v3291
    %v3356 = vadd.f32 %v3224, %v3292
    %v3357 = vadd.f32 %v3225, %v3293
    %v3358 = vadd.f32 %v3226, %v3294
    %v3359 = vadd.f32 %v3227, %v3295
    %v3360 = vadd.f32 %v3228, %v3296
    %v3361 = vadd.f32 %v3229, %v3297
    %v3362 = vadd.f32 %v3230, %v3298
    %v3363 = vadd.f32 %v3231, %v3299
    %v3364 = vadd.f32 %v3232, %v3300
    %v3365 = vadd.f32 %v3233, %v3301
    %v3366 = vadd.f32 %v3234, %v3302
    %v3367 = vadd.f32 %v3235, %v3303
    %v3368 = vadd.f32 %v3236, %v3304
    %v3369 = vadd.f32 %v3237, %v3305
    %v3370 = vadd.f32 %v3238, %v3306
    %v3371 = vadd.f32 %v3239, %v3307
    %v3372 = vadd.f32 %v3240, %v3308
    %v3373 = vadd.f32 %v3241, %v3309
    %v3374 = vadd.f32 %v3242, %v3310
    %v3375 = vadd.f32 %v3243, %v3311
    %v3376 = vadd.f32 %v3244, %v3312
    %v3377 = vadd.f32 %v3245, %v3313
    %v3378 = vadd.f32 %v3246, %v3314
    %v3379 = vadd.f32 %v3247, %v3315
    %v3380 = vadd.f32 %v3248, %v3316
    %v3381 = vadd.f32 %v3249, %v3317
    %v3382 = vadd.f32 %v3250, %v3318
    %v3383 = vadd.f32 %v3251, %v3319
    %v3384 = vrot.slane %v2833, 1
    %v3385 = vrot.slane %v2837, 1
    %v3386 = vrot.slane %v2841, 1
    %v3387 = vrot.slane %v2845, 1
    %v3388 = vrot.slane %v2849, 1
    %v3389 = vrot.slane %v2853, 1
    %v3390 = vrot.slane %v2857, 1
    %v3391 = vrot.slane %v2861, 1
    %v3392 = vrot.slane %v2865, 1
    %v3393 = vrot.slane %v2869, 1
    %v3394 = vrot.slane %v2873, 1
    %v3395 = vrot.slane %v2877, 1
    %v3396 = vrot.slane %v2881, 1
    %v3397 = vrot.slane %v2885, 1
    %v3398 = vrot.slane %v2889, 1
    %v3399 = vrot.slane %v2893, 1
    %v3400 = vrot.slane %v2897, 1
    %v3401 = vrot.slane %v2901, 1
    %v3402 = vrot.slane %v2905, 1
    %v3403 = vrot.slane %v2909, 1
    %v3404 = vrot.slane %v2913, 1
    %v3405 = vrot.slane %v2917, 1
    %v3406 = vrot.slane %v2921, 1
    %v3407 = vrot.slane %v2925, 1
    %v3408 = vrot.slane %v2929, 1
    %v3409 = vrot.slane %v2933, 1
    %v3410 = vrot.slane %v2937, 1
    %v3411 = vrot.slane %v2941, 1
    %v3412 = vrot.slane %v2945, 1
    %v3413 = vrot.slane %v2949, 1
    %v3414 = vrot.slane %v2953, 1
    %v3415 = vrot.slane %v2957, 1
    %v3416 = vrot.slane %v2834, 1
    %v3417 = vrot.slane %v2838, 1
    %v3418 = vrot.slane %v2842, 1
    %v3419 = vrot.slane %v2846, 1
    %v3420 = vrot.slane %v2850, 1
    %v3421 = vrot.slane %v2854, 1
    %v3422 = vrot.slane %v2858, 1
    %v3423 = vrot.slane %v2862, 1
    %v3424 = vrot.slane %v2866, 1
    %v3425 = vrot.slane %v2870, 1
    %v3426 = vrot.slane %v2874, 1
    %v3427 = vrot.slane %v2878, 1
    %v3428 = vrot.slane %v2882, 1
    %v3429 = vrot.slane %v2886, 1
    %v3430 = vrot.slane %v2890, 1
    %v3431 = vrot.slane %v2894, 1
    %v3432 = vrot.slane %v2898, 1
    %v3433 = vrot.slane %v2902, 1
    %v3434 = vrot.slane %v2906, 1
    %v3435 = vrot.slane %v2910, 1
    %v3436 = vrot.slane %v2914, 1
    %v3437 = vrot.slane %v2918, 1
    %v3438 = vrot.slane %v2922, 1
    %v3439 = vrot.slane %v2926, 1
    %v3440 = vrot.slane %v2930, 1
    %v3441 = vrot.slane %v2934, 1
    %v3442 = vrot.slane %v2938, 1
    %v3443 = vrot.slane %v2942, 1
    %v3444 = vrot.slane %v2946, 1
    %v3445 = vrot.slane %v2950, 1
    %v3446 = vrot.slane %v2954, 1
    %v3447 = vrot.slane %v2958, 1
    %v3448 = vrot.slane %v2835, 1
    %v3449 = vrot.slane %v2839, 1
    %v3450 = vrot.slane %v2843, 1
    %v3451 = vrot.slane %v2847, 1
    %v3452 = vrot.slane %v2851, 1
    %v3453 = vrot.slane %v2855, 1
    %v3454 = vrot.slane %v2859, 1
    %v3455 = vrot.slane %v2863, 1
    %v3456 = vrot.slane %v2867, 1
    %v3457 = vrot.slane %v2871, 1
    %v3458 = vrot.slane %v2875, 1
    %v3459 = vrot.slane %v2879, 1
    %v3460 = vrot.slane %v2883, 1
    %v3461 = vrot.slane %v2887, 1
    %v3462 = vrot.slane %v2891, 1
    %v3463 = vrot.slane %v2895, 1
    %v3464 = vrot.slane %v2899, 1
    %v3465 = vrot.slane %v2903, 1
    %v3466 = vrot.slane %v2907, 1
    %v3467 = vrot.slane %v2911, 1
    %v3468 = vrot.slane %v2915, 1
    %v3469 = vrot.slane %v2919, 1
    %v3470 = vrot.slane %v2923, 1
    %v3471 = vrot.slane %v2927, 1
    %v3472 = vrot.slane %v2931, 1
    %v3473 = vrot.slane %v2935, 1
    %v3474 = vrot.slane %v2939, 1
    %v3475 = vrot.slane %v2943, 1
    %v3476 = vrot.slane %v2947, 1
    %v3477 = vrot.slane %v2951, 1
    %v3478 = vrot.slane %v2955, 1
    %v3479 = vrot.slane %v2959, 1
    %v3480 = vsel %vm2635, %v3416, %v3448
    %v3481 = vsel %vm2635, %v3417, %v3449
    %v3482 = vsel %vm2635, %v3418, %v3450
    %v3483 = vsel %vm2635, %v3419, %v3451
    %v3484 = vsel %vm2635, %v3420, %v3452
    %v3485 = vsel %vm2635, %v3421, %v3453
    %v3486 = vsel %vm2635, %v3422, %v3454
    %v3487 = vsel %vm2635, %v3423, %v3455
    %v3488 = vsel %vm2635, %v3424, %v3456
    %v3489 = vsel %vm2635, %v3425, %v3457
    %v3490 = vsel %vm2635, %v3426, %v3458
    %v3491 = vsel %vm2635, %v3427, %v3459
    %v3492 = vsel %vm2635, %v3428, %v3460
    %v3493 = vsel %vm2635, %v3429, %v3461
    %v3494 = vsel %vm2635, %v3430, %v3462
    %v3495 = vsel %vm2635, %v3431, %v3463
    %v3496 = vsel %vm2635, %v3432, %v3464
    %v3497 = vsel %vm2635, %v3433, %v3465
    %v3498 = vsel %vm2635, %v3434, %v3466
    %v3499 = vsel %vm2635, %v3435, %v3467
    %v3500 = vsel %vm2635, %v3436, %v3468
    %v3501 = vsel %vm2635, %v3437, %v3469
    %v3502 = vsel %vm2635, %v3438, %v3470
    %v3503 = vsel %vm2635, %v3439, %v3471
    %v3504 = vsel %vm2635, %v3440, %v3472
    %v3505 = vsel %vm2635, %v3441, %v3473
    %v3506 = vsel %vm2635, %v3442, %v3474
    %v3507 = vsel %vm2635, %v3443, %v3475
    %v3508 = vsel %vm2635, %v3444, %v3476
    %v3509 = vsel %vm2635, %v3445, %v3477
    %v3510 = vsel %vm2635, %v3446, %v3478
    %v3511 = vsel %vm2635, %v3447, %v3479
    %v3512 = vsel %vm2635, %v3384, %v3416
    %v3513 = vsel %vm2635, %v3385, %v3417
    %v3514 = vsel %vm2635, %v3386, %v3418
    %v3515 = vsel %vm2635, %v3387, %v3419
    %v3516 = vsel %vm2635, %v3388, %v3420
    %v3517 = vsel %vm2635, %v3389, %v3421
    %v3518 = vsel %vm2635, %v3390, %v3422
    %v3519 = vsel %vm2635, %v3391, %v3423
    %v3520 = vsel %vm2635, %v3392, %v3424
    %v3521 = vsel %vm2635, %v3393, %v3425
    %v3522 = vsel %vm2635, %v3394, %v3426
    %v3523 = vsel %vm2635, %v3395, %v3427
    %v3524 = vsel %vm2635, %v3396, %v3428
    %v3525 = vsel %vm2635, %v3397, %v3429
    %v3526 = vsel %vm2635, %v3398, %v3430
    %v3527 = vsel %vm2635, %v3399, %v3431
    %v3528 = vsel %vm2635, %v3400, %v3432
    %v3529 = vsel %vm2635, %v3401, %v3433
    %v3530 = vsel %vm2635, %v3402, %v3434
    %v3531 = vsel %vm2635, %v3403, %v3435
    %v3532 = vsel %vm2635, %v3404, %v3436
    %v3533 = vsel %vm2635, %v3405, %v3437
    %v3534 = vsel %vm2635, %v3406, %v3438
    %v3535 = vsel %vm2635, %v3407, %v3439
    %v3536 = vsel %vm2635, %v3408, %v3440
    %v3537 = vsel %vm2635, %v3409, %v3441
    %v3538 = vsel %vm2635, %v3410, %v3442
    %v3539 = vsel %vm2635, %v3411, %v3443
    %v3540 = vsel %vm2635, %v3412, %v3444
    %v3541 = vsel %vm2635, %v3413, %v3445
    %v3542 = vsel %vm2635, %v3414, %v3446
    %v3543 = vsel %vm2635, %v3415, %v3447
    %v3544 = vlaneseq
    %v3545 = vshrl.u32 %v3544, 7
    %v3546 = vsub.s32 5, %v3545
    %v3547 = vrot.slane %v1982, %v3546
    %v3548 = vmul.f32 %v3512, %v3547
    %v3549 = vmul.f32 %v3480, %v3547
    %v3550 = vmul.f32 %v3513, %v3547
    %v3551 = vmul.f32 %v3481, %v3547
    %v3552 = vmul.f32 %v3514, %v3547
    %v3553 = vmul.f32 %v3482, %v3547
    %v3554 = vmul.f32 %v3515, %v3547
    %v3555 = vmul.f32 %v3483, %v3547
    %v3556 = vmul.f32 %v3516, %v3547
    %v3557 = vmul.f32 %v3484, %v3547
    %v3558 = vmul.f32 %v3517, %v3547
    %v3559 = vmul.f32 %v3485, %v3547
    %v3560 = vmul.f32 %v3518, %v3547
    %v3561 = vmul.f32 %v3486, %v3547
    %v3562 = vmul.f32 %v3519, %v3547
    %v3563 = vmul.f32 %v3487, %v3547
    %v3564 = vmul.f32 %v3520, %v3547
    %v3565 = vmul.f32 %v3488, %v3547
    %v3566 = vmul.f32 %v3521, %v3547
    %v3567 = vmul.f32 %v3489, %v3547
    %v3568 = vmul.f32 %v3522, %v3547
    %v3569 = vmul.f32 %v3490, %v3547
    %v3570 = vmul.f32 %v3523, %v3547
    %v3571 = vmul.f32 %v3491, %v3547
    %v3572 = vmul.f32 %v3524, %v3547
    %v3573 = vmul.f32 %v3492, %v3547
    %v3574 = vmul.f32 %v3525, %v3547
    %v3575 = vmul.f32 %v3493, %v3547
    %v3576 = vmul.f32 %v3526, %v3547
    %v3577 = vmul.f32 %v3494, %v3547
    %v3578 = vmul.f32 %v3527, %v3547
    %v3579 = vmul.f32 %v3495, %v3547
    %v3580 = vmul.f32 %v3528, %v3547
    %v3581 = vmul.f32 %v3496, %v3547
    %v3582 = vmul.f32 %v3529, %v3547
    %v3583 = vmul.f32 %v3497, %v3547
    %v3584 = vmul.f32 %v3530, %v3547
    %v3585 = vmul.f32 %v3498, %v3547
    %v3586 = vmul.f32 %v3531, %v3547
    %v3587 = vmul.f32 %v3499, %v3547
    %v3588 = vmul.f32 %v3532, %v3547
    %v3589 = vmul.f32 %v3500, %v3547
    %v3590 = vmul.f32 %v3533, %v3547
    %v3591 = vmul.f32 %v3501, %v3547
    %v3592 = vmul.f32 %v3534, %v3547
    %v3593 = vmul.f32 %v3502, %v3547
    %v3594 = vmul.f32 %v3535, %v3547
    %v3595 = vmul.f32 %v3503, %v3547
    %v3596 = vmul.f32 %v3536, %v3547
    %v3597 = vmul.f32 %v3504, %v3547
    %v3598 = vmul.f32 %v3537, %v3547
    %v3599 = vmul.f32 %v3505, %v3547
    %v3600 = vmul.f32 %v3538, %v3547
    %v3601 = vmul.f32 %v3506, %v3547
    %v3602 = vmul.f32 %v3539, %v3547
    %v3603 = vmul.f32 %v3507, %v3547
    %v3604 = vmul.f32 %v3540, %v3547
    %v3605 = vmul.f32 %v3508, %v3547
    %v3606 = vmul.f32 %v3541, %v3547
    %v3607 = vmul.f32 %v3509, %v3547
    %v3608 = vmul.f32 %v3542, %v3547
    %v3609 = vmul.f32 %v3510, %v3547
    %v3610 = vmul.f32 %v3543, %v3547
    %v3611 = vmul.f32 %v3511, %v3547
    %v3612 = vadd.f32 %v3320, %v3548
    %v3613 = vadd.f32 %v3321, %v3549
    %v3614 = vadd.f32 %v3322, %v3550
    %v3615 = vadd.f32 %v3323, %v3551
    %v3616 = vadd.f32 %v3324, %v3552
    %v3617 = vadd.f32 %v3325, %v3553
    %v3618 = vadd.f32 %v3326, %v3554
    %v3619 = vadd.f32 %v3327, %v3555
    %v3620 = vadd.f32 %v3328, %v3556
    %v3621 = vadd.f32 %v3329, %v3557
    %v3622 = vadd.f32 %v3330, %v3558
    %v3623 = vadd.f32 %v3331, %v3559
    %v3624 = vadd.f32 %v3332, %v3560
    %v3625 = vadd.f32 %v3333, %v3561
    %v3626 = vadd.f32 %v3334, %v3562
    %v3627 = vadd.f32 %v3335, %v3563
    %v3628 = vadd.f32 %v3336, %v3564
    %v3629 = vadd.f32 %v3337, %v3565
    %v3630 = vadd.f32 %v3338, %v3566
    %v3631 = vadd.f32 %v3339, %v3567
    %v3632 = vadd.f32 %v3340, %v3568
    %v3633 = vadd.f32 %v3341, %v3569
    %v3634 = vadd.f32 %v3342, %v3570
    %v3635 = vadd.f32 %v3343, %v3571
    %v3636 = vadd.f32 %v3344, %v3572
    %v3637 = vadd.f32 %v3345, %v3573
    %v3638 = vadd.f32 %v3346, %v3574
    %v3639 = vadd.f32 %v3347, %v3575
    %v3640 = vadd.f32 %v3348, %v3576
    %v3641 = vadd.f32 %v3349, %v3577
    %v3642 = vadd.f32 %v3350, %v3578
    %v3643 = vadd.f32 %v3351, %v3579
    %v3644 = vadd.f32 %v3352, %v3580
    %v3645 = vadd.f32 %v3353, %v3581
    %v3646 = vadd.f32 %v3354, %v3582
    %v3647 = vadd.f32 %v3355, %v3583
    %v3648 = vadd.f32 %v3356, %v3584
    %v3649 = vadd.f32 %v3357, %v3585
    %v3650 = vadd.f32 %v3358, %v3586
    %v3651 = vadd.f32 %v3359, %v3587
    %v3652 = vadd.f32 %v3360, %v3588
    %v3653 = vadd.f32 %v3361, %v3589
    %v3654 = vadd.f32 %v3362, %v3590
    %v3655 = vadd.f32 %v3363, %v3591
    %v3656 = vadd.f32 %v3364, %v3592
    %v3657 = vadd.f32 %v3365, %v3593
    %v3658 = vadd.f32 %v3366, %v3594
    %v3659 = vadd.f32 %v3367, %v3595
    %v3660 = vadd.f32 %v3368, %v3596
    %v3661 = vadd.f32 %v3369, %v3597
    %v3662 = vadd.f32 %v3370, %v3598
    %v3663 = vadd.f32 %v3371, %v3599
    %v3664 = vadd.f32 %v3372, %v3600
    %v3665 = vadd.f32 %v3373, %v3601
    %v3666 = vadd.f32 %v3374, %v3602
    %v3667 = vadd.f32 %v3375, %v3603
    %v3668 = vadd.f32 %v3376, %v3604
    %v3669 = vadd.f32 %v3377, %v3605
    %v3670 = vadd.f32 %v3378, %v3606
    %v3671 = vadd.f32 %v3379, %v3607
    %v3672 = vadd.f32 %v3380, %v3608
    %v3673 = vadd.f32 %v3381, %v3609
    %v3674 = vadd.f32 %v3382, %v3610
    %v3675 = vadd.f32 %v3383, %v3611
    %s3676 = scalar_lea.vmem [#allocation2], 64
    %v3677 = vld [vmem:[%s3676] sm:$0xff]
    %v3678 = vld [vmem:[%s3676 + $0x8] sm:$0xff]
    %v3679 = vld [vmem:[%s3676 + $0x10] sm:$0xff]
    %v3680 = vld [vmem:[%s3676 + $0x18] sm:$0xff]
    %v3681 = vld [vmem:[%s3676 + $0x20] sm:$0xff]
    %v3682 = vld [vmem:[%s3676 + $0x28] sm:$0xff]
    %v3683 = vld [vmem:[%s3676 + $0x30] sm:$0xff]
    %v3684 = vld [vmem:[%s3676 + $0x38] sm:$0xff]
    %v3685 = vld [vmem:[%s3676 + $0x40] sm:$0xff]
    %v3686 = vld [vmem:[%s3676 + $0x48] sm:$0xff]
    %v3687 = vld [vmem:[%s3676 + $0x50] sm:$0xff]
    %v3688 = vld [vmem:[%s3676 + $0x58] sm:$0xff]
    %v3689 = vld [vmem:[%s3676 + $0x60] sm:$0xff]
    %v3690 = vld [vmem:[%s3676 + $0x68] sm:$0xff]
    %v3691 = vld [vmem:[%s3676 + $0x70] sm:$0xff]
    %v3692 = vld [vmem:[%s3676 + $0x78] sm:$0xff]
    %v3693 = vld [vmem:[%s3676 + $0x80] sm:$0xff]
    %v3694 = vld [vmem:[%s3676 + $0x88] sm:$0xff]
    %v3695 = vld [vmem:[%s3676 + $0x90] sm:$0xff]
    %v3696 = vld [vmem:[%s3676 + $0x98] sm:$0xff]
    %v3697 = vld [vmem:[%s3676 + $0xa0] sm:$0xff]
    %v3698 = vld [vmem:[%s3676 + $0xa8] sm:$0xff]
    %v3699 = vld [vmem:[%s3676 + $0xb0] sm:$0xff]
    %v3700 = vld [vmem:[%s3676 + $0xb8] sm:$0xff]
    %v3701 = vld [vmem:[%s3676 + $0xc0] sm:$0xff]
    %v3702 = vld [vmem:[%s3676 + $0xc8] sm:$0xff]
    %v3703 = vld [vmem:[%s3676 + $0xd0] sm:$0xff]
    %v3704 = vld [vmem:[%s3676 + $0xd8] sm:$0xff]
    %v3705 = vld [vmem:[%s3676 + $0xe0] sm:$0xff]
    %v3706 = vld [vmem:[%s3676 + $0xe8] sm:$0xff]
    %v3707 = vld [vmem:[%s3676 + $0xf0] sm:$0xff]
    %v3708 = vld [vmem:[%s3676 + $0xf8] sm:$0xff]
    %v3709 = vld [vmem:[%s3676 + $0x100] sm:$0xff]
    %v3710 = vld [vmem:[%s3676 + $0x108] sm:$0xff]
    %v3711 = vld [vmem:[%s3676 + $0x110] sm:$0xff]
    %v3712 = vld [vmem:[%s3676 + $0x118] sm:$0xff]
    %v3713 = vld [vmem:[%s3676 + $0x120] sm:$0xff]
    %v3714 = vld [vmem:[%s3676 + $0x128] sm:$0xff]
    %v3715 = vld [vmem:[%s3676 + $0x130] sm:$0xff]
    %v3716 = vld [vmem:[%s3676 + $0x138] sm:$0xff]
    %v3717 = vld [vmem:[%s3676 + $0x140] sm:$0xff]
    %v3718 = vld [vmem:[%s3676 + $0x148] sm:$0xff]
    %v3719 = vld [vmem:[%s3676 + $0x150] sm:$0xff]
    %v3720 = vld [vmem:[%s3676 + $0x158] sm:$0xff]
    %v3721 = vld [vmem:[%s3676 + $0x160] sm:$0xff]
    %v3722 = vld [vmem:[%s3676 + $0x168] sm:$0xff]
    %v3723 = vld [vmem:[%s3676 + $0x170] sm:$0xff]
    %v3724 = vld [vmem:[%s3676 + $0x178] sm:$0xff]
    %v3725 = vld [vmem:[%s3676 + $0x180] sm:$0xff]
    %v3726 = vld [vmem:[%s3676 + $0x188] sm:$0xff]
    %v3727 = vld [vmem:[%s3676 + $0x190] sm:$0xff]
    %v3728 = vld [vmem:[%s3676 + $0x198] sm:$0xff]
    %v3729 = vld [vmem:[%s3676 + $0x1a0] sm:$0xff]
    %v3730 = vld [vmem:[%s3676 + $0x1a8] sm:$0xff]
    %v3731 = vld [vmem:[%s3676 + $0x1b0] sm:$0xff]
    %v3732 = vld [vmem:[%s3676 + $0x1b8] sm:$0xff]
    %v3733 = vld [vmem:[%s3676 + $0x1c0] sm:$0xff]
    %v3734 = vld [vmem:[%s3676 + $0x1c8] sm:$0xff]
    %v3735 = vld [vmem:[%s3676 + $0x1d0] sm:$0xff]
    %v3736 = vld [vmem:[%s3676 + $0x1d8] sm:$0xff]
    %v3737 = vld [vmem:[%s3676 + $0x1e0] sm:$0xff]
    %v3738 = vld [vmem:[%s3676 + $0x1e8] sm:$0xff]
    %v3739 = vld [vmem:[%s3676 + $0x1f0] sm:$0xff]
    %v3740 = vld [vmem:[%s3676 + $0x1f8] sm:$0xff]
    %v3741 = vld [vmem:[%s3676 + $0x240] sm:$0xff]
    %v3742 = vld [vmem:[%s3676 + $0x248] sm:$0xff]
    %v3743 = vld [vmem:[%s3676 + $0x250] sm:$0xff]
    %v3744 = vld [vmem:[%s3676 + $0x258] sm:$0xff]
    %v3745 = vld [vmem:[%s3676 + $0x260] sm:$0xff]
    %v3746 = vld [vmem:[%s3676 + $0x268] sm:$0xff]
    %v3747 = vld [vmem:[%s3676 + $0x270] sm:$0xff]
    %v3748 = vld [vmem:[%s3676 + $0x278] sm:$0xff]
    %v3749 = vld [vmem:[%s3676 + $0x280] sm:$0xff]
    %v3750 = vld [vmem:[%s3676 + $0x288] sm:$0xff]
    %v3751 = vld [vmem:[%s3676 + $0x290] sm:$0xff]
    %v3752 = vld [vmem:[%s3676 + $0x298] sm:$0xff]
    %v3753 = vld [vmem:[%s3676 + $0x2a0] sm:$0xff]
    %v3754 = vld [vmem:[%s3676 + $0x2a8] sm:$0xff]
    %v3755 = vld [vmem:[%s3676 + $0x2b0] sm:$0xff]
    %v3756 = vld [vmem:[%s3676 + $0x2b8] sm:$0xff]
    %v3757 = vld [vmem:[%s3676 + $0x2c0] sm:$0xff]
    %v3758 = vld [vmem:[%s3676 + $0x2c8] sm:$0xff]
    %v3759 = vld [vmem:[%s3676 + $0x2d0] sm:$0xff]
    %v3760 = vld [vmem:[%s3676 + $0x2d8] sm:$0xff]
    %v3761 = vld [vmem:[%s3676 + $0x2e0] sm:$0xff]
    %v3762 = vld [vmem:[%s3676 + $0x2e8] sm:$0xff]
    %v3763 = vld [vmem:[%s3676 + $0x2f0] sm:$0xff]
    %v3764 = vld [vmem:[%s3676 + $0x2f8] sm:$0xff]
    %v3765 = vld [vmem:[%s3676 + $0x300] sm:$0xff]
    %v3766 = vld [vmem:[%s3676 + $0x308] sm:$0xff]
    %v3767 = vld [vmem:[%s3676 + $0x310] sm:$0xff]
    %v3768 = vld [vmem:[%s3676 + $0x318] sm:$0xff]
    %v3769 = vld [vmem:[%s3676 + $0x320] sm:$0xff]
    %v3770 = vld [vmem:[%s3676 + $0x328] sm:$0xff]
    %v3771 = vld [vmem:[%s3676 + $0x330] sm:$0xff]
    %v3772 = vld [vmem:[%s3676 + $0x338] sm:$0xff]
    %v3773 = vld [vmem:[%s3676 + $0x340] sm:$0xff]
    %v3774 = vld [vmem:[%s3676 + $0x348] sm:$0xff]
    %v3775 = vld [vmem:[%s3676 + $0x350] sm:$0xff]
    %v3776 = vld [vmem:[%s3676 + $0x358] sm:$0xff]
    %v3777 = vld [vmem:[%s3676 + $0x360] sm:$0xff]
    %v3778 = vld [vmem:[%s3676 + $0x368] sm:$0xff]
    %v3779 = vld [vmem:[%s3676 + $0x370] sm:$0xff]
    %v3780 = vld [vmem:[%s3676 + $0x378] sm:$0xff]
    %v3781 = vld [vmem:[%s3676 + $0x380] sm:$0xff]
    %v3782 = vld [vmem:[%s3676 + $0x388] sm:$0xff]
    %v3783 = vld [vmem:[%s3676 + $0x390] sm:$0xff]
    %v3784 = vld [vmem:[%s3676 + $0x398] sm:$0xff]
    %v3785 = vld [vmem:[%s3676 + $0x3a0] sm:$0xff]
    %v3786 = vld [vmem:[%s3676 + $0x3a8] sm:$0xff]
    %v3787 = vld [vmem:[%s3676 + $0x3b0] sm:$0xff]
    %v3788 = vld [vmem:[%s3676 + $0x3b8] sm:$0xff]
    %v3789 = vld [vmem:[%s3676 + $0x3c0] sm:$0xff]
    %v3790 = vld [vmem:[%s3676 + $0x3c8] sm:$0xff]
    %v3791 = vld [vmem:[%s3676 + $0x3d0] sm:$0xff]
    %v3792 = vld [vmem:[%s3676 + $0x3d8] sm:$0xff]
    %v3793 = vld [vmem:[%s3676 + $0x3e0] sm:$0xff]
    %v3794 = vld [vmem:[%s3676 + $0x3e8] sm:$0xff]
    %v3795 = vld [vmem:[%s3676 + $0x3f0] sm:$0xff]
    %v3796 = vld [vmem:[%s3676 + $0x3f8] sm:$0xff]
    %v3797 = vld [vmem:[%s3676 + $0x400] sm:$0xff]
    %v3798 = vld [vmem:[%s3676 + $0x408] sm:$0xff]
    %v3799 = vld [vmem:[%s3676 + $0x410] sm:$0xff]
    %v3800 = vld [vmem:[%s3676 + $0x418] sm:$0xff]
    %v3801 = vld [vmem:[%s3676 + $0x420] sm:$0xff]
    %v3802 = vld [vmem:[%s3676 + $0x428] sm:$0xff]
    %v3803 = vld [vmem:[%s3676 + $0x430] sm:$0xff]
    %v3804 = vld [vmem:[%s3676 + $0x438] sm:$0xff]
    %v3805 = vrot.slane %v3677, 7
    %v3806 = vrot.slane %v3681, 7
    %v3807 = vrot.slane %v3685, 7
    %v3808 = vrot.slane %v3689, 7
    %v3809 = vrot.slane %v3693, 7
    %v3810 = vrot.slane %v3697, 7
    %v3811 = vrot.slane %v3701, 7
    %v3812 = vrot.slane %v3705, 7
    %v3813 = vrot.slane %v3709, 7
    %v3814 = vrot.slane %v3713, 7
    %v3815 = vrot.slane %v3717, 7
    %v3816 = vrot.slane %v3721, 7
    %v3817 = vrot.slane %v3725, 7
    %v3818 = vrot.slane %v3729, 7
    %v3819 = vrot.slane %v3733, 7
    %v3820 = vrot.slane %v3737, 7
    %v3821 = vrot.slane %v3741, 7
    %v3822 = vrot.slane %v3745, 7
    %v3823 = vrot.slane %v3749, 7
    %v3824 = vrot.slane %v3753, 7
    %v3825 = vrot.slane %v3757, 7
    %v3826 = vrot.slane %v3761, 7
    %v3827 = vrot.slane %v3765, 7
    %v3828 = vrot.slane %v3769, 7
    %v3829 = vrot.slane %v3773, 7
    %v3830 = vrot.slane %v3777, 7
    %v3831 = vrot.slane %v3781, 7
    %v3832 = vrot.slane %v3785, 7
    %v3833 = vrot.slane %v3789, 7
    %v3834 = vrot.slane %v3793, 7
    %v3835 = vrot.slane %v3797, 7
    %v3836 = vrot.slane %v3801, 7
    %v3837 = vrot.slane %v3678, 7
    %v3838 = vrot.slane %v3682, 7
    %v3839 = vrot.slane %v3686, 7
    %v3840 = vrot.slane %v3690, 7
    %v3841 = vrot.slane %v3694, 7
    %v3842 = vrot.slane %v3698, 7
    %v3843 = vrot.slane %v3702, 7
    %v3844 = vrot.slane %v3706, 7
    %v3845 = vrot.slane %v3710, 7
    %v3846 = vrot.slane %v3714, 7
    %v3847 = vrot.slane %v3718, 7
    %v3848 = vrot.slane %v3722, 7
    %v3849 = vrot.slane %v3726, 7
    %v3850 = vrot.slane %v3730, 7
    %v3851 = vrot.slane %v3734, 7
    %v3852 = vrot.slane %v3738, 7
    %v3853 = vrot.slane %v3742, 7
    %v3854 = vrot.slane %v3746, 7
    %v3855 = vrot.slane %v3750, 7
    %v3856 = vrot.slane %v3754, 7
    %v3857 = vrot.slane %v3758, 7
    %v3858 = vrot.slane %v3762, 7
    %v3859 = vrot.slane %v3766, 7
    %v3860 = vrot.slane %v3770, 7
    %v3861 = vrot.slane %v3774, 7
    %v3862 = vrot.slane %v3778, 7
    %v3863 = vrot.slane %v3782, 7
    %v3864 = vrot.slane %v3786, 7
    %v3865 = vrot.slane %v3790, 7
    %v3866 = vrot.slane %v3794, 7
    %v3867 = vrot.slane %v3798, 7
    %v3868 = vrot.slane %v3802, 7
    %v3869 = vrot.slane %v3679, 7
    %v3870 = vrot.slane %v3683, 7
    %v3871 = vrot.slane %v3687, 7
    %v3872 = vrot.slane %v3691, 7
    %v3873 = vrot.slane %v3695, 7
    %v3874 = vrot.slane %v3699, 7
    %v3875 = vrot.slane %v3703, 7
    %v3876 = vrot.slane %v3707, 7
    %v3877 = vrot.slane %v3711, 7
    %v3878 = vrot.slane %v3715, 7
    %v3879 = vrot.slane %v3719, 7
    %v3880 = vrot.slane %v3723, 7
    %v3881 = vrot.slane %v3727, 7
    %v3882 = vrot.slane %v3731, 7
    %v3883 = vrot.slane %v3735, 7
    %v3884 = vrot.slane %v3739, 7
    %v3885 = vrot.slane %v3743, 7
    %v3886 = vrot.slane %v3747, 7
    %v3887 = vrot.slane %v3751, 7
    %v3888 = vrot.slane %v3755, 7
    %v3889 = vrot.slane %v3759, 7
    %v3890 = vrot.slane %v3763, 7
    %v3891 = vrot.slane %v3767, 7
    %v3892 = vrot.slane %v3771, 7
    %v3893 = vrot.slane %v3775, 7
    %v3894 = vrot.slane %v3779, 7
    %v3895 = vrot.slane %v3783, 7
    %v3896 = vrot.slane %v3787, 7
    %v3897 = vrot.slane %v3791, 7
    %v3898 = vrot.slane %v3795, 7
    %v3899 = vrot.slane %v3799, 7
    %v3900 = vrot.slane %v3803, 7
    %v3901 = vsel %vm2210, %v3837, %v3869
    %v3902 = vsel %vm2210, %v3838, %v3870
    %v3903 = vsel %vm2210, %v3839, %v3871
    %v3904 = vsel %vm2210, %v3840, %v3872
    %v3905 = vsel %vm2210, %v3841, %v3873
    %v3906 = vsel %vm2210, %v3842, %v3874
    %v3907 = vsel %vm2210, %v3843, %v3875
    %v3908 = vsel %vm2210, %v3844, %v3876
    %v3909 = vsel %vm2210, %v3845, %v3877
    %v3910 = vsel %vm2210, %v3846, %v3878
    %v3911 = vsel %vm2210, %v3847, %v3879
    %v3912 = vsel %vm2210, %v3848, %v3880
    %v3913 = vsel %vm2210, %v3849, %v3881
    %v3914 = vsel %vm2210, %v3850, %v3882
    %v3915 = vsel %vm2210, %v3851, %v3883
    %v3916 = vsel %vm2210, %v3852, %v3884
    %v3917 = vsel %vm2210, %v3853, %v3885
    %v3918 = vsel %vm2210, %v3854, %v3886
    %v3919 = vsel %vm2210, %v3855, %v3887
    %v3920 = vsel %vm2210, %v3856, %v3888
    %v3921 = vsel %vm2210, %v3857, %v3889
    %v3922 = vsel %vm2210, %v3858, %v3890
    %v3923 = vsel %vm2210, %v3859, %v3891
    %v3924 = vsel %vm2210, %v3860, %v3892
    %v3925 = vsel %vm2210, %v3861, %v3893
    %v3926 = vsel %vm2210, %v3862, %v3894
    %v3927 = vsel %vm2210, %v3863, %v3895
    %v3928 = vsel %vm2210, %v3864, %v3896
    %v3929 = vsel %vm2210, %v3865, %v3897
    %v3930 = vsel %vm2210, %v3866, %v3898
    %v3931 = vsel %vm2210, %v3867, %v3899
    %v3932 = vsel %vm2210, %v3868, %v3900
    %v3933 = vsel %vm2210, %v3805, %v3837
    %v3934 = vsel %vm2210, %v3806, %v3838
    %v3935 = vsel %vm2210, %v3807, %v3839
    %v3936 = vsel %vm2210, %v3808, %v3840
    %v3937 = vsel %vm2210, %v3809, %v3841
    %v3938 = vsel %vm2210, %v3810, %v3842
    %v3939 = vsel %vm2210, %v3811, %v3843
    %v3940 = vsel %vm2210, %v3812, %v3844
    %v3941 = vsel %vm2210, %v3813, %v3845
    %v3942 = vsel %vm2210, %v3814, %v3846
    %v3943 = vsel %vm2210, %v3815, %v3847
    %v3944 = vsel %vm2210, %v3816, %v3848
    %v3945 = vsel %vm2210, %v3817, %v3849
    %v3946 = vsel %vm2210, %v3818, %v3850
    %v3947 = vsel %vm2210, %v3819, %v3851
    %v3948 = vsel %vm2210, %v3820, %v3852
    %v3949 = vsel %vm2210, %v3821, %v3853
    %v3950 = vsel %vm2210, %v3822, %v3854
    %v3951 = vsel %vm2210, %v3823, %v3855
    %v3952 = vsel %vm2210, %v3824, %v3856
    %v3953 = vsel %vm2210, %v3825, %v3857
    %v3954 = vsel %vm2210, %v3826, %v3858
    %v3955 = vsel %vm2210, %v3827, %v3859
    %v3956 = vsel %vm2210, %v3828, %v3860
    %v3957 = vsel %vm2210, %v3829, %v3861
    %v3958 = vsel %vm2210, %v3830, %v3862
    %v3959 = vsel %vm2210, %v3831, %v3863
    %v3960 = vsel %vm2210, %v3832, %v3864
    %v3961 = vsel %vm2210, %v3833, %v3865
    %v3962 = vsel %vm2210, %v3834, %v3866
    %v3963 = vsel %vm2210, %v3835, %v3867
    %v3964 = vsel %vm2210, %v3836, %v3868
    %v3965 = vlaneseq
    %v3966 = vshrl.u32 %v3965, 7
    %v3967 = vsub.s32 6, %v3966
    %v3968 = vrot.slane %v1982, %v3967
    %v3969 = vmul.f32 %v3933, %v3968
    %v3970 = vmul.f32 %v3901, %v3968
    %v3971 = vmul.f32 %v3934, %v3968
    %v3972 = vmul.f32 %v3902, %v3968
    %v3973 = vmul.f32 %v3935, %v3968
    %v3974 = vmul.f32 %v3903, %v3968
    %v3975 = vmul.f32 %v3936, %v3968
    %v3976 = vmul.f32 %v3904, %v3968
    %v3977 = vmul.f32 %v3937, %v3968
    %v3978 = vmul.f32 %v3905, %v3968
    %v3979 = vmul.f32 %v3938, %v3968
    %v3980 = vmul.f32 %v3906, %v3968
    %v3981 = vmul.f32 %v3939, %v3968
    %v3982 = vmul.f32 %v3907, %v3968
    %v3983 = vmul.f32 %v3940, %v3968
    %v3984 = vmul.f32 %v3908, %v3968
    %v3985 = vmul.f32 %v3941, %v3968
    %v3986 = vmul.f32 %v3909, %v3968
    %v3987 = vmul.f32 %v3942, %v3968
    %v3988 = vmul.f32 %v3910, %v3968
    %v3989 = vmul.f32 %v3943, %v3968
    %v3990 = vmul.f32 %v3911, %v3968
    %v3991 = vmul.f32 %v3944, %v3968
    %v3992 = vmul.f32 %v3912, %v3968
    %v3993 = vmul.f32 %v3945, %v3968
    %v3994 = vmul.f32 %v3913, %v3968
    %v3995 = vmul.f32 %v3946, %v3968
    %v3996 = vmul.f32 %v3914, %v3968
    %v3997 = vmul.f32 %v3947, %v3968
    %v3998 = vmul.f32 %v3915, %v3968
    %v3999 = vmul.f32 %v3948, %v3968
    %v4000 = vmul.f32 %v3916, %v3968
    %v4001 = vmul.f32 %v3949, %v3968
    %v4002 = vmul.f32 %v3917, %v3968
    %v4003 = vmul.f32 %v3950, %v3968
    %v4004 = vmul.f32 %v3918, %v3968
    %v4005 = vmul.f32 %v3951, %v3968
    %v4006 = vmul.f32 %v3919, %v3968
    %v4007 = vmul.f32 %v3952, %v3968
    %v4008 = vmul.f32 %v3920, %v3968
    %v4009 = vmul.f32 %v3953, %v3968
    %v4010 = vmul.f32 %v3921, %v3968
    %v4011 = vmul.f32 %v3954, %v3968
    %v4012 = vmul.f32 %v3922, %v3968
    %v4013 = vmul.f32 %v3955, %v3968
    %v4014 = vmul.f32 %v3923, %v3968
    %v4015 = vmul.f32 %v3956, %v3968
    %v4016 = vmul.f32 %v3924, %v3968
    %v4017 = vmul.f32 %v3957, %v3968
    %v4018 = vmul.f32 %v3925, %v3968
    %v4019 = vmul.f32 %v3958, %v3968
    %v4020 = vmul.f32 %v3926, %v3968
    %v4021 = vmul.f32 %v3959, %v3968
    %v4022 = vmul.f32 %v3927, %v3968
    %v4023 = vmul.f32 %v3960, %v3968
    %v4024 = vmul.f32 %v3928, %v3968
    %v4025 = vmul.f32 %v3961, %v3968
    %v4026 = vmul.f32 %v3929, %v3968
    %v4027 = vmul.f32 %v3962, %v3968
    %v4028 = vmul.f32 %v3930, %v3968
    %v4029 = vmul.f32 %v3963, %v3968
    %v4030 = vmul.f32 %v3931, %v3968
    %v4031 = vmul.f32 %v3964, %v3968
    %v4032 = vmul.f32 %v3932, %v3968
    %v4033 = vadd.f32 %v3612, %v3969
    %v4034 = vadd.f32 %v3613, %v3970
    %v4035 = vadd.f32 %v3614, %v3971
    %v4036 = vadd.f32 %v3615, %v3972
    %v4037 = vadd.f32 %v3616, %v3973
    %v4038 = vadd.f32 %v3617, %v3974
    %v4039 = vadd.f32 %v3618, %v3975
    %v4040 = vadd.f32 %v3619, %v3976
    %v4041 = vadd.f32 %v3620, %v3977
    %v4042 = vadd.f32 %v3621, %v3978
    %v4043 = vadd.f32 %v3622, %v3979
    %v4044 = vadd.f32 %v3623, %v3980
    %v4045 = vadd.f32 %v3624, %v3981
    %v4046 = vadd.f32 %v3625, %v3982
    %v4047 = vadd.f32 %v3626, %v3983
    %v4048 = vadd.f32 %v3627, %v3984
    %v4049 = vadd.f32 %v3628, %v3985
    %v4050 = vadd.f32 %v3629, %v3986
    %v4051 = vadd.f32 %v3630, %v3987
    %v4052 = vadd.f32 %v3631, %v3988
    %v4053 = vadd.f32 %v3632, %v3989
    %v4054 = vadd.f32 %v3633, %v3990
    %v4055 = vadd.f32 %v3634, %v3991
    %v4056 = vadd.f32 %v3635, %v3992
    %v4057 = vadd.f32 %v3636, %v3993
    %v4058 = vadd.f32 %v3637, %v3994
    %v4059 = vadd.f32 %v3638, %v3995
    %v4060 = vadd.f32 %v3639, %v3996
    %v4061 = vadd.f32 %v3640, %v3997
    %v4062 = vadd.f32 %v3641, %v3998
    %v4063 = vadd.f32 %v3642, %v3999
    %v4064 = vadd.f32 %v3643, %v4000
    %v4065 = vadd.f32 %v3644, %v4001
    %v4066 = vadd.f32 %v3645, %v4002
    %v4067 = vadd.f32 %v3646, %v4003
    %v4068 = vadd.f32 %v3647, %v4004
    %v4069 = vadd.f32 %v3648, %v4005
    %v4070 = vadd.f32 %v3649, %v4006
    %v4071 = vadd.f32 %v3650, %v4007
    %v4072 = vadd.f32 %v3651, %v4008
    %v4073 = vadd.f32 %v3652, %v4009
    %v4074 = vadd.f32 %v3653, %v4010
    %v4075 = vadd.f32 %v3654, %v4011
    %v4076 = vadd.f32 %v3655, %v4012
    %v4077 = vadd.f32 %v3656, %v4013
    %v4078 = vadd.f32 %v3657, %v4014
    %v4079 = vadd.f32 %v3658, %v4015
    %v4080 = vadd.f32 %v3659, %v4016
    %v4081 = vadd.f32 %v3660, %v4017
    %v4082 = vadd.f32 %v3661, %v4018
    %v4083 = vadd.f32 %v3662, %v4019
    %v4084 = vadd.f32 %v3663, %v4020
    %v4085 = vadd.f32 %v3664, %v4021
    %v4086 = vadd.f32 %v3665, %v4022
    %v4087 = vadd.f32 %v3666, %v4023
    %v4088 = vadd.f32 %v3667, %v4024
    %v4089 = vadd.f32 %v3668, %v4025
    %v4090 = vadd.f32 %v3669, %v4026
    %v4091 = vadd.f32 %v3670, %v4027
    %v4092 = vadd.f32 %v3671, %v4028
    %v4093 = vadd.f32 %v3672, %v4029
    %v4094 = vadd.f32 %v3673, %v4030
    %v4095 = vadd.f32 %v3674, %v4031
    %v4096 = vadd.f32 %v3675, %v4032
    %v4097 = vlaneseq
    %v4098 = vshrl.u32 %v4097, 7
    %v4099 = vsub.s32 7, %v4098
    %v4100 = vrot.slane %v1982, %v4099
    %v4101 = vmul.f32 %v3678, %v4100
    %v4102 = vmul.f32 %v3679, %v4100
    %v4103 = vmul.f32 %v3682, %v4100
    %v4104 = vmul.f32 %v3683, %v4100
    %v4105 = vmul.f32 %v3686, %v4100
    %v4106 = vmul.f32 %v3687, %v4100
    %v4107 = vmul.f32 %v3690, %v4100
    %v4108 = vmul.f32 %v3691, %v4100
    %v4109 = vmul.f32 %v3694, %v4100
    %v4110 = vmul.f32 %v3695, %v4100
    %v4111 = vmul.f32 %v3698, %v4100
    %v4112 = vmul.f32 %v3699, %v4100
    %v4113 = vmul.f32 %v3702, %v4100
    %v4114 = vmul.f32 %v3703, %v4100
    %v4115 = vmul.f32 %v3706, %v4100
    %v4116 = vmul.f32 %v3707, %v4100
    %v4117 = vmul.f32 %v3710, %v4100
    %v4118 = vmul.f32 %v3711, %v4100
    %v4119 = vmul.f32 %v3714, %v4100
    %v4120 = vmul.f32 %v3715, %v4100
    %v4121 = vmul.f32 %v3718, %v4100
    %v4122 = vmul.f32 %v3719, %v4100
    %v4123 = vmul.f32 %v3722, %v4100
    %v4124 = vmul.f32 %v3723, %v4100
    %v4125 = vmul.f32 %v3726, %v4100
    %v4126 = vmul.f32 %v3727, %v4100
    %v4127 = vmul.f32 %v3730, %v4100
    %v4128 = vmul.f32 %v3731, %v4100
    %v4129 = vmul.f32 %v3734, %v4100
    %v4130 = vmul.f32 %v3735, %v4100
    %v4131 = vmul.f32 %v3738, %v4100
    %v4132 = vmul.f32 %v3739, %v4100
    %v4133 = vmul.f32 %v3742, %v4100
    %v4134 = vmul.f32 %v3743, %v4100
    %v4135 = vmul.f32 %v3746, %v4100
    %v4136 = vmul.f32 %v3747, %v4100
    %v4137 = vmul.f32 %v3750, %v4100
    %v4138 = vmul.f32 %v3751, %v4100
    %v4139 = vmul.f32 %v3754, %v4100
    %v4140 = vmul.f32 %v3755, %v4100
    %v4141 = vmul.f32 %v3758, %v4100
    %v4142 = vmul.f32 %v3759, %v4100
    %v4143 = vmul.f32 %v3762, %v4100
    %v4144 = vmul.f32 %v3763, %v4100
    %v4145 = vmul.f32 %v3766, %v4100
    %v4146 = vmul.f32 %v3767, %v4100
    %v4147 = vmul.f32 %v3770, %v4100
    %v4148 = vmul.f32 %v3771, %v4100
    %v4149 = vmul.f32 %v3774, %v4100
    %v4150 = vmul.f32 %v3775, %v4100
    %v4151 = vmul.f32 %v3778, %v4100
    %v4152 = vmul.f32 %v3779, %v4100
    %v4153 = vmul.f32 %v3782, %v4100
    %v4154 = vmul.f32 %v3783, %v4100
    %v4155 = vmul.f32 %v3786, %v4100
    %v4156 = vmul.f32 %v3787, %v4100
    %v4157 = vmul.f32 %v3790, %v4100
    %v4158 = vmul.f32 %v3791, %v4100
    %v4159 = vmul.f32 %v3794, %v4100
    %v4160 = vmul.f32 %v3795, %v4100
    %v4161 = vmul.f32 %v3798, %v4100
    %v4162 = vmul.f32 %v3799, %v4100
    %v4163 = vmul.f32 %v3802, %v4100
    %v4164 = vmul.f32 %v3803, %v4100
    %v4165 = vadd.f32 %v4033, %v4101
    %v4166 = vadd.f32 %v4034, %v4102
    %v4167 = vadd.f32 %v4035, %v4103
    %v4168 = vadd.f32 %v4036, %v4104
    %v4169 = vadd.f32 %v4037, %v4105
    %v4170 = vadd.f32 %v4038, %v4106
    %v4171 = vadd.f32 %v4039, %v4107
    %v4172 = vadd.f32 %v4040, %v4108
    %v4173 = vadd.f32 %v4041, %v4109
    %v4174 = vadd.f32 %v4042, %v4110
    %v4175 = vadd.f32 %v4043, %v4111
    %v4176 = vadd.f32 %v4044, %v4112
    %v4177 = vadd.f32 %v4045, %v4113
    %v4178 = vadd.f32 %v4046, %v4114
    %v4179 = vadd.f32 %v4047, %v4115
    %v4180 = vadd.f32 %v4048, %v4116
    %v4181 = vadd.f32 %v4049, %v4117
    %v4182 = vadd.f32 %v4050, %v4118
    %v4183 = vadd.f32 %v4051, %v4119
    %v4184 = vadd.f32 %v4052, %v4120
    %v4185 = vadd.f32 %v4053, %v4121
    %v4186 = vadd.f32 %v4054, %v4122
    %v4187 = vadd.f32 %v4055, %v4123
    %v4188 = vadd.f32 %v4056, %v4124
    %v4189 = vadd.f32 %v4057, %v4125
    %v4190 = vadd.f32 %v4058, %v4126
    %v4191 = vadd.f32 %v4059, %v4127
    %v4192 = vadd.f32 %v4060, %v4128
    %v4193 = vadd.f32 %v4061, %v4129
    %v4194 = vadd.f32 %v4062, %v4130
    %v4195 = vadd.f32 %v4063, %v4131
    %v4196 = vadd.f32 %v4064, %v4132
    %v4197 = vadd.f32 %v4065, %v4133
    %v4198 = vadd.f32 %v4066, %v4134
    %v4199 = vadd.f32 %v4067, %v4135
    %v4200 = vadd.f32 %v4068, %v4136
    %v4201 = vadd.f32 %v4069, %v4137
    %v4202 = vadd.f32 %v4070, %v4138
    %v4203 = vadd.f32 %v4071, %v4139
    %v4204 = vadd.f32 %v4072, %v4140
    %v4205 = vadd.f32 %v4073, %v4141
    %v4206 = vadd.f32 %v4074, %v4142
    %v4207 = vadd.f32 %v4075, %v4143
    %v4208 = vadd.f32 %v4076, %v4144
    %v4209 = vadd.f32 %v4077, %v4145
    %v4210 = vadd.f32 %v4078, %v4146
    %v4211 = vadd.f32 %v4079, %v4147
    %v4212 = vadd.f32 %v4080, %v4148
    %v4213 = vadd.f32 %v4081, %v4149
    %v4214 = vadd.f32 %v4082, %v4150
    %v4215 = vadd.f32 %v4083, %v4151
    %v4216 = vadd.f32 %v4084, %v4152
    %v4217 = vadd.f32 %v4085, %v4153
    %v4218 = vadd.f32 %v4086, %v4154
    %v4219 = vadd.f32 %v4087, %v4155
    %v4220 = vadd.f32 %v4088, %v4156
    %v4221 = vadd.f32 %v4089, %v4157
    %v4222 = vadd.f32 %v4090, %v4158
    %v4223 = vadd.f32 %v4091, %v4159
    %v4224 = vadd.f32 %v4092, %v4160
    %v4225 = vadd.f32 %v4093, %v4161
    %v4226 = vadd.f32 %v4094, %v4162
    %v4227 = vadd.f32 %v4095, %v4163
    %v4228 = vadd.f32 %v4096, %v4164
    %v4229 = vrot.slane %v3678, 1
    %v4230 = vrot.slane %v3682, 1
    %v4231 = vrot.slane %v3686, 1
    %v4232 = vrot.slane %v3690, 1
    %v4233 = vrot.slane %v3694, 1
    %v4234 = vrot.slane %v3698, 1
    %v4235 = vrot.slane %v3702, 1
    %v4236 = vrot.slane %v3706, 1
    %v4237 = vrot.slane %v3710, 1
    %v4238 = vrot.slane %v3714, 1
    %v4239 = vrot.slane %v3718, 1
    %v4240 = vrot.slane %v3722, 1
    %v4241 = vrot.slane %v3726, 1
    %v4242 = vrot.slane %v3730, 1
    %v4243 = vrot.slane %v3734, 1
    %v4244 = vrot.slane %v3738, 1
    %v4245 = vrot.slane %v3742, 1
    %v4246 = vrot.slane %v3746, 1
    %v4247 = vrot.slane %v3750, 1
    %v4248 = vrot.slane %v3754, 1
    %v4249 = vrot.slane %v3758, 1
    %v4250 = vrot.slane %v3762, 1
    %v4251 = vrot.slane %v3766, 1
    %v4252 = vrot.slane %v3770, 1
    %v4253 = vrot.slane %v3774, 1
    %v4254 = vrot.slane %v3778, 1
    %v4255 = vrot.slane %v3782, 1
    %v4256 = vrot.slane %v3786, 1
    %v4257 = vrot.slane %v3790, 1
    %v4258 = vrot.slane %v3794, 1
    %v4259 = vrot.slane %v3798, 1
    %v4260 = vrot.slane %v3802, 1
    %v4261 = vrot.slane %v3679, 1
    %v4262 = vrot.slane %v3683, 1
    %v4263 = vrot.slane %v3687, 1
    %v4264 = vrot.slane %v3691, 1
    %v4265 = vrot.slane %v3695, 1
    %v4266 = vrot.slane %v3699, 1
    %v4267 = vrot.slane %v3703, 1
    %v4268 = vrot.slane %v3707, 1
    %v4269 = vrot.slane %v3711, 1
    %v4270 = vrot.slane %v3715, 1
    %v4271 = vrot.slane %v3719, 1
    %v4272 = vrot.slane %v3723, 1
    %v4273 = vrot.slane %v3727, 1
    %v4274 = vrot.slane %v3731, 1
    %v4275 = vrot.slane %v3735, 1
    %v4276 = vrot.slane %v3739, 1
    %v4277 = vrot.slane %v3743, 1
    %v4278 = vrot.slane %v3747, 1
    %v4279 = vrot.slane %v3751, 1
    %v4280 = vrot.slane %v3755, 1
    %v4281 = vrot.slane %v3759, 1
    %v4282 = vrot.slane %v3763, 1
    %v4283 = vrot.slane %v3767, 1
    %v4284 = vrot.slane %v3771, 1
    %v4285 = vrot.slane %v3775, 1
    %v4286 = vrot.slane %v3779, 1
    %v4287 = vrot.slane %v3783, 1
    %v4288 = vrot.slane %v3787, 1
    %v4289 = vrot.slane %v3791, 1
    %v4290 = vrot.slane %v3795, 1
    %v4291 = vrot.slane %v3799, 1
    %v4292 = vrot.slane %v3803, 1
    %v4293 = vrot.slane %v3680, 1
    %v4294 = vrot.slane %v3684, 1
    %v4295 = vrot.slane %v3688, 1
    %v4296 = vrot.slane %v3692, 1
    %v4297 = vrot.slane %v3696, 1
    %v4298 = vrot.slane %v3700, 1
    %v4299 = vrot.slane %v3704, 1
    %v4300 = vrot.slane %v3708, 1
    %v4301 = vrot.slane %v3712, 1
    %v4302 = vrot.slane %v3716, 1
    %v4303 = vrot.slane %v3720, 1
    %v4304 = vrot.slane %v3724, 1
    %v4305 = vrot.slane %v3728, 1
    %v4306 = vrot.slane %v3732, 1
    %v4307 = vrot.slane %v3736, 1
    %v4308 = vrot.slane %v3740, 1
    %v4309 = vrot.slane %v3744, 1
    %v4310 = vrot.slane %v3748, 1
    %v4311 = vrot.slane %v3752, 1
    %v4312 = vrot.slane %v3756, 1
    %v4313 = vrot.slane %v3760, 1
    %v4314 = vrot.slane %v3764, 1
    %v4315 = vrot.slane %v3768, 1
    %v4316 = vrot.slane %v3772, 1
    %v4317 = vrot.slane %v3776, 1
    %v4318 = vrot.slane %v3780, 1
    %v4319 = vrot.slane %v3784, 1
    %v4320 = vrot.slane %v3788, 1
    %v4321 = vrot.slane %v3792, 1
    %v4322 = vrot.slane %v3796, 1
    %v4323 = vrot.slane %v3800, 1
    %v4324 = vrot.slane %v3804, 1
    %v4325 = vsel %vm2635, %v4261, %v4293
    %v4326 = vsel %vm2635, %v4262, %v4294
    %v4327 = vsel %vm2635, %v4263, %v4295
    %v4328 = vsel %vm2635, %v4264, %v4296
    %v4329 = vsel %vm2635, %v4265, %v4297
    %v4330 = vsel %vm2635, %v4266, %v4298
    %v4331 = vsel %vm2635, %v4267, %v4299
    %v4332 = vsel %vm2635, %v4268, %v4300
    %v4333 = vsel %vm2635, %v4269, %v4301
    %v4334 = vsel %vm2635, %v4270, %v4302
    %v4335 = vsel %vm2635, %v4271, %v4303
    %v4336 = vsel %vm2635, %v4272, %v4304
    %v4337 = vsel %vm2635, %v4273, %v4305
    %v4338 = vsel %vm2635, %v4274, %v4306
    %v4339 = vsel %vm2635, %v4275, %v4307
    %v4340 = vsel %vm2635, %v4276, %v4308
    %v4341 = vsel %vm2635, %v4277, %v4309
    %v4342 = vsel %vm2635, %v4278, %v4310
    %v4343 = vsel %vm2635, %v4279, %v4311
    %v4344 = vsel %vm2635, %v4280, %v4312
    %v4345 = vsel %vm2635, %v4281, %v4313
    %v4346 = vsel %vm2635, %v4282, %v4314
    %v4347 = vsel %vm2635, %v4283, %v4315
    %v4348 = vsel %vm2635, %v4284, %v4316
    %v4349 = vsel %vm2635, %v4285, %v4317
    %v4350 = vsel %vm2635, %v4286, %v4318
    %v4351 = vsel %vm2635, %v4287, %v4319
    %v4352 = vsel %vm2635, %v4288, %v4320
    %v4353 = vsel %vm2635, %v4289, %v4321
    %v4354 = vsel %vm2635, %v4290, %v4322
    %v4355 = vsel %vm2635, %v4291, %v4323
    %v4356 = vsel %vm2635, %v4292, %v4324
    %v4357 = vsel %vm2635, %v4229, %v4261
    %v4358 = vsel %vm2635, %v4230, %v4262
    %v4359 = vsel %vm2635, %v4231, %v4263
    %v4360 = vsel %vm2635, %v4232, %v4264
    %v4361 = vsel %vm2635, %v4233, %v4265
    %v4362 = vsel %vm2635, %v4234, %v4266
    %v4363 = vsel %vm2635, %v4235, %v4267
    %v4364 = vsel %vm2635, %v4236, %v4268
    %v4365 = vsel %vm2635, %v4237, %v4269
    %v4366 = vsel %vm2635, %v4238, %v4270
    %v4367 = vsel %vm2635, %v4239, %v4271
    %v4368 = vsel %vm2635, %v4240, %v4272
    %v4369 = vsel %vm2635, %v4241, %v4273
    %v4370 = vsel %vm2635, %v4242, %v4274
    %v4371 = vsel %vm2635, %v4243, %v4275
    %v4372 = vsel %vm2635, %v4244, %v4276
    %v4373 = vsel %vm2635, %v4245, %v4277
    %v4374 = vsel %vm2635, %v4246, %v4278
    %v4375 = vsel %vm2635, %v4247, %v4279
    %v4376 = vsel %vm2635, %v4248, %v4280
    %v4377 = vsel %vm2635, %v4249, %v4281
    %v4378 = vsel %vm2635, %v4250, %v4282
    %v4379 = vsel %vm2635, %v4251, %v4283
    %v4380 = vsel %vm2635, %v4252, %v4284
    %v4381 = vsel %vm2635, %v4253, %v4285
    %v4382 = vsel %vm2635, %v4254, %v4286
    %v4383 = vsel %vm2635, %v4255, %v4287
    %v4384 = vsel %vm2635, %v4256, %v4288
    %v4385 = vsel %vm2635, %v4257, %v4289
    %v4386 = vsel %vm2635, %v4258, %v4290
    %v4387 = vsel %vm2635, %v4259, %v4291
    %v4388 = vsel %vm2635, %v4260, %v4292
    %v4389 = vlaneseq
    %v4390 = vshrl.u32 %v4389, 7
    %v4391 = vsub.s32 0, %v4390
    %v4392 = vrot.slane %v1983, %v4391
    %v4393 = vmul.f32 %v4357, %v4392
    %v4394 = vmul.f32 %v4325, %v4392
    %v4395 = vmul.f32 %v4358, %v4392
    %v4396 = vmul.f32 %v4326, %v4392
    %v4397 = vmul.f32 %v4359, %v4392
    %v4398 = vmul.f32 %v4327, %v4392
    %v4399 = vmul.f32 %v4360, %v4392
    %v4400 = vmul.f32 %v4328, %v4392
    %v4401 = vmul.f32 %v4361, %v4392
    %v4402 = vmul.f32 %v4329, %v4392
    %v4403 = vmul.f32 %v4362, %v4392
    %v4404 = vmul.f32 %v4330, %v4392
    %v4405 = vmul.f32 %v4363, %v4392
    %v4406 = vmul.f32 %v4331, %v4392
    %v4407 = vmul.f32 %v4364, %v4392
    %v4408 = vmul.f32 %v4332, %v4392
    %v4409 = vmul.f32 %v4365, %v4392
    %v4410 = vmul.f32 %v4333, %v4392
    %v4411 = vmul.f32 %v4366, %v4392
    %v4412 = vmul.f32 %v4334, %v4392
    %v4413 = vmul.f32 %v4367, %v4392
    %v4414 = vmul.f32 %v4335, %v4392
    %v4415 = vmul.f32 %v4368, %v4392
    %v4416 = vmul.f32 %v4336, %v4392
    %v4417 = vmul.f32 %v4369, %v4392
    %v4418 = vmul.f32 %v4337, %v4392
    %v4419 = vmul.f32 %v4370, %v4392
    %v4420 = vmul.f32 %v4338, %v4392
    %v4421 = vmul.f32 %v4371, %v4392
    %v4422 = vmul.f32 %v4339, %v4392
    %v4423 = vmul.f32 %v4372, %v4392
    %v4424 = vmul.f32 %v4340, %v4392
    %v4425 = vmul.f32 %v4373, %v4392
    %v4426 = vmul.f32 %v4341, %v4392
    %v4427 = vmul.f32 %v4374, %v4392
    %v4428 = vmul.f32 %v4342, %v4392
    %v4429 = vmul.f32 %v4375, %v4392
    %v4430 = vmul.f32 %v4343, %v4392
    %v4431 = vmul.f32 %v4376, %v4392
    %v4432 = vmul.f32 %v4344, %v4392
    %v4433 = vmul.f32 %v4377, %v4392
    %v4434 = vmul.f32 %v4345, %v4392
    %v4435 = vmul.f32 %v4378, %v4392
    %v4436 = vmul.f32 %v4346, %v4392
    %v4437 = vmul.f32 %v4379, %v4392
    %v4438 = vmul.f32 %v4347, %v4392
    %v4439 = vmul.f32 %v4380, %v4392
    %v4440 = vmul.f32 %v4348, %v4392
    %v4441 = vmul.f32 %v4381, %v4392
    %v4442 = vmul.f32 %v4349, %v4392
    %v4443 = vmul.f32 %v4382, %v4392
    %v4444 = vmul.f32 %v4350, %v4392
    %v4445 = vmul.f32 %v4383, %v4392
    %v4446 = vmul.f32 %v4351, %v4392
    %v4447 = vmul.f32 %v4384, %v4392
    %v4448 = vmul.f32 %v4352, %v4392
    %v4449 = vmul.f32 %v4385, %v4392
    %v4450 = vmul.f32 %v4353, %v4392
    %v4451 = vmul.f32 %v4386, %v4392
    %v4452 = vmul.f32 %v4354, %v4392
    %v4453 = vmul.f32 %v4387, %v4392
    %v4454 = vmul.f32 %v4355, %v4392
    %v4455 = vmul.f32 %v4388, %v4392
    %v4456 = vmul.f32 %v4356, %v4392
    %v4457 = vadd.f32 %v4165, %v4393
    %v4458 = vadd.f32 %v4166, %v4394
    %v4459 = vadd.f32 %v4167, %v4395
    %v4460 = vadd.f32 %v4168, %v4396
    %v4461 = vadd.f32 %v4169, %v4397
    %v4462 = vadd.f32 %v4170, %v4398
    %v4463 = vadd.f32 %v4171, %v4399
    %v4464 = vadd.f32 %v4172, %v4400
    %v4465 = vadd.f32 %v4173, %v4401
    %v4466 = vadd.f32 %v4174, %v4402
    %v4467 = vadd.f32 %v4175, %v4403
    %v4468 = vadd.f32 %v4176, %v4404
    %v4469 = vadd.f32 %v4177, %v4405
    %v4470 = vadd.f32 %v4178, %v4406
    %v4471 = vadd.f32 %v4179, %v4407
    %v4472 = vadd.f32 %v4180, %v4408
    %v4473 = vadd.f32 %v4181, %v4409
    %v4474 = vadd.f32 %v4182, %v4410
    %v4475 = vadd.f32 %v4183, %v4411
    %v4476 = vadd.f32 %v4184, %v4412
    %v4477 = vadd.f32 %v4185, %v4413
    %v4478 = vadd.f32 %v4186, %v4414
    %v4479 = vadd.f32 %v4187, %v4415
    %v4480 = vadd.f32 %v4188, %v4416
    %v4481 = vadd.f32 %v4189, %v4417
    %v4482 = vadd.f32 %v4190, %v4418
    %v4483 = vadd.f32 %v4191, %v4419
    %v4484 = vadd.f32 %v4192, %v4420
    %v4485 = vadd.f32 %v4193, %v4421
    %v4486 = vadd.f32 %v4194, %v4422
    %v4487 = vadd.f32 %v4195, %v4423
    %v4488 = vadd.f32 %v4196, %v4424
    %v4489 = vadd.f32 %v4197, %v4425
    %v4490 = vadd.f32 %v4198, %v4426
    %v4491 = vadd.f32 %v4199, %v4427
    %v4492 = vadd.f32 %v4200, %v4428
    %v4493 = vadd.f32 %v4201, %v4429
    %v4494 = vadd.f32 %v4202, %v4430
    %v4495 = vadd.f32 %v4203, %v4431
    %v4496 = vadd.f32 %v4204, %v4432
    %v4497 = vadd.f32 %v4205, %v4433
    %v4498 = vadd.f32 %v4206, %v4434
    %v4499 = vadd.f32 %v4207, %v4435
    %v4500 = vadd.f32 %v4208, %v4436
    %v4501 = vadd.f32 %v4209, %v4437
    %v4502 = vadd.f32 %v4210, %v4438
    %v4503 = vadd.f32 %v4211, %v4439
    %v4504 = vadd.f32 %v4212, %v4440
    %v4505 = vadd.f32 %v4213, %v4441
    %v4506 = vadd.f32 %v4214, %v4442
    %v4507 = vadd.f32 %v4215, %v4443
    %v4508 = vadd.f32 %v4216, %v4444
    %v4509 = vadd.f32 %v4217, %v4445
    %v4510 = vadd.f32 %v4218, %v4446
    %v4511 = vadd.f32 %v4219, %v4447
    %v4512 = vadd.f32 %v4220, %v4448
    %v4513 = vadd.f32 %v4221, %v4449
    %v4514 = vadd.f32 %v4222, %v4450
    %v4515 = vadd.f32 %v4223, %v4451
    %v4516 = vadd.f32 %v4224, %v4452
    %v4517 = vadd.f32 %v4225, %v4453
    %v4518 = vadd.f32 %v4226, %v4454
    %v4519 = vadd.f32 %v4227, %v4455
    %v4520 = vadd.f32 %v4228, %v4456
    %v4521 = vld [vmem:[%s1 + $0x50] sm:$0x1]
    %v4522 = vlaneseq
    %v4523 = vshrl.u32 %v4522, 7
    %v4524 = vsub.s32 0, %v4523
    %v4525 = vrot.slane %v4521, %v4524
    %v4526 = vadd.f32 %v4457, %v4525
    %v4527 = vadd.f32 %v4458, %v4525
    %v4528 = vadd.f32 %v4459, %v4525
    %v4529 = vadd.f32 %v4460, %v4525
    %v4530 = vadd.f32 %v4461, %v4525
    %v4531 = vadd.f32 %v4462, %v4525
    %v4532 = vadd.f32 %v4463, %v4525
    %v4533 = vadd.f32 %v4464, %v4525
    %v4534 = vadd.f32 %v4465, %v4525
    %v4535 = vadd.f32 %v4466, %v4525
    %v4536 = vadd.f32 %v4467, %v4525
    %v4537 = vadd.f32 %v4468, %v4525
    %v4538 = vadd.f32 %v4469, %v4525
    %v4539 = vadd.f32 %v4470, %v4525
    %v4540 = vadd.f32 %v4471, %v4525
    %v4541 = vadd.f32 %v4472, %v4525
    %v4542 = vadd.f32 %v4473, %v4525
    %v4543 = vadd.f32 %v4474, %v4525
    %v4544 = vadd.f32 %v4475, %v4525
    %v4545 = vadd.f32 %v4476, %v4525
    %v4546 = vadd.f32 %v4477, %v4525
    %v4547 = vadd.f32 %v4478, %v4525
    %v4548 = vadd.f32 %v4479, %v4525
    %v4549 = vadd.f32 %v4480, %v4525
    %v4550 = vadd.f32 %v4481, %v4525
    %v4551 = vadd.f32 %v4482, %v4525
    %v4552 = vadd.f32 %v4483, %v4525
    %v4553 = vadd.f32 %v4484, %v4525
    %v4554 = vadd.f32 %v4485, %v4525
    %v4555 = vadd.f32 %v4486, %v4525
    %v4556 = vadd.f32 %v4487, %v4525
    %v4557 = vadd.f32 %v4488, %v4525
    %v4558 = vadd.f32 %v4489, %v4525
    %v4559 = vadd.f32 %v4490, %v4525
    %v4560 = vadd.f32 %v4491, %v4525
    %v4561 = vadd.f32 %v4492, %v4525
    %v4562 = vadd.f32 %v4493, %v4525
    %v4563 = vadd.f32 %v4494, %v4525
    %v4564 = vadd.f32 %v4495, %v4525
    %v4565 = vadd.f32 %v4496, %v4525
    %v4566 = vadd.f32 %v4497, %v4525
    %v4567 = vadd.f32 %v4498, %v4525
    %v4568 = vadd.f32 %v4499, %v4525
    %v4569 = vadd.f32 %v4500, %v4525
    %v4570 = vadd.f32 %v4501, %v4525
    %v4571 = vadd.f32 %v4502, %v4525
    %v4572 = vadd.f32 %v4503, %v4525
    %v4573 = vadd.f32 %v4504, %v4525
    %v4574 = vadd.f32 %v4505, %v4525
    %v4575 = vadd.f32 %v4506, %v4525
    %v4576 = vadd.f32 %v4507, %v4525
    %v4577 = vadd.f32 %v4508, %v4525
    %v4578 = vadd.f32 %v4509, %v4525
    %v4579 = vadd.f32 %v4510, %v4525
    %v4580 = vadd.f32 %v4511, %v4525
    %v4581 = vadd.f32 %v4512, %v4525
    %v4582 = vadd.f32 %v4513, %v4525
    %v4583 = vadd.f32 %v4514, %v4525
    %v4584 = vadd.f32 %v4515, %v4525
    %v4585 = vadd.f32 %v4516, %v4525
    %v4586 = vadd.f32 %v4517, %v4525
    %v4587 = vadd.f32 %v4518, %v4525
    %v4588 = vadd.f32 %v4519, %v4525
    %v4589 = vadd.f32 %v4520, %v4525
    %v4590 = vxor.u32 %v4526, 2147483648
    %v4591 = vxor.u32 %v4527, 2147483648
    %v4592 = vxor.u32 %v4528, 2147483648
    %v4593 = vxor.u32 %v4529, 2147483648
    %v4594 = vxor.u32 %v4530, 2147483648
    %v4595 = vxor.u32 %v4531, 2147483648
    %v4596 = vxor.u32 %v4532, 2147483648
    %v4597 = vxor.u32 %v4533, 2147483648
    %v4598 = vxor.u32 %v4534, 2147483648
    %v4599 = vxor.u32 %v4535, 2147483648
    %v4600 = vxor.u32 %v4536, 2147483648
    %v4601 = vxor.u32 %v4537, 2147483648
    %v4602 = vxor.u32 %v4538, 2147483648
    %v4603 = vxor.u32 %v4539, 2147483648
    %v4604 = vxor.u32 %v4540, 2147483648
    %v4605 = vxor.u32 %v4541, 2147483648
    %v4606 = vxor.u32 %v4542, 2147483648
    %v4607 = vxor.u32 %v4543, 2147483648
    %v4608 = vxor.u32 %v4544, 2147483648
    %v4609 = vxor.u32 %v4545, 2147483648
    %v4610 = vxor.u32 %v4546, 2147483648
    %v4611 = vxor.u32 %v4547, 2147483648
    %v4612 = vxor.u32 %v4548, 2147483648
    %v4613 = vxor.u32 %v4549, 2147483648
    %v4614 = vxor.u32 %v4550, 2147483648
    %v4615 = vxor.u32 %v4551, 2147483648
    %v4616 = vxor.u32 %v4552, 2147483648
    %v4617 = vxor.u32 %v4553, 2147483648
    %v4618 = vxor.u32 %v4554, 2147483648
    %v4619 = vxor.u32 %v4555, 2147483648
    %v4620 = vxor.u32 %v4556, 2147483648
    %v4621 = vxor.u32 %v4557, 2147483648
    %v4622 = vxor.u32 %v4558, 2147483648
    %v4623 = vxor.u32 %v4559, 2147483648
    %v4624 = vxor.u32 %v4560, 2147483648
    %v4625 = vxor.u32 %v4561, 2147483648
    %v4626 = vxor.u32 %v4562, 2147483648
    %v4627 = vxor.u32 %v4563, 2147483648
    %v4628 = vxor.u32 %v4564, 2147483648
    %v4629 = vxor.u32 %v4565, 2147483648
    %v4630 = vxor.u32 %v4566, 2147483648
    %v4631 = vxor.u32 %v4567, 2147483648
    %v4632 = vxor.u32 %v4568, 2147483648
    %v4633 = vxor.u32 %v4569, 2147483648
    %v4634 = vxor.u32 %v4570, 2147483648
    %v4635 = vxor.u32 %v4571, 2147483648
    %v4636 = vxor.u32 %v4572, 2147483648
    %v4637 = vxor.u32 %v4573, 2147483648
    %v4638 = vxor.u32 %v4574, 2147483648
    %v4639 = vxor.u32 %v4575, 2147483648
    %v4640 = vxor.u32 %v4576, 2147483648
    %v4641 = vxor.u32 %v4577, 2147483648
    %v4642 = vxor.u32 %v4578, 2147483648
    %v4643 = vxor.u32 %v4579, 2147483648
    %v4644 = vxor.u32 %v4580, 2147483648
    %v4645 = vxor.u32 %v4581, 2147483648
    %v4646 = vxor.u32 %v4582, 2147483648
    %v4647 = vxor.u32 %v4583, 2147483648
    %v4648 = vxor.u32 %v4584, 2147483648
    %v4649 = vxor.u32 %v4585, 2147483648
    %v4650 = vxor.u32 %v4586, 2147483648
    %v4651 = vxor.u32 %v4587, 2147483648
    %v4652 = vxor.u32 %v4588, 2147483648
    %v4653 = vxor.u32 %v4589, 2147483648
    %v4654 = vmul.f32 %v4590, 1.442695
    %v4655 = vpow.pop %v4654
    %v4656 = vmul.f32 %v4591, 1.442695
    %v4657 = vpow.pop %v4656
    %v4658 = vmul.f32 %v4592, 1.442695
    %v4659 = vpow.pop %v4658
    %v4660 = vmul.f32 %v4593, 1.442695
    %v4661 = vpow.pop %v4660
    %v4662 = vmul.f32 %v4594, 1.442695
    %v4663 = vpow.pop %v4662
    %v4664 = vmul.f32 %v4595, 1.442695
    %v4665 = vpow.pop %v4664
    %v4666 = vmul.f32 %v4596, 1.442695
    %v4667 = vpow.pop %v4666
    %v4668 = vmul.f32 %v4597, 1.442695
    %v4669 = vpow.pop %v4668
    %v4670 = vmul.f32 %v4598, 1.442695
    %v4671 = vpow.pop %v4670
    %v4672 = vmul.f32 %v4599, 1.442695
    %v4673 = vpow.pop %v4672
    %v4674 = vmul.f32 %v4600, 1.442695
    %v4675 = vpow.pop %v4674
    %v4676 = vmul.f32 %v4601, 1.442695
    %v4677 = vpow.pop %v4676
    %v4678 = vmul.f32 %v4602, 1.442695
    %v4679 = vpow.pop %v4678
    %v4680 = vmul.f32 %v4603, 1.442695
    %v4681 = vpow.pop %v4680
    %v4682 = vmul.f32 %v4604, 1.442695
    %v4683 = vpow.pop %v4682
    %v4684 = vmul.f32 %v4605, 1.442695
    %v4685 = vpow.pop %v4684
    %v4686 = vmul.f32 %v4606, 1.442695
    %v4687 = vpow.pop %v4686
    %v4688 = vmul.f32 %v4607, 1.442695
    %v4689 = vpow.pop %v4688
    %v4690 = vmul.f32 %v4608, 1.442695
    %v4691 = vpow.pop %v4690
    %v4692 = vmul.f32 %v4609, 1.442695
    %v4693 = vpow.pop %v4692
    %v4694 = vmul.f32 %v4610, 1.442695
    %v4695 = vpow.pop %v4694
    %v4696 = vmul.f32 %v4611, 1.442695
    %v4697 = vpow.pop %v4696
    %v4698 = vmul.f32 %v4612, 1.442695
    %v4699 = vpow.pop %v4698
    %v4700 = vmul.f32 %v4613, 1.442695
    %v4701 = vpow.pop %v4700
    %v4702 = vmul.f32 %v4614, 1.442695
    %v4703 = vpow.pop %v4702
    %v4704 = vmul.f32 %v4615, 1.442695
    %v4705 = vpow.pop %v4704
    %v4706 = vmul.f32 %v4616, 1.442695
    %v4707 = vpow.pop %v4706
    %v4708 = vmul.f32 %v4617, 1.442695
    %v4709 = vpow.pop %v4708
    %v4710 = vmul.f32 %v4618, 1.442695
    %v4711 = vpow.pop %v4710
    %v4712 = vmul.f32 %v4619, 1.442695
    %v4713 = vpow.pop %v4712
    %v4714 = vmul.f32 %v4620, 1.442695
    %v4715 = vpow.pop %v4714
    %v4716 = vmul.f32 %v4621, 1.442695
    %v4717 = vpow.pop %v4716
    %v4718 = vmul.f32 %v4622, 1.442695
    %v4719 = vpow.pop %v4718
    %v4720 = vmul.f32 %v4623, 1.442695
    %v4721 = vpow.pop %v4720
    %v4722 = vmul.f32 %v4624, 1.442695
    %v4723 = vpow.pop %v4722
    %v4724 = vmul.f32 %v4625, 1.442695
    %v4725 = vpow.pop %v4724
    %v4726 = vmul.f32 %v4626, 1.442695
    %v4727 = vpow.pop %v4726
    %v4728 = vmul.f32 %v4627, 1.442695
    %v4729 = vpow.pop %v4728
    %v4730 = vmul.f32 %v4628, 1.442695
    %v4731 = vpow.pop %v4730
    %v4732 = vmul.f32 %v4629, 1.442695
    %v4733 = vpow.pop %v4732
    %v4734 = vmul.f32 %v4630, 1.442695
    %v4735 = vpow.pop %v4734
    %v4736 = vmul.f32 %v4631, 1.442695
    %v4737 = vpow.pop %v4736
    %v4738 = vmul.f32 %v4632, 1.442695
    %v4739 = vpow.pop %v4738
    %v4740 = vmul.f32 %v4633, 1.442695
    %v4741 = vpow.pop %v4740
    %v4742 = vmul.f32 %v4634, 1.442695
    %v4743 = vpow.pop %v4742
    %v4744 = vmul.f32 %v4635, 1.442695
    %v4745 = vpow.pop %v4744
    %v4746 = vmul.f32 %v4636, 1.442695
    %v4747 = vpow.pop %v4746
    %v4748 = vmul.f32 %v4637, 1.442695
    %v4749 = vpow.pop %v4748
    %v4750 = vmul.f32 %v4638, 1.442695
    %v4751 = vpow.pop %v4750
    %v4752 = vmul.f32 %v4639, 1.442695
    %v4753 = vpow.pop %v4752
    %v4754 = vmul.f32 %v4640, 1.442695
    %v4755 = vpow.pop %v4754
    %v4756 = vmul.f32 %v4641, 1.442695
    %v4757 = vpow.pop %v4756
    %v4758 = vmul.f32 %v4642, 1.442695
    %v4759 = vpow.pop %v4758
    %v4760 = vmul.f32 %v4643, 1.442695
    %v4761 = vpow.pop %v4760
    %v4762 = vmul.f32 %v4644, 1.442695
    %v4763 = vpow.pop %v4762
    %v4764 = vmul.f32 %v4645, 1.442695
    %v4765 = vpow.pop %v4764
    %v4766 = vmul.f32 %v4646, 1.442695
    %v4767 = vpow.pop %v4766
    %v4768 = vmul.f32 %v4647, 1.442695
    %v4769 = vpow.pop %v4768
    %v4770 = vmul.f32 %v4648, 1.442695
    %v4771 = vpow.pop %v4770
    %v4772 = vmul.f32 %v4649, 1.442695
    %v4773 = vpow.pop %v4772
    %v4774 = vmul.f32 %v4650, 1.442695
    %v4775 = vpow.pop %v4774
    %v4776 = vmul.f32 %v4651, 1.442695
    %v4777 = vpow.pop %v4776
    %v4778 = vmul.f32 %v4652, 1.442695
    %v4779 = vpow.pop %v4778
    %v4780 = vmul.f32 %v4653, 1.442695
    %v4781 = vpow.pop %v4780
    %v4782 = vadd.f32 %v4655, 1.0
    %v4783 = vadd.f32 %v4657, 1.0
    %v4784 = vadd.f32 %v4659, 1.0
    %v4785 = vadd.f32 %v4661, 1.0
    %v4786 = vadd.f32 %v4663, 1.0
    %v4787 = vadd.f32 %v4665, 1.0
    %v4788 = vadd.f32 %v4667, 1.0
    %v4789 = vadd.f32 %v4669, 1.0
    %v4790 = vadd.f32 %v4671, 1.0
    %v4791 = vadd.f32 %v4673, 1.0
    %v4792 = vadd.f32 %v4675, 1.0
    %v4793 = vadd.f32 %v4677, 1.0
    %v4794 = vadd.f32 %v4679, 1.0
    %v4795 = vadd.f32 %v4681, 1.0
    %v4796 = vadd.f32 %v4683, 1.0
    %v4797 = vadd.f32 %v4685, 1.0
    %v4798 = vadd.f32 %v4687, 1.0
    %v4799 = vadd.f32 %v4689, 1.0
    %v4800 = vadd.f32 %v4691, 1.0
    %v4801 = vadd.f32 %v4693, 1.0
    %v4802 = vadd.f32 %v4695, 1.0
    %v4803 = vadd.f32 %v4697, 1.0
    %v4804 = vadd.f32 %v4699, 1.0
    %v4805 = vadd.f32 %v4701, 1.0
    %v4806 = vadd.f32 %v4703, 1.0
    %v4807 = vadd.f32 %v4705, 1.0
    %v4808 = vadd.f32 %v4707, 1.0
    %v4809 = vadd.f32 %v4709, 1.0
    %v4810 = vadd.f32 %v4711, 1.0
    %v4811 = vadd.f32 %v4713, 1.0
    %v4812 = vadd.f32 %v4715, 1.0
    %v4813 = vadd.f32 %v4717, 1.0
    %v4814 = vadd.f32 %v4719, 1.0
    %v4815 = vadd.f32 %v4721, 1.0
    %v4816 = vadd.f32 %v4723, 1.0
    %v4817 = vadd.f32 %v4725, 1.0
    %v4818 = vadd.f32 %v4727, 1.0
    %v4819 = vadd.f32 %v4729, 1.0
    %v4820 = vadd.f32 %v4731, 1.0
    %v4821 = vadd.f32 %v4733, 1.0
    %v4822 = vadd.f32 %v4735, 1.0
    %v4823 = vadd.f32 %v4737, 1.0
    %v4824 = vadd.f32 %v4739, 1.0
    %v4825 = vadd.f32 %v4741, 1.0
    %v4826 = vadd.f32 %v4743, 1.0
    %v4827 = vadd.f32 %v4745, 1.0
    %v4828 = vadd.f32 %v4747, 1.0
    %v4829 = vadd.f32 %v4749, 1.0
    %v4830 = vadd.f32 %v4751, 1.0
    %v4831 = vadd.f32 %v4753, 1.0
    %v4832 = vadd.f32 %v4755, 1.0
    %v4833 = vadd.f32 %v4757, 1.0
    %v4834 = vadd.f32 %v4759, 1.0
    %v4835 = vadd.f32 %v4761, 1.0
    %v4836 = vadd.f32 %v4763, 1.0
    %v4837 = vadd.f32 %v4765, 1.0
    %v4838 = vadd.f32 %v4767, 1.0
    %v4839 = vadd.f32 %v4769, 1.0
    %v4840 = vadd.f32 %v4771, 1.0
    %v4841 = vadd.f32 %v4773, 1.0
    %v4842 = vadd.f32 %v4775, 1.0
    %v4843 = vadd.f32 %v4777, 1.0
    %v4844 = vadd.f32 %v4779, 1.0
    %v4845 = vadd.f32 %v4781, 1.0
    %v4846 = vrcp.pop %v4782
    %v4847 = vmul.f32 1.0, %v4846
    %v4848 = vrcp.pop %v4783
    %v4849 = vmul.f32 1.0, %v4848
    %v4850 = vrcp.pop %v4784
    %v4851 = vmul.f32 1.0, %v4850
    %v4852 = vrcp.pop %v4785
    %v4853 = vmul.f32 1.0, %v4852
    %v4854 = vrcp.pop %v4786
    %v4855 = vmul.f32 1.0, %v4854
    %v4856 = vrcp.pop %v4787
    %v4857 = vmul.f32 1.0, %v4856
    %v4858 = vrcp.pop %v4788
    %v4859 = vmul.f32 1.0, %v4858
    %v4860 = vrcp.pop %v4789
    %v4861 = vmul.f32 1.0, %v4860
    %v4862 = vrcp.pop %v4790
    %v4863 = vmul.f32 1.0, %v4862
    %v4864 = vrcp.pop %v4791
    %v4865 = vmul.f32 1.0, %v4864
    %v4866 = vrcp.pop %v4792
    %v4867 = vmul.f32 1.0, %v4866
    %v4868 = vrcp.pop %v4793
    %v4869 = vmul.f32 1.0, %v4868
    %v4870 = vrcp.pop %v4794
    %v4871 = vmul.f32 1.0, %v4870
    %v4872 = vrcp.pop %v4795
    %v4873 = vmul.f32 1.0, %v4872
    %v4874 = vrcp.pop %v4796
    %v4875 = vmul.f32 1.0, %v4874
    %v4876 = vrcp.pop %v4797
    %v4877 = vmul.f32 1.0, %v4876
    %v4878 = vrcp.pop %v4798
    %v4879 = vmul.f32 1.0, %v4878
    %v4880 = vrcp.pop %v4799
    %v4881 = vmul.f32 1.0, %v4880
    %v4882 = vrcp.pop %v4800
    %v4883 = vmul.f32 1.0, %v4882
    %v4884 = vrcp.pop %v4801
    %v4885 = vmul.f32 1.0, %v4884
    %v4886 = vrcp.pop %v4802
    %v4887 = vmul.f32 1.0, %v4886
    %v4888 = vrcp.pop %v4803
    %v4889 = vmul.f32 1.0, %v4888
    %v4890 = vrcp.pop %v4804
    %v4891 = vmul.f32 1.0, %v4890
    %v4892 = vrcp.pop %v4805
    %v4893 = vmul.f32 1.0, %v4892
    %v4894 = vrcp.pop %v4806
    %v4895 = vmul.f32 1.0, %v4894
    %v4896 = vrcp.pop %v4807
    %v4897 = vmul.f32 1.0, %v4896
    %v4898 = vrcp.pop %v4808
    %v4899 = vmul.f32 1.0, %v4898
    %v4900 = vrcp.pop %v4809
    %v4901 = vmul.f32 1.0, %v4900
    %v4902 = vrcp.pop %v4810
    %v4903 = vmul.f32 1.0, %v4902
    %v4904 = vrcp.pop %v4811
    %v4905 = vmul.f32 1.0, %v4904
    %v4906 = vrcp.pop %v4812
    %v4907 = vmul.f32 1.0, %v4906
    %v4908 = vrcp.pop %v4813
    %v4909 = vmul.f32 1.0, %v4908
    %v4910 = vrcp.pop %v4814
    %v4911 = vmul.f32 1.0, %v4910
    %v4912 = vrcp.pop %v4815
    %v4913 = vmul.f32 1.0, %v4912
    %v4914 = vrcp.pop %v4816
    %v4915 = vmul.f32 1.0, %v4914
    %v4916 = vrcp.pop %v4817
    %v4917 = vmul.f32 1.0, %v4916
    %v4918 = vrcp.pop %v4818
    %v4919 = vmul.f32 1.0, %v4918
    %v4920 = vrcp.pop %v4819
    %v4921 = vmul.f32 1.0, %v4920
    %v4922 = vrcp.pop %v4820
    %v4923 = vmul.f32 1.0, %v4922
    %v4924 = vrcp.pop %v4821
    %v4925 = vmul.f32 1.0, %v4924
    %v4926 = vrcp.pop %v4822
    %v4927 = vmul.f32 1.0, %v4926
    %v4928 = vrcp.pop %v4823
    %v4929 = vmul.f32 1.0, %v4928
    %v4930 = vrcp.pop %v4824
    %v4931 = vmul.f32 1.0, %v4930
    %v4932 = vrcp.pop %v4825
    %v4933 = vmul.f32 1.0, %v4932
    %v4934 = vrcp.pop %v4826
    %v4935 = vmul.f32 1.0, %v4934
    %v4936 = vrcp.pop %v4827
    %v4937 = vmul.f32 1.0, %v4936
    %v4938 = vrcp.pop %v4828
    %v4939 = vmul.f32 1.0, %v4938
    %v4940 = vrcp.pop %v4829
    %v4941 = vmul.f32 1.0, %v4940
    %v4942 = vrcp.pop %v4830
    %v4943 = vmul.f32 1.0, %v4942
    %v4944 = vrcp.pop %v4831
    %v4945 = vmul.f32 1.0, %v4944
    %v4946 = vrcp.pop %v4832
    %v4947 = vmul.f32 1.0, %v4946
    %v4948 = vrcp.pop %v4833
    %v4949 = vmul.f32 1.0, %v4948
    %v4950 = vrcp.pop %v4834
    %v4951 = vmul.f32 1.0, %v4950
    %v4952 = vrcp.pop %v4835
    %v4953 = vmul.f32 1.0, %v4952
    %v4954 = vrcp.pop %v4836
    %v4955 = vmul.f32 1.0, %v4954
    %v4956 = vrcp.pop %v4837
    %v4957 = vmul.f32 1.0, %v4956
    %v4958 = vrcp.pop %v4838
    %v4959 = vmul.f32 1.0, %v4958
    %v4960 = vrcp.pop %v4839
    %v4961 = vmul.f32 1.0, %v4960
    %v4962 = vrcp.pop %v4840
    %v4963 = vmul.f32 1.0, %v4962
    %v4964 = vrcp.pop %v4841
    %v4965 = vmul.f32 1.0, %v4964
    %v4966 = vrcp.pop %v4842
    %v4967 = vmul.f32 1.0, %v4966
    %v4968 = vrcp.pop %v4843
    %v4969 = vmul.f32 1.0, %v4968
    %v4970 = vrcp.pop %v4844
    %v4971 = vmul.f32 1.0, %v4970
    %v4972 = vrcp.pop %v4845
    %v4973 = vmul.f32 1.0, %v4972
    %v4974 = vmul.f32 %v4526, %v4847
    %v4975 = vmul.f32 %v4527, %v4849
    %v4976 = vmul.f32 %v4528, %v4851
    %v4977 = vmul.f32 %v4529, %v4853
    %v4978 = vmul.f32 %v4530, %v4855
    %v4979 = vmul.f32 %v4531, %v4857
    %v4980 = vmul.f32 %v4532, %v4859
    %v4981 = vmul.f32 %v4533, %v4861
    %v4982 = vmul.f32 %v4534, %v4863
    %v4983 = vmul.f32 %v4535, %v4865
    %v4984 = vmul.f32 %v4536, %v4867
    %v4985 = vmul.f32 %v4537, %v4869
    %v4986 = vmul.f32 %v4538, %v4871
    %v4987 = vmul.f32 %v4539, %v4873
    %v4988 = vmul.f32 %v4540, %v4875
    %v4989 = vmul.f32 %v4541, %v4877
    %v4990 = vmul.f32 %v4542, %v4879
    %v4991 = vmul.f32 %v4543, %v4881
    %v4992 = vmul.f32 %v4544, %v4883
    %v4993 = vmul.f32 %v4545, %v4885
    %v4994 = vmul.f32 %v4546, %v4887
    %v4995 = vmul.f32 %v4547, %v4889
    %v4996 = vmul.f32 %v4548, %v4891
    %v4997 = vmul.f32 %v4549, %v4893
    %v4998 = vmul.f32 %v4550, %v4895
    %v4999 = vmul.f32 %v4551, %v4897
    %v5000 = vmul.f32 %v4552, %v4899
    %v5001 = vmul.f32 %v4553, %v4901
    %v5002 = vmul.f32 %v4554, %v4903
    %v5003 = vmul.f32 %v4555, %v4905
    %v5004 = vmul.f32 %v4556, %v4907
    %v5005 = vmul.f32 %v4557, %v4909
    %v5006 = vmul.f32 %v4558, %v4911
    %v5007 = vmul.f32 %v4559, %v4913
    %v5008 = vmul.f32 %v4560, %v4915
    %v5009 = vmul.f32 %v4561, %v4917
    %v5010 = vmul.f32 %v4562, %v4919
    %v5011 = vmul.f32 %v4563, %v4921
    %v5012 = vmul.f32 %v4564, %v4923
    %v5013 = vmul.f32 %v4565, %v4925
    %v5014 = vmul.f32 %v4566, %v4927
    %v5015 = vmul.f32 %v4567, %v4929
    %v5016 = vmul.f32 %v4568, %v4931
    %v5017 = vmul.f32 %v4569, %v4933
    %v5018 = vmul.f32 %v4570, %v4935
    %v5019 = vmul.f32 %v4571, %v4937
    %v5020 = vmul.f32 %v4572, %v4939
    %v5021 = vmul.f32 %v4573, %v4941
    %v5022 = vmul.f32 %v4574, %v4943
    %v5023 = vmul.f32 %v4575, %v4945
    %v5024 = vmul.f32 %v4576, %v4947
    %v5025 = vmul.f32 %v4577, %v4949
    %v5026 = vmul.f32 %v4578, %v4951
    %v5027 = vmul.f32 %v4579, %v4953
    %v5028 = vmul.f32 %v4580, %v4955
    %v5029 = vmul.f32 %v4581, %v4957
    %v5030 = vmul.f32 %v4582, %v4959
    %v5031 = vmul.f32 %v4583, %v4961
    %v5032 = vmul.f32 %v4584, %v4963
    %v5033 = vmul.f32 %v4585, %v4965
    %v5034 = vmul.f32 %v4586, %v4967
    %v5035 = vmul.f32 %v4587, %v4969
    %v5036 = vmul.f32 %v4588, %v4971
    %v5037 = vmul.f32 %v4589, %v4973
    %v5038 = vsel %vm1835, %v4974, 0.0
    %v5039 = vsel %vm1835, %v4975, 0.0
    %v5040 = vadd.f32 %v5038, %v5039
    %v5041 = vsel %vm1835, %v4976, 0.0
    %v5042 = vadd.f32 %v5040, %v5041
    %v5043 = vsel %vm1835, %v4977, 0.0
    %v5044 = vadd.f32 %v5042, %v5043
    %v5045 = vsel %vm1835, %v4978, 0.0
    %v5046 = vadd.f32 %v5044, %v5045
    %v5047 = vsel %vm1835, %v4979, 0.0
    %v5048 = vadd.f32 %v5046, %v5047
    %v5049 = vsel %vm1835, %v4980, 0.0
    %v5050 = vadd.f32 %v5048, %v5049
    %v5051 = vsel %vm1835, %v4981, 0.0
    %v5052 = vadd.f32 %v5050, %v5051
    %v5053 = vsel %vm1835, %v4982, 0.0
    %v5054 = vadd.f32 %v5052, %v5053
    %v5055 = vsel %vm1835, %v4983, 0.0
    %v5056 = vadd.f32 %v5054, %v5055
    %v5057 = vsel %vm1835, %v4984, 0.0
    %v5058 = vadd.f32 %v5056, %v5057
    %v5059 = vsel %vm1835, %v4985, 0.0
    %v5060 = vadd.f32 %v5058, %v5059
    %v5061 = vsel %vm1835, %v4986, 0.0
    %v5062 = vadd.f32 %v5060, %v5061
    %v5063 = vsel %vm1835, %v4987, 0.0
    %v5064 = vadd.f32 %v5062, %v5063
    %v5065 = vsel %vm1835, %v4988, 0.0
    %v5066 = vadd.f32 %v5064, %v5065
    %v5067 = vsel %vm1835, %v4989, 0.0
    %v5068 = vadd.f32 %v5066, %v5067
    %v5069 = vsel %vm1835, %v4990, 0.0
    %v5070 = vadd.f32 %v5068, %v5069
    %v5071 = vsel %vm1835, %v4991, 0.0
    %v5072 = vadd.f32 %v5070, %v5071
    %v5073 = vsel %vm1835, %v4992, 0.0
    %v5074 = vadd.f32 %v5072, %v5073
    %v5075 = vsel %vm1835, %v4993, 0.0
    %v5076 = vadd.f32 %v5074, %v5075
    %v5077 = vsel %vm1835, %v4994, 0.0
    %v5078 = vadd.f32 %v5076, %v5077
    %v5079 = vsel %vm1835, %v4995, 0.0
    %v5080 = vadd.f32 %v5078, %v5079
    %v5081 = vsel %vm1835, %v4996, 0.0
    %v5082 = vadd.f32 %v5080, %v5081
    %v5083 = vsel %vm1835, %v4997, 0.0
    %v5084 = vadd.f32 %v5082, %v5083
    %v5085 = vsel %vm1835, %v4998, 0.0
    %v5086 = vadd.f32 %v5084, %v5085
    %v5087 = vsel %vm1835, %v4999, 0.0
    %v5088 = vadd.f32 %v5086, %v5087
    %v5089 = vsel %vm1835, %v5000, 0.0
    %v5090 = vadd.f32 %v5088, %v5089
    %v5091 = vsel %vm1835, %v5001, 0.0
    %v5092 = vadd.f32 %v5090, %v5091
    %v5093 = vsel %vm1835, %v5002, 0.0
    %v5094 = vadd.f32 %v5092, %v5093
    %v5095 = vsel %vm1835, %v5003, 0.0
    %v5096 = vadd.f32 %v5094, %v5095
    %v5097 = vsel %vm1835, %v5004, 0.0
    %v5098 = vadd.f32 %v5096, %v5097
    %v5099 = vsel %vm1835, %v5005, 0.0
    %v5100 = vadd.f32 %v5098, %v5099
    %v5101 = vrot.slane %v5100, 4
    %v5102 = vadd.f32 %v5100, %v5101
    %v5103 = vrot.slane %v5102, 2
    %v5104 = vadd.f32 %v5102, %v5103
    %v5105 = vrot.slane %v5104, 1
    %v5106 = vadd.f32 %v5104, %v5105
    %v5107 = vsel %vm1835, %v5006, 0.0
    %v5108 = vsel %vm1835, %v5007, 0.0
    %v5109 = vadd.f32 %v5107, %v5108
    %v5110 = vsel %vm1835, %v5008, 0.0
    %v5111 = vadd.f32 %v5109, %v5110
    %v5112 = vsel %vm1835, %v5009, 0.0
    %v5113 = vadd.f32 %v5111, %v5112
    %v5114 = vsel %vm1835, %v5010, 0.0
    %v5115 = vadd.f32 %v5113, %v5114
    %v5116 = vsel %vm1835, %v5011, 0.0
    %v5117 = vadd.f32 %v5115, %v5116
    %v5118 = vsel %vm1835, %v5012, 0.0
    %v5119 = vadd.f32 %v5117, %v5118
    %v5120 = vsel %vm1835, %v5013, 0.0
    %v5121 = vadd.f32 %v5119, %v5120
    %v5122 = vsel %vm1835, %v5014, 0.0
    %v5123 = vadd.f32 %v5121, %v5122
    %v5124 = vsel %vm1835, %v5015, 0.0
    %v5125 = vadd.f32 %v5123, %v5124
    %v5126 = vsel %vm1835, %v5016, 0.0
    %v5127 = vadd.f32 %v5125, %v5126
    %v5128 = vsel %vm1835, %v5017, 0.0
    %v5129 = vadd.f32 %v5127, %v5128
    %v5130 = vsel %vm1835, %v5018, 0.0
    %v5131 = vadd.f32 %v5129, %v5130
    %v5132 = vsel %vm1835, %v5019, 0.0
    %v5133 = vadd.f32 %v5131, %v5132
    %v5134 = vsel %vm1835, %v5020, 0.0
    %v5135 = vadd.f32 %v5133, %v5134
    %v5136 = vsel %vm1835, %v5021, 0.0
    %v5137 = vadd.f32 %v5135, %v5136
    %v5138 = vsel %vm1835, %v5022, 0.0
    %v5139 = vadd.f32 %v5137, %v5138
    %v5140 = vsel %vm1835, %v5023, 0.0
    %v5141 = vadd.f32 %v5139, %v5140
    %v5142 = vsel %vm1835, %v5024, 0.0
    %v5143 = vadd.f32 %v5141, %v5142
    %v5144 = vsel %vm1835, %v5025, 0.0
    %v5145 = vadd.f32 %v5143, %v5144
    %v5146 = vsel %vm1835, %v5026, 0.0
    %v5147 = vadd.f32 %v5145, %v5146
    %v5148 = vsel %vm1835, %v5027, 0.0
    %v5149 = vadd.f32 %v5147, %v5148
    %v5150 = vsel %vm1835, %v5028, 0.0
    %v5151 = vadd.f32 %v5149, %v5150
    %v5152 = vsel %vm1835, %v5029, 0.0
    %v5153 = vadd.f32 %v5151, %v5152
    %v5154 = vsel %vm1835, %v5030, 0.0
    %v5155 = vadd.f32 %v5153, %v5154
    %v5156 = vsel %vm1835, %v5031, 0.0
    %v5157 = vadd.f32 %v5155, %v5156
    %v5158 = vsel %vm1835, %v5032, 0.0
    %v5159 = vadd.f32 %v5157, %v5158
    %v5160 = vsel %vm1835, %v5033, 0.0
    %v5161 = vadd.f32 %v5159, %v5160
    %v5162 = vsel %vm1835, %v5034, 0.0
    %v5163 = vadd.f32 %v5161, %v5162
    %v5164 = vsel %vm1835, %v5035, 0.0
    %v5165 = vadd.f32 %v5163, %v5164
    %v5166 = vsel %vm1835, %v5036, 0.0
    %v5167 = vadd.f32 %v5165, %v5166
    %v5168 = vsel %vm1835, %v5037, 0.0
    %v5169 = vadd.f32 %v5167, %v5168
    %v5170 = vrot.slane %v5169, 4
    %v5171 = vadd.f32 %v5169, %v5170
    %v5172 = vrot.slane %v5171, 2
    %v5173 = vadd.f32 %v5171, %v5172
    %v5174 = vrot.slane %v5173, 1
    %v5175 = vadd.f32 %v5173, %v5174
    %v5176 = vrcp.pop 256.0
    %v5177 = vmul.f32 %v5106, %v5176
    %v5178 = vmul.f32 %v5175, %v5176
    %v5179 = vld [vmem:[%s1 + $0x58] sm:$0xf]
    %v5180 = vmul.f32 %v5177, %v5179
    %v5181 = vmul.f32 %v5178, %v5179
    %vm5182 = vcmask 519168
    %v5183 = vsel %vm5182, %v5180, 0.0
    %5184 = vadd.xlane.f32.xlu0 %v5183
    %v5185 = vpop.xlane.xlu0 %5184
    %v5186 = vsel %vm5182, %v5181, 0.0
    %5187 = vadd.xlane.f32.xlu0 %v5186
    %v5188 = vpop.xlane.xlu0 %5187
    %v5189 = vld [vmem:[%s1 + $0x60] sm:$0x1]
    %v5190 = vlaneseq
    %v5191 = vshrl.u32 %v5190, 7
    %v5192 = vsub.s32 0, %v5191
    %v5193 = vrot.slane %v5189, %v5192
    %5196 = vbcast.lane.b32.xlu0 %v5193, 256
    %v5197 = vpop.permute.xlu0 %5196
    %v5199 = vadd.f32 %v5185, %v5197
    %v5200 = vadd.f32 %v5188, %v5197
    %v5201 = vxor.u32 %v5199, 2147483648
    %v5202 = vxor.u32 %v5200, 2147483648
    %v5203 = vmul.f32 %v5201, 1.442695
    %v5204 = vpow.pop %v5203
    %v5205 = vmul.f32 %v5202, 1.442695
    %v5206 = vpow.pop %v5205
    %v5207 = vadd.f32 %v5204, 1.0
    %v5208 = vadd.f32 %v5206, 1.0
    %v5209 = vrcp.pop %v5207
    %v5210 = vmul.f32 1.0, %v5209
    %v5211 = vrcp.pop %v5208
    %v5212 = vmul.f32 1.0, %v5211
    %v5213 = vmul.f32 %v5199, %v5210
    %v5214 = vmul.f32 %v5200, %v5212
    %v5215 = vld [vmem:[%s1 + $0x68] sm:$0xf]
    %5217 = vset.pattern.permute.xlu0 0
    %5218 = vperm.xlu0 %5217, %v5213
    %v5219 = vpop.permute.xlu0 %5218
    %5222 = vset.pattern.permute.xlu0 0
    %5223 = vperm.xlu0 %5222, %v5214
    %v5224 = vpop.permute.xlu0 %5223
    %v5226 = vmul.f32 %v5219, %v5215
    %v5227 = vmul.f32 %v5224, %v5215
    %v5228 = vsel %vm5182, %v5226, 0.0
    %v5229 = vrot.slane %v5228, 4
    %v5230 = vadd.f32 %v5228, %v5229
    %v5231 = vrot.slane %v5230, 2
    %v5232 = vadd.f32 %v5230, %v5231
    %v5233 = vrot.slane %v5232, 1
    %v5234 = vadd.f32 %v5232, %v5233
    %v5235 = vsel %vm5182, %v5227, 0.0
    %v5236 = vrot.slane %v5235, 4
    %v5237 = vadd.f32 %v5235, %v5236
    %v5238 = vrot.slane %v5237, 2
    %v5239 = vadd.f32 %v5237, %v5238
    %v5240 = vrot.slane %v5239, 1
    %v5241 = vadd.f32 %v5239, %v5240
    %v5242 = vld [vmem:[%s1 + $0x70] sm:$0x1]
    %v5243 = vlaneseq
    %v5244 = vshrl.u32 %v5243, 7
    %v5245 = vsub.s32 0, %v5244
    %v5246 = vrot.slane %v5242, %v5245
    %v5247 = vadd.f32 %v5234, %v5246
    %v5248 = vadd.f32 %v5241, %v5246
    %v5249 = vxor.u32 %v5247, 2147483648
    %v5250 = vxor.u32 %v5248, 2147483648
    %v5251 = vmul.f32 %v5249, 1.442695
    %v5252 = vpow.pop %v5251
    %v5253 = vmul.f32 %v5250, 1.442695
    %v5254 = vpow.pop %v5253
    %v5255 = vadd.f32 %v5252, 1.0
    %v5256 = vadd.f32 %v5254, 1.0
    %v5257 = vrcp.pop %v5255
    %v5258 = vmul.f32 1.0, %v5257
    %v5259 = vrcp.pop %v5256
    %v5260 = vmul.f32 1.0, %v5259
    %v5261 = vlaneseq
    %v5262 = vshrl.u32 %v5261, 7
    %v5263 = vsub.s32 0, %v5262
    %v5264 = vrot.slane %v5258, %v5263
    %v5265 = vlaneseq
    %v5266 = vshrl.u32 %v5265, 7
    %v5267 = vsub.s32 0, %v5266
    %v5268 = vrot.slane %v5260, %v5267
    %v5269 = vmul.f32 %v4974, %v5264
    %v5270 = vmul.f32 %v4975, %v5264
    %v5271 = vmul.f32 %v4976, %v5264
    %v5272 = vmul.f32 %v4977, %v5264
    %v5273 = vmul.f32 %v4978, %v5264
    %v5274 = vmul.f32 %v4979, %v5264
    %v5275 = vmul.f32 %v4980, %v5264
    %v5276 = vmul.f32 %v4981, %v5264
    %v5277 = vmul.f32 %v4982, %v5264
    %v5278 = vmul.f32 %v4983, %v5264
    %v5279 = vmul.f32 %v4984, %v5264
    %v5280 = vmul.f32 %v4985, %v5264
    %v5281 = vmul.f32 %v4986, %v5264
    %v5282 = vmul.f32 %v4987, %v5264
    %v5283 = vmul.f32 %v4988, %v5264
    %v5284 = vmul.f32 %v4989, %v5264
    %v5285 = vmul.f32 %v4990, %v5264
    %v5286 = vmul.f32 %v4991, %v5264
    %v5287 = vmul.f32 %v4992, %v5264
    %v5288 = vmul.f32 %v4993, %v5264
    %v5289 = vmul.f32 %v4994, %v5264
    %v5290 = vmul.f32 %v4995, %v5264
    %v5291 = vmul.f32 %v4996, %v5264
    %v5292 = vmul.f32 %v4997, %v5264
    %v5293 = vmul.f32 %v4998, %v5264
    %v5294 = vmul.f32 %v4999, %v5264
    %v5295 = vmul.f32 %v5000, %v5264
    %v5296 = vmul.f32 %v5001, %v5264
    %v5297 = vmul.f32 %v5002, %v5264
    %v5298 = vmul.f32 %v5003, %v5264
    %v5299 = vmul.f32 %v5004, %v5264
    %v5300 = vmul.f32 %v5005, %v5264
    %v5301 = vmul.f32 %v5006, %v5268
    %v5302 = vmul.f32 %v5007, %v5268
    %v5303 = vmul.f32 %v5008, %v5268
    %v5304 = vmul.f32 %v5009, %v5268
    %v5305 = vmul.f32 %v5010, %v5268
    %v5306 = vmul.f32 %v5011, %v5268
    %v5307 = vmul.f32 %v5012, %v5268
    %v5308 = vmul.f32 %v5013, %v5268
    %v5309 = vmul.f32 %v5014, %v5268
    %v5310 = vmul.f32 %v5015, %v5268
    %v5311 = vmul.f32 %v5016, %v5268
    %v5312 = vmul.f32 %v5017, %v5268
    %v5313 = vmul.f32 %v5018, %v5268
    %v5314 = vmul.f32 %v5019, %v5268
    %v5315 = vmul.f32 %v5020, %v5268
    %v5316 = vmul.f32 %v5021, %v5268
    %v5317 = vmul.f32 %v5022, %v5268
    %v5318 = vmul.f32 %v5023, %v5268
    %v5319 = vmul.f32 %v5024, %v5268
    %v5320 = vmul.f32 %v5025, %v5268
    %v5321 = vmul.f32 %v5026, %v5268
    %v5322 = vmul.f32 %v5027, %v5268
    %v5323 = vmul.f32 %v5028, %v5268
    %v5324 = vmul.f32 %v5029, %v5268
    %v5325 = vmul.f32 %v5030, %v5268
    %v5326 = vmul.f32 %v5031, %v5268
    %v5327 = vmul.f32 %v5032, %v5268
    %v5328 = vmul.f32 %v5033, %v5268
    %v5329 = vmul.f32 %v5034, %v5268
    %v5330 = vmul.f32 %v5035, %v5268
    %v5331 = vmul.f32 %v5036, %v5268
    %v5332 = vmul.f32 %v5037, %v5268
    %v5333 = vpack.c.bf16 %v5270, %v5269
    %v5334 = vpack.c.bf16 %v5272, %v5271
    %v5335 = vpack.c.bf16 %v5274, %v5273
    %v5336 = vpack.c.bf16 %v5276, %v5275
    %v5337 = vpack.c.bf16 %v5278, %v5277
    %v5338 = vpack.c.bf16 %v5280, %v5279
    %v5339 = vpack.c.bf16 %v5282, %v5281
    %v5340 = vpack.c.bf16 %v5284, %v5283
    %v5341 = vpack.c.bf16 %v5286, %v5285
    %v5342 = vpack.c.bf16 %v5288, %v5287
    %v5343 = vpack.c.bf16 %v5290, %v5289
    %v5344 = vpack.c.bf16 %v5292, %v5291
    %v5345 = vpack.c.bf16 %v5294, %v5293
    %v5346 = vpack.c.bf16 %v5296, %v5295
    %v5347 = vpack.c.bf16 %v5298, %v5297
    %v5348 = vpack.c.bf16 %v5300, %v5299
    %v5349 = vpack.c.bf16 %v5302, %v5301
    %v5350 = vpack.c.bf16 %v5304, %v5303
    %v5351 = vpack.c.bf16 %v5306, %v5305
    %v5352 = vpack.c.bf16 %v5308, %v5307
    %v5353 = vpack.c.bf16 %v5310, %v5309
    %v5354 = vpack.c.bf16 %v5312, %v5311
    %v5355 = vpack.c.bf16 %v5314, %v5313
    %v5356 = vpack.c.bf16 %v5316, %v5315
    %v5357 = vpack.c.bf16 %v5318, %v5317
    %v5358 = vpack.c.bf16 %v5320, %v5319
    %v5359 = vpack.c.bf16 %v5322, %v5321
    %v5360 = vpack.c.bf16 %v5324, %v5323
    %v5361 = vpack.c.bf16 %v5326, %v5325
    %v5362 = vpack.c.bf16 %v5328, %v5327
    %v5363 = vpack.c.bf16 %v5330, %v5329
    %v5364 = vpack.c.bf16 %v5332, %v5331
    %v5365 = vld [vmem:[%s1 + $0x78] sm:$0xff]
    %v5366 = vld [vmem:[%s1 + $0x80] sm:$0xff]
    %v5367 = vld [vmem:[%s1 + $0x88] sm:$0xff]
    %v5368 = vld [vmem:[%s1 + $0x90] sm:$0xff]
    %v5369 = vld [vmem:[%s1 + $0x98] sm:$0xff]
    %v5370 = vld [vmem:[%s1 + $0xa0] sm:$0xff]
    %v5371 = vld [vmem:[%s1 + $0xa8] sm:$0xff]
    %v5372 = vld [vmem:[%s1 + $0xb0] sm:$0xff]
    %v5373 = vpack.c.bf16 %v5366, %v5365
    %v5374 = vpack.c.bf16 %v5368, %v5367
    %v5375 = vpack.c.bf16 %v5370, %v5369
    %v5376 = vpack.c.bf16 %v5372, %v5371
    %v5377 = vld [vmem:[%s1 + $0xb8] sm:$0x1]
    %v5378 = vlaneseq
    %v5379 = vshrl.u32 %v5378, 7
    %v5380 = vsub.s32 0, %v5379
    %v5381 = vrot.slane %v5377, %v5380
    %v5383 = vsel %vm1835, %v5333, 0
    %v5386 = vsel %vm1835, %v5334, 0
    %v5389 = vsel %vm1835, %v5335, 0
    %v5392 = vsel %vm1835, %v5336, 0
    %v5395 = vsel %vm1835, %v5337, 0
    %v5398 = vsel %vm1835, %v5338, 0
    %v5401 = vsel %vm1835, %v5339, 0
    %v5404 = vsel %vm1835, %v5340, 0
    %v5407 = vsel %vm1835, %v5341, 0
    %v5410 = vsel %vm1835, %v5342, 0
    %v5413 = vsel %vm1835, %v5343, 0
    %v5416 = vsel %vm1835, %v5344, 0
    %v5419 = vsel %vm1835, %v5345, 0
    %v5422 = vsel %vm1835, %v5346, 0
    %v5425 = vsel %vm1835, %v5347, 0
    %v5428 = vsel %vm1835, %v5348, 0
    %v5431 = vsel %vm1835, %v5349, 0
    %v5434 = vsel %vm1835, %v5350, 0
    %v5437 = vsel %vm1835, %v5351, 0
    %v5440 = vsel %vm1835, %v5352, 0
    %v5443 = vsel %vm1835, %v5353, 0
    %v5446 = vsel %vm1835, %v5354, 0
    %v5449 = vsel %vm1835, %v5355, 0
    %v5452 = vsel %vm1835, %v5356, 0
    %v5455 = vsel %vm1835, %v5357, 0
    %v5458 = vsel %vm1835, %v5358, 0
    %v5461 = vsel %vm1835, %v5359, 0
    %v5464 = vsel %vm1835, %v5360, 0
    %v5467 = vsel %vm1835, %v5361, 0
    %v5470 = vsel %vm1835, %v5362, 0
    %v5473 = vsel %vm1835, %v5363, 0
    %v5476 = vsel %vm1835, %v5364, 0
    %5478 = vmatprep.subr.bf16.mxu0 0
    %5479 = vmatpush1.bf16.msra.mxu0 %v5373
    %5480 = vmatprep.subr.bf16.mxu0 0
    %5481 = vmatpush1.bf16.msra.mxu0 %v5374
    %5482 = vmatprep.subr.bf16.mxu0 0
    %5483 = vmatpush1.bf16.msra.mxu0 %v5375
    %5484 = vmatprep.subr.bf16.mxu0 0
    %5485 = vmatpush1.bf16.msra.mxu0 %v5376
    %5486 = vmatprep.subr.bf16.mxu0 0
    %5487 = vmatpush1.bf16.msra.mxu0 0
    %5488 = vmatprep.subr.bf16.mxu0 0
    %5489 = vmatpush1.bf16.msra.mxu0 0
    %5490 = vmatprep.subr.bf16.mxu0 0
    %5491 = vmatpush1.bf16.msra.mxu0 0
    %5492 = vmatprep.subr.bf16.mxu0 0
    %5493 = vmatpush1.bf16.msra.mxu0 0
    %5494 = vmatprep.subr.bf16.mxu0 0
    %5495 = vmatpush1.bf16.msra.mxu0 0
    %5496 = vmatprep.subr.bf16.mxu0 0
    %5497 = vmatpush1.bf16.msra.mxu0 0
    %5498 = vmatprep.subr.bf16.mxu0 0
    %5499 = vmatpush1.bf16.msra.mxu0 0
    %5500 = vmatprep.subr.bf16.mxu0 0
    %5501 = vmatpush1.bf16.msra.mxu0 0
    %5502 = vmatprep.subr.bf16.mxu0 0
    %5503 = vmatpush1.bf16.msra.mxu0 0
    %5504 = vmatprep.subr.bf16.mxu0 0
    %5505 = vmatpush1.bf16.msra.mxu0 0
    %5506 = vmatprep.subr.bf16.mxu0 0
    %5507 = vmatpush1.bf16.msra.mxu0 0
    %5508 = vmatprep.subr.bf16.mxu0 0
    %5509 = vmatpush1.bf16.msra.mxu0 0
    %5510 = vmatprep.mubr.bf16.mxu0 0
    %5511 = vmatmul.mubr.bf16.gmra.mrb[0].mxu0 %v5383
    %v5512 = vpop.f32.mrb[0].mxu0
    %v5513 = vadd.f32 %v5381, %v5512
    %v5514 = vpop.f32.mrb[0].mxu0
    %v5515 = vpop.f32.mrb[0].mxu0
    %v5516 = vadd.f32 %v5381, %v5515
    %v5517 = vpop.f32.mrb[0].mxu0
    %5518 = vmatprep.mubr.bf16.mxu0 0
    %5519 = vmatmul.mubr.bf16.gmra.mrb[0].mxu0 %v5386
    %v5520 = vpop.f32.mrb[0].mxu0
    %v5521 = vadd.f32 %v5381, %v5520
    %v5522 = vpop.f32.mrb[0].mxu0
    %v5523 = vpop.f32.mrb[0].mxu0
    %v5524 = vadd.f32 %v5381, %v5523
    %v5525 = vpop.f32.mrb[0].mxu0
    %5526 = vmatprep.mubr.bf16.mxu0 0
    %5527 = vmatmul.mubr.bf16.gmra.mrb[0].mxu0 %v5389
    %v5528 = vpop.f32.mrb[0].mxu0
    %v5529 = vadd.f32 %v5381, %v5528
    %v5530 = vpop.f32.mrb[0].mxu0
    %v5531 = vpop.f32.mrb[0].mxu0
    %v5532 = vadd.f32 %v5381, %v5531
    %v5533 = vpop.f32.mrb[0].mxu0
    %5534 = vmatprep.mubr.bf16.mxu0 0
    %5535 = vmatmul.mubr.bf16.gmra.mrb[0].mxu0 %v5392
    %v5536 = vpop.f32.mrb[0].mxu0
    %v5537 = vadd.f32 %v5381, %v5536
    %v5538 = vpop.f32.mrb[0].mxu0
    %v5539 = vpop.f32.mrb[0].mxu0
    %v5540 = vadd.f32 %v5381, %v5539
    %v5541 = vpop.f32.mrb[0].mxu0
    %5542 = vmatprep.mubr.bf16.mxu0 0
    %5543 = vmatmul.mubr.bf16.gmra.mrb[0].mxu0 %v5395
    %v5544 = vpop.f32.mrb[0].mxu0
    %v5545 = vadd.f32 %v5381, %v5544
    %v5546 = vpop.f32.mrb[0].mxu0
    %v5547 = vpop.f32.mrb[0].mxu0
    %v5548 = vadd.f32 %v5381, %v5547
    %v5549 = vpop.f32.mrb[0].mxu0
    %5550 = vmatprep.mubr.bf16.mxu0 0
    %5551 = vmatmul.mubr.bf16.gmra.mrb[0].mxu0 %v5398
    %v5552 = vpop.f32.mrb[0].mxu0
    %v5553 = vadd.f32 %v5381, %v5552
    %v5554 = vpop.f32.mrb[0].mxu0
    %v5555 = vpop.f32.mrb[0].mxu0
    %v5556 = vadd.f32 %v5381, %v5555
    %v5557 = vpop.f32.mrb[0].mxu0
    %5558 = vmatprep.mubr.bf16.mxu0 0
    %5559 = vmatmul.mubr.bf16.gmra.mrb[0].mxu0 %v5401
    %v5560 = vpop.f32.mrb[0].mxu0
    %v5561 = vadd.f32 %v5381, %v5560
    %v5562 = vpop.f32.mrb[0].mxu0
    %v5563 = vpop.f32.mrb[0].mxu0
    %v5564 = vadd.f32 %v5381, %v5563
    %v5565 = vpop.f32.mrb[0].mxu0
    %5566 = vmatprep.mubr.bf16.mxu0 0
    %5567 = vmatmul.mubr.bf16.gmra.mrb[0].mxu0 %v5404
    %v5568 = vpop.f32.mrb[0].mxu0
    %v5569 = vadd.f32 %v5381, %v5568
    %v5570 = vpop.f32.mrb[0].mxu0
    %v5571 = vpop.f32.mrb[0].mxu0
    %v5572 = vadd.f32 %v5381, %v5571
    %v5573 = vpop.f32.mrb[0].mxu0
    %5574 = vmatprep.mubr.bf16.mxu0 0
    %5575 = vmatmul.mubr.bf16.gmra.mrb[0].mxu0 %v5407
    %v5576 = vpop.f32.mrb[0].mxu0
    %v5577 = vadd.f32 %v5381, %v5576
    %v5578 = vpop.f32.mrb[0].mxu0
    %v5579 = vpop.f32.mrb[0].mxu0
    %v5580 = vadd.f32 %v5381, %v5579
    %v5581 = vpop.f32.mrb[0].mxu0
    %5582 = vmatprep.mubr.bf16.mxu0 0
    %5583 = vmatmul.mubr.bf16.gmra.mrb[0].mxu0 %v5410
    %v5584 = vpop.f32.mrb[0].mxu0
    %v5585 = vadd.f32 %v5381, %v5584
    %v5586 = vpop.f32.mrb[0].mxu0
    %v5587 = vpop.f32.mrb[0].mxu0
    %v5588 = vadd.f32 %v5381, %v5587
    %v5589 = vpop.f32.mrb[0].mxu0
    %5590 = vmatprep.mubr.bf16.mxu0 0
    %5591 = vmatmul.mubr.bf16.gmra.mrb[0].mxu0 %v5413
    %v5592 = vpop.f32.mrb[0].mxu0
    %v5593 = vadd.f32 %v5381, %v5592
    %v5594 = vpop.f32.mrb[0].mxu0
    %v5595 = vpop.f32.mrb[0].mxu0
    %v5596 = vadd.f32 %v5381, %v5595
    %v5597 = vpop.f32.mrb[0].mxu0
    %5598 = vmatprep.mubr.bf16.mxu0 0
    %5599 = vmatmul.mubr.bf16.gmra.mrb[0].mxu0 %v5416
    %v5600 = vpop.f32.mrb[0].mxu0
    %v5601 = vadd.f32 %v5381, %v5600
    %v5602 = vpop.f32.mrb[0].mxu0
    %v5603 = vpop.f32.mrb[0].mxu0
    %v5604 = vadd.f32 %v5381, %v5603
    %v5605 = vpop.f32.mrb[0].mxu0
    %5606 = vmatprep.mubr.bf16.mxu0 0
    %5607 = vmatmul.mubr.bf16.gmra.mrb[0].mxu0 %v5419
    %v5608 = vpop.f32.mrb[0].mxu0
    %v5609 = vadd.f32 %v5381, %v5608
    %v5610 = vpop.f32.mrb[0].mxu0
    %v5611 = vpop.f32.mrb[0].mxu0
    %v5612 = vadd.f32 %v5381, %v5611
    %v5613 = vpop.f32.mrb[0].mxu0
    %5614 = vmatprep.mubr.bf16.mxu0 0
    %5615 = vmatmul.mubr.bf16.gmra.mrb[0].mxu0 %v5422
    %v5616 = vpop.f32.mrb[0].mxu0
    %v5617 = vadd.f32 %v5381, %v5616
    %v5618 = vpop.f32.mrb[0].mxu0
    %v5619 = vpop.f32.mrb[0].mxu0
    %v5620 = vadd.f32 %v5381, %v5619
    %v5621 = vpop.f32.mrb[0].mxu0
    %5622 = vmatprep.mubr.bf16.mxu0 0
    %5623 = vmatmul.mubr.bf16.gmra.mrb[0].mxu0 %v5425
    %v5624 = vpop.f32.mrb[0].mxu0
    %v5625 = vadd.f32 %v5381, %v5624
    %v5626 = vpop.f32.mrb[0].mxu0
    %v5627 = vpop.f32.mrb[0].mxu0
    %v5628 = vadd.f32 %v5381, %v5627
    %v5629 = vpop.f32.mrb[0].mxu0
    %5630 = vmatprep.mubr.bf16.mxu0 0
    %5631 = vmatmul.mubr.bf16.gmra.mrb[0].mxu0 %v5428
    %v5632 = vpop.f32.mrb[0].mxu0
    %v5633 = vadd.f32 %v5381, %v5632
    %v5634 = vpop.f32.mrb[0].mxu0
    %v5635 = vpop.f32.mrb[0].mxu0
    %v5636 = vadd.f32 %v5381, %v5635
    %v5637 = vpop.f32.mrb[0].mxu0
    %5638 = vmatprep.mubr.bf16.mxu0 0
    %5639 = vmatmul.mubr.bf16.gmra.mrb[0].mxu0 %v5431
    %v5640 = vpop.f32.mrb[0].mxu0
    %v5641 = vadd.f32 %v5381, %v5640
    %v5642 = vpop.f32.mrb[0].mxu0
    %v5643 = vpop.f32.mrb[0].mxu0
    %v5644 = vadd.f32 %v5381, %v5643
    %v5645 = vpop.f32.mrb[0].mxu0
    %5646 = vmatprep.mubr.bf16.mxu0 0
    %5647 = vmatmul.mubr.bf16.gmra.mrb[0].mxu0 %v5434
    %v5648 = vpop.f32.mrb[0].mxu0
    %v5649 = vadd.f32 %v5381, %v5648
    %v5650 = vpop.f32.mrb[0].mxu0
    %v5651 = vpop.f32.mrb[0].mxu0
    %v5652 = vadd.f32 %v5381, %v5651
    %v5653 = vpop.f32.mrb[0].mxu0
    %5654 = vmatprep.mubr.bf16.mxu0 0
    %5655 = vmatmul.mubr.bf16.gmra.mrb[0].mxu0 %v5437
    %v5656 = vpop.f32.mrb[0].mxu0
    %v5657 = vadd.f32 %v5381, %v5656
    %v5658 = vpop.f32.mrb[0].mxu0
    %v5659 = vpop.f32.mrb[0].mxu0
    %v5660 = vadd.f32 %v5381, %v5659
    %v5661 = vpop.f32.mrb[0].mxu0
    %5662 = vmatprep.mubr.bf16.mxu0 0
    %5663 = vmatmul.mubr.bf16.gmra.mrb[0].mxu0 %v5440
    %v5664 = vpop.f32.mrb[0].mxu0
    %v5665 = vadd.f32 %v5381, %v5664
    %v5666 = vpop.f32.mrb[0].mxu0
    %v5667 = vpop.f32.mrb[0].mxu0
    %v5668 = vadd.f32 %v5381, %v5667
    %v5669 = vpop.f32.mrb[0].mxu0
    %5670 = vmatprep.mubr.bf16.mxu0 0
    %5671 = vmatmul.mubr.bf16.gmra.mrb[0].mxu0 %v5443
    %v5672 = vpop.f32.mrb[0].mxu0
    %v5673 = vadd.f32 %v5381, %v5672
    %v5674 = vpop.f32.mrb[0].mxu0
    %v5675 = vpop.f32.mrb[0].mxu0
    %v5676 = vadd.f32 %v5381, %v5675
    %v5677 = vpop.f32.mrb[0].mxu0
    %5678 = vmatprep.mubr.bf16.mxu0 0
    %5679 = vmatmul.mubr.bf16.gmra.mrb[0].mxu0 %v5446
    %v5680 = vpop.f32.mrb[0].mxu0
    %v5681 = vadd.f32 %v5381, %v5680
    %v5682 = vpop.f32.mrb[0].mxu0
    %v5683 = vpop.f32.mrb[0].mxu0
    %v5684 = vadd.f32 %v5381, %v5683
    %v5685 = vpop.f32.mrb[0].mxu0
    %5686 = vmatprep.mubr.bf16.mxu0 0
    %5687 = vmatmul.mubr.bf16.gmra.mrb[0].mxu0 %v5449
    %v5688 = vpop.f32.mrb[0].mxu0
    %v5689 = vadd.f32 %v5381, %v5688
    %v5690 = vpop.f32.mrb[0].mxu0
    %v5691 = vpop.f32.mrb[0].mxu0
    %v5692 = vadd.f32 %v5381, %v5691
    %v5693 = vpop.f32.mrb[0].mxu0
    %5694 = vmatprep.mubr.bf16.mxu0 0
    %5695 = vmatmul.mubr.bf16.gmra.mrb[0].mxu0 %v5452
    %v5696 = vpop.f32.mrb[0].mxu0
    %v5697 = vadd.f32 %v5381, %v5696
    %v5698 = vpop.f32.mrb[0].mxu0
    %v5699 = vpop.f32.mrb[0].mxu0
    %v5700 = vadd.f32 %v5381, %v5699
    %v5701 = vpop.f32.mrb[0].mxu0
    %5702 = vmatprep.mubr.bf16.mxu0 0
    %5703 = vmatmul.mubr.bf16.gmra.mrb[0].mxu0 %v5455
    %v5704 = vpop.f32.mrb[0].mxu0
    %v5705 = vadd.f32 %v5381, %v5704
    %v5706 = vpop.f32.mrb[0].mxu0
    %v5707 = vpop.f32.mrb[0].mxu0
    %v5708 = vadd.f32 %v5381, %v5707
    %v5709 = vpop.f32.mrb[0].mxu0
    %5710 = vmatprep.mubr.bf16.mxu0 0
    %5711 = vmatmul.mubr.bf16.gmra.mrb[0].mxu0 %v5458
    %v5712 = vpop.f32.mrb[0].mxu0
    %v5713 = vadd.f32 %v5381, %v5712
    %v5714 = vpop.f32.mrb[0].mxu0
    %v5715 = vpop.f32.mrb[0].mxu0
    %v5716 = vadd.f32 %v5381, %v5715
    %v5717 = vpop.f32.mrb[0].mxu0
    %5718 = vmatprep.mubr.bf16.mxu0 0
    %5719 = vmatmul.mubr.bf16.gmra.mrb[0].mxu0 %v5461
    %v5720 = vpop.f32.mrb[0].mxu0
    %v5721 = vadd.f32 %v5381, %v5720
    %v5722 = vpop.f32.mrb[0].mxu0
    %v5723 = vpop.f32.mrb[0].mxu0
    %v5724 = vadd.f32 %v5381, %v5723
    %v5725 = vpop.f32.mrb[0].mxu0
    %5726 = vmatprep.mubr.bf16.mxu0 0
    %5727 = vmatmul.mubr.bf16.gmra.mrb[0].mxu0 %v5464
    %v5728 = vpop.f32.mrb[0].mxu0
    %v5729 = vadd.f32 %v5381, %v5728
    %v5730 = vpop.f32.mrb[0].mxu0
    %v5731 = vpop.f32.mrb[0].mxu0
    %v5732 = vadd.f32 %v5381, %v5731
    %v5733 = vpop.f32.mrb[0].mxu0
    %5734 = vmatprep.mubr.bf16.mxu0 0
    %5735 = vmatmul.mubr.bf16.gmra.mrb[0].mxu0 %v5467
    %v5736 = vpop.f32.mrb[0].mxu0
    %v5737 = vadd.f32 %v5381, %v5736
    %v5738 = vpop.f32.mrb[0].mxu0
    %v5739 = vpop.f32.mrb[0].mxu0
    %v5740 = vadd.f32 %v5381, %v5739
    %v5741 = vpop.f32.mrb[0].mxu0
    %5742 = vmatprep.mubr.bf16.mxu0 0
    %5743 = vmatmul.mubr.bf16.gmra.mrb[0].mxu0 %v5470
    %v5744 = vpop.f32.mrb[0].mxu0
    %v5745 = vadd.f32 %v5381, %v5744
    %v5746 = vpop.f32.mrb[0].mxu0
    %v5747 = vpop.f32.mrb[0].mxu0
    %v5748 = vadd.f32 %v5381, %v5747
    %v5749 = vpop.f32.mrb[0].mxu0
    %5750 = vmatprep.mubr.bf16.mxu0 0
    %5751 = vmatmul.mubr.bf16.gmra.mrb[0].mxu0 %v5473
    %v5752 = vpop.f32.mrb[0].mxu0
    %v5753 = vadd.f32 %v5381, %v5752
    %v5754 = vpop.f32.mrb[0].mxu0
    %v5755 = vpop.f32.mrb[0].mxu0
    %v5756 = vadd.f32 %v5381, %v5755
    %v5757 = vpop.f32.mrb[0].mxu0
    %5758 = vmatprep.mubr.bf16.mxu0 0
    %5759 = vmatmul.mubr.bf16.gmra.mrb[0].mxu0 %v5476
    %v5760 = vpop.f32.mrb[0].mxu0
    %v5761 = vadd.f32 %v5381, %v5760
    %v5762 = vpop.f32.mrb[0].mxu0
    %v5763 = vpop.f32.mrb[0].mxu0
    %v5764 = vadd.f32 %v5381, %v5763
    %v5765 = vpop.f32.mrb[0].mxu0
    %5766 = vdwg.mxu0
    %v5767 = vadd.f32 %v5513, %v897
    %v5768 = vadd.f32 %v5516, %v898
    %v5769 = vadd.f32 %v5521, %v899
    %v5770 = vadd.f32 %v5524, %v900
    %v5771 = vadd.f32 %v5529, %v901
    %v5772 = vadd.f32 %v5532, %v902
    %v5773 = vadd.f32 %v5537, %v903
    %v5774 = vadd.f32 %v5540, %v904
    %v5775 = vadd.f32 %v5545, %v905
    %v5776 = vadd.f32 %v5548, %v906
    %v5777 = vadd.f32 %v5553, %v907
    %v5778 = vadd.f32 %v5556, %v908
    %v5779 = vadd.f32 %v5561, %v909
    %v5780 = vadd.f32 %v5564, %v910
    %v5781 = vadd.f32 %v5569, %v911
    %v5782 = vadd.f32 %v5572, %v912
    %v5783 = vadd.f32 %v5577, %v913
    %v5784 = vadd.f32 %v5580, %v914
    %v5785 = vadd.f32 %v5585, %v915
    %v5786 = vadd.f32 %v5588, %v916
    %v5787 = vadd.f32 %v5593, %v917
    %v5788 = vadd.f32 %v5596, %v918
    %v5789 = vadd.f32 %v5601, %v919
    %v5790 = vadd.f32 %v5604, %v920
    %v5791 = vadd.f32 %v5609, %v921
    %v5792 = vadd.f32 %v5612, %v922
    %v5793 = vadd.f32 %v5617, %v923
    %v5794 = vadd.f32 %v5620, %v924
    %v5795 = vadd.f32 %v5625, %v925
    %v5796 = vadd.f32 %v5628, %v926
    %v5797 = vadd.f32 %v5633, %v927
    %v5798 = vadd.f32 %v5636, %v928
    %v5799 = vadd.f32 %v5641, %v929
    %v5800 = vadd.f32 %v5644, %v930
    %v5801 = vadd.f32 %v5649, %v931
    %v5802 = vadd.f32 %v5652, %v932
    %v5803 = vadd.f32 %v5657, %v933
    %v5804 = vadd.f32 %v5660, %v934
    %v5805 = vadd.f32 %v5665, %v935
    %v5806 = vadd.f32 %v5668, %v936
    %v5807 = vadd.f32 %v5673, %v937
    %v5808 = vadd.f32 %v5676, %v938
    %v5809 = vadd.f32 %v5681, %v939
    %v5810 = vadd.f32 %v5684, %v940
    %v5811 = vadd.f32 %v5689, %v941
    %v5812 = vadd.f32 %v5692, %v942
    %v5813 = vadd.f32 %v5697, %v943
    %v5814 = vadd.f32 %v5700, %v944
    %v5815 = vadd.f32 %v5705, %v945
    %v5816 = vadd.f32 %v5708, %v946
    %v5817 = vadd.f32 %v5713, %v947
    %v5818 = vadd.f32 %v5716, %v948
    %v5819 = vadd.f32 %v5721, %v949
    %v5820 = vadd.f32 %v5724, %v950
    %v5821 = vadd.f32 %v5729, %v951
    %v5822 = vadd.f32 %v5732, %v952
    %v5823 = vadd.f32 %v5737, %v953
    %v5824 = vadd.f32 %v5740, %v954
    %v5825 = vadd.f32 %v5745, %v955
    %v5826 = vadd.f32 %v5748, %v956
    %v5827 = vadd.f32 %v5753, %v957
    %v5828 = vadd.f32 %v5756, %v958
    %v5829 = vadd.f32 %v5761, %v959
    %v5830 = vadd.f32 %v5764, %v960
    %v5831 = vpack.c.bf16 %v5768, %v5767
    %v5832 = vpack.c.bf16 %v5770, %v5769
    %v5833 = vpack.c.bf16 %v5772, %v5771
    %v5834 = vpack.c.bf16 %v5774, %v5773
    %v5835 = vpack.c.bf16 %v5776, %v5775
    %v5836 = vpack.c.bf16 %v5778, %v5777
    %v5837 = vpack.c.bf16 %v5780, %v5779
    %v5838 = vpack.c.bf16 %v5782, %v5781
    %v5839 = vpack.c.bf16 %v5784, %v5783
    %v5840 = vpack.c.bf16 %v5786, %v5785
    %v5841 = vpack.c.bf16 %v5788, %v5787
    %v5842 = vpack.c.bf16 %v5790, %v5789
    %v5843 = vpack.c.bf16 %v5792, %v5791
    %v5844 = vpack.c.bf16 %v5794, %v5793
    %v5845 = vpack.c.bf16 %v5796, %v5795
    %v5846 = vpack.c.bf16 %v5798, %v5797
    %v5847 = vpack.c.bf16 %v5800, %v5799
    %v5848 = vpack.c.bf16 %v5802, %v5801
    %v5849 = vpack.c.bf16 %v5804, %v5803
    %v5850 = vpack.c.bf16 %v5806, %v5805
    %v5851 = vpack.c.bf16 %v5808, %v5807
    %v5852 = vpack.c.bf16 %v5810, %v5809
    %v5853 = vpack.c.bf16 %v5812, %v5811
    %v5854 = vpack.c.bf16 %v5814, %v5813
    %v5855 = vpack.c.bf16 %v5816, %v5815
    %v5856 = vpack.c.bf16 %v5818, %v5817
    %v5857 = vpack.c.bf16 %v5820, %v5819
    %v5858 = vpack.c.bf16 %v5822, %v5821
    %v5859 = vpack.c.bf16 %v5824, %v5823
    %v5860 = vpack.c.bf16 %v5826, %v5825
    %v5861 = vpack.c.bf16 %v5828, %v5827
    %v5862 = vpack.c.bf16 %v5830, %v5829
    %v5863 = vld [vmem:[%s1 + $0xc0] sm:$0xff]
    %v5864 = vld [vmem:[%s1 + $0xc8] sm:$0xff]
    %v5865 = vpack.c.bf16 %v5864, %v5863
    %v5866 = vld [vmem:[%s1 + $0xd0] sm:$0x1]
    %v5867 = vlaneseq
    %v5868 = vshrl.u32 %v5867, 7
    %v5869 = vsub.s32 0, %v5868
    %v5870 = vrot.slane %v5866, %v5869
    %v5872 = vsel %vm1001, %v5831, 0
    %v5875 = vsel %vm1001, %v5832, 0
    %v5878 = vsel %vm1001, %v5833, 0
    %v5881 = vsel %vm1001, %v5834, 0
    %v5884 = vsel %vm1001, %v5835, 0
    %v5887 = vsel %vm1001, %v5836, 0
    %v5890 = vsel %vm1001, %v5837, 0
    %v5893 = vsel %vm1001, %v5838, 0
    %v5896 = vsel %vm1001, %v5839, 0
    %v5899 = vsel %vm1001, %v5840, 0
    %v5902 = vsel %vm1001, %v5841, 0
    %v5905 = vsel %vm1001, %v5842, 0
    %v5908 = vsel %vm1001, %v5843, 0
    %v5911 = vsel %vm1001, %v5844, 0
    %v5914 = vsel %vm1001, %v5845, 0
    %v5917 = vsel %vm1001, %v5846, 0
    %v5920 = vsel %vm1001, %v5847, 0
    %v5923 = vsel %vm1001, %v5848, 0
    %v5926 = vsel %vm1001, %v5849, 0
    %v5929 = vsel %vm1001, %v5850, 0
    %v5932 = vsel %vm1001, %v5851, 0
    %v5935 = vsel %vm1001, %v5852, 0
    %v5938 = vsel %vm1001, %v5853, 0
    %v5941 = vsel %vm1001, %v5854, 0
    %v5944 = vsel %vm1001, %v5855, 0
    %v5947 = vsel %vm1001, %v5856, 0
    %v5950 = vsel %vm1001, %v5857, 0
    %v5953 = vsel %vm1001, %v5858, 0
    %v5956 = vsel %vm1001, %v5859, 0
    %v5959 = vsel %vm1001, %v5860, 0
    %v5962 = vsel %vm1001, %v5861, 0
    %v5965 = vsel %vm1001, %v5862, 0
    %5967 = vmatprep.subr.bf16.mxu0 0
    %5968 = vmatpush1.bf16.msra.mxu0 %v5865
    %5969 = vmatprep.subr.bf16.mxu0 0
    %5970 = vmatpush1.bf16.msra.mxu0 0
    %5971 = vmatprep.subr.bf16.mxu0 0
    %5972 = vmatpush1.bf16.msra.mxu0 0
    %5973 = vmatprep.subr.bf16.mxu0 0
    %5974 = vmatpush1.bf16.msra.mxu0 0
    %5975 = vmatprep.subr.bf16.mxu0 0
    %5976 = vmatpush1.bf16.msra.mxu0 0
    %5977 = vmatprep.subr.bf16.mxu0 0
    %5978 = vmatpush1.bf16.msra.mxu0 0
    %5979 = vmatprep.subr.bf16.mxu0 0
    %5980 = vmatpush1.bf16.msra.mxu0 0
    %5981 = vmatprep.subr.bf16.mxu0 0
    %5982 = vmatpush1.bf16.msra.mxu0 0
    %5983 = vmatprep.subr.bf16.mxu0 0
    %5984 = vmatpush1.bf16.msra.mxu0 0
    %5985 = vmatprep.subr.bf16.mxu0 0
    %5986 = vmatpush1.bf16.msra.mxu0 0
    %5987 = vmatprep.subr.bf16.mxu0 0
    %5988 = vmatpush1.bf16.msra.mxu0 0
    %5989 = vmatprep.subr.bf16.mxu0 0
    %5990 = vmatpush1.bf16.msra.mxu0 0
    %5991 = vmatprep.subr.bf16.mxu0 0
    %5992 = vmatpush1.bf16.msra.mxu0 0
    %5993 = vmatprep.subr.bf16.mxu0 0
    %5994 = vmatpush1.bf16.msra.mxu0 0
    %5995 = vmatprep.subr.bf16.mxu0 0
    %5996 = vmatpush1.bf16.msra.mxu0 0
    %5997 = vmatprep.subr.bf16.mxu0 0
    %5998 = vmatpush1.bf16.msra.mxu0 0
    %5999 = vmatprep.mubr.bf16.mxu0 0
    %6000 = vmatmul.mubr.bf16.gmra.mrb[0].mxu0 %v5872
    %v6001 = vpop.f32.mrb[0].mxu0
    %v6002 = vadd.f32 %v5870, %v6001
    %v6003 = vpop.f32.mrb[0].mxu0
    %v6004 = vpop.f32.mrb[0].mxu0
    %v6005 = vadd.f32 %v5870, %v6004
    %v6006 = vpop.f32.mrb[0].mxu0
    %6007 = vmatprep.mubr.bf16.mxu0 0
    %6008 = vmatmul.mubr.bf16.gmra.mrb[0].mxu0 %v5875
    %v6009 = vpop.f32.mrb[0].mxu0
    %v6010 = vadd.f32 %v5870, %v6009
    %v6011 = vpop.f32.mrb[0].mxu0
    %v6012 = vpop.f32.mrb[0].mxu0
    %v6013 = vadd.f32 %v5870, %v6012
    %v6014 = vpop.f32.mrb[0].mxu0
    %6015 = vmatprep.mubr.bf16.mxu0 0
    %6016 = vmatmul.mubr.bf16.gmra.mrb[0].mxu0 %v5878
    %v6017 = vpop.f32.mrb[0].mxu0
    %v6018 = vadd.f32 %v5870, %v6017
    %v6019 = vpop.f32.mrb[0].mxu0
    %v6020 = vpop.f32.mrb[0].mxu0
    %v6021 = vadd.f32 %v5870, %v6020
    %v6022 = vpop.f32.mrb[0].mxu0
    %6023 = vmatprep.mubr.bf16.mxu0 0
    %6024 = vmatmul.mubr.bf16.gmra.mrb[0].mxu0 %v5881
    %v6025 = vpop.f32.mrb[0].mxu0
    %v6026 = vadd.f32 %v5870, %v6025
    %v6027 = vpop.f32.mrb[0].mxu0
    %v6028 = vpop.f32.mrb[0].mxu0
    %v6029 = vadd.f32 %v5870, %v6028
    %v6030 = vpop.f32.mrb[0].mxu0
    %6031 = vmatprep.mubr.bf16.mxu0 0
    %6032 = vmatmul.mubr.bf16.gmra.mrb[0].mxu0 %v5884
    %v6033 = vpop.f32.mrb[0].mxu0
    %v6034 = vadd.f32 %v5870, %v6033
    %v6035 = vpop.f32.mrb[0].mxu0
    %v6036 = vpop.f32.mrb[0].mxu0
    %v6037 = vadd.f32 %v5870, %v6036
    %v6038 = vpop.f32.mrb[0].mxu0
    %6039 = vmatprep.mubr.bf16.mxu0 0
    %6040 = vmatmul.mubr.bf16.gmra.mrb[0].mxu0 %v5887
    %v6041 = vpop.f32.mrb[0].mxu0
    %v6042 = vadd.f32 %v5870, %v6041
    %v6043 = vpop.f32.mrb[0].mxu0
    %v6044 = vpop.f32.mrb[0].mxu0
    %v6045 = vadd.f32 %v5870, %v6044
    %v6046 = vpop.f32.mrb[0].mxu0
    %6047 = vmatprep.mubr.bf16.mxu0 0
    %6048 = vmatmul.mubr.bf16.gmra.mrb[0].mxu0 %v5890
    %v6049 = vpop.f32.mrb[0].mxu0
    %v6050 = vadd.f32 %v5870, %v6049
    %v6051 = vpop.f32.mrb[0].mxu0
    %v6052 = vpop.f32.mrb[0].mxu0
    %v6053 = vadd.f32 %v5870, %v6052
    %v6054 = vpop.f32.mrb[0].mxu0
    %6055 = vmatprep.mubr.bf16.mxu0 0
    %6056 = vmatmul.mubr.bf16.gmra.mrb[0].mxu0 %v5893
    %v6057 = vpop.f32.mrb[0].mxu0
    %v6058 = vadd.f32 %v5870, %v6057
    %v6059 = vpop.f32.mrb[0].mxu0
    %v6060 = vpop.f32.mrb[0].mxu0
    %v6061 = vadd.f32 %v5870, %v6060
    %v6062 = vpop.f32.mrb[0].mxu0
    %6063 = vmatprep.mubr.bf16.mxu0 0
    %6064 = vmatmul.mubr.bf16.gmra.mrb[0].mxu0 %v5896
    %v6065 = vpop.f32.mrb[0].mxu0
    %v6066 = vadd.f32 %v5870, %v6065
    %v6067 = vpop.f32.mrb[0].mxu0
    %v6068 = vpop.f32.mrb[0].mxu0
    %v6069 = vadd.f32 %v5870, %v6068
    %v6070 = vpop.f32.mrb[0].mxu0
    %6071 = vmatprep.mubr.bf16.mxu0 0
    %6072 = vmatmul.mubr.bf16.gmra.mrb[0].mxu0 %v5899
    %v6073 = vpop.f32.mrb[0].mxu0
    %v6074 = vadd.f32 %v5870, %v6073
    %v6075 = vpop.f32.mrb[0].mxu0
    %v6076 = vpop.f32.mrb[0].mxu0
    %v6077 = vadd.f32 %v5870, %v6076
    %v6078 = vpop.f32.mrb[0].mxu0
    %6079 = vmatprep.mubr.bf16.mxu0 0
    %6080 = vmatmul.mubr.bf16.gmra.mrb[0].mxu0 %v5902
    %v6081 = vpop.f32.mrb[0].mxu0
    %v6082 = vadd.f32 %v5870, %v6081
    %v6083 = vpop.f32.mrb[0].mxu0
    %v6084 = vpop.f32.mrb[0].mxu0
    %v6085 = vadd.f32 %v5870, %v6084
    %v6086 = vpop.f32.mrb[0].mxu0
    %6087 = vmatprep.mubr.bf16.mxu0 0
    %6088 = vmatmul.mubr.bf16.gmra.mrb[0].mxu0 %v5905
    %v6089 = vpop.f32.mrb[0].mxu0
    %v6090 = vadd.f32 %v5870, %v6089
    %v6091 = vpop.f32.mrb[0].mxu0
    %v6092 = vpop.f32.mrb[0].mxu0
    %v6093 = vadd.f32 %v5870, %v6092
    %v6094 = vpop.f32.mrb[0].mxu0
    %6095 = vmatprep.mubr.bf16.mxu0 0
    %6096 = vmatmul.mubr.bf16.gmra.mrb[0].mxu0 %v5908
    %v6097 = vpop.f32.mrb[0].mxu0
    %v6098 = vadd.f32 %v5870, %v6097
    %v6099 = vpop.f32.mrb[0].mxu0
    %v6100 = vpop.f32.mrb[0].mxu0
    %v6101 = vadd.f32 %v5870, %v6100
    %v6102 = vpop.f32.mrb[0].mxu0
    %6103 = vmatprep.mubr.bf16.mxu0 0
    %6104 = vmatmul.mubr.bf16.gmra.mrb[0].mxu0 %v5911
    %v6105 = vpop.f32.mrb[0].mxu0
    %v6106 = vadd.f32 %v5870, %v6105
    %v6107 = vpop.f32.mrb[0].mxu0
    %v6108 = vpop.f32.mrb[0].mxu0
    %v6109 = vadd.f32 %v5870, %v6108
    %v6110 = vpop.f32.mrb[0].mxu0
    %6111 = vmatprep.mubr.bf16.mxu0 0
    %6112 = vmatmul.mubr.bf16.gmra.mrb[0].mxu0 %v5914
    %v6113 = vpop.f32.mrb[0].mxu0
    %v6114 = vadd.f32 %v5870, %v6113
    %v6115 = vpop.f32.mrb[0].mxu0
    %v6116 = vpop.f32.mrb[0].mxu0
    %v6117 = vadd.f32 %v5870, %v6116
    %v6118 = vpop.f32.mrb[0].mxu0
    %6119 = vmatprep.mubr.bf16.mxu0 0
    %6120 = vmatmul.mubr.bf16.gmra.mrb[0].mxu0 %v5917
    %v6121 = vpop.f32.mrb[0].mxu0
    %v6122 = vadd.f32 %v5870, %v6121
    %v6123 = vpop.f32.mrb[0].mxu0
    %v6124 = vpop.f32.mrb[0].mxu0
    %v6125 = vadd.f32 %v5870, %v6124
    %v6126 = vpop.f32.mrb[0].mxu0
    %6127 = vmatprep.mubr.bf16.mxu0 0
    %6128 = vmatmul.mubr.bf16.gmra.mrb[0].mxu0 %v5920
    %v6129 = vpop.f32.mrb[0].mxu0
    %v6130 = vadd.f32 %v5870, %v6129
    %v6131 = vpop.f32.mrb[0].mxu0
    %v6132 = vpop.f32.mrb[0].mxu0
    %v6133 = vadd.f32 %v5870, %v6132
    %v6134 = vpop.f32.mrb[0].mxu0
    %6135 = vmatprep.mubr.bf16.mxu0 0
    %6136 = vmatmul.mubr.bf16.gmra.mrb[0].mxu0 %v5923
    %v6137 = vpop.f32.mrb[0].mxu0
    %v6138 = vadd.f32 %v5870, %v6137
    %v6139 = vpop.f32.mrb[0].mxu0
    %v6140 = vpop.f32.mrb[0].mxu0
    %v6141 = vadd.f32 %v5870, %v6140
    %v6142 = vpop.f32.mrb[0].mxu0
    %6143 = vmatprep.mubr.bf16.mxu0 0
    %6144 = vmatmul.mubr.bf16.gmra.mrb[0].mxu0 %v5926
    %v6145 = vpop.f32.mrb[0].mxu0
    %v6146 = vadd.f32 %v5870, %v6145
    %v6147 = vpop.f32.mrb[0].mxu0
    %v6148 = vpop.f32.mrb[0].mxu0
    %v6149 = vadd.f32 %v5870, %v6148
    %v6150 = vpop.f32.mrb[0].mxu0
    %6151 = vmatprep.mubr.bf16.mxu0 0
    %6152 = vmatmul.mubr.bf16.gmra.mrb[0].mxu0 %v5929
    %v6153 = vpop.f32.mrb[0].mxu0
    %v6154 = vadd.f32 %v5870, %v6153
    %v6155 = vpop.f32.mrb[0].mxu0
    %v6156 = vpop.f32.mrb[0].mxu0
    %v6157 = vadd.f32 %v5870, %v6156
    %v6158 = vpop.f32.mrb[0].mxu0
    %6159 = vmatprep.mubr.bf16.mxu0 0
    %6160 = vmatmul.mubr.bf16.gmra.mrb[0].mxu0 %v5932
    %v6161 = vpop.f32.mrb[0].mxu0
    %v6162 = vadd.f32 %v5870, %v6161
    %v6163 = vpop.f32.mrb[0].mxu0
    %v6164 = vpop.f32.mrb[0].mxu0
    %v6165 = vadd.f32 %v5870, %v6164
    %v6166 = vpop.f32.mrb[0].mxu0
    %6167 = vmatprep.mubr.bf16.mxu0 0
    %6168 = vmatmul.mubr.bf16.gmra.mrb[0].mxu0 %v5935
    %v6169 = vpop.f32.mrb[0].mxu0
    %v6170 = vadd.f32 %v5870, %v6169
    %v6171 = vpop.f32.mrb[0].mxu0
    %v6172 = vpop.f32.mrb[0].mxu0
    %v6173 = vadd.f32 %v5870, %v6172
    %v6174 = vpop.f32.mrb[0].mxu0
    %6175 = vmatprep.mubr.bf16.mxu0 0
    %6176 = vmatmul.mubr.bf16.gmra.mrb[0].mxu0 %v5938
    %v6177 = vpop.f32.mrb[0].mxu0
    %v6178 = vadd.f32 %v5870, %v6177
    %v6179 = vpop.f32.mrb[0].mxu0
    %v6180 = vpop.f32.mrb[0].mxu0
    %v6181 = vadd.f32 %v5870, %v6180
    %v6182 = vpop.f32.mrb[0].mxu0
    %6183 = vmatprep.mubr.bf16.mxu0 0
    %6184 = vmatmul.mubr.bf16.gmra.mrb[0].mxu0 %v5941
    %v6185 = vpop.f32.mrb[0].mxu0
    %v6186 = vadd.f32 %v5870, %v6185
    %v6187 = vpop.f32.mrb[0].mxu0
    %v6188 = vpop.f32.mrb[0].mxu0
    %v6189 = vadd.f32 %v5870, %v6188
    %v6190 = vpop.f32.mrb[0].mxu0
    %6191 = vmatprep.mubr.bf16.mxu0 0
    %6192 = vmatmul.mubr.bf16.gmra.mrb[0].mxu0 %v5944
    %v6193 = vpop.f32.mrb[0].mxu0
    %v6194 = vadd.f32 %v5870, %v6193
    %v6195 = vpop.f32.mrb[0].mxu0
    %v6196 = vpop.f32.mrb[0].mxu0
    %v6197 = vadd.f32 %v5870, %v6196
    %v6198 = vpop.f32.mrb[0].mxu0
    %6199 = vmatprep.mubr.bf16.mxu0 0
    %6200 = vmatmul.mubr.bf16.gmra.mrb[0].mxu0 %v5947
    %v6201 = vpop.f32.mrb[0].mxu0
    %v6202 = vadd.f32 %v5870, %v6201
    %v6203 = vpop.f32.mrb[0].mxu0
    %v6204 = vpop.f32.mrb[0].mxu0
    %v6205 = vadd.f32 %v5870, %v6204
    %v6206 = vpop.f32.mrb[0].mxu0
    %6207 = vmatprep.mubr.bf16.mxu0 0
    %6208 = vmatmul.mubr.bf16.gmra.mrb[0].mxu0 %v5950
    %v6209 = vpop.f32.mrb[0].mxu0
    %v6210 = vadd.f32 %v5870, %v6209
    %v6211 = vpop.f32.mrb[0].mxu0
    %v6212 = vpop.f32.mrb[0].mxu0
    %v6213 = vadd.f32 %v5870, %v6212
    %v6214 = vpop.f32.mrb[0].mxu0
    %6215 = vmatprep.mubr.bf16.mxu0 0
    %6216 = vmatmul.mubr.bf16.gmra.mrb[0].mxu0 %v5953
    %v6217 = vpop.f32.mrb[0].mxu0
    %v6218 = vadd.f32 %v5870, %v6217
    %v6219 = vpop.f32.mrb[0].mxu0
    %v6220 = vpop.f32.mrb[0].mxu0
    %v6221 = vadd.f32 %v5870, %v6220
    %v6222 = vpop.f32.mrb[0].mxu0
    %6223 = vmatprep.mubr.bf16.mxu0 0
    %6224 = vmatmul.mubr.bf16.gmra.mrb[0].mxu0 %v5956
    %v6225 = vpop.f32.mrb[0].mxu0
    %v6226 = vadd.f32 %v5870, %v6225
    %v6227 = vpop.f32.mrb[0].mxu0
    %v6228 = vpop.f32.mrb[0].mxu0
    %v6229 = vadd.f32 %v5870, %v6228
    %v6230 = vpop.f32.mrb[0].mxu0
    %6231 = vmatprep.mubr.bf16.mxu0 0
    %6232 = vmatmul.mubr.bf16.gmra.mrb[0].mxu0 %v5959
    %v6233 = vpop.f32.mrb[0].mxu0
    %v6234 = vadd.f32 %v5870, %v6233
    %v6235 = vpop.f32.mrb[0].mxu0
    %v6236 = vpop.f32.mrb[0].mxu0
    %v6237 = vadd.f32 %v5870, %v6236
    %v6238 = vpop.f32.mrb[0].mxu0
    %6239 = vmatprep.mubr.bf16.mxu0 0
    %6240 = vmatmul.mubr.bf16.gmra.mrb[0].mxu0 %v5962
    %v6241 = vpop.f32.mrb[0].mxu0
    %v6242 = vadd.f32 %v5870, %v6241
    %v6243 = vpop.f32.mrb[0].mxu0
    %v6244 = vpop.f32.mrb[0].mxu0
    %v6245 = vadd.f32 %v5870, %v6244
    %v6246 = vpop.f32.mrb[0].mxu0
    %6247 = vmatprep.mubr.bf16.mxu0 0
    %6248 = vmatmul.mubr.bf16.gmra.mrb[0].mxu0 %v5965
    %v6249 = vpop.f32.mrb[0].mxu0
    %v6250 = vadd.f32 %v5870, %v6249
    %v6251 = vpop.f32.mrb[0].mxu0
    %v6252 = vpop.f32.mrb[0].mxu0
    %v6253 = vadd.f32 %v5870, %v6252
    %v6254 = vpop.f32.mrb[0].mxu0
    %6255 = vdwg.mxu0
    %v6256 = vxor.u32 %v6002, 2147483648
    %v6257 = vxor.u32 %v6005, 2147483648
    %v6258 = vxor.u32 %v6010, 2147483648
    %v6259 = vxor.u32 %v6013, 2147483648
    %v6260 = vxor.u32 %v6018, 2147483648
    %v6261 = vxor.u32 %v6021, 2147483648
    %v6262 = vxor.u32 %v6026, 2147483648
    %v6263 = vxor.u32 %v6029, 2147483648
    %v6264 = vxor.u32 %v6034, 2147483648
    %v6265 = vxor.u32 %v6037, 2147483648
    %v6266 = vxor.u32 %v6042, 2147483648
    %v6267 = vxor.u32 %v6045, 2147483648
    %v6268 = vxor.u32 %v6050, 2147483648
    %v6269 = vxor.u32 %v6053, 2147483648
    %v6270 = vxor.u32 %v6058, 2147483648
    %v6271 = vxor.u32 %v6061, 2147483648
    %v6272 = vxor.u32 %v6066, 2147483648
    %v6273 = vxor.u32 %v6069, 2147483648
    %v6274 = vxor.u32 %v6074, 2147483648
    %v6275 = vxor.u32 %v6077, 2147483648
    %v6276 = vxor.u32 %v6082, 2147483648
    %v6277 = vxor.u32 %v6085, 2147483648
    %v6278 = vxor.u32 %v6090, 2147483648
    %v6279 = vxor.u32 %v6093, 2147483648
    %v6280 = vxor.u32 %v6098, 2147483648
    %v6281 = vxor.u32 %v6101, 2147483648
    %v6282 = vxor.u32 %v6106, 2147483648
    %v6283 = vxor.u32 %v6109, 2147483648
    %v6284 = vxor.u32 %v6114, 2147483648
    %v6285 = vxor.u32 %v6117, 2147483648
    %v6286 = vxor.u32 %v6122, 2147483648
    %v6287 = vxor.u32 %v6125, 2147483648
    %v6288 = vxor.u32 %v6130, 2147483648
    %v6289 = vxor.u32 %v6133, 2147483648
    %v6290 = vxor.u32 %v6138, 2147483648
    %v6291 = vxor.u32 %v6141, 2147483648
    %v6292 = vxor.u32 %v6146, 2147483648
    %v6293 = vxor.u32 %v6149, 2147483648
    %v6294 = vxor.u32 %v6154, 2147483648
    %v6295 = vxor.u32 %v6157, 2147483648
    %v6296 = vxor.u32 %v6162, 2147483648
    %v6297 = vxor.u32 %v6165, 2147483648
    %v6298 = vxor.u32 %v6170, 2147483648
    %v6299 = vxor.u32 %v6173, 2147483648
    %v6300 = vxor.u32 %v6178, 2147483648
    %v6301 = vxor.u32 %v6181, 2147483648
    %v6302 = vxor.u32 %v6186, 2147483648
    %v6303 = vxor.u32 %v6189, 2147483648
    %v6304 = vxor.u32 %v6194, 2147483648
    %v6305 = vxor.u32 %v6197, 2147483648
    %v6306 = vxor.u32 %v6202, 2147483648
    %v6307 = vxor.u32 %v6205, 2147483648
    %v6308 = vxor.u32 %v6210, 2147483648
    %v6309 = vxor.u32 %v6213, 2147483648
    %v6310 = vxor.u32 %v6218, 2147483648
    %v6311 = vxor.u32 %v6221, 2147483648
    %v6312 = vxor.u32 %v6226, 2147483648
    %v6313 = vxor.u32 %v6229, 2147483648
    %v6314 = vxor.u32 %v6234, 2147483648
    %v6315 = vxor.u32 %v6237, 2147483648
    %v6316 = vxor.u32 %v6242, 2147483648
    %v6317 = vxor.u32 %v6245, 2147483648
    %v6318 = vxor.u32 %v6250, 2147483648
    %v6319 = vxor.u32 %v6253, 2147483648
    %v6320 = vmul.f32 %v6256, 1.442695
    %v6321 = vpow.pop %v6320
    %v6322 = vmul.f32 %v6257, 1.442695
    %v6323 = vpow.pop %v6322
    %v6324 = vmul.f32 %v6258, 1.442695
    %v6325 = vpow.pop %v6324
    %v6326 = vmul.f32 %v6259, 1.442695
    %v6327 = vpow.pop %v6326
    %v6328 = vmul.f32 %v6260, 1.442695
    %v6329 = vpow.pop %v6328
    %v6330 = vmul.f32 %v6261, 1.442695
    %v6331 = vpow.pop %v6330
    %v6332 = vmul.f32 %v6262, 1.442695
    %v6333 = vpow.pop %v6332
    %v6334 = vmul.f32 %v6263, 1.442695
    %v6335 = vpow.pop %v6334
    %v6336 = vmul.f32 %v6264, 1.442695
    %v6337 = vpow.pop %v6336
    %v6338 = vmul.f32 %v6265, 1.442695
    %v6339 = vpow.pop %v6338
    %v6340 = vmul.f32 %v6266, 1.442695
    %v6341 = vpow.pop %v6340
    %v6342 = vmul.f32 %v6267, 1.442695
    %v6343 = vpow.pop %v6342
    %v6344 = vmul.f32 %v6268, 1.442695
    %v6345 = vpow.pop %v6344
    %v6346 = vmul.f32 %v6269, 1.442695
    %v6347 = vpow.pop %v6346
    %v6348 = vmul.f32 %v6270, 1.442695
    %v6349 = vpow.pop %v6348
    %v6350 = vmul.f32 %v6271, 1.442695
    %v6351 = vpow.pop %v6350
    %v6352 = vmul.f32 %v6272, 1.442695
    %v6353 = vpow.pop %v6352
    %v6354 = vmul.f32 %v6273, 1.442695
    %v6355 = vpow.pop %v6354
    %v6356 = vmul.f32 %v6274, 1.442695
    %v6357 = vpow.pop %v6356
    %v6358 = vmul.f32 %v6275, 1.442695
    %v6359 = vpow.pop %v6358
    %v6360 = vmul.f32 %v6276, 1.442695
    %v6361 = vpow.pop %v6360
    %v6362 = vmul.f32 %v6277, 1.442695
    %v6363 = vpow.pop %v6362
    %v6364 = vmul.f32 %v6278, 1.442695
    %v6365 = vpow.pop %v6364
    %v6366 = vmul.f32 %v6279, 1.442695
    %v6367 = vpow.pop %v6366
    %v6368 = vmul.f32 %v6280, 1.442695
    %v6369 = vpow.pop %v6368
    %v6370 = vmul.f32 %v6281, 1.442695
    %v6371 = vpow.pop %v6370
    %v6372 = vmul.f32 %v6282, 1.442695
    %v6373 = vpow.pop %v6372
    %v6374 = vmul.f32 %v6283, 1.442695
    %v6375 = vpow.pop %v6374
    %v6376 = vmul.f32 %v6284, 1.442695
    %v6377 = vpow.pop %v6376
    %v6378 = vmul.f32 %v6285, 1.442695
    %v6379 = vpow.pop %v6378
    %v6380 = vmul.f32 %v6286, 1.442695
    %v6381 = vpow.pop %v6380
    %v6382 = vmul.f32 %v6287, 1.442695
    %v6383 = vpow.pop %v6382
    %v6384 = vmul.f32 %v6288, 1.442695
    %v6385 = vpow.pop %v6384
    %v6386 = vmul.f32 %v6289, 1.442695
    %v6387 = vpow.pop %v6386
    %v6388 = vmul.f32 %v6290, 1.442695
    %v6389 = vpow.pop %v6388
    %v6390 = vmul.f32 %v6291, 1.442695
    %v6391 = vpow.pop %v6390
    %v6392 = vmul.f32 %v6292, 1.442695
    %v6393 = vpow.pop %v6392
    %v6394 = vmul.f32 %v6293, 1.442695
    %v6395 = vpow.pop %v6394
    %v6396 = vmul.f32 %v6294, 1.442695
    %v6397 = vpow.pop %v6396
    %v6398 = vmul.f32 %v6295, 1.442695
    %v6399 = vpow.pop %v6398
    %v6400 = vmul.f32 %v6296, 1.442695
    %v6401 = vpow.pop %v6400
    %v6402 = vmul.f32 %v6297, 1.442695
    %v6403 = vpow.pop %v6402
    %v6404 = vmul.f32 %v6298, 1.442695
    %v6405 = vpow.pop %v6404
    %v6406 = vmul.f32 %v6299, 1.442695
    %v6407 = vpow.pop %v6406
    %v6408 = vmul.f32 %v6300, 1.442695
    %v6409 = vpow.pop %v6408
    %v6410 = vmul.f32 %v6301, 1.442695
    %v6411 = vpow.pop %v6410
    %v6412 = vmul.f32 %v6302, 1.442695
    %v6413 = vpow.pop %v6412
    %v6414 = vmul.f32 %v6303, 1.442695
    %v6415 = vpow.pop %v6414
    %v6416 = vmul.f32 %v6304, 1.442695
    %v6417 = vpow.pop %v6416
    %v6418 = vmul.f32 %v6305, 1.442695
    %v6419 = vpow.pop %v6418
    %v6420 = vmul.f32 %v6306, 1.442695
    %v6421 = vpow.pop %v6420
    %v6422 = vmul.f32 %v6307, 1.442695
    %v6423 = vpow.pop %v6422
    %v6424 = vmul.f32 %v6308, 1.442695
    %v6425 = vpow.pop %v6424
    %v6426 = vmul.f32 %v6309, 1.442695
    %v6427 = vpow.pop %v6426
    %v6428 = vmul.f32 %v6310, 1.442695
    %v6429 = vpow.pop %v6428
    %v6430 = vmul.f32 %v6311, 1.442695
    %v6431 = vpow.pop %v6430
    %v6432 = vmul.f32 %v6312, 1.442695
    %v6433 = vpow.pop %v6432
    %v6434 = vmul.f32 %v6313, 1.442695
    %v6435 = vpow.pop %v6434
    %v6436 = vmul.f32 %v6314, 1.442695
    %v6437 = vpow.pop %v6436
    %v6438 = vmul.f32 %v6315, 1.442695
    %v6439 = vpow.pop %v6438
    %v6440 = vmul.f32 %v6316, 1.442695
    %v6441 = vpow.pop %v6440
    %v6442 = vmul.f32 %v6317, 1.442695
    %v6443 = vpow.pop %v6442
    %v6444 = vmul.f32 %v6318, 1.442695
    %v6445 = vpow.pop %v6444
    %v6446 = vmul.f32 %v6319, 1.442695
    %v6447 = vpow.pop %v6446
    %v6448 = vadd.f32 %v6321, 1.0
    %v6449 = vadd.f32 %v6323, 1.0
    %v6450 = vadd.f32 %v6325, 1.0
    %v6451 = vadd.f32 %v6327, 1.0
    %v6452 = vadd.f32 %v6329, 1.0
    %v6453 = vadd.f32 %v6331, 1.0
    %v6454 = vadd.f32 %v6333, 1.0
    %v6455 = vadd.f32 %v6335, 1.0
    %v6456 = vadd.f32 %v6337, 1.0
    %v6457 = vadd.f32 %v6339, 1.0
    %v6458 = vadd.f32 %v6341, 1.0
    %v6459 = vadd.f32 %v6343, 1.0
    %v6460 = vadd.f32 %v6345, 1.0
    %v6461 = vadd.f32 %v6347, 1.0
    %v6462 = vadd.f32 %v6349, 1.0
    %v6463 = vadd.f32 %v6351, 1.0
    %v6464 = vadd.f32 %v6353, 1.0
    %v6465 = vadd.f32 %v6355, 1.0
    %v6466 = vadd.f32 %v6357, 1.0
    %v6467 = vadd.f32 %v6359, 1.0
    %v6468 = vadd.f32 %v6361, 1.0
    %v6469 = vadd.f32 %v6363, 1.0
    %v6470 = vadd.f32 %v6365, 1.0
    %v6471 = vadd.f32 %v6367, 1.0
    %v6472 = vadd.f32 %v6369, 1.0
    %v6473 = vadd.f32 %v6371, 1.0
    %v6474 = vadd.f32 %v6373, 1.0
    %v6475 = vadd.f32 %v6375, 1.0
    %v6476 = vadd.f32 %v6377, 1.0
    %v6477 = vadd.f32 %v6379, 1.0
    %v6478 = vadd.f32 %v6381, 1.0
    %v6479 = vadd.f32 %v6383, 1.0
    %v6480 = vadd.f32 %v6385, 1.0
    %v6481 = vadd.f32 %v6387, 1.0
    %v6482 = vadd.f32 %v6389, 1.0
    %v6483 = vadd.f32 %v6391, 1.0
    %v6484 = vadd.f32 %v6393, 1.0
    %v6485 = vadd.f32 %v6395, 1.0
    %v6486 = vadd.f32 %v6397, 1.0
    %v6487 = vadd.f32 %v6399, 1.0
    %v6488 = vadd.f32 %v6401, 1.0
    %v6489 = vadd.f32 %v6403, 1.0
    %v6490 = vadd.f32 %v6405, 1.0
    %v6491 = vadd.f32 %v6407, 1.0
    %v6492 = vadd.f32 %v6409, 1.0
    %v6493 = vadd.f32 %v6411, 1.0
    %v6494 = vadd.f32 %v6413, 1.0
    %v6495 = vadd.f32 %v6415, 1.0
    %v6496 = vadd.f32 %v6417, 1.0
    %v6497 = vadd.f32 %v6419, 1.0
    %v6498 = vadd.f32 %v6421, 1.0
    %v6499 = vadd.f32 %v6423, 1.0
    %v6500 = vadd.f32 %v6425, 1.0
    %v6501 = vadd.f32 %v6427, 1.0
    %v6502 = vadd.f32 %v6429, 1.0
    %v6503 = vadd.f32 %v6431, 1.0
    %v6504 = vadd.f32 %v6433, 1.0
    %v6505 = vadd.f32 %v6435, 1.0
    %v6506 = vadd.f32 %v6437, 1.0
    %v6507 = vadd.f32 %v6439, 1.0
    %v6508 = vadd.f32 %v6441, 1.0
    %v6509 = vadd.f32 %v6443, 1.0
    %v6510 = vadd.f32 %v6445, 1.0
    %v6511 = vadd.f32 %v6447, 1.0
    %v6512 = vrcp.pop %v6448
    %v6513 = vmul.f32 1.0, %v6512
    %v6514 = vrcp.pop %v6449
    %v6515 = vmul.f32 1.0, %v6514
    %v6516 = vrcp.pop %v6450
    %v6517 = vmul.f32 1.0, %v6516
    %v6518 = vrcp.pop %v6451
    %v6519 = vmul.f32 1.0, %v6518
    %v6520 = vrcp.pop %v6452
    %v6521 = vmul.f32 1.0, %v6520
    %v6522 = vrcp.pop %v6453
    %v6523 = vmul.f32 1.0, %v6522
    %v6524 = vrcp.pop %v6454
    %v6525 = vmul.f32 1.0, %v6524
    %v6526 = vrcp.pop %v6455
    %v6527 = vmul.f32 1.0, %v6526
    %v6528 = vrcp.pop %v6456
    %v6529 = vmul.f32 1.0, %v6528
    %v6530 = vrcp.pop %v6457
    %v6531 = vmul.f32 1.0, %v6530
    %v6532 = vrcp.pop %v6458
    %v6533 = vmul.f32 1.0, %v6532
    %v6534 = vrcp.pop %v6459
    %v6535 = vmul.f32 1.0, %v6534
    %v6536 = vrcp.pop %v6460
    %v6537 = vmul.f32 1.0, %v6536
    %v6538 = vrcp.pop %v6461
    %v6539 = vmul.f32 1.0, %v6538
    %v6540 = vrcp.pop %v6462
    %v6541 = vmul.f32 1.0, %v6540
    %v6542 = vrcp.pop %v6463
    %v6543 = vmul.f32 1.0, %v6542
    %v6544 = vrcp.pop %v6464
    %v6545 = vmul.f32 1.0, %v6544
    %v6546 = vrcp.pop %v6465
    %v6547 = vmul.f32 1.0, %v6546
    %v6548 = vrcp.pop %v6466
    %v6549 = vmul.f32 1.0, %v6548
    %v6550 = vrcp.pop %v6467
    %v6551 = vmul.f32 1.0, %v6550
    %v6552 = vrcp.pop %v6468
    %v6553 = vmul.f32 1.0, %v6552
    %v6554 = vrcp.pop %v6469
    %v6555 = vmul.f32 1.0, %v6554
    %v6556 = vrcp.pop %v6470
    %v6557 = vmul.f32 1.0, %v6556
    %v6558 = vrcp.pop %v6471
    %v6559 = vmul.f32 1.0, %v6558
    %v6560 = vrcp.pop %v6472
    %v6561 = vmul.f32 1.0, %v6560
    %v6562 = vrcp.pop %v6473
    %v6563 = vmul.f32 1.0, %v6562
    %v6564 = vrcp.pop %v6474
    %v6565 = vmul.f32 1.0, %v6564
    %v6566 = vrcp.pop %v6475
    %v6567 = vmul.f32 1.0, %v6566
    %v6568 = vrcp.pop %v6476
    %v6569 = vmul.f32 1.0, %v6568
    %v6570 = vrcp.pop %v6477
    %v6571 = vmul.f32 1.0, %v6570
    %v6572 = vrcp.pop %v6478
    %v6573 = vmul.f32 1.0, %v6572
    %v6574 = vrcp.pop %v6479
    %v6575 = vmul.f32 1.0, %v6574
    %v6576 = vrcp.pop %v6480
    %v6577 = vmul.f32 1.0, %v6576
    %v6578 = vrcp.pop %v6481
    %v6579 = vmul.f32 1.0, %v6578
    %v6580 = vrcp.pop %v6482
    %v6581 = vmul.f32 1.0, %v6580
    %v6582 = vrcp.pop %v6483
    %v6583 = vmul.f32 1.0, %v6582
    %v6584 = vrcp.pop %v6484
    %v6585 = vmul.f32 1.0, %v6584
    %v6586 = vrcp.pop %v6485
    %v6587 = vmul.f32 1.0, %v6586
    %v6588 = vrcp.pop %v6486
    %v6589 = vmul.f32 1.0, %v6588
    %v6590 = vrcp.pop %v6487
    %v6591 = vmul.f32 1.0, %v6590
    %v6592 = vrcp.pop %v6488
    %v6593 = vmul.f32 1.0, %v6592
    %v6594 = vrcp.pop %v6489
    %v6595 = vmul.f32 1.0, %v6594
    %v6596 = vrcp.pop %v6490
    %v6597 = vmul.f32 1.0, %v6596
    %v6598 = vrcp.pop %v6491
    %v6599 = vmul.f32 1.0, %v6598
    %v6600 = vrcp.pop %v6492
    %v6601 = vmul.f32 1.0, %v6600
    %v6602 = vrcp.pop %v6493
    %v6603 = vmul.f32 1.0, %v6602
    %v6604 = vrcp.pop %v6494
    %v6605 = vmul.f32 1.0, %v6604
    %v6606 = vrcp.pop %v6495
    %v6607 = vmul.f32 1.0, %v6606
    %v6608 = vrcp.pop %v6496
    %v6609 = vmul.f32 1.0, %v6608
    %v6610 = vrcp.pop %v6497
    %v6611 = vmul.f32 1.0, %v6610
    %v6612 = vrcp.pop %v6498
    %v6613 = vmul.f32 1.0, %v6612
    %v6614 = vrcp.pop %v6499
    %v6615 = vmul.f32 1.0, %v6614
    %v6616 = vrcp.pop %v6500
    %v6617 = vmul.f32 1.0, %v6616
    %v6618 = vrcp.pop %v6501
    %v6619 = vmul.f32 1.0, %v6618
    %v6620 = vrcp.pop %v6502
    %v6621 = vmul.f32 1.0, %v6620
    %v6622 = vrcp.pop %v6503
    %v6623 = vmul.f32 1.0, %v6622
    %v6624 = vrcp.pop %v6504
    %v6625 = vmul.f32 1.0, %v6624
    %v6626 = vrcp.pop %v6505
    %v6627 = vmul.f32 1.0, %v6626
    %v6628 = vrcp.pop %v6506
    %v6629 = vmul.f32 1.0, %v6628
    %v6630 = vrcp.pop %v6507
    %v6631 = vmul.f32 1.0, %v6630
    %v6632 = vrcp.pop %v6508
    %v6633 = vmul.f32 1.0, %v6632
    %v6634 = vrcp.pop %v6509
    %v6635 = vmul.f32 1.0, %v6634
    %v6636 = vrcp.pop %v6510
    %v6637 = vmul.f32 1.0, %v6636
    %v6638 = vrcp.pop %v6511
    %v6639 = vmul.f32 1.0, %v6638
    %v6640 = vmul.f32 %v6002, %v6513
    %v6641 = vmul.f32 %v6005, %v6515
    %v6642 = vmul.f32 %v6010, %v6517
    %v6643 = vmul.f32 %v6013, %v6519
    %v6644 = vmul.f32 %v6018, %v6521
    %v6645 = vmul.f32 %v6021, %v6523
    %v6646 = vmul.f32 %v6026, %v6525
    %v6647 = vmul.f32 %v6029, %v6527
    %v6648 = vmul.f32 %v6034, %v6529
    %v6649 = vmul.f32 %v6037, %v6531
    %v6650 = vmul.f32 %v6042, %v6533
    %v6651 = vmul.f32 %v6045, %v6535
    %v6652 = vmul.f32 %v6050, %v6537
    %v6653 = vmul.f32 %v6053, %v6539
    %v6654 = vmul.f32 %v6058, %v6541
    %v6655 = vmul.f32 %v6061, %v6543
    %v6656 = vmul.f32 %v6066, %v6545
    %v6657 = vmul.f32 %v6069, %v6547
    %v6658 = vmul.f32 %v6074, %v6549
    %v6659 = vmul.f32 %v6077, %v6551
    %v6660 = vmul.f32 %v6082, %v6553
    %v6661 = vmul.f32 %v6085, %v6555
    %v6662 = vmul.f32 %v6090, %v6557
    %v6663 = vmul.f32 %v6093, %v6559
    %v6664 = vmul.f32 %v6098, %v6561
    %v6665 = vmul.f32 %v6101, %v6563
    %v6666 = vmul.f32 %v6106, %v6565
    %v6667 = vmul.f32 %v6109, %v6567
    %v6668 = vmul.f32 %v6114, %v6569
    %v6669 = vmul.f32 %v6117, %v6571
    %v6670 = vmul.f32 %v6122, %v6573
    %v6671 = vmul.f32 %v6125, %v6575
    %v6672 = vmul.f32 %v6130, %v6577
    %v6673 = vmul.f32 %v6133, %v6579
    %v6674 = vmul.f32 %v6138, %v6581
    %v6675 = vmul.f32 %v6141, %v6583
    %v6676 = vmul.f32 %v6146, %v6585
    %v6677 = vmul.f32 %v6149, %v6587
    %v6678 = vmul.f32 %v6154, %v6589
    %v6679 = vmul.f32 %v6157, %v6591
    %v6680 = vmul.f32 %v6162, %v6593
    %v6681 = vmul.f32 %v6165, %v6595
    %v6682 = vmul.f32 %v6170, %v6597
    %v6683 = vmul.f32 %v6173, %v6599
    %v6684 = vmul.f32 %v6178, %v6601
    %v6685 = vmul.f32 %v6181, %v6603
    %v6686 = vmul.f32 %v6186, %v6605
    %v6687 = vmul.f32 %v6189, %v6607
    %v6688 = vmul.f32 %v6194, %v6609
    %v6689 = vmul.f32 %v6197, %v6611
    %v6690 = vmul.f32 %v6202, %v6613
    %v6691 = vmul.f32 %v6205, %v6615
    %v6692 = vmul.f32 %v6210, %v6617
    %v6693 = vmul.f32 %v6213, %v6619
    %v6694 = vmul.f32 %v6218, %v6621
    %v6695 = vmul.f32 %v6221, %v6623
    %v6696 = vmul.f32 %v6226, %v6625
    %v6697 = vmul.f32 %v6229, %v6627
    %v6698 = vmul.f32 %v6234, %v6629
    %v6699 = vmul.f32 %v6237, %v6631
    %v6700 = vmul.f32 %v6242, %v6633
    %v6701 = vmul.f32 %v6245, %v6635
    %v6702 = vmul.f32 %v6250, %v6637
    %v6703 = vmul.f32 %v6253, %v6639
    %v6704 = vsel %vm1835, %v6640, 0.0
    %v6705 = vsel %vm1835, %v6641, 0.0
    %v6706 = vadd.f32 %v6704, %v6705
    %v6707 = vsel %vm1835, %v6642, 0.0
    %v6708 = vadd.f32 %v6706, %v6707
    %v6709 = vsel %vm1835, %v6643, 0.0
    %v6710 = vadd.f32 %v6708, %v6709
    %v6711 = vsel %vm1835, %v6644, 0.0
    %v6712 = vadd.f32 %v6710, %v6711
    %v6713 = vsel %vm1835, %v6645, 0.0
    %v6714 = vadd.f32 %v6712, %v6713
    %v6715 = vsel %vm1835, %v6646, 0.0
    %v6716 = vadd.f32 %v6714, %v6715
    %v6717 = vsel %vm1835, %v6647, 0.0
    %v6718 = vadd.f32 %v6716, %v6717
    %v6719 = vsel %vm1835, %v6648, 0.0
    %v6720 = vadd.f32 %v6718, %v6719
    %v6721 = vsel %vm1835, %v6649, 0.0
    %v6722 = vadd.f32 %v6720, %v6721
    %v6723 = vsel %vm1835, %v6650, 0.0
    %v6724 = vadd.f32 %v6722, %v6723
    %v6725 = vsel %vm1835, %v6651, 0.0
    %v6726 = vadd.f32 %v6724, %v6725
    %v6727 = vsel %vm1835, %v6652, 0.0
    %v6728 = vadd.f32 %v6726, %v6727
    %v6729 = vsel %vm1835, %v6653, 0.0
    %v6730 = vadd.f32 %v6728, %v6729
    %v6731 = vsel %vm1835, %v6654, 0.0
    %v6732 = vadd.f32 %v6730, %v6731
    %v6733 = vsel %vm1835, %v6655, 0.0
    %v6734 = vadd.f32 %v6732, %v6733
    %v6735 = vsel %vm1835, %v6656, 0.0
    %v6736 = vadd.f32 %v6734, %v6735
    %v6737 = vsel %vm1835, %v6657, 0.0
    %v6738 = vadd.f32 %v6736, %v6737
    %v6739 = vsel %vm1835, %v6658, 0.0
    %v6740 = vadd.f32 %v6738, %v6739
    %v6741 = vsel %vm1835, %v6659, 0.0
    %v6742 = vadd.f32 %v6740, %v6741
    %v6743 = vsel %vm1835, %v6660, 0.0
    %v6744 = vadd.f32 %v6742, %v6743
    %v6745 = vsel %vm1835, %v6661, 0.0
    %v6746 = vadd.f32 %v6744, %v6745
    %v6747 = vsel %vm1835, %v6662, 0.0
    %v6748 = vadd.f32 %v6746, %v6747
    %v6749 = vsel %vm1835, %v6663, 0.0
    %v6750 = vadd.f32 %v6748, %v6749
    %v6751 = vsel %vm1835, %v6664, 0.0
    %v6752 = vadd.f32 %v6750, %v6751
    %v6753 = vsel %vm1835, %v6665, 0.0
    %v6754 = vadd.f32 %v6752, %v6753
    %v6755 = vsel %vm1835, %v6666, 0.0
    %v6756 = vadd.f32 %v6754, %v6755
    %v6757 = vsel %vm1835, %v6667, 0.0
    %v6758 = vadd.f32 %v6756, %v6757
    %v6759 = vsel %vm1835, %v6668, 0.0
    %v6760 = vadd.f32 %v6758, %v6759
    %v6761 = vsel %vm1835, %v6669, 0.0
    %v6762 = vadd.f32 %v6760, %v6761
    %v6763 = vsel %vm1835, %v6670, 0.0
    %v6764 = vadd.f32 %v6762, %v6763
    %v6765 = vsel %vm1835, %v6671, 0.0
    %v6766 = vadd.f32 %v6764, %v6765
    %v6767 = vrot.slane %v6766, 4
    %v6768 = vadd.f32 %v6766, %v6767
    %v6769 = vrot.slane %v6768, 2
    %v6770 = vadd.f32 %v6768, %v6769
    %v6771 = vrot.slane %v6770, 1
    %v6772 = vadd.f32 %v6770, %v6771
    %v6773 = vsel %vm1835, %v6672, 0.0
    %v6774 = vsel %vm1835, %v6673, 0.0
    %v6775 = vadd.f32 %v6773, %v6774
    %v6776 = vsel %vm1835, %v6674, 0.0
    %v6777 = vadd.f32 %v6775, %v6776
    %v6778 = vsel %vm1835, %v6675, 0.0
    %v6779 = vadd.f32 %v6777, %v6778
    %v6780 = vsel %vm1835, %v6676, 0.0
    %v6781 = vadd.f32 %v6779, %v6780
    %v6782 = vsel %vm1835, %v6677, 0.0
    %v6783 = vadd.f32 %v6781, %v6782
    %v6784 = vsel %vm1835, %v6678, 0.0
    %v6785 = vadd.f32 %v6783, %v6784
    %v6786 = vsel %vm1835, %v6679, 0.0
    %v6787 = vadd.f32 %v6785, %v6786
    %v6788 = vsel %vm1835, %v6680, 0.0
    %v6789 = vadd.f32 %v6787, %v6788
    %v6790 = vsel %vm1835, %v6681, 0.0
    %v6791 = vadd.f32 %v6789, %v6790
    %v6792 = vsel %vm1835, %v6682, 0.0
    %v6793 = vadd.f32 %v6791, %v6792
    %v6794 = vsel %vm1835, %v6683, 0.0
    %v6795 = vadd.f32 %v6793, %v6794
    %v6796 = vsel %vm1835, %v6684, 0.0
    %v6797 = vadd.f32 %v6795, %v6796
    %v6798 = vsel %vm1835, %v6685, 0.0
    %v6799 = vadd.f32 %v6797, %v6798
    %v6800 = vsel %vm1835, %v6686, 0.0
    %v6801 = vadd.f32 %v6799, %v6800
    %v6802 = vsel %vm1835, %v6687, 0.0
    %v6803 = vadd.f32 %v6801, %v6802
    %v6804 = vsel %vm1835, %v6688, 0.0
    %v6805 = vadd.f32 %v6803, %v6804
    %v6806 = vsel %vm1835, %v6689, 0.0
    %v6807 = vadd.f32 %v6805, %v6806
    %v6808 = vsel %vm1835, %v6690, 0.0
    %v6809 = vadd.f32 %v6807, %v6808
    %v6810 = vsel %vm1835, %v6691, 0.0
    %v6811 = vadd.f32 %v6809, %v6810
    %v6812 = vsel %vm1835, %v6692, 0.0
    %v6813 = vadd.f32 %v6811, %v6812
    %v6814 = vsel %vm1835, %v6693, 0.0
    %v6815 = vadd.f32 %v6813, %v6814
    %v6816 = vsel %vm1835, %v6694, 0.0
    %v6817 = vadd.f32 %v6815, %v6816
    %v6818 = vsel %vm1835, %v6695, 0.0
    %v6819 = vadd.f32 %v6817, %v6818
    %v6820 = vsel %vm1835, %v6696, 0.0
    %v6821 = vadd.f32 %v6819, %v6820
    %v6822 = vsel %vm1835, %v6697, 0.0
    %v6823 = vadd.f32 %v6821, %v6822
    %v6824 = vsel %vm1835, %v6698, 0.0
    %v6825 = vadd.f32 %v6823, %v6824
    %v6826 = vsel %vm1835, %v6699, 0.0
    %v6827 = vadd.f32 %v6825, %v6826
    %v6828 = vsel %vm1835, %v6700, 0.0
    %v6829 = vadd.f32 %v6827, %v6828
    %v6830 = vsel %vm1835, %v6701, 0.0
    %v6831 = vadd.f32 %v6829, %v6830
    %v6832 = vsel %vm1835, %v6702, 0.0
    %v6833 = vadd.f32 %v6831, %v6832
    %v6834 = vsel %vm1835, %v6703, 0.0
    %v6835 = vadd.f32 %v6833, %v6834
    %v6836 = vrot.slane %v6835, 4
    %v6837 = vadd.f32 %v6835, %v6836
    %v6838 = vrot.slane %v6837, 2
    %v6839 = vadd.f32 %v6837, %v6838
    %v6840 = vrot.slane %v6839, 1
    %v6841 = vadd.f32 %v6839, %v6840
    %v6842 = vmul.f32 %v6772, %v5176
    %v6843 = vmul.f32 %v6841, %v5176
    %v6844 = vpack.c.bf16 %v6842, %v6842
    %v6845 = vpack.c.bf16 %v6843, %v6843
    %v6846 = vld [vmem:[%s1 + $0xd8] sm:$0xff]
    %v6847 = vld [vmem:[%s1 + $0xe0] sm:$0xff]
    %v6848 = vld [vmem:[%s1 + $0xe8] sm:$0xff]
    %v6849 = vld [vmem:[%s1 + $0xf0] sm:$0xff]
    %v6850 = vld [vmem:[%s1 + $0xf8] sm:$0xff]
    %v6851 = vld [vmem:[%s1 + $0x100] sm:$0xff]
    %v6852 = vld [vmem:[%s1 + $0x108] sm:$0xff]
    %v6853 = vld [vmem:[%s1 + $0x110] sm:$0xff]
    %v6854 = vpack.c.bf16 %v6847, %v6846
    %v6855 = vpack.c.bf16 %v6849, %v6848
    %v6856 = vpack.c.bf16 %v6851, %v6850
    %v6857 = vpack.c.bf16 %v6853, %v6852
    %v6858 = vld [vmem:[%s1 + $0x118] sm:$0x1]
    %v6859 = vlaneseq
    %v6860 = vshrl.u32 %v6859, 7
    %v6861 = vsub.s32 0, %v6860
    %v6862 = vrot.slane %v6858, %v6861
    %v6865 = vunpack.c.l.b16 %v6844
    %v6866 = vunpack.c.l.b16 %v6845
    %vm6867 = vcmask 1041409
    %v6868 = vsel %vm6867, %v6866, %v6865
    %v6869 = vpack.c.b16 %v6868, %v6868
    %v6871 = vsel %vm1835, %v6869, 0
    %6873 = vmatprep.subr.bf16.mxu0 0
    %6874 = vmatpush1.bf16.msra.mxu0 %v6854
    %6875 = vmatprep.subr.bf16.mxu0 0
    %6876 = vmatpush1.bf16.msra.mxu0 %v6855
    %6877 = vmatprep.subr.bf16.mxu0 0
    %6878 = vmatpush1.bf16.msra.mxu0 %v6856
    %6879 = vmatprep.subr.bf16.mxu0 0
    %6880 = vmatpush1.bf16.msra.mxu0 %v6857
    %6881 = vmatprep.subr.bf16.mxu0 0
    %6882 = vmatpush1.bf16.msra.mxu0 0
    %6883 = vmatprep.subr.bf16.mxu0 0
    %6884 = vmatpush1.bf16.msra.mxu0 0
    %6885 = vmatprep.subr.bf16.mxu0 0
    %6886 = vmatpush1.bf16.msra.mxu0 0
    %6887 = vmatprep.subr.bf16.mxu0 0
    %6888 = vmatpush1.bf16.msra.mxu0 0
    %6889 = vmatprep.subr.bf16.mxu0 0
    %6890 = vmatpush1.bf16.msra.mxu0 0
    %6891 = vmatprep.subr.bf16.mxu0 0
    %6892 = vmatpush1.bf16.msra.mxu0 0
    %6893 = vmatprep.subr.bf16.mxu0 0
    %6894 = vmatpush1.bf16.msra.mxu0 0
    %6895 = vmatprep.subr.bf16.mxu0 0
    %6896 = vmatpush1.bf16.msra.mxu0 0
    %6897 = vmatprep.subr.bf16.mxu0 0
    %6898 = vmatpush1.bf16.msra.mxu0 0
    %6899 = vmatprep.subr.bf16.mxu0 0
    %6900 = vmatpush1.bf16.msra.mxu0 0
    %6901 = vmatprep.subr.bf16.mxu0 0
    %6902 = vmatpush1.bf16.msra.mxu0 0
    %6903 = vmatprep.subr.bf16.mxu0 0
    %6904 = vmatpush1.bf16.msra.mxu0 0
    %6905 = vmatprep.mubr.bf16.mxu0 0
    %6906 = vmatmul.mubr.bf16.gmra.mrb[0].mxu0 %v6871
    %v6907 = vpop.f32.mrb[0].mxu0
    %v6908 = vadd.f32 %v6862, %v6907
    %v6909 = vpop.f32.mrb[0].mxu0
    %v6910 = vpop.f32.mrb[0].mxu0
    %v6911 = vpop.f32.mrb[0].mxu0
    %6912 = vdwg.mxu0
    %v6913 = vmax.f32 %v6908, 0.0
    %v6914 = vpack.c.bf16 %v6913, %v6913
    %v6915 = vld [vmem:[%s1 + $0x120] sm:$0xff]
    %v6916 = vld [vmem:[%s1 + $0x128] sm:$0xff]
    %v6917 = vld [vmem:[%s1 + $0x130] sm:$0xff]
    %v6918 = vld [vmem:[%s1 + $0x138] sm:$0xff]
    %v6919 = vpack.c.bf16 %v6916, %v6915
    %v6920 = vpack.c.bf16 %v6918, %v6917
    %v6921 = vld [vmem:[%s1 + $0x140] sm:$0x1]
    %v6922 = vlaneseq
    %v6923 = vshrl.u32 %v6922, 7
    %v6924 = vsub.s32 0, %v6923
    %v6925 = vrot.slane %v6921, %v6924
    %vm6926 = vcmask 261120
    %v6928 = vsel %vm6926, %v6914, 0
    %6930 = vmatprep.subr.bf16.mxu0 0
    %6931 = vmatpush1.bf16.msra.mxu0 %v6919
    %6932 = vmatprep.subr.bf16.mxu0 0
    %6933 = vmatpush1.bf16.msra.mxu0 %v6920
    %6934 = vmatprep.subr.bf16.mxu0 0
    %6935 = vmatpush1.bf16.msra.mxu0 0
    %6936 = vmatprep.subr.bf16.mxu0 0
    %6937 = vmatpush1.bf16.msra.mxu0 0
    %6938 = vmatprep.subr.bf16.mxu0 0
    %6939 = vmatpush1.bf16.msra.mxu0 0
    %6940 = vmatprep.subr.bf16.mxu0 0
    %6941 = vmatpush1.bf16.msra.mxu0 0
    %6942 = vmatprep.subr.bf16.mxu0 0
    %6943 = vmatpush1.bf16.msra.mxu0 0
    %6944 = vmatprep.subr.bf16.mxu0 0
    %6945 = vmatpush1.bf16.msra.mxu0 0
    %6946 = vmatprep.subr.bf16.mxu0 0
    %6947 = vmatpush1.bf16.msra.mxu0 0
    %6948 = vmatprep.subr.bf16.mxu0 0
    %6949 = vmatpush1.bf16.msra.mxu0 0
    %6950 = vmatprep.subr.bf16.mxu0 0
    %6951 = vmatpush1.bf16.msra.mxu0 0
    %6952 = vmatprep.subr.bf16.mxu0 0
    %6953 = vmatpush1.bf16.msra.mxu0 0
    %6954 = vmatprep.subr.bf16.mxu0 0
    %6955 = vmatpush1.bf16.msra.mxu0 0
    %6956 = vmatprep.subr.bf16.mxu0 0
    %6957 = vmatpush1.bf16.msra.mxu0 0
    %6958 = vmatprep.subr.bf16.mxu0 0
    %6959 = vmatpush1.bf16.msra.mxu0 0
    %6960 = vmatprep.subr.bf16.mxu0 0
    %6961 = vmatpush1.bf16.msra.mxu0 0
    %6962 = vmatprep.mubr.bf16.mxu0 0
    %6963 = vmatmul.mubr.bf16.gmra.mrb[0].mxu0 %v6928
    %v6964 = vpop.f32.mrb[0].mxu0
    %v6965 = vadd.f32 %v6925, %v6964
    %v6966 = vpop.f32.mrb[0].mxu0
    %v6967 = vpop.f32.mrb[0].mxu0
    %v6968 = vpop.f32.mrb[0].mxu0
    %6969 = vdwg.mxu0
    %vm6970 = vcmask 1041408
    %v6971 = vsel %vm6970, %v6965, -inf
    %6972 = vmax.xlane.f32.xlu0 %v6971
    %v6973 = vpop.xlane.xlu0 %6972
    %v6974 = vsub.f32 %v6965, %v6973
    %v6975 = vmul.f32 %v6974, 1.442695
    %v6976 = vpow.pop %v6975
    %v6977 = vsel %vm6970, %v6976, 0.0
    %6978 = vadd.xlane.f32.xlu0 %v6977
    %v6979 = vpop.xlane.xlu0 %6978
    %v6980 = vlog2.pop %v6979
    %v6981 = vmul.f32 %v6980, 0.6931472
    %v6982 = vadd.f32 %v6973, %v6981
    %v6983 = vsub.f32 %v6965, %v6982
    %6984 = vst [vmem:[#allocation3] sm:$0x3] %v6983
    // Predicated region
    $region10: #{efficientnet_forward.1} parent=1 // pred_check
      _
    $region11: #{efficientnet_forward.1} parent=1 // pred_check_branch
      %6986 = sbr.rel (0) target = $region13
    $region12: #{efficientnet_forward.1} parent=1 // pred_region
      %s6988 = ssub.s32 32, 32
      %6989 = vsyncadd [#allocation4], %s6988
      %s6991 = sshll.u32 [#allocation3], 4
      %s6992 = int_to_ptr.vmem [resolvable:$true] %s6991
      %6994 = dma.vmem_to_hbm [thread:$0]  %s6992, 32, %s2, [#allocation4]
    $region13: #{efficientnet_forward.1} parent=1 // pred_fallthru
      _
    // Predicated region
    $region14: #{efficientnet_forward.1} parent=1 // pred_check
      _
    $region15: #{efficientnet_forward.1} parent=1 // pred_check_branch
      %6996 = sbr.rel (0) target = $region17
    $region16: #{efficientnet_forward.1} parent=1 // pred_region
      %6997 = dma.done [#allocation4], 32
    $region17: #{efficientnet_forward.1} parent=1 // pred_fallthru
      _
    %6998 = vsyncpa [#allocation4], 1

</llo_original>
